<compile_context>
chip_gen: v5e
topology: v5e:2x2
jax: 0.10.0
libtpu: 0.0.40
codegen_flags: <defaults>
</compile_context>

<pallas_src>
import jax
import jax.numpy as jnp
from jax.experimental import pallas as pl
from jax.experimental.pallas import tpu as pltpu

IMG = 16                      # image_height == image_width
C = 3                         # conv_channels
K1, K2 = 4, 2                 # conv kernel sizes
H1 = IMG - K1 + 1             # 13  (conv1 output)
P1 = (H1 - 2) // 2 + 1        # 6   (pool1 output, kernel 2 stride 2)
H2 = P1 - K2 + 1              # 5   (conv2 output)
P2 = H2 - 2 + 1               # 4   (pool2 output, kernel 2 stride 1)
CONV_FEATURES = C * P2 * P2   # 48
OUT_FEATURES = IMG * IMG      # 256
HIDDEN = 32
BATCH = 2


# ---------------------------------------------------------------------------
# Fused kernel: conv stack + flatten/encoder + reparameterize + decoder.
#
# Image data arrives as space-to-depth parity planes with layout
#   xp[pr, pc, r, b, c] = x[b, 0, 2*r + pr, 2*c + pc]        (2, 2, 8, BT, 8)
# (batch on the sublane axis, image rows on the leading, shift-free axis).
# ---------------------------------------------------------------------------
def _vae_kernel(xp_ref, eps_ref, w1_ref, b1_ref, w2_ref, b2_ref,
                we_ref, be_ref, wd1_ref, bd1_ref, wd2_ref, bd2_ref,
                xprime_ref, enc_ref):
    # ---- load the four parity planes: each (8, BT, 8) ----------------------
    planes = [[xp_ref[pr, pc] for pc in range(2)] for pr in range(2)]

    # Memoized contiguous (6, BT, 6) windows of the parity planes: each
    # distinct window is traced once and reused by every output channel and
    # every 2x2 pool tap.
    win1 = {}

    def window1(rp, cp, s, t):
        key = (rp, cp, s, t)
        if key not in win1:
            win1[key] = planes[rp][cp][s:s + P1, :, t:t + P1]
        return win1[key]

    # ---- conv1 (1->3, 4x4, s1) fused with maxpool(2, stride 2) + ReLU ------
    # pool1[i, j] = max_{di,dj} relu(conv1[2i+di, 2j+dj]); in parity-plane
    # coordinates every needed value is a contiguous window, so the stride-2
    # downsample is free.  Bias is tap-invariant -> added once after the max.
    p1 = []
    for co in range(C):
        pooled = None
        for di in range(2):
            for dj in range(2):
                acc = None
                for ki in range(K1):
                    for kj in range(K1):
                        ar, ac = di + ki, dj + kj
                        term = w1_ref[co, ki * K1 + kj] * window1(
                            ar % 2, ac % 2, ar // 2, ac // 2)
                        acc = term if acc is None else acc + term
                pooled = acc if pooled is None else jnp.maximum(pooled, acc)
        p1.append(jnp.maximum(pooled + b1_ref[co], 0.0))          # (6, BT, 6)

    # ---- conv2 (3->3, 2x2, s1) + ReLU + maxpool(2, stride 1) ---------------
    # The flatten + encoder matmul is fused right here: each pooled (BT, 4)
    # row-piece is multiplied against the matching (4, 64) slice of the fused
    # [we1 | we2] weight (pre-reshaped to (12, 4, 64) in the wrapper) and
    # accumulated in f32.  No flatten scratch, no masked stores.
    win2 = {}
    for ci in range(C):
        for ki in range(K2):
            for kj in range(K2):
                win2[(ci, ki, kj)] = p1[ci][ki:ki + H2, :, kj:kj + H2]  # (5,BT,5)

    enc_acc = None
    for co in range(C):
        acc = None
        for ci in range(C):
            for ki in range(K2):
                for kj in range(K2):
                    term = (w2_ref[co, ci * K2 * K2 + ki * K2 + kj]
                            * win2[(ci, ki, kj)])
                    acc = term if acc is None else acc + term
        c2 = jnp.maximum(acc + b2_ref[co], 0.0)                   # (5, BT, 5)
        m = jnp.maximum(
            jnp.maximum(c2[0:P2, :, 0:P2], c2[0:P2, :, 1:P2 + 1]),
            jnp.maximum(c2[1:P2 + 1, :, 0:P2], c2[1:P2 + 1, :, 1:P2 + 1]))
        for i in range(P2):                                       # m[i]: (BT, 4)
            p = co * P2 + i                                       # torch flatten order
            t = jnp.dot(m[i].astype(jnp.bfloat16), we_ref[p],
                        preferred_element_type=jnp.float32)       # (BT, 64)
            enc_acc = t if enc_acc is None else enc_acc + t

    # ---- dense head: encoder bias, reparameterize, decoder -----------------
    enc = enc_acc + be_ref[...]                                   # (BT, 64) = [mean|logvar]
    mean = enc[:, :HIDDEN]
    logvar = enc[:, HIDDEN:]
    z = mean + eps_ref[...] * jnp.exp(0.5 * logvar)               # reparameterize
    h1 = jnp.maximum(
        jnp.dot(z.astype(jnp.bfloat16), wd1_ref[...],
                preferred_element_type=jnp.float32) + bd1_ref[...], 0.0)
    logits = jnp.dot(h1.astype(jnp.bfloat16), wd2_ref[...],
                     preferred_element_type=jnp.float32) + bd2_ref[...]
    xprime_ref[...] = 1.0 / (1.0 + jnp.exp(-logits))              # exact sigmoid
    enc_ref[...] = enc


# ---------------------------------------------------------------------------
# Wrapper
# ---------------------------------------------------------------------------
def vae_forward(x, params, eps):
    B = x.shape[0]
    BT = B if B <= 8 else 8           # batch tile (sublane-sized for big B)
    assert B % BT == 0

    # Space-to-depth layout plumbing (XLA side, ~2 KiB):
    #   xp[pr, pc, r, b, c] = x[b, 0, 2*r + pr, 2*c + pc]
    xr = x[:, 0]                                                   # (B, 16, 16)
    xp = jnp.stack(
        [jnp.stack([xr[:, pr::2, pc::2] for pc in range(2)], axis=0)
         for pr in range(2)], axis=0)                              # (2,2,B,8,8)
    xp = jnp.transpose(xp, (0, 1, 3, 2, 4))                        # (2,2,8,B,8)

    # Fuse encoder_fc1 / encoder_fc2 into one weight; reshape to (12, 4, 64)
    # so the kernel consumes it with free leading-axis indexing.  Dense-head
    # weights are pre-cast to bf16 (f32 MXU accumulation kept in-kernel).
    we = jnp.concatenate([params["we1"], params["we2"]], axis=1)   # (48, 64)
    be = jnp.concatenate([params["be1"], params["be2"]], axis=1)   # (1, 64)
    we3 = we.reshape(C * P2, P2, 2 * HIDDEN).astype(jnp.bfloat16)  # (12, 4, 64)
    wd1 = params["wd1"].astype(jnp.bfloat16)                       # (32, 48)
    wd2 = params["wd2"].astype(jnp.bfloat16)                       # (48, 256)

    smem = pl.BlockSpec(memory_space=pltpu.MemorySpace.SMEM)

    def full_block(shape):
        return pl.BlockSpec(shape, lambda i, _s=shape: (0,) * len(_s))

    x_prime, enc = pl.pallas_call(
        _vae_kernel,
        grid=(B // BT,),
        out_shape=(
            jax.ShapeDtypeStruct((B, OUT_FEATURES), jnp.float32),
            jax.ShapeDtypeStruct((B, 2 * HIDDEN), jnp.float32),
        ),
        in_specs=[
            pl.BlockSpec((2, 2, IMG // 2, BT, IMG // 2),
                         lambda i: (0, 0, 0, i, 0)),               # xp
            pl.BlockSpec((BT, HIDDEN), lambda i: (i, 0)),          # eps
            smem, smem, smem, smem,                                # conv scalars
            full_block((C * P2, P2, 2 * HIDDEN)),                  # we3 (bf16)
            full_block((1, 2 * HIDDEN)),                           # be
            full_block((HIDDEN, CONV_FEATURES)),                   # wd1 (bf16)
            full_block((1, CONV_FEATURES)),                        # bd1
            full_block((CONV_FEATURES, OUT_FEATURES)),             # wd2 (bf16)
            full_block((1, OUT_FEATURES)),                         # bd2
        ],
        out_specs=(
            pl.BlockSpec((BT, OUT_FEATURES), lambda i: (i, 0)),
            pl.BlockSpec((BT, 2 * HIDDEN), lambda i: (i, 0)),
        ),
        compiler_params=pltpu.CompilerParams(
            dimension_semantics=("parallel",)),                    # 2 TCs on v7x
    )(xp, eps, params["w1"], params["b1"], params["w2"], params["b2"],
      we3, be, wd1, params["bd1"], wd2, params["bd2"])

    mean = enc[:, :HIDDEN]
    logvar = enc[:, HIDDEN:]
    # matches torch forward: (x_prime, input, mean, variance)
    return x_prime, x, mean, logvar


# ---------------------------------------------------------------------------
# Pure-JAX (XLA) reference of the PyTorch module, used only for validation.
# ---------------------------------------------------------------------------
def vae_reference(x, params, eps):
    B = x.shape[0]
    w1 = params["w1"].reshape(C, 1, K1, K1)
    w2 = params["w2"].reshape(C, C, K2, K2)
    dn = ("NCHW", "OIHW", "NCHW")
    y = jax.lax.conv_general_dilated(x, w1, (1, 1), "VALID", dimension_numbers=dn)
    y = jax.nn.relu(y + params["b1"][None, :, None, None])
    y = jax.lax.reduce_window(y, -jnp.inf, jax.lax.max,
                              (1, 1, 2, 2), (1, 1, 2, 2), "VALID")
    y = jax.lax.conv_general_dilated(y, w2, (1, 1), "VALID", dimension_numbers=dn)
    y = jax.nn.relu(y + params["b2"][None, :, None, None])
    y = jax.lax.reduce_window(y, -jnp.inf, jax.lax.max,
                              (1, 1, 2, 2), (1, 1, 1, 1), "VALID")
    h = y.reshape(B, CONV_FEATURES)
    mean = h @ params["we1"] + params["be1"]
    logvar = h @ params["we2"] + params["be2"]
    z = mean + eps * jnp.exp(0.5 * logvar)
    h1 = jax.nn.relu(z @ params["wd1"] + params["bd1"])
    x_prime = jax.nn.sigmoid(h1 @ params["wd2"] + params["bd2"])
    return x_prime, mean, logvar


def init_params(key):
    """Deterministic synthetic init (PyTorch-style uniform(-1/sqrt(fan_in)))."""
    ks = jax.random.split(key, 12)

    def u(k, shape, fan_in):
        bound = 1.0 / (fan_in ** 0.5)
        return jax.random.uniform(k, shape, jnp.float32, -bound, bound)

    w1 = u(ks[0], (C, 1, K1, K1), 1 * K1 * K1)
    b1 = u(ks[1], (C,), 1 * K1 * K1)
    w2 = u(ks[2], (C, C, K2, K2), C * K2 * K2)
    b2 = u(ks[3], (C,), C * K2 * K2)
    # FC weights are stored pre-transposed as (in, out) so the kernel does h @ W.
    we1 = u(ks[4], (CONV_FEATURES, HIDDEN), CONV_FEATURES)
    be1 = u(ks[5], (1, HIDDEN), CONV_FEATURES)
    we2 = u(ks[6], (CONV_FEATURES, HIDDEN), CONV_FEATURES)
    be2 = u(ks[7], (1, HIDDEN), CONV_FEATURES)
    wd1 = u(ks[8], (HIDDEN, CONV_FEATURES), HIDDEN)
    bd1 = u(ks[9], (1, CONV_FEATURES), HIDDEN)
    wd2 = u(ks[10], (CONV_FEATURES, OUT_FEATURES), CONV_FEATURES)
    bd2 = u(ks[11], (1, OUT_FEATURES), CONV_FEATURES)

    return dict(
        w1=w1.reshape(C, K1 * K1),            # [co, ki*4 + kj]
        b1=b1,
        w2=w2.reshape(C, C * K2 * K2),        # [co, ci*4 + ki*2 + kj]
        b2=b2,
        we1=we1, be1=be1, we2=we2, be2=be2,
        wd1=wd1, bd1=bd1, wd2=wd2, bd2=bd2,
    )


if __name__ == "__main__":
    key = jax.random.PRNGKey(0)
    kx, keps, kp = jax.random.split(key, 3)

    x = jax.random.uniform(kx, (BATCH, 1, IMG, IMG), jnp.float32)   # NCHW "image"
    eps = jax.random.normal(keps, (BATCH, HIDDEN), jnp.float32)     # reparam noise
    params = init_params(kp)

    fwd = jax.jit(vae_forward)
    out = fwd(x, params, eps)
    jax.block_until_ready(out)

    x_prime, x_in, mean, logvar = out
    assert x_prime.shape == (BATCH, OUT_FEATURES)
    assert mean.shape == (BATCH, HIDDEN) and logvar.shape == (BATCH, HIDDEN)
    assert x_in.shape == x.shape

    # Loose-tolerance validation against the pure-XLA reference (bf16 MXU
    # operands with f32 accumulation in the Pallas dense head).
    ref_xp, ref_mean, ref_logvar = vae_reference(x, params, eps)
    assert bool(jnp.allclose(mean, ref_mean, atol=3e-2, rtol=3e-2))
    assert bool(jnp.allclose(logvar, ref_logvar, atol=3e-2, rtol=3e-2))
    assert bool(jnp.allclose(x_prime, ref_xp, atol=3e-2, rtol=3e-2))

    print("KERNEL_OK")
</pallas_src>

<mosaic_0001>
module attributes {stable_mosaic.version = 11 : i64} {
  func.func @_vae_kernel(%arg0: i32, %arg1: memref<2x2x8x2x8xf32, #tpu.memory_space<vmem>>, %arg2: memref<2x32xf32, #tpu.memory_space<vmem>>, %arg3: memref<3x16xf32, #tpu.memory_space<smem>>, %arg4: memref<3xf32, #tpu.memory_space<smem>>, %arg5: memref<3x12xf32, #tpu.memory_space<smem>>, %arg6: memref<3xf32, #tpu.memory_space<smem>>, %arg7: memref<12x4x64xbf16, #tpu.memory_space<vmem>>, %arg8: memref<1x64xf32, #tpu.memory_space<vmem>>, %arg9: memref<32x48xbf16, #tpu.memory_space<vmem>>, %arg10: memref<1x48xf32, #tpu.memory_space<vmem>>, %arg11: memref<48x256xbf16, #tpu.memory_space<vmem>>, %arg12: memref<1x256xf32, #tpu.memory_space<vmem>>, %arg13: memref<2x256xf32, #tpu.memory_space<vmem>>, %arg14: memref<2x64xf32, #tpu.memory_space<vmem>>) attributes {dimension_semantics = [#tpu.dimension_semantics<parallel>], iteration_bounds = array<i64: 1>, scalar_prefetch = 0 : i64, scratch_operands = 0 : i64, tpu.core_type = #tpu.core_type<tc>, window_params = [{transform_indices = @transform_0, window_bounds = array<i64: 2, 2, 8, 2, 8>}, {transform_indices = @transform_1, window_bounds = array<i64: 2, 32>}, {transform_indices = @transform_2, window_bounds = array<i64: 3, 16>}, {transform_indices = @transform_3, window_bounds = array<i64: 3>}, {transform_indices = @transform_4, window_bounds = array<i64: 3, 12>}, {transform_indices = @transform_5, window_bounds = array<i64: 3>}, {pipeline_mode = #tpu.pipeline_mode<synchronous>, transform_indices = @transform_6, window_bounds = array<i64: 12, 4, 64>}, {pipeline_mode = #tpu.pipeline_mode<synchronous>, transform_indices = @transform_7, window_bounds = array<i64: 1, 64>}, {pipeline_mode = #tpu.pipeline_mode<synchronous>, transform_indices = @transform_8, window_bounds = array<i64: 32, 48>}, {pipeline_mode = #tpu.pipeline_mode<synchronous>, transform_indices = @transform_9, window_bounds = array<i64: 1, 48>}, {pipeline_mode = #tpu.pipeline_mode<synchronous>, transform_indices = @transform_10, window_bounds = array<i64: 48, 256>}, {pipeline_mode = #tpu.pipeline_mode<synchronous>, transform_indices = @transform_11, window_bounds = array<i64: 1, 256>}, {transform_indices = @transform_12, window_bounds = array<i64: 2, 256>}, {transform_indices = @transform_13, window_bounds = array<i64: 2, 64>}]} {
    %c0 = arith.constant 0 : index
    %c0_0 = arith.constant 0 : index
    %c0_1 = arith.constant 0 : index
    %c0_2 = arith.constant 0 : index
    %c0_3 = arith.constant 0 : index
    %0 = vector.load %arg1[%c0, %c0_0, %c0_1, %c0_2, %c0_3] : memref<2x2x8x2x8xf32, #tpu.memory_space<vmem>>, vector<1x1x8x2x8xf32>
    %1 = vector.shape_cast %0 : vector<1x1x8x2x8xf32> to vector<8x2x8xf32>
    %c0_4 = arith.constant 0 : index
    %c1 = arith.constant 1 : index
    %c0_5 = arith.constant 0 : index
    %c0_6 = arith.constant 0 : index
    %c0_7 = arith.constant 0 : index
    %2 = vector.load %arg1[%c0_4, %c1, %c0_5, %c0_6, %c0_7] : memref<2x2x8x2x8xf32, #tpu.memory_space<vmem>>, vector<1x1x8x2x8xf32>
    %3 = vector.shape_cast %2 : vector<1x1x8x2x8xf32> to vector<8x2x8xf32>
    %c1_8 = arith.constant 1 : index
    %c0_9 = arith.constant 0 : index
    %c0_10 = arith.constant 0 : index
    %c0_11 = arith.constant 0 : index
    %c0_12 = arith.constant 0 : index
    %4 = vector.load %arg1[%c1_8, %c0_9, %c0_10, %c0_11, %c0_12] : memref<2x2x8x2x8xf32, #tpu.memory_space<vmem>>, vector<1x1x8x2x8xf32>
    %5 = vector.shape_cast %4 : vector<1x1x8x2x8xf32> to vector<8x2x8xf32>
    %c1_13 = arith.constant 1 : index
    %c1_14 = arith.constant 1 : index
    %c0_15 = arith.constant 0 : index
    %c0_16 = arith.constant 0 : index
    %c0_17 = arith.constant 0 : index
    %6 = vector.load %arg1[%c1_13, %c1_14, %c0_15, %c0_16, %c0_17] : memref<2x2x8x2x8xf32, #tpu.memory_space<vmem>>, vector<1x1x8x2x8xf32>
    %7 = vector.shape_cast %6 : vector<1x1x8x2x8xf32> to vector<8x2x8xf32>
    %c0_18 = arith.constant 0 : index
    %c0_19 = arith.constant 0 : index
    %8 = memref.load %arg3[%c0_18, %c0_19] : memref<3x16xf32, #tpu.memory_space<smem>>
    %9 = vector.extract_strided_slice %1 {offsets = [0, 0, 0], sizes = [6, 2, 6], strides = [1, 1, 1]} : vector<8x2x8xf32> to vector<6x2x6xf32>
    %10 = vector.broadcast %8 : f32 to vector<6x2x6xf32>
    %11 = arith.mulf %10, %9 : vector<6x2x6xf32>
    %c0_20 = arith.constant 0 : index
    %c1_21 = arith.constant 1 : index
    %12 = memref.load %arg3[%c0_20, %c1_21] : memref<3x16xf32, #tpu.memory_space<smem>>
    %13 = vector.extract_strided_slice %3 {offsets = [0, 0, 0], sizes = [6, 2, 6], strides = [1, 1, 1]} : vector<8x2x8xf32> to vector<6x2x6xf32>
    %14 = vector.broadcast %12 : f32 to vector<6x2x6xf32>
    %15 = arith.mulf %14, %13 : vector<6x2x6xf32>
    %16 = arith.addf %11, %15 : vector<6x2x6xf32>
    %c0_22 = arith.constant 0 : index
    %c2 = arith.constant 2 : index
    %17 = memref.load %arg3[%c0_22, %c2] : memref<3x16xf32, #tpu.memory_space<smem>>
    %18 = vector.extract_strided_slice %1 {offsets = [0, 0, 1], sizes = [6, 2, 6], strides = [1, 1, 1]} : vector<8x2x8xf32> to vector<6x2x6xf32>
    %19 = vector.broadcast %17 : f32 to vector<6x2x6xf32>
    %20 = arith.mulf %19, %18 : vector<6x2x6xf32>
    %21 = arith.addf %16, %20 : vector<6x2x6xf32>
    %c0_23 = arith.constant 0 : index
    %c3 = arith.constant 3 : index
    %22 = memref.load %arg3[%c0_23, %c3] : memref<3x16xf32, #tpu.memory_space<smem>>
    %23 = vector.extract_strided_slice %3 {offsets = [0, 0, 1], sizes = [6, 2, 6], strides = [1, 1, 1]} : vector<8x2x8xf32> to vector<6x2x6xf32>
    %24 = vector.broadcast %22 : f32 to vector<6x2x6xf32>
    %25 = arith.mulf %24, %23 : vector<6x2x6xf32>
    %26 = arith.addf %21, %25 : vector<6x2x6xf32>
    %c0_24 = arith.constant 0 : index
    %c4 = arith.constant 4 : index
    %27 = memref.load %arg3[%c0_24, %c4] : memref<3x16xf32, #tpu.memory_space<smem>>
    %28 = vector.extract_strided_slice %5 {offsets = [0, 0, 0], sizes = [6, 2, 6], strides = [1, 1, 1]} : vector<8x2x8xf32> to vector<6x2x6xf32>
    %29 = vector.broadcast %27 : f32 to vector<6x2x6xf32>
    %30 = arith.mulf %29, %28 : vector<6x2x6xf32>
    %31 = arith.addf %26, %30 : vector<6x2x6xf32>
    %c0_25 = arith.constant 0 : index
    %c5 = arith.constant 5 : index
    %32 = memref.load %arg3[%c0_25, %c5] : memref<3x16xf32, #tpu.memory_space<smem>>
    %33 = vector.extract_strided_slice %7 {offsets = [0, 0, 0], sizes = [6, 2, 6], strides = [1, 1, 1]} : vector<8x2x8xf32> to vector<6x2x6xf32>
    %34 = vector.broadcast %32 : f32 to vector<6x2x6xf32>
    %35 = arith.mulf %34, %33 : vector<6x2x6xf32>
    %36 = arith.addf %31, %35 : vector<6x2x6xf32>
    %c0_26 = arith.constant 0 : index
    %c6 = arith.constant 6 : index
    %37 = memref.load %arg3[%c0_26, %c6] : memref<3x16xf32, #tpu.memory_space<smem>>
    %38 = vector.extract_strided_slice %5 {offsets = [0, 0, 1], sizes = [6, 2, 6], strides = [1, 1, 1]} : vector<8x2x8xf32> to vector<6x2x6xf32>
    %39 = vector.broadcast %37 : f32 to vector<6x2x6xf32>
    %40 = arith.mulf %39, %38 : vector<6x2x6xf32>
    %41 = arith.addf %36, %40 : vector<6x2x6xf32>
    %c0_27 = arith.constant 0 : index
    %c7 = arith.constant 7 : index
    %42 = memref.load %arg3[%c0_27, %c7] : memref<3x16xf32, #tpu.memory_space<smem>>
    %43 = vector.extract_strided_slice %7 {offsets = [0, 0, 1], sizes = [6, 2, 6], strides = [1, 1, 1]} : vector<8x2x8xf32> to vector<6x2x6xf32>
    %44 = vector.broadcast %42 : f32 to vector<6x2x6xf32>
    %45 = arith.mulf %44, %43 : vector<6x2x6xf32>
    %46 = arith.addf %41, %45 : vector<6x2x6xf32>
    %c0_28 = arith.constant 0 : index
    %c8 = arith.constant 8 : index
    %47 = memref.load %arg3[%c0_28, %c8] : memref<3x16xf32, #tpu.memory_space<smem>>
    %48 = vector.extract_strided_slice %1 {offsets = [1, 0, 0], sizes = [6, 2, 6], strides = [1, 1, 1]} : vector<8x2x8xf32> to vector<6x2x6xf32>
    %49 = vector.broadcast %47 : f32 to vector<6x2x6xf32>
    %50 = arith.mulf %49, %48 : vector<6x2x6xf32>
    %51 = arith.addf %46, %50 : vector<6x2x6xf32>
    %c0_29 = arith.constant 0 : index
    %c9 = arith.constant 9 : index
    %52 = memref.load %arg3[%c0_29, %c9] : memref<3x16xf32, #tpu.memory_space<smem>>
    %53 = vector.extract_strided_slice %3 {offsets = [1, 0, 0], sizes = [6, 2, 6], strides = [1, 1, 1]} : vector<8x2x8xf32> to vector<6x2x6xf32>
    %54 = vector.broadcast %52 : f32 to vector<6x2x6xf32>
    %55 = arith.mulf %54, %53 : vector<6x2x6xf32>
    %56 = arith.addf %51, %55 : vector<6x2x6xf32>
    %c0_30 = arith.constant 0 : index
    %c10 = arith.constant 10 : index
    %57 = memref.load %arg3[%c0_30, %c10] : memref<3x16xf32, #tpu.memory_space<smem>>
    %58 = vector.extract_strided_slice %1 {offsets = [1, 0, 1], sizes = [6, 2, 6], strides = [1, 1, 1]} : vector<8x2x8xf32> to vector<6x2x6xf32>
    %59 = vector.broadcast %57 : f32 to vector<6x2x6xf32>
    %60 = arith.mulf %59, %58 : vector<6x2x6xf32>
    %61 = arith.addf %56, %60 : vector<6x2x6xf32>
    %c0_31 = arith.constant 0 : index
    %c11 = arith.constant 11 : index
    %62 = memref.load %arg3[%c0_31, %c11] : memref<3x16xf32, #tpu.memory_space<smem>>
    %63 = vector.extract_strided_slice %3 {offsets = [1, 0, 1], sizes = [6, 2, 6], strides = [1, 1, 1]} : vector<8x2x8xf32> to vector<6x2x6xf32>
    %64 = vector.broadcast %62 : f32 to vector<6x2x6xf32>
    %65 = arith.mulf %64, %63 : vector<6x2x6xf32>
    %66 = arith.addf %61, %65 : vector<6x2x6xf32>
    %c0_32 = arith.constant 0 : index
    %c12 = arith.constant 12 : index
    %67 = memref.load %arg3[%c0_32, %c12] : memref<3x16xf32, #tpu.memory_space<smem>>
    %68 = vector.extract_strided_slice %5 {offsets = [1, 0, 0], sizes = [6, 2, 6], strides = [1, 1, 1]} : vector<8x2x8xf32> to vector<6x2x6xf32>
    %69 = vector.broadcast %67 : f32 to vector<6x2x6xf32>
    %70 = arith.mulf %69, %68 : vector<6x2x6xf32>
    %71 = arith.addf %66, %70 : vector<6x2x6xf32>
    %c0_33 = arith.constant 0 : index
    %c13 = arith.constant 13 : index
    %72 = memref.load %arg3[%c0_33, %c13] : memref<3x16xf32, #tpu.memory_space<smem>>
    %73 = vector.extract_strided_slice %7 {offsets = [1, 0, 0], sizes = [6, 2, 6], strides = [1, 1, 1]} : vector<8x2x8xf32> to vector<6x2x6xf32>
    %74 = vector.broadcast %72 : f32 to vector<6x2x6xf32>
    %75 = arith.mulf %74, %73 : vector<6x2x6xf32>
    %76 = arith.addf %71, %75 : vector<6x2x6xf32>
    %c0_34 = arith.constant 0 : index
    %c14 = arith.constant 14 : index
    %77 = memref.load %arg3[%c0_34, %c14] : memref<3x16xf32, #tpu.memory_space<smem>>
    %78 = vector.extract_strided_slice %5 {offsets = [1, 0, 1], sizes = [6, 2, 6], strides = [1, 1, 1]} : vector<8x2x8xf32> to vector<6x2x6xf32>
    %79 = vector.broadcast %77 : f32 to vector<6x2x6xf32>
    %80 = arith.mulf %79, %78 : vector<6x2x6xf32>
    %81 = arith.addf %76, %80 : vector<6x2x6xf32>
    %c0_35 = arith.constant 0 : index
    %c15 = arith.constant 15 : index
    %82 = memref.load %arg3[%c0_35, %c15] : memref<3x16xf32, #tpu.memory_space<smem>>
    %83 = vector.extract_strided_slice %7 {offsets = [1, 0, 1], sizes = [6, 2, 6], strides = [1, 1, 1]} : vector<8x2x8xf32> to vector<6x2x6xf32>
    %84 = vector.broadcast %82 : f32 to vector<6x2x6xf32>
    %85 = arith.mulf %84, %83 : vector<6x2x6xf32>
    %86 = arith.addf %81, %85 : vector<6x2x6xf32>
    %c0_36 = arith.constant 0 : index
    %c0_37 = arith.constant 0 : index
    %87 = memref.load %arg3[%c0_36, %c0_37] : memref<3x16xf32, #tpu.memory_space<smem>>
    %88 = vector.broadcast %87 : f32 to vector<6x2x6xf32>
    %89 = arith.mulf %88, %13 : vector<6x2x6xf32>
    %c0_38 = arith.constant 0 : index
    %c1_39 = arith.constant 1 : index
    %90 = memref.load %arg3[%c0_38, %c1_39] : memref<3x16xf32, #tpu.memory_space<smem>>
    %91 = vector.broadcast %90 : f32 to vector<6x2x6xf32>
    %92 = arith.mulf %91, %18 : vector<6x2x6xf32>
    %93 = arith.addf %89, %92 : vector<6x2x6xf32>
    %c0_40 = arith.constant 0 : index
    %c2_41 = arith.constant 2 : index
    %94 = memref.load %arg3[%c0_40, %c2_41] : memref<3x16xf32, #tpu.memory_space<smem>>
    %95 = vector.broadcast %94 : f32 to vector<6x2x6xf32>
    %96 = arith.mulf %95, %23 : vector<6x2x6xf32>
    %97 = arith.addf %93, %96 : vector<6x2x6xf32>
    %c0_42 = arith.constant 0 : index
    %c3_43 = arith.constant 3 : index
    %98 = memref.load %arg3[%c0_42, %c3_43] : memref<3x16xf32, #tpu.memory_space<smem>>
    %99 = vector.extract_strided_slice %1 {offsets = [0, 0, 2], sizes = [6, 2, 6], strides = [1, 1, 1]} : vector<8x2x8xf32> to vector<6x2x6xf32>
    %100 = vector.broadcast %98 : f32 to vector<6x2x6xf32>
    %101 = arith.mulf %100, %99 : vector<6x2x6xf32>
    %102 = arith.addf %97, %101 : vector<6x2x6xf32>
    %c0_44 = arith.constant 0 : index
    %c4_45 = arith.constant 4 : index
    %103 = memref.load %arg3[%c0_44, %c4_45] : memref<3x16xf32, #tpu.memory_space<smem>>
    %104 = vector.broadcast %103 : f32 to vector<6x2x6xf32>
    %105 = arith.mulf %104, %33 : vector<6x2x6xf32>
    %106 = arith.addf %102, %105 : vector<6x2x6xf32>
    %c0_46 = arith.constant 0 : index
    %c5_47 = arith.constant 5 : index
    %107 = memref.load %arg3[%c0_46, %c5_47] : memref<3x16xf32, #tpu.memory_space<smem>>
    %108 = vector.broadcast %107 : f32 to vector<6x2x6xf32>
    %109 = arith.mulf %108, %38 : vector<6x2x6xf32>
    %110 = arith.addf %106, %109 : vector<6x2x6xf32>
    %c0_48 = arith.constant 0 : index
    %c6_49 = arith.constant 6 : index
    %111 = memref.load %arg3[%c0_48, %c6_49] : memref<3x16xf32, #tpu.memory_space<smem>>
    %112 = vector.broadcast %111 : f32 to vector<6x2x6xf32>
    %113 = arith.mulf %112, %43 : vector<6x2x6xf32>
    %114 = arith.addf %110, %113 : vector<6x2x6xf32>
    %c0_50 = arith.constant 0 : index
    %c7_51 = arith.constant 7 : index
    %115 = memref.load %arg3[%c0_50, %c7_51] : memref<3x16xf32, #tpu.memory_space<smem>>
    %116 = vector.extract_strided_slice %5 {offsets = [0, 0, 2], sizes = [6, 2, 6], strides = [1, 1, 1]} : vector<8x2x8xf32> to vector<6x2x6xf32>
    %117 = vector.broadcast %115 : f32 to vector<6x2x6xf32>
    %118 = arith.mulf %117, %116 : vector<6x2x6xf32>
    %119 = arith.addf %114, %118 : vector<6x2x6xf32>
    %c0_52 = arith.constant 0 : index
    %c8_53 = arith.constant 8 : index
    %120 = memref.load %arg3[%c0_52, %c8_53] : memref<3x16xf32, #tpu.memory_space<smem>>
    %121 = vector.broadcast %120 : f32 to vector<6x2x6xf32>
    %122 = arith.mulf %121, %53 : vector<6x2x6xf32>
    %123 = arith.addf %119, %122 : vector<6x2x6xf32>
    %c0_54 = arith.constant 0 : index
    %c9_55 = arith.constant 9 : index
    %124 = memref.load %arg3[%c0_54, %c9_55] : memref<3x16xf32, #tpu.memory_space<smem>>
    %125 = vector.broadcast %124 : f32 to vector<6x2x6xf32>
    %126 = arith.mulf %125, %58 : vector<6x2x6xf32>
    %127 = arith.addf %123, %126 : vector<6x2x6xf32>
    %c0_56 = arith.constant 0 : index
    %c10_57 = arith.constant 10 : index
    %128 = memref.load %arg3[%c0_56, %c10_57] : memref<3x16xf32, #tpu.memory_space<smem>>
    %129 = vector.broadcast %128 : f32 to vector<6x2x6xf32>
    %130 = arith.mulf %129, %63 : vector<6x2x6xf32>
    %131 = arith.addf %127, %130 : vector<6x2x6xf32>
    %c0_58 = arith.constant 0 : index
    %c11_59 = arith.constant 11 : index
    %132 = memref.load %arg3[%c0_58, %c11_59] : memref<3x16xf32, #tpu.memory_space<smem>>
    %133 = vector.extract_strided_slice %1 {offsets = [1, 0, 2], sizes = [6, 2, 6], strides = [1, 1, 1]} : vector<8x2x8xf32> to vector<6x2x6xf32>
    %134 = vector.broadcast %132 : f32 to vector<6x2x6xf32>
    %135 = arith.mulf %134, %133 : vector<6x2x6xf32>
    %136 = arith.addf %131, %135 : vector<6x2x6xf32>
    %c0_60 = arith.constant 0 : index
    %c12_61 = arith.constant 12 : index
    %137 = memref.load %arg3[%c0_60, %c12_61] : memref<3x16xf32, #tpu.memory_space<smem>>
    %138 = vector.broadcast %137 : f32 to vector<6x2x6xf32>
    %139 = arith.mulf %138, %73 : vector<6x2x6xf32>
    %140 = arith.addf %136, %139 : vector<6x2x6xf32>
    %c0_62 = arith.constant 0 : index
    %c13_63 = arith.constant 13 : index
    %141 = memref.load %arg3[%c0_62, %c13_63] : memref<3x16xf32, #tpu.memory_space<smem>>
    %142 = vector.broadcast %141 : f32 to vector<6x2x6xf32>
    %143 = arith.mulf %142, %78 : vector<6x2x6xf32>
    %144 = arith.addf %140, %143 : vector<6x2x6xf32>
    %c0_64 = arith.constant 0 : index
    %c14_65 = arith.constant 14 : index
    %145 = memref.load %arg3[%c0_64, %c14_65] : memref<3x16xf32, #tpu.memory_space<smem>>
    %146 = vector.broadcast %145 : f32 to vector<6x2x6xf32>
    %147 = arith.mulf %146, %83 : vector<6x2x6xf32>
    %148 = arith.addf %144, %147 : vector<6x2x6xf32>
    %c0_66 = arith.constant 0 : index
    %c15_67 = arith.constant 15 : index
    %149 = memref.load %arg3[%c0_66, %c15_67] : memref<3x16xf32, #tpu.memory_space<smem>>
    %150 = vector.extract_strided_slice %5 {offsets = [1, 0, 2], sizes = [6, 2, 6], strides = [1, 1, 1]} : vector<8x2x8xf32> to vector<6x2x6xf32>
    %151 = vector.broadcast %149 : f32 to vector<6x2x6xf32>
    %152 = arith.mulf %151, %150 : vector<6x2x6xf32>
    %153 = arith.addf %148, %152 : vector<6x2x6xf32>
    %154 = arith.maximumf %86, %153 : vector<6x2x6xf32>
    %c0_68 = arith.constant 0 : index
    %c0_69 = arith.constant 0 : index
    %155 = memref.load %arg3[%c0_68, %c0_69] : memref<3x16xf32, #tpu.memory_space<smem>>
    %156 = vector.broadcast %155 : f32 to vector<6x2x6xf32>
    %157 = arith.mulf %156, %28 : vector<6x2x6xf32>
    %c0_70 = arith.constant 0 : index
    %c1_71 = arith.constant 1 : index
    %158 = memref.load %arg3[%c0_70, %c1_71] : memref<3x16xf32, #tpu.memory_space<smem>>
    %159 = vector.broadcast %158 : f32 to vector<6x2x6xf32>
    %160 = arith.mulf %159, %33 : vector<6x2x6xf32>
    %161 = arith.addf %157, %160 : vector<6x2x6xf32>
    %c0_72 = arith.constant 0 : index
    %c2_73 = arith.constant 2 : index
    %162 = memref.load %arg3[%c0_72, %c2_73] : memref<3x16xf32, #tpu.memory_space<smem>>
    %163 = vector.broadcast %162 : f32 to vector<6x2x6xf32>
    %164 = arith.mulf %163, %38 : vector<6x2x6xf32>
    %165 = arith.addf %161, %164 : vector<6x2x6xf32>
    %c0_74 = arith.constant 0 : index
    %c3_75 = arith.constant 3 : index
    %166 = memref.load %arg3[%c0_74, %c3_75] : memref<3x16xf32, #tpu.memory_space<smem>>
    %167 = vector.broadcast %166 : f32 to vector<6x2x6xf32>
    %168 = arith.mulf %167, %43 : vector<6x2x6xf32>
    %169 = arith.addf %165, %168 : vector<6x2x6xf32>
    %c0_76 = arith.constant 0 : index
    %c4_77 = arith.constant 4 : index
    %170 = memref.load %arg3[%c0_76, %c4_77] : memref<3x16xf32, #tpu.memory_space<smem>>
    %171 = vector.broadcast %170 : f32 to vector<6x2x6xf32>
    %172 = arith.mulf %171, %48 : vector<6x2x6xf32>
    %173 = arith.addf %169, %172 : vector<6x2x6xf32>
    %c0_78 = arith.constant 0 : index
    %c5_79 = arith.constant 5 : index
    %174 = memref.load %arg3[%c0_78, %c5_79] : memref<3x16xf32, #tpu.memory_space<smem>>
    %175 = vector.broadcast %174 : f32 to vector<6x2x6xf32>
    %176 = arith.mulf %175, %53 : vector<6x2x6xf32>
    %177 = arith.addf %173, %176 : vector<6x2x6xf32>
    %c0_80 = arith.constant 0 : index
    %c6_81 = arith.constant 6 : index
    %178 = memref.load %arg3[%c0_80, %c6_81] : memref<3x16xf32, #tpu.memory_space<smem>>
    %179 = vector.broadcast %178 : f32 to vector<6x2x6xf32>
    %180 = arith.mulf %179, %58 : vector<6x2x6xf32>
    %181 = arith.addf %177, %180 : vector<6x2x6xf32>
    %c0_82 = arith.constant 0 : index
    %c7_83 = arith.constant 7 : index
    %182 = memref.load %arg3[%c0_82, %c7_83] : memref<3x16xf32, #tpu.memory_space<smem>>
    %183 = vector.broadcast %182 : f32 to vector<6x2x6xf32>
    %184 = arith.mulf %183, %63 : vector<6x2x6xf32>
    %185 = arith.addf %181, %184 : vector<6x2x6xf32>
    %c0_84 = arith.constant 0 : index
    %c8_85 = arith.constant 8 : index
    %186 = memref.load %arg3[%c0_84, %c8_85] : memref<3x16xf32, #tpu.memory_space<smem>>
    %187 = vector.broadcast %186 : f32 to vector<6x2x6xf32>
    %188 = arith.mulf %187, %68 : vector<6x2x6xf32>
    %189 = arith.addf %185, %188 : vector<6x2x6xf32>
    %c0_86 = arith.constant 0 : index
    %c9_87 = arith.constant 9 : index
    %190 = memref.load %arg3[%c0_86, %c9_87] : memref<3x16xf32, #tpu.memory_space<smem>>
    %191 = vector.broadcast %190 : f32 to vector<6x2x6xf32>
    %192 = arith.mulf %191, %73 : vector<6x2x6xf32>
    %193 = arith.addf %189, %192 : vector<6x2x6xf32>
    %c0_88 = arith.constant 0 : index
    %c10_89 = arith.constant 10 : index
    %194 = memref.load %arg3[%c0_88, %c10_89] : memref<3x16xf32, #tpu.memory_space<smem>>
    %195 = vector.broadcast %194 : f32 to vector<6x2x6xf32>
    %196 = arith.mulf %195, %78 : vector<6x2x6xf32>
    %197 = arith.addf %193, %196 : vector<6x2x6xf32>
    %c0_90 = arith.constant 0 : index
    %c11_91 = arith.constant 11 : index
    %198 = memref.load %arg3[%c0_90, %c11_91] : memref<3x16xf32, #tpu.memory_space<smem>>
    %199 = vector.broadcast %198 : f32 to vector<6x2x6xf32>
    %200 = arith.mulf %199, %83 : vector<6x2x6xf32>
    %201 = arith.addf %197, %200 : vector<6x2x6xf32>
    %c0_92 = arith.constant 0 : index
    %c12_93 = arith.constant 12 : index
    %202 = memref.load %arg3[%c0_92, %c12_93] : memref<3x16xf32, #tpu.memory_space<smem>>
    %203 = vector.extract_strided_slice %1 {offsets = [2, 0, 0], sizes = [6, 2, 6], strides = [1, 1, 1]} : vector<8x2x8xf32> to vector<6x2x6xf32>
    %204 = vector.broadcast %202 : f32 to vector<6x2x6xf32>
    %205 = arith.mulf %204, %203 : vector<6x2x6xf32>
    %206 = arith.addf %201, %205 : vector<6x2x6xf32>
    %c0_94 = arith.constant 0 : index
    %c13_95 = arith.constant 13 : index
    %207 = memref.load %arg3[%c0_94, %c13_95] : memref<3x16xf32, #tpu.memory_space<smem>>
    %208 = vector.extract_strided_slice %3 {offsets = [2, 0, 0], sizes = [6, 2, 6], strides = [1, 1, 1]} : vector<8x2x8xf32> to vector<6x2x6xf32>
    %209 = vector.broadcast %207 : f32 to vector<6x2x6xf32>
    %210 = arith.mulf %209, %208 : vector<6x2x6xf32>
    %211 = arith.addf %206, %210 : vector<6x2x6xf32>
    %c0_96 = arith.constant 0 : index
    %c14_97 = arith.constant 14 : index
    %212 = memref.load %arg3[%c0_96, %c14_97] : memref<3x16xf32, #tpu.memory_space<smem>>
    %213 = vector.extract_strided_slice %1 {offsets = [2, 0, 1], sizes = [6, 2, 6], strides = [1, 1, 1]} : vector<8x2x8xf32> to vector<6x2x6xf32>
    %214 = vector.broadcast %212 : f32 to vector<6x2x6xf32>
    %215 = arith.mulf %214, %213 : vector<6x2x6xf32>
    %216 = arith.addf %211, %215 : vector<6x2x6xf32>
    %c0_98 = arith.constant 0 : index
    %c15_99 = arith.constant 15 : index
    %217 = memref.load %arg3[%c0_98, %c15_99] : memref<3x16xf32, #tpu.memory_space<smem>>
    %218 = vector.extract_strided_slice %3 {offsets = [2, 0, 1], sizes = [6, 2, 6], strides = [1, 1, 1]} : vector<8x2x8xf32> to vector<6x2x6xf32>
    %219 = vector.broadcast %217 : f32 to vector<6x2x6xf32>
    %220 = arith.mulf %219, %218 : vector<6x2x6xf32>
    %221 = arith.addf %216, %220 : vector<6x2x6xf32>
    %222 = arith.maximumf %154, %221 : vector<6x2x6xf32>
    %c0_100 = arith.constant 0 : index
    %c0_101 = arith.constant 0 : index
    %223 = memref.load %arg3[%c0_100, %c0_101] : memref<3x16xf32, #tpu.memory_space<smem>>
    %224 = vector.broadcast %223 : f32 to vector<6x2x6xf32>
    %225 = arith.mulf %224, %33 : vector<6x2x6xf32>
    %c0_102 = arith.constant 0 : index
    %c1_103 = arith.constant 1 : index
    %226 = memref.load %arg3[%c0_102, %c1_103] : memref<3x16xf32, #tpu.memory_space<smem>>
    %227 = vector.broadcast %226 : f32 to vector<6x2x6xf32>
    %228 = arith.mulf %227, %38 : vector<6x2x6xf32>
    %229 = arith.addf %225, %228 : vector<6x2x6xf32>
    %c0_104 = arith.constant 0 : index
    %c2_105 = arith.constant 2 : index
    %230 = memref.load %arg3[%c0_104, %c2_105] : memref<3x16xf32, #tpu.memory_space<smem>>
    %231 = vector.broadcast %230 : f32 to vector<6x2x6xf32>
    %232 = arith.mulf %231, %43 : vector<6x2x6xf32>
    %233 = arith.addf %229, %232 : vector<6x2x6xf32>
    %c0_106 = arith.constant 0 : index
    %c3_107 = arith.constant 3 : index
    %234 = memref.load %arg3[%c0_106, %c3_107] : memref<3x16xf32, #tpu.memory_space<smem>>
    %235 = vector.broadcast %234 : f32 to vector<6x2x6xf32>
    %236 = arith.mulf %235, %116 : vector<6x2x6xf32>
    %237 = arith.addf %233, %236 : vector<6x2x6xf32>
    %c0_108 = arith.constant 0 : index
    %c4_109 = arith.constant 4 : index
    %238 = memref.load %arg3[%c0_108, %c4_109] : memref<3x16xf32, #tpu.memory_space<smem>>
    %239 = vector.broadcast %238 : f32 to vector<6x2x6xf32>
    %240 = arith.mulf %239, %53 : vector<6x2x6xf32>
    %241 = arith.addf %237, %240 : vector<6x2x6xf32>
    %c0_110 = arith.constant 0 : index
    %c5_111 = arith.constant 5 : index
    %242 = memref.load %arg3[%c0_110, %c5_111] : memref<3x16xf32, #tpu.memory_space<smem>>
    %243 = vector.broadcast %242 : f32 to vector<6x2x6xf32>
    %244 = arith.mulf %243, %58 : vector<6x2x6xf32>
    %245 = arith.addf %241, %244 : vector<6x2x6xf32>
    %c0_112 = arith.constant 0 : index
    %c6_113 = arith.constant 6 : index
    %246 = memref.load %arg3[%c0_112, %c6_113] : memref<3x16xf32, #tpu.memory_space<smem>>
    %247 = vector.broadcast %246 : f32 to vector<6x2x6xf32>
    %248 = arith.mulf %247, %63 : vector<6x2x6xf32>
    %249 = arith.addf %245, %248 : vector<6x2x6xf32>
    %c0_114 = arith.constant 0 : index
    %c7_115 = arith.constant 7 : index
    %250 = memref.load %arg3[%c0_114, %c7_115] : memref<3x16xf32, #tpu.memory_space<smem>>
    %251 = vector.broadcast %250 : f32 to vector<6x2x6xf32>
    %252 = arith.mulf %251, %133 : vector<6x2x6xf32>
    %253 = arith.addf %249, %252 : vector<6x2x6xf32>
    %c0_116 = arith.constant 0 : index
    %c8_117 = arith.constant 8 : index
    %254 = memref.load %arg3[%c0_116, %c8_117] : memref<3x16xf32, #tpu.memory_space<smem>>
    %255 = vector.broadcast %254 : f32 to vector<6x2x6xf32>
    %256 = arith.mulf %255, %73 : vector<6x2x6xf32>
    %257 = arith.addf %253, %256 : vector<6x2x6xf32>
    %c0_118 = arith.constant 0 : index
    %c9_119 = arith.constant 9 : index
    %258 = memref.load %arg3[%c0_118, %c9_119] : memref<3x16xf32, #tpu.memory_space<smem>>
    %259 = vector.broadcast %258 : f32 to vector<6x2x6xf32>
    %260 = arith.mulf %259, %78 : vector<6x2x6xf32>
    %261 = arith.addf %257, %260 : vector<6x2x6xf32>
    %c0_120 = arith.constant 0 : index
    %c10_121 = arith.constant 10 : index
    %262 = memref.load %arg3[%c0_120, %c10_121] : memref<3x16xf32, #tpu.memory_space<smem>>
    %263 = vector.broadcast %262 : f32 to vector<6x2x6xf32>
    %264 = arith.mulf %263, %83 : vector<6x2x6xf32>
    %265 = arith.addf %261, %264 : vector<6x2x6xf32>
    %c0_122 = arith.constant 0 : index
    %c11_123 = arith.constant 11 : index
    %266 = memref.load %arg3[%c0_122, %c11_123] : memref<3x16xf32, #tpu.memory_space<smem>>
    %267 = vector.broadcast %266 : f32 to vector<6x2x6xf32>
    %268 = arith.mulf %267, %150 : vector<6x2x6xf32>
    %269 = arith.addf %265, %268 : vector<6x2x6xf32>
    %c0_124 = arith.constant 0 : index
    %c12_125 = arith.constant 12 : index
    %270 = memref.load %arg3[%c0_124, %c12_125] : memref<3x16xf32, #tpu.memory_space<smem>>
    %271 = vector.broadcast %270 : f32 to vector<6x2x6xf32>
    %272 = arith.mulf %271, %208 : vector<6x2x6xf32>
    %273 = arith.addf %269, %272 : vector<6x2x6xf32>
    %c0_126 = arith.constant 0 : index
    %c13_127 = arith.constant 13 : index
    %274 = memref.load %arg3[%c0_126, %c13_127] : memref<3x16xf32, #tpu.memory_space<smem>>
    %275 = vector.broadcast %274 : f32 to vector<6x2x6xf32>
    %276 = arith.mulf %275, %213 : vector<6x2x6xf32>
    %277 = arith.addf %273, %276 : vector<6x2x6xf32>
    %c0_128 = arith.constant 0 : index
    %c14_129 = arith.constant 14 : index
    %278 = memref.load %arg3[%c0_128, %c14_129] : memref<3x16xf32, #tpu.memory_space<smem>>
    %279 = vector.broadcast %278 : f32 to vector<6x2x6xf32>
    %280 = arith.mulf %279, %218 : vector<6x2x6xf32>
    %281 = arith.addf %277, %280 : vector<6x2x6xf32>
    %c0_130 = arith.constant 0 : index
    %c15_131 = arith.constant 15 : index
    %282 = memref.load %arg3[%c0_130, %c15_131] : memref<3x16xf32, #tpu.memory_space<smem>>
    %283 = vector.extract_strided_slice %1 {offsets = [2, 0, 2], sizes = [6, 2, 6], strides = [1, 1, 1]} : vector<8x2x8xf32> to vector<6x2x6xf32>
    %284 = vector.broadcast %282 : f32 to vector<6x2x6xf32>
    %285 = arith.mulf %284, %283 : vector<6x2x6xf32>
    %286 = arith.addf %281, %285 : vector<6x2x6xf32>
    %287 = arith.maximumf %222, %286 : vector<6x2x6xf32>
    %c0_132 = arith.constant 0 : index
    %288 = memref.load %arg4[%c0_132] : memref<3xf32, #tpu.memory_space<smem>>
    %289 = vector.broadcast %288 : f32 to vector<6x2x6xf32>
    %290 = arith.addf %287, %289 : vector<6x2x6xf32>
    %cst = arith.constant 0.000000e+00 : f32
    %291 = vector.broadcast %cst : f32 to vector<6x2x6xf32>
    %292 = arith.maximumf %290, %291 : vector<6x2x6xf32>
    %c1_133 = arith.constant 1 : index
    %c0_134 = arith.constant 0 : index
    %293 = memref.load %arg3[%c1_133, %c0_134] : memref<3x16xf32, #tpu.memory_space<smem>>
    %294 = vector.broadcast %293 : f32 to vector<6x2x6xf32>
    %295 = arith.mulf %294, %9 : vector<6x2x6xf32>
    %c1_135 = arith.constant 1 : index
    %c1_136 = arith.constant 1 : index
    %296 = memref.load %arg3[%c1_135, %c1_136] : memref<3x16xf32, #tpu.memory_space<smem>>
    %297 = vector.broadcast %296 : f32 to vector<6x2x6xf32>
    %298 = arith.mulf %297, %13 : vector<6x2x6xf32>
    %299 = arith.addf %295, %298 : vector<6x2x6xf32>
    %c1_137 = arith.constant 1 : index
    %c2_138 = arith.constant 2 : index
    %300 = memref.load %arg3[%c1_137, %c2_138] : memref<3x16xf32, #tpu.memory_space<smem>>
    %301 = vector.broadcast %300 : f32 to vector<6x2x6xf32>
    %302 = arith.mulf %301, %18 : vector<6x2x6xf32>
    %303 = arith.addf %299, %302 : vector<6x2x6xf32>
    %c1_139 = arith.constant 1 : index
    %c3_140 = arith.constant 3 : index
    %304 = memref.load %arg3[%c1_139, %c3_140] : memref<3x16xf32, #tpu.memory_space<smem>>
    %305 = vector.broadcast %304 : f32 to vector<6x2x6xf32>
    %306 = arith.mulf %305, %23 : vector<6x2x6xf32>
    %307 = arith.addf %303, %306 : vector<6x2x6xf32>
    %c1_141 = arith.constant 1 : index
    %c4_142 = arith.constant 4 : index
    %308 = memref.load %arg3[%c1_141, %c4_142] : memref<3x16xf32, #tpu.memory_space<smem>>
    %309 = vector.broadcast %308 : f32 to vector<6x2x6xf32>
    %310 = arith.mulf %309, %28 : vector<6x2x6xf32>
    %311 = arith.addf %307, %310 : vector<6x2x6xf32>
    %c1_143 = arith.constant 1 : index
    %c5_144 = arith.constant 5 : index
    %312 = memref.load %arg3[%c1_143, %c5_144] : memref<3x16xf32, #tpu.memory_space<smem>>
    %313 = vector.broadcast %312 : f32 to vector<6x2x6xf32>
    %314 = arith.mulf %313, %33 : vector<6x2x6xf32>
    %315 = arith.addf %311, %314 : vector<6x2x6xf32>
    %c1_145 = arith.constant 1 : index
    %c6_146 = arith.constant 6 : index
    %316 = memref.load %arg3[%c1_145, %c6_146] : memref<3x16xf32, #tpu.memory_space<smem>>
    %317 = vector.broadcast %316 : f32 to vector<6x2x6xf32>
    %318 = arith.mulf %317, %38 : vector<6x2x6xf32>
    %319 = arith.addf %315, %318 : vector<6x2x6xf32>
    %c1_147 = arith.constant 1 : index
    %c7_148 = arith.constant 7 : index
    %320 = memref.load %arg3[%c1_147, %c7_148] : memref<3x16xf32, #tpu.memory_space<smem>>
    %321 = vector.broadcast %320 : f32 to vector<6x2x6xf32>
    %322 = arith.mulf %321, %43 : vector<6x2x6xf32>
    %323 = arith.addf %319, %322 : vector<6x2x6xf32>
    %c1_149 = arith.constant 1 : index
    %c8_150 = arith.constant 8 : index
    %324 = memref.load %arg3[%c1_149, %c8_150] : memref<3x16xf32, #tpu.memory_space<smem>>
    %325 = vector.broadcast %324 : f32 to vector<6x2x6xf32>
    %326 = arith.mulf %325, %48 : vector<6x2x6xf32>
    %327 = arith.addf %323, %326 : vector<6x2x6xf32>
    %c1_151 = arith.constant 1 : index
    %c9_152 = arith.constant 9 : index
    %328 = memref.load %arg3[%c1_151, %c9_152] : memref<3x16xf32, #tpu.memory_space<smem>>
    %329 = vector.broadcast %328 : f32 to vector<6x2x6xf32>
    %330 = arith.mulf %329, %53 : vector<6x2x6xf32>
    %331 = arith.addf %327, %330 : vector<6x2x6xf32>
    %c1_153 = arith.constant 1 : index
    %c10_154 = arith.constant 10 : index
    %332 = memref.load %arg3[%c1_153, %c10_154] : memref<3x16xf32, #tpu.memory_space<smem>>
    %333 = vector.broadcast %332 : f32 to vector<6x2x6xf32>
    %334 = arith.mulf %333, %58 : vector<6x2x6xf32>
    %335 = arith.addf %331, %334 : vector<6x2x6xf32>
    %c1_155 = arith.constant 1 : index
    %c11_156 = arith.constant 11 : index
    %336 = memref.load %arg3[%c1_155, %c11_156] : memref<3x16xf32, #tpu.memory_space<smem>>
    %337 = vector.broadcast %336 : f32 to vector<6x2x6xf32>
    %338 = arith.mulf %337, %63 : vector<6x2x6xf32>
    %339 = arith.addf %335, %338 : vector<6x2x6xf32>
    %c1_157 = arith.constant 1 : index
    %c12_158 = arith.constant 12 : index
    %340 = memref.load %arg3[%c1_157, %c12_158] : memref<3x16xf32, #tpu.memory_space<smem>>
    %341 = vector.broadcast %340 : f32 to vector<6x2x6xf32>
    %342 = arith.mulf %341, %68 : vector<6x2x6xf32>
    %343 = arith.addf %339, %342 : vector<6x2x6xf32>
    %c1_159 = arith.constant 1 : index
    %c13_160 = arith.constant 13 : index
    %344 = memref.load %arg3[%c1_159, %c13_160] : memref<3x16xf32, #tpu.memory_space<smem>>
    %345 = vector.broadcast %344 : f32 to vector<6x2x6xf32>
    %346 = arith.mulf %345, %73 : vector<6x2x6xf32>
    %347 = arith.addf %343, %346 : vector<6x2x6xf32>
    %c1_161 = arith.constant 1 : index
    %c14_162 = arith.constant 14 : index
    %348 = memref.load %arg3[%c1_161, %c14_162] : memref<3x16xf32, #tpu.memory_space<smem>>
    %349 = vector.broadcast %348 : f32 to vector<6x2x6xf32>
    %350 = arith.mulf %349, %78 : vector<6x2x6xf32>
    %351 = arith.addf %347, %350 : vector<6x2x6xf32>
    %c1_163 = arith.constant 1 : index
    %c15_164 = arith.constant 15 : index
    %352 = memref.load %arg3[%c1_163, %c15_164] : memref<3x16xf32, #tpu.memory_space<smem>>
    %353 = vector.broadcast %352 : f32 to vector<6x2x6xf32>
    %354 = arith.mulf %353, %83 : vector<6x2x6xf32>
    %355 = arith.addf %351, %354 : vector<6x2x6xf32>
    %c1_165 = arith.constant 1 : index
    %c0_166 = arith.constant 0 : index
    %356 = memref.load %arg3[%c1_165, %c0_166] : memref<3x16xf32, #tpu.memory_space<smem>>
    %357 = vector.broadcast %356 : f32 to vector<6x2x6xf32>
    %358 = arith.mulf %357, %13 : vector<6x2x6xf32>
    %c1_167 = arith.constant 1 : index
    %c1_168 = arith.constant 1 : index
    %359 = memref.load %arg3[%c1_167, %c1_168] : memref<3x16xf32, #tpu.memory_space<smem>>
    %360 = vector.broadcast %359 : f32 to vector<6x2x6xf32>
    %361 = arith.mulf %360, %18 : vector<6x2x6xf32>
    %362 = arith.addf %358, %361 : vector<6x2x6xf32>
    %c1_169 = arith.constant 1 : index
    %c2_170 = arith.constant 2 : index
    %363 = memref.load %arg3[%c1_169, %c2_170] : memref<3x16xf32, #tpu.memory_space<smem>>
    %364 = vector.broadcast %363 : f32 to vector<6x2x6xf32>
    %365 = arith.mulf %364, %23 : vector<6x2x6xf32>
    %366 = arith.addf %362, %365 : vector<6x2x6xf32>
    %c1_171 = arith.constant 1 : index
    %c3_172 = arith.constant 3 : index
    %367 = memref.load %arg3[%c1_171, %c3_172] : memref<3x16xf32, #tpu.memory_space<smem>>
    %368 = vector.broadcast %367 : f32 to vector<6x2x6xf32>
    %369 = arith.mulf %368, %99 : vector<6x2x6xf32>
    %370 = arith.addf %366, %369 : vector<6x2x6xf32>
    %c1_173 = arith.constant 1 : index
    %c4_174 = arith.constant 4 : index
    %371 = memref.load %arg3[%c1_173, %c4_174] : memref<3x16xf32, #tpu.memory_space<smem>>
    %372 = vector.broadcast %371 : f32 to vector<6x2x6xf32>
    %373 = arith.mulf %372, %33 : vector<6x2x6xf32>
    %374 = arith.addf %370, %373 : vector<6x2x6xf32>
    %c1_175 = arith.constant 1 : index
    %c5_176 = arith.constant 5 : index
    %375 = memref.load %arg3[%c1_175, %c5_176] : memref<3x16xf32, #tpu.memory_space<smem>>
    %376 = vector.broadcast %375 : f32 to vector<6x2x6xf32>
    %377 = arith.mulf %376, %38 : vector<6x2x6xf32>
    %378 = arith.addf %374, %377 : vector<6x2x6xf32>
    %c1_177 = arith.constant 1 : index
    %c6_178 = arith.constant 6 : index
    %379 = memref.load %arg3[%c1_177, %c6_178] : memref<3x16xf32, #tpu.memory_space<smem>>
    %380 = vector.broadcast %379 : f32 to vector<6x2x6xf32>
    %381 = arith.mulf %380, %43 : vector<6x2x6xf32>
    %382 = arith.addf %378, %381 : vector<6x2x6xf32>
    %c1_179 = arith.constant 1 : index
    %c7_180 = arith.constant 7 : index
    %383 = memref.load %arg3[%c1_179, %c7_180] : memref<3x16xf32, #tpu.memory_space<smem>>
    %384 = vector.broadcast %383 : f32 to vector<6x2x6xf32>
    %385 = arith.mulf %384, %116 : vector<6x2x6xf32>
    %386 = arith.addf %382, %385 : vector<6x2x6xf32>
    %c1_181 = arith.constant 1 : index
    %c8_182 = arith.constant 8 : index
    %387 = memref.load %arg3[%c1_181, %c8_182] : memref<3x16xf32, #tpu.memory_space<smem>>
    %388 = vector.broadcast %387 : f32 to vector<6x2x6xf32>
    %389 = arith.mulf %388, %53 : vector<6x2x6xf32>
    %390 = arith.addf %386, %389 : vector<6x2x6xf32>
    %c1_183 = arith.constant 1 : index
    %c9_184 = arith.constant 9 : index
    %391 = memref.load %arg3[%c1_183, %c9_184] : memref<3x16xf32, #tpu.memory_space<smem>>
    %392 = vector.broadcast %391 : f32 to vector<6x2x6xf32>
    %393 = arith.mulf %392, %58 : vector<6x2x6xf32>
    %394 = arith.addf %390, %393 : vector<6x2x6xf32>
    %c1_185 = arith.constant 1 : index
    %c10_186 = arith.constant 10 : index
    %395 = memref.load %arg3[%c1_185, %c10_186] : memref<3x16xf32, #tpu.memory_space<smem>>
    %396 = vector.broadcast %395 : f32 to vector<6x2x6xf32>
    %397 = arith.mulf %396, %63 : vector<6x2x6xf32>
    %398 = arith.addf %394, %397 : vector<6x2x6xf32>
    %c1_187 = arith.constant 1 : index
    %c11_188 = arith.constant 11 : index
    %399 = memref.load %arg3[%c1_187, %c11_188] : memref<3x16xf32, #tpu.memory_space<smem>>
    %400 = vector.broadcast %399 : f32 to vector<6x2x6xf32>
    %401 = arith.mulf %400, %133 : vector<6x2x6xf32>
    %402 = arith.addf %398, %401 : vector<6x2x6xf32>
    %c1_189 = arith.constant 1 : index
    %c12_190 = arith.constant 12 : index
    %403 = memref.load %arg3[%c1_189, %c12_190] : memref<3x16xf32, #tpu.memory_space<smem>>
    %404 = vector.broadcast %403 : f32 to vector<6x2x6xf32>
    %405 = arith.mulf %404, %73 : vector<6x2x6xf32>
    %406 = arith.addf %402, %405 : vector<6x2x6xf32>
    %c1_191 = arith.constant 1 : index
    %c13_192 = arith.constant 13 : index
    %407 = memref.load %arg3[%c1_191, %c13_192] : memref<3x16xf32, #tpu.memory_space<smem>>
    %408 = vector.broadcast %407 : f32 to vector<6x2x6xf32>
    %409 = arith.mulf %408, %78 : vector<6x2x6xf32>
    %410 = arith.addf %406, %409 : vector<6x2x6xf32>
    %c1_193 = arith.constant 1 : index
    %c14_194 = arith.constant 14 : index
    %411 = memref.load %arg3[%c1_193, %c14_194] : memref<3x16xf32, #tpu.memory_space<smem>>
    %412 = vector.broadcast %411 : f32 to vector<6x2x6xf32>
    %413 = arith.mulf %412, %83 : vector<6x2x6xf32>
    %414 = arith.addf %410, %413 : vector<6x2x6xf32>
    %c1_195 = arith.constant 1 : index
    %c15_196 = arith.constant 15 : index
    %415 = memref.load %arg3[%c1_195, %c15_196] : memref<3x16xf32, #tpu.memory_space<smem>>
    %416 = vector.broadcast %415 : f32 to vector<6x2x6xf32>
    %417 = arith.mulf %416, %150 : vector<6x2x6xf32>
    %418 = arith.addf %414, %417 : vector<6x2x6xf32>
    %419 = arith.maximumf %355, %418 : vector<6x2x6xf32>
    %c1_197 = arith.constant 1 : index
    %c0_198 = arith.constant 0 : index
    %420 = memref.load %arg3[%c1_197, %c0_198] : memref<3x16xf32, #tpu.memory_space<smem>>
    %421 = vector.broadcast %420 : f32 to vector<6x2x6xf32>
    %422 = arith.mulf %421, %28 : vector<6x2x6xf32>
    %c1_199 = arith.constant 1 : index
    %c1_200 = arith.constant 1 : index
    %423 = memref.load %arg3[%c1_199, %c1_200] : memref<3x16xf32, #tpu.memory_space<smem>>
    %424 = vector.broadcast %423 : f32 to vector<6x2x6xf32>
    %425 = arith.mulf %424, %33 : vector<6x2x6xf32>
    %426 = arith.addf %422, %425 : vector<6x2x6xf32>
    %c1_201 = arith.constant 1 : index
    %c2_202 = arith.constant 2 : index
    %427 = memref.load %arg3[%c1_201, %c2_202] : memref<3x16xf32, #tpu.memory_space<smem>>
    %428 = vector.broadcast %427 : f32 to vector<6x2x6xf32>
    %429 = arith.mulf %428, %38 : vector<6x2x6xf32>
    %430 = arith.addf %426, %429 : vector<6x2x6xf32>
    %c1_203 = arith.constant 1 : index
    %c3_204 = arith.constant 3 : index
    %431 = memref.load %arg3[%c1_203, %c3_204] : memref<3x16xf32, #tpu.memory_space<smem>>
    %432 = vector.broadcast %431 : f32 to vector<6x2x6xf32>
    %433 = arith.mulf %432, %43 : vector<6x2x6xf32>
    %434 = arith.addf %430, %433 : vector<6x2x6xf32>
    %c1_205 = arith.constant 1 : index
    %c4_206 = arith.constant 4 : index
    %435 = memref.load %arg3[%c1_205, %c4_206] : memref<3x16xf32, #tpu.memory_space<smem>>
    %436 = vector.broadcast %435 : f32 to vector<6x2x6xf32>
    %437 = arith.mulf %436, %48 : vector<6x2x6xf32>
    %438 = arith.addf %434, %437 : vector<6x2x6xf32>
    %c1_207 = arith.constant 1 : index
    %c5_208 = arith.constant 5 : index
    %439 = memref.load %arg3[%c1_207, %c5_208] : memref<3x16xf32, #tpu.memory_space<smem>>
    %440 = vector.broadcast %439 : f32 to vector<6x2x6xf32>
    %441 = arith.mulf %440, %53 : vector<6x2x6xf32>
    %442 = arith.addf %438, %441 : vector<6x2x6xf32>
    %c1_209 = arith.constant 1 : index
    %c6_210 = arith.constant 6 : index
    %443 = memref.load %arg3[%c1_209, %c6_210] : memref<3x16xf32, #tpu.memory_space<smem>>
    %444 = vector.broadcast %443 : f32 to vector<6x2x6xf32>
    %445 = arith.mulf %444, %58 : vector<6x2x6xf32>
    %446 = arith.addf %442, %445 : vector<6x2x6xf32>
    %c1_211 = arith.constant 1 : index
    %c7_212 = arith.constant 7 : index
    %447 = memref.load %arg3[%c1_211, %c7_212] : memref<3x16xf32, #tpu.memory_space<smem>>
    %448 = vector.broadcast %447 : f32 to vector<6x2x6xf32>
    %449 = arith.mulf %448, %63 : vector<6x2x6xf32>
    %450 = arith.addf %446, %449 : vector<6x2x6xf32>
    %c1_213 = arith.constant 1 : index
    %c8_214 = arith.constant 8 : index
    %451 = memref.load %arg3[%c1_213, %c8_214] : memref<3x16xf32, #tpu.memory_space<smem>>
    %452 = vector.broadcast %451 : f32 to vector<6x2x6xf32>
    %453 = arith.mulf %452, %68 : vector<6x2x6xf32>
    %454 = arith.addf %450, %453 : vector<6x2x6xf32>
    %c1_215 = arith.constant 1 : index
    %c9_216 = arith.constant 9 : index
    %455 = memref.load %arg3[%c1_215, %c9_216] : memref<3x16xf32, #tpu.memory_space<smem>>
    %456 = vector.broadcast %455 : f32 to vector<6x2x6xf32>
    %457 = arith.mulf %456, %73 : vector<6x2x6xf32>
    %458 = arith.addf %454, %457 : vector<6x2x6xf32>
    %c1_217 = arith.constant 1 : index
    %c10_218 = arith.constant 10 : index
    %459 = memref.load %arg3[%c1_217, %c10_218] : memref<3x16xf32, #tpu.memory_space<smem>>
    %460 = vector.broadcast %459 : f32 to vector<6x2x6xf32>
    %461 = arith.mulf %460, %78 : vector<6x2x6xf32>
    %462 = arith.addf %458, %461 : vector<6x2x6xf32>
    %c1_219 = arith.constant 1 : index
    %c11_220 = arith.constant 11 : index
    %463 = memref.load %arg3[%c1_219, %c11_220] : memref<3x16xf32, #tpu.memory_space<smem>>
    %464 = vector.broadcast %463 : f32 to vector<6x2x6xf32>
    %465 = arith.mulf %464, %83 : vector<6x2x6xf32>
    %466 = arith.addf %462, %465 : vector<6x2x6xf32>
    %c1_221 = arith.constant 1 : index
    %c12_222 = arith.constant 12 : index
    %467 = memref.load %arg3[%c1_221, %c12_222] : memref<3x16xf32, #tpu.memory_space<smem>>
    %468 = vector.broadcast %467 : f32 to vector<6x2x6xf32>
    %469 = arith.mulf %468, %203 : vector<6x2x6xf32>
    %470 = arith.addf %466, %469 : vector<6x2x6xf32>
    %c1_223 = arith.constant 1 : index
    %c13_224 = arith.constant 13 : index
    %471 = memref.load %arg3[%c1_223, %c13_224] : memref<3x16xf32, #tpu.memory_space<smem>>
    %472 = vector.broadcast %471 : f32 to vector<6x2x6xf32>
    %473 = arith.mulf %472, %208 : vector<6x2x6xf32>
    %474 = arith.addf %470, %473 : vector<6x2x6xf32>
    %c1_225 = arith.constant 1 : index
    %c14_226 = arith.constant 14 : index
    %475 = memref.load %arg3[%c1_225, %c14_226] : memref<3x16xf32, #tpu.memory_space<smem>>
    %476 = vector.broadcast %475 : f32 to vector<6x2x6xf32>
    %477 = arith.mulf %476, %213 : vector<6x2x6xf32>
    %478 = arith.addf %474, %477 : vector<6x2x6xf32>
    %c1_227 = arith.constant 1 : index
    %c15_228 = arith.constant 15 : index
    %479 = memref.load %arg3[%c1_227, %c15_228] : memref<3x16xf32, #tpu.memory_space<smem>>
    %480 = vector.broadcast %479 : f32 to vector<6x2x6xf32>
    %481 = arith.mulf %480, %218 : vector<6x2x6xf32>
    %482 = arith.addf %478, %481 : vector<6x2x6xf32>
    %483 = arith.maximumf %419, %482 : vector<6x2x6xf32>
    %c1_229 = arith.constant 1 : index
    %c0_230 = arith.constant 0 : index
    %484 = memref.load %arg3[%c1_229, %c0_230] : memref<3x16xf32, #tpu.memory_space<smem>>
    %485 = vector.broadcast %484 : f32 to vector<6x2x6xf32>
    %486 = arith.mulf %485, %33 : vector<6x2x6xf32>
    %c1_231 = arith.constant 1 : index
    %c1_232 = arith.constant 1 : index
    %487 = memref.load %arg3[%c1_231, %c1_232] : memref<3x16xf32, #tpu.memory_space<smem>>
    %488 = vector.broadcast %487 : f32 to vector<6x2x6xf32>
    %489 = arith.mulf %488, %38 : vector<6x2x6xf32>
    %490 = arith.addf %486, %489 : vector<6x2x6xf32>
    %c1_233 = arith.constant 1 : index
    %c2_234 = arith.constant 2 : index
    %491 = memref.load %arg3[%c1_233, %c2_234] : memref<3x16xf32, #tpu.memory_space<smem>>
    %492 = vector.broadcast %491 : f32 to vector<6x2x6xf32>
    %493 = arith.mulf %492, %43 : vector<6x2x6xf32>
    %494 = arith.addf %490, %493 : vector<6x2x6xf32>
    %c1_235 = arith.constant 1 : index
    %c3_236 = arith.constant 3 : index
    %495 = memref.load %arg3[%c1_235, %c3_236] : memref<3x16xf32, #tpu.memory_space<smem>>
    %496 = vector.broadcast %495 : f32 to vector<6x2x6xf32>
    %497 = arith.mulf %496, %116 : vector<6x2x6xf32>
    %498 = arith.addf %494, %497 : vector<6x2x6xf32>
    %c1_237 = arith.constant 1 : index
    %c4_238 = arith.constant 4 : index
    %499 = memref.load %arg3[%c1_237, %c4_238] : memref<3x16xf32, #tpu.memory_space<smem>>
    %500 = vector.broadcast %499 : f32 to vector<6x2x6xf32>
    %501 = arith.mulf %500, %53 : vector<6x2x6xf32>
    %502 = arith.addf %498, %501 : vector<6x2x6xf32>
    %c1_239 = arith.constant 1 : index
    %c5_240 = arith.constant 5 : index
    %503 = memref.load %arg3[%c1_239, %c5_240] : memref<3x16xf32, #tpu.memory_space<smem>>
    %504 = vector.broadcast %503 : f32 to vector<6x2x6xf32>
    %505 = arith.mulf %504, %58 : vector<6x2x6xf32>
    %506 = arith.addf %502, %505 : vector<6x2x6xf32>
    %c1_241 = arith.constant 1 : index
    %c6_242 = arith.constant 6 : index
    %507 = memref.load %arg3[%c1_241, %c6_242] : memref<3x16xf32, #tpu.memory_space<smem>>
    %508 = vector.broadcast %507 : f32 to vector<6x2x6xf32>
    %509 = arith.mulf %508, %63 : vector<6x2x6xf32>
    %510 = arith.addf %506, %509 : vector<6x2x6xf32>
    %c1_243 = arith.constant 1 : index
    %c7_244 = arith.constant 7 : index
    %511 = memref.load %arg3[%c1_243, %c7_244] : memref<3x16xf32, #tpu.memory_space<smem>>
    %512 = vector.broadcast %511 : f32 to vector<6x2x6xf32>
    %513 = arith.mulf %512, %133 : vector<6x2x6xf32>
    %514 = arith.addf %510, %513 : vector<6x2x6xf32>
    %c1_245 = arith.constant 1 : index
    %c8_246 = arith.constant 8 : index
    %515 = memref.load %arg3[%c1_245, %c8_246] : memref<3x16xf32, #tpu.memory_space<smem>>
    %516 = vector.broadcast %515 : f32 to vector<6x2x6xf32>
    %517 = arith.mulf %516, %73 : vector<6x2x6xf32>
    %518 = arith.addf %514, %517 : vector<6x2x6xf32>
    %c1_247 = arith.constant 1 : index
    %c9_248 = arith.constant 9 : index
    %519 = memref.load %arg3[%c1_247, %c9_248] : memref<3x16xf32, #tpu.memory_space<smem>>
    %520 = vector.broadcast %519 : f32 to vector<6x2x6xf32>
    %521 = arith.mulf %520, %78 : vector<6x2x6xf32>
    %522 = arith.addf %518, %521 : vector<6x2x6xf32>
    %c1_249 = arith.constant 1 : index
    %c10_250 = arith.constant 10 : index
    %523 = memref.load %arg3[%c1_249, %c10_250] : memref<3x16xf32, #tpu.memory_space<smem>>
    %524 = vector.broadcast %523 : f32 to vector<6x2x6xf32>
    %525 = arith.mulf %524, %83 : vector<6x2x6xf32>
    %526 = arith.addf %522, %525 : vector<6x2x6xf32>
    %c1_251 = arith.constant 1 : index
    %c11_252 = arith.constant 11 : index
    %527 = memref.load %arg3[%c1_251, %c11_252] : memref<3x16xf32, #tpu.memory_space<smem>>
    %528 = vector.broadcast %527 : f32 to vector<6x2x6xf32>
    %529 = arith.mulf %528, %150 : vector<6x2x6xf32>
    %530 = arith.addf %526, %529 : vector<6x2x6xf32>
    %c1_253 = arith.constant 1 : index
    %c12_254 = arith.constant 12 : index
    %531 = memref.load %arg3[%c1_253, %c12_254] : memref<3x16xf32, #tpu.memory_space<smem>>
    %532 = vector.broadcast %531 : f32 to vector<6x2x6xf32>
    %533 = arith.mulf %532, %208 : vector<6x2x6xf32>
    %534 = arith.addf %530, %533 : vector<6x2x6xf32>
    %c1_255 = arith.constant 1 : index
    %c13_256 = arith.constant 13 : index
    %535 = memref.load %arg3[%c1_255, %c13_256] : memref<3x16xf32, #tpu.memory_space<smem>>
    %536 = vector.broadcast %535 : f32 to vector<6x2x6xf32>
    %537 = arith.mulf %536, %213 : vector<6x2x6xf32>
    %538 = arith.addf %534, %537 : vector<6x2x6xf32>
    %c1_257 = arith.constant 1 : index
    %c14_258 = arith.constant 14 : index
    %539 = memref.load %arg3[%c1_257, %c14_258] : memref<3x16xf32, #tpu.memory_space<smem>>
    %540 = vector.broadcast %539 : f32 to vector<6x2x6xf32>
    %541 = arith.mulf %540, %218 : vector<6x2x6xf32>
    %542 = arith.addf %538, %541 : vector<6x2x6xf32>
    %c1_259 = arith.constant 1 : index
    %c15_260 = arith.constant 15 : index
    %543 = memref.load %arg3[%c1_259, %c15_260] : memref<3x16xf32, #tpu.memory_space<smem>>
    %544 = vector.broadcast %543 : f32 to vector<6x2x6xf32>
    %545 = arith.mulf %544, %283 : vector<6x2x6xf32>
    %546 = arith.addf %542, %545 : vector<6x2x6xf32>
    %547 = arith.maximumf %483, %546 : vector<6x2x6xf32>
    %c1_261 = arith.constant 1 : index
    %548 = memref.load %arg4[%c1_261] : memref<3xf32, #tpu.memory_space<smem>>
    %549 = vector.broadcast %548 : f32 to vector<6x2x6xf32>
    %550 = arith.addf %547, %549 : vector<6x2x6xf32>
    %cst_262 = arith.constant 0.000000e+00 : f32
    %551 = vector.broadcast %cst_262 : f32 to vector<6x2x6xf32>
    %552 = arith.maximumf %550, %551 : vector<6x2x6xf32>
    %c2_263 = arith.constant 2 : index
    %c0_264 = arith.constant 0 : index
    %553 = memref.load %arg3[%c2_263, %c0_264] : memref<3x16xf32, #tpu.memory_space<smem>>
    %554 = vector.broadcast %553 : f32 to vector<6x2x6xf32>
    %555 = arith.mulf %554, %9 : vector<6x2x6xf32>
    %c2_265 = arith.constant 2 : index
    %c1_266 = arith.constant 1 : index
    %556 = memref.load %arg3[%c2_265, %c1_266] : memref<3x16xf32, #tpu.memory_space<smem>>
    %557 = vector.broadcast %556 : f32 to vector<6x2x6xf32>
    %558 = arith.mulf %557, %13 : vector<6x2x6xf32>
    %559 = arith.addf %555, %558 : vector<6x2x6xf32>
    %c2_267 = arith.constant 2 : index
    %c2_268 = arith.constant 2 : index
    %560 = memref.load %arg3[%c2_267, %c2_268] : memref<3x16xf32, #tpu.memory_space<smem>>
    %561 = vector.broadcast %560 : f32 to vector<6x2x6xf32>
    %562 = arith.mulf %561, %18 : vector<6x2x6xf32>
    %563 = arith.addf %559, %562 : vector<6x2x6xf32>
    %c2_269 = arith.constant 2 : index
    %c3_270 = arith.constant 3 : index
    %564 = memref.load %arg3[%c2_269, %c3_270] : memref<3x16xf32, #tpu.memory_space<smem>>
    %565 = vector.broadcast %564 : f32 to vector<6x2x6xf32>
    %566 = arith.mulf %565, %23 : vector<6x2x6xf32>
    %567 = arith.addf %563, %566 : vector<6x2x6xf32>
    %c2_271 = arith.constant 2 : index
    %c4_272 = arith.constant 4 : index
    %568 = memref.load %arg3[%c2_271, %c4_272] : memref<3x16xf32, #tpu.memory_space<smem>>
    %569 = vector.broadcast %568 : f32 to vector<6x2x6xf32>
    %570 = arith.mulf %569, %28 : vector<6x2x6xf32>
    %571 = arith.addf %567, %570 : vector<6x2x6xf32>
    %c2_273 = arith.constant 2 : index
    %c5_274 = arith.constant 5 : index
    %572 = memref.load %arg3[%c2_273, %c5_274] : memref<3x16xf32, #tpu.memory_space<smem>>
    %573 = vector.broadcast %572 : f32 to vector<6x2x6xf32>
    %574 = arith.mulf %573, %33 : vector<6x2x6xf32>
    %575 = arith.addf %571, %574 : vector<6x2x6xf32>
    %c2_275 = arith.constant 2 : index
    %c6_276 = arith.constant 6 : index
    %576 = memref.load %arg3[%c2_275, %c6_276] : memref<3x16xf32, #tpu.memory_space<smem>>
    %577 = vector.broadcast %576 : f32 to vector<6x2x6xf32>
    %578 = arith.mulf %577, %38 : vector<6x2x6xf32>
    %579 = arith.addf %575, %578 : vector<6x2x6xf32>
    %c2_277 = arith.constant 2 : index
    %c7_278 = arith.constant 7 : index
    %580 = memref.load %arg3[%c2_277, %c7_278] : memref<3x16xf32, #tpu.memory_space<smem>>
    %581 = vector.broadcast %580 : f32 to vector<6x2x6xf32>
    %582 = arith.mulf %581, %43 : vector<6x2x6xf32>
    %583 = arith.addf %579, %582 : vector<6x2x6xf32>
    %c2_279 = arith.constant 2 : index
    %c8_280 = arith.constant 8 : index
    %584 = memref.load %arg3[%c2_279, %c8_280] : memref<3x16xf32, #tpu.memory_space<smem>>
    %585 = vector.broadcast %584 : f32 to vector<6x2x6xf32>
    %586 = arith.mulf %585, %48 : vector<6x2x6xf32>
    %587 = arith.addf %583, %586 : vector<6x2x6xf32>
    %c2_281 = arith.constant 2 : index
    %c9_282 = arith.constant 9 : index
    %588 = memref.load %arg3[%c2_281, %c9_282] : memref<3x16xf32, #tpu.memory_space<smem>>
    %589 = vector.broadcast %588 : f32 to vector<6x2x6xf32>
    %590 = arith.mulf %589, %53 : vector<6x2x6xf32>
    %591 = arith.addf %587, %590 : vector<6x2x6xf32>
    %c2_283 = arith.constant 2 : index
    %c10_284 = arith.constant 10 : index
    %592 = memref.load %arg3[%c2_283, %c10_284] : memref<3x16xf32, #tpu.memory_space<smem>>
    %593 = vector.broadcast %592 : f32 to vector<6x2x6xf32>
    %594 = arith.mulf %593, %58 : vector<6x2x6xf32>
    %595 = arith.addf %591, %594 : vector<6x2x6xf32>
    %c2_285 = arith.constant 2 : index
    %c11_286 = arith.constant 11 : index
    %596 = memref.load %arg3[%c2_285, %c11_286] : memref<3x16xf32, #tpu.memory_space<smem>>
    %597 = vector.broadcast %596 : f32 to vector<6x2x6xf32>
    %598 = arith.mulf %597, %63 : vector<6x2x6xf32>
    %599 = arith.addf %595, %598 : vector<6x2x6xf32>
    %c2_287 = arith.constant 2 : index
    %c12_288 = arith.constant 12 : index
    %600 = memref.load %arg3[%c2_287, %c12_288] : memref<3x16xf32, #tpu.memory_space<smem>>
    %601 = vector.broadcast %600 : f32 to vector<6x2x6xf32>
    %602 = arith.mulf %601, %68 : vector<6x2x6xf32>
    %603 = arith.addf %599, %602 : vector<6x2x6xf32>
    %c2_289 = arith.constant 2 : index
    %c13_290 = arith.constant 13 : index
    %604 = memref.load %arg3[%c2_289, %c13_290] : memref<3x16xf32, #tpu.memory_space<smem>>
    %605 = vector.broadcast %604 : f32 to vector<6x2x6xf32>
    %606 = arith.mulf %605, %73 : vector<6x2x6xf32>
    %607 = arith.addf %603, %606 : vector<6x2x6xf32>
    %c2_291 = arith.constant 2 : index
    %c14_292 = arith.constant 14 : index
    %608 = memref.load %arg3[%c2_291, %c14_292] : memref<3x16xf32, #tpu.memory_space<smem>>
    %609 = vector.broadcast %608 : f32 to vector<6x2x6xf32>
    %610 = arith.mulf %609, %78 : vector<6x2x6xf32>
    %611 = arith.addf %607, %610 : vector<6x2x6xf32>
    %c2_293 = arith.constant 2 : index
    %c15_294 = arith.constant 15 : index
    %612 = memref.load %arg3[%c2_293, %c15_294] : memref<3x16xf32, #tpu.memory_space<smem>>
    %613 = vector.broadcast %612 : f32 to vector<6x2x6xf32>
    %614 = arith.mulf %613, %83 : vector<6x2x6xf32>
    %615 = arith.addf %611, %614 : vector<6x2x6xf32>
    %c2_295 = arith.constant 2 : index
    %c0_296 = arith.constant 0 : index
    %616 = memref.load %arg3[%c2_295, %c0_296] : memref<3x16xf32, #tpu.memory_space<smem>>
    %617 = vector.broadcast %616 : f32 to vector<6x2x6xf32>
    %618 = arith.mulf %617, %13 : vector<6x2x6xf32>
    %c2_297 = arith.constant 2 : index
    %c1_298 = arith.constant 1 : index
    %619 = memref.load %arg3[%c2_297, %c1_298] : memref<3x16xf32, #tpu.memory_space<smem>>
    %620 = vector.broadcast %619 : f32 to vector<6x2x6xf32>
    %621 = arith.mulf %620, %18 : vector<6x2x6xf32>
    %622 = arith.addf %618, %621 : vector<6x2x6xf32>
    %c2_299 = arith.constant 2 : index
    %c2_300 = arith.constant 2 : index
    %623 = memref.load %arg3[%c2_299, %c2_300] : memref<3x16xf32, #tpu.memory_space<smem>>
    %624 = vector.broadcast %623 : f32 to vector<6x2x6xf32>
    %625 = arith.mulf %624, %23 : vector<6x2x6xf32>
    %626 = arith.addf %622, %625 : vector<6x2x6xf32>
    %c2_301 = arith.constant 2 : index
    %c3_302 = arith.constant 3 : index
    %627 = memref.load %arg3[%c2_301, %c3_302] : memref<3x16xf32, #tpu.memory_space<smem>>
    %628 = vector.broadcast %627 : f32 to vector<6x2x6xf32>
    %629 = arith.mulf %628, %99 : vector<6x2x6xf32>
    %630 = arith.addf %626, %629 : vector<6x2x6xf32>
    %c2_303 = arith.constant 2 : index
    %c4_304 = arith.constant 4 : index
    %631 = memref.load %arg3[%c2_303, %c4_304] : memref<3x16xf32, #tpu.memory_space<smem>>
    %632 = vector.broadcast %631 : f32 to vector<6x2x6xf32>
    %633 = arith.mulf %632, %33 : vector<6x2x6xf32>
    %634 = arith.addf %630, %633 : vector<6x2x6xf32>
    %c2_305 = arith.constant 2 : index
    %c5_306 = arith.constant 5 : index
    %635 = memref.load %arg3[%c2_305, %c5_306] : memref<3x16xf32, #tpu.memory_space<smem>>
    %636 = vector.broadcast %635 : f32 to vector<6x2x6xf32>
    %637 = arith.mulf %636, %38 : vector<6x2x6xf32>
    %638 = arith.addf %634, %637 : vector<6x2x6xf32>
    %c2_307 = arith.constant 2 : index
    %c6_308 = arith.constant 6 : index
    %639 = memref.load %arg3[%c2_307, %c6_308] : memref<3x16xf32, #tpu.memory_space<smem>>
    %640 = vector.broadcast %639 : f32 to vector<6x2x6xf32>
    %641 = arith.mulf %640, %43 : vector<6x2x6xf32>
    %642 = arith.addf %638, %641 : vector<6x2x6xf32>
    %c2_309 = arith.constant 2 : index
    %c7_310 = arith.constant 7 : index
    %643 = memref.load %arg3[%c2_309, %c7_310] : memref<3x16xf32, #tpu.memory_space<smem>>
    %644 = vector.broadcast %643 : f32 to vector<6x2x6xf32>
    %645 = arith.mulf %644, %116 : vector<6x2x6xf32>
    %646 = arith.addf %642, %645 : vector<6x2x6xf32>
    %c2_311 = arith.constant 2 : index
    %c8_312 = arith.constant 8 : index
    %647 = memref.load %arg3[%c2_311, %c8_312] : memref<3x16xf32, #tpu.memory_space<smem>>
    %648 = vector.broadcast %647 : f32 to vector<6x2x6xf32>
    %649 = arith.mulf %648, %53 : vector<6x2x6xf32>
    %650 = arith.addf %646, %649 : vector<6x2x6xf32>
    %c2_313 = arith.constant 2 : index
    %c9_314 = arith.constant 9 : index
    %651 = memref.load %arg3[%c2_313, %c9_314] : memref<3x16xf32, #tpu.memory_space<smem>>
    %652 = vector.broadcast %651 : f32 to vector<6x2x6xf32>
    %653 = arith.mulf %652, %58 : vector<6x2x6xf32>
    %654 = arith.addf %650, %653 : vector<6x2x6xf32>
    %c2_315 = arith.constant 2 : index
    %c10_316 = arith.constant 10 : index
    %655 = memref.load %arg3[%c2_315, %c10_316] : memref<3x16xf32, #tpu.memory_space<smem>>
    %656 = vector.broadcast %655 : f32 to vector<6x2x6xf32>
    %657 = arith.mulf %656, %63 : vector<6x2x6xf32>
    %658 = arith.addf %654, %657 : vector<6x2x6xf32>
    %c2_317 = arith.constant 2 : index
    %c11_318 = arith.constant 11 : index
    %659 = memref.load %arg3[%c2_317, %c11_318] : memref<3x16xf32, #tpu.memory_space<smem>>
    %660 = vector.broadcast %659 : f32 to vector<6x2x6xf32>
    %661 = arith.mulf %660, %133 : vector<6x2x6xf32>
    %662 = arith.addf %658, %661 : vector<6x2x6xf32>
    %c2_319 = arith.constant 2 : index
    %c12_320 = arith.constant 12 : index
    %663 = memref.load %arg3[%c2_319, %c12_320] : memref<3x16xf32, #tpu.memory_space<smem>>
    %664 = vector.broadcast %663 : f32 to vector<6x2x6xf32>
    %665 = arith.mulf %664, %73 : vector<6x2x6xf32>
    %666 = arith.addf %662, %665 : vector<6x2x6xf32>
    %c2_321 = arith.constant 2 : index
    %c13_322 = arith.constant 13 : index
    %667 = memref.load %arg3[%c2_321, %c13_322] : memref<3x16xf32, #tpu.memory_space<smem>>
    %668 = vector.broadcast %667 : f32 to vector<6x2x6xf32>
    %669 = arith.mulf %668, %78 : vector<6x2x6xf32>
    %670 = arith.addf %666, %669 : vector<6x2x6xf32>
    %c2_323 = arith.constant 2 : index
    %c14_324 = arith.constant 14 : index
    %671 = memref.load %arg3[%c2_323, %c14_324] : memref<3x16xf32, #tpu.memory_space<smem>>
    %672 = vector.broadcast %671 : f32 to vector<6x2x6xf32>
    %673 = arith.mulf %672, %83 : vector<6x2x6xf32>
    %674 = arith.addf %670, %673 : vector<6x2x6xf32>
    %c2_325 = arith.constant 2 : index
    %c15_326 = arith.constant 15 : index
    %675 = memref.load %arg3[%c2_325, %c15_326] : memref<3x16xf32, #tpu.memory_space<smem>>
    %676 = vector.broadcast %675 : f32 to vector<6x2x6xf32>
    %677 = arith.mulf %676, %150 : vector<6x2x6xf32>
    %678 = arith.addf %674, %677 : vector<6x2x6xf32>
    %679 = arith.maximumf %615, %678 : vector<6x2x6xf32>
    %c2_327 = arith.constant 2 : index
    %c0_328 = arith.constant 0 : index
    %680 = memref.load %arg3[%c2_327, %c0_328] : memref<3x16xf32, #tpu.memory_space<smem>>
    %681 = vector.broadcast %680 : f32 to vector<6x2x6xf32>
    %682 = arith.mulf %681, %28 : vector<6x2x6xf32>
    %c2_329 = arith.constant 2 : index
    %c1_330 = arith.constant 1 : index
    %683 = memref.load %arg3[%c2_329, %c1_330] : memref<3x16xf32, #tpu.memory_space<smem>>
    %684 = vector.broadcast %683 : f32 to vector<6x2x6xf32>
    %685 = arith.mulf %684, %33 : vector<6x2x6xf32>
    %686 = arith.addf %682, %685 : vector<6x2x6xf32>
    %c2_331 = arith.constant 2 : index
    %c2_332 = arith.constant 2 : index
    %687 = memref.load %arg3[%c2_331, %c2_332] : memref<3x16xf32, #tpu.memory_space<smem>>
    %688 = vector.broadcast %687 : f32 to vector<6x2x6xf32>
    %689 = arith.mulf %688, %38 : vector<6x2x6xf32>
    %690 = arith.addf %686, %689 : vector<6x2x6xf32>
    %c2_333 = arith.constant 2 : index
    %c3_334 = arith.constant 3 : index
    %691 = memref.load %arg3[%c2_333, %c3_334] : memref<3x16xf32, #tpu.memory_space<smem>>
    %692 = vector.broadcast %691 : f32 to vector<6x2x6xf32>
    %693 = arith.mulf %692, %43 : vector<6x2x6xf32>
    %694 = arith.addf %690, %693 : vector<6x2x6xf32>
    %c2_335 = arith.constant 2 : index
    %c4_336 = arith.constant 4 : index
    %695 = memref.load %arg3[%c2_335, %c4_336] : memref<3x16xf32, #tpu.memory_space<smem>>
    %696 = vector.broadcast %695 : f32 to vector<6x2x6xf32>
    %697 = arith.mulf %696, %48 : vector<6x2x6xf32>
    %698 = arith.addf %694, %697 : vector<6x2x6xf32>
    %c2_337 = arith.constant 2 : index
    %c5_338 = arith.constant 5 : index
    %699 = memref.load %arg3[%c2_337, %c5_338] : memref<3x16xf32, #tpu.memory_space<smem>>
    %700 = vector.broadcast %699 : f32 to vector<6x2x6xf32>
    %701 = arith.mulf %700, %53 : vector<6x2x6xf32>
    %702 = arith.addf %698, %701 : vector<6x2x6xf32>
    %c2_339 = arith.constant 2 : index
    %c6_340 = arith.constant 6 : index
    %703 = memref.load %arg3[%c2_339, %c6_340] : memref<3x16xf32, #tpu.memory_space<smem>>
    %704 = vector.broadcast %703 : f32 to vector<6x2x6xf32>
    %705 = arith.mulf %704, %58 : vector<6x2x6xf32>
    %706 = arith.addf %702, %705 : vector<6x2x6xf32>
    %c2_341 = arith.constant 2 : index
    %c7_342 = arith.constant 7 : index
    %707 = memref.load %arg3[%c2_341, %c7_342] : memref<3x16xf32, #tpu.memory_space<smem>>
    %708 = vector.broadcast %707 : f32 to vector<6x2x6xf32>
    %709 = arith.mulf %708, %63 : vector<6x2x6xf32>
    %710 = arith.addf %706, %709 : vector<6x2x6xf32>
    %c2_343 = arith.constant 2 : index
    %c8_344 = arith.constant 8 : index
    %711 = memref.load %arg3[%c2_343, %c8_344] : memref<3x16xf32, #tpu.memory_space<smem>>
    %712 = vector.broadcast %711 : f32 to vector<6x2x6xf32>
    %713 = arith.mulf %712, %68 : vector<6x2x6xf32>
    %714 = arith.addf %710, %713 : vector<6x2x6xf32>
    %c2_345 = arith.constant 2 : index
    %c9_346 = arith.constant 9 : index
    %715 = memref.load %arg3[%c2_345, %c9_346] : memref<3x16xf32, #tpu.memory_space<smem>>
    %716 = vector.broadcast %715 : f32 to vector<6x2x6xf32>
    %717 = arith.mulf %716, %73 : vector<6x2x6xf32>
    %718 = arith.addf %714, %717 : vector<6x2x6xf32>
    %c2_347 = arith.constant 2 : index
    %c10_348 = arith.constant 10 : index
    %719 = memref.load %arg3[%c2_347, %c10_348] : memref<3x16xf32, #tpu.memory_space<smem>>
    %720 = vector.broadcast %719 : f32 to vector<6x2x6xf32>
    %721 = arith.mulf %720, %78 : vector<6x2x6xf32>
    %722 = arith.addf %718, %721 : vector<6x2x6xf32>
    %c2_349 = arith.constant 2 : index
    %c11_350 = arith.constant 11 : index
    %723 = memref.load %arg3[%c2_349, %c11_350] : memref<3x16xf32, #tpu.memory_space<smem>>
    %724 = vector.broadcast %723 : f32 to vector<6x2x6xf32>
    %725 = arith.mulf %724, %83 : vector<6x2x6xf32>
    %726 = arith.addf %722, %725 : vector<6x2x6xf32>
    %c2_351 = arith.constant 2 : index
    %c12_352 = arith.constant 12 : index
    %727 = memref.load %arg3[%c2_351, %c12_352] : memref<3x16xf32, #tpu.memory_space<smem>>
    %728 = vector.broadcast %727 : f32 to vector<6x2x6xf32>
    %729 = arith.mulf %728, %203 : vector<6x2x6xf32>
    %730 = arith.addf %726, %729 : vector<6x2x6xf32>
    %c2_353 = arith.constant 2 : index
    %c13_354 = arith.constant 13 : index
    %731 = memref.load %arg3[%c2_353, %c13_354] : memref<3x16xf32, #tpu.memory_space<smem>>
    %732 = vector.broadcast %731 : f32 to vector<6x2x6xf32>
    %733 = arith.mulf %732, %208 : vector<6x2x6xf32>
    %734 = arith.addf %730, %733 : vector<6x2x6xf32>
    %c2_355 = arith.constant 2 : index
    %c14_356 = arith.constant 14 : index
    %735 = memref.load %arg3[%c2_355, %c14_356] : memref<3x16xf32, #tpu.memory_space<smem>>
    %736 = vector.broadcast %735 : f32 to vector<6x2x6xf32>
    %737 = arith.mulf %736, %213 : vector<6x2x6xf32>
    %738 = arith.addf %734, %737 : vector<6x2x6xf32>
    %c2_357 = arith.constant 2 : index
    %c15_358 = arith.constant 15 : index
    %739 = memref.load %arg3[%c2_357, %c15_358] : memref<3x16xf32, #tpu.memory_space<smem>>
    %740 = vector.broadcast %739 : f32 to vector<6x2x6xf32>
    %741 = arith.mulf %740, %218 : vector<6x2x6xf32>
    %742 = arith.addf %738, %741 : vector<6x2x6xf32>
    %743 = arith.maximumf %679, %742 : vector<6x2x6xf32>
    %c2_359 = arith.constant 2 : index
    %c0_360 = arith.constant 0 : index
    %744 = memref.load %arg3[%c2_359, %c0_360] : memref<3x16xf32, #tpu.memory_space<smem>>
    %745 = vector.broadcast %744 : f32 to vector<6x2x6xf32>
    %746 = arith.mulf %745, %33 : vector<6x2x6xf32>
    %c2_361 = arith.constant 2 : index
    %c1_362 = arith.constant 1 : index
    %747 = memref.load %arg3[%c2_361, %c1_362] : memref<3x16xf32, #tpu.memory_space<smem>>
    %748 = vector.broadcast %747 : f32 to vector<6x2x6xf32>
    %749 = arith.mulf %748, %38 : vector<6x2x6xf32>
    %750 = arith.addf %746, %749 : vector<6x2x6xf32>
    %c2_363 = arith.constant 2 : index
    %c2_364 = arith.constant 2 : index
    %751 = memref.load %arg3[%c2_363, %c2_364] : memref<3x16xf32, #tpu.memory_space<smem>>
    %752 = vector.broadcast %751 : f32 to vector<6x2x6xf32>
    %753 = arith.mulf %752, %43 : vector<6x2x6xf32>
    %754 = arith.addf %750, %753 : vector<6x2x6xf32>
    %c2_365 = arith.constant 2 : index
    %c3_366 = arith.constant 3 : index
    %755 = memref.load %arg3[%c2_365, %c3_366] : memref<3x16xf32, #tpu.memory_space<smem>>
    %756 = vector.broadcast %755 : f32 to vector<6x2x6xf32>
    %757 = arith.mulf %756, %116 : vector<6x2x6xf32>
    %758 = arith.addf %754, %757 : vector<6x2x6xf32>
    %c2_367 = arith.constant 2 : index
    %c4_368 = arith.constant 4 : index
    %759 = memref.load %arg3[%c2_367, %c4_368] : memref<3x16xf32, #tpu.memory_space<smem>>
    %760 = vector.broadcast %759 : f32 to vector<6x2x6xf32>
    %761 = arith.mulf %760, %53 : vector<6x2x6xf32>
    %762 = arith.addf %758, %761 : vector<6x2x6xf32>
    %c2_369 = arith.constant 2 : index
    %c5_370 = arith.constant 5 : index
    %763 = memref.load %arg3[%c2_369, %c5_370] : memref<3x16xf32, #tpu.memory_space<smem>>
    %764 = vector.broadcast %763 : f32 to vector<6x2x6xf32>
    %765 = arith.mulf %764, %58 : vector<6x2x6xf32>
    %766 = arith.addf %762, %765 : vector<6x2x6xf32>
    %c2_371 = arith.constant 2 : index
    %c6_372 = arith.constant 6 : index
    %767 = memref.load %arg3[%c2_371, %c6_372] : memref<3x16xf32, #tpu.memory_space<smem>>
    %768 = vector.broadcast %767 : f32 to vector<6x2x6xf32>
    %769 = arith.mulf %768, %63 : vector<6x2x6xf32>
    %770 = arith.addf %766, %769 : vector<6x2x6xf32>
    %c2_373 = arith.constant 2 : index
    %c7_374 = arith.constant 7 : index
    %771 = memref.load %arg3[%c2_373, %c7_374] : memref<3x16xf32, #tpu.memory_space<smem>>
    %772 = vector.broadcast %771 : f32 to vector<6x2x6xf32>
    %773 = arith.mulf %772, %133 : vector<6x2x6xf32>
    %774 = arith.addf %770, %773 : vector<6x2x6xf32>
    %c2_375 = arith.constant 2 : index
    %c8_376 = arith.constant 8 : index
    %775 = memref.load %arg3[%c2_375, %c8_376] : memref<3x16xf32, #tpu.memory_space<smem>>
    %776 = vector.broadcast %775 : f32 to vector<6x2x6xf32>
    %777 = arith.mulf %776, %73 : vector<6x2x6xf32>
    %778 = arith.addf %774, %777 : vector<6x2x6xf32>
    %c2_377 = arith.constant 2 : index
    %c9_378 = arith.constant 9 : index
    %779 = memref.load %arg3[%c2_377, %c9_378] : memref<3x16xf32, #tpu.memory_space<smem>>
    %780 = vector.broadcast %779 : f32 to vector<6x2x6xf32>
    %781 = arith.mulf %780, %78 : vector<6x2x6xf32>
    %782 = arith.addf %778, %781 : vector<6x2x6xf32>
    %c2_379 = arith.constant 2 : index
    %c10_380 = arith.constant 10 : index
    %783 = memref.load %arg3[%c2_379, %c10_380] : memref<3x16xf32, #tpu.memory_space<smem>>
    %784 = vector.broadcast %783 : f32 to vector<6x2x6xf32>
    %785 = arith.mulf %784, %83 : vector<6x2x6xf32>
    %786 = arith.addf %782, %785 : vector<6x2x6xf32>
    %c2_381 = arith.constant 2 : index
    %c11_382 = arith.constant 11 : index
    %787 = memref.load %arg3[%c2_381, %c11_382] : memref<3x16xf32, #tpu.memory_space<smem>>
    %788 = vector.broadcast %787 : f32 to vector<6x2x6xf32>
    %789 = arith.mulf %788, %150 : vector<6x2x6xf32>
    %790 = arith.addf %786, %789 : vector<6x2x6xf32>
    %c2_383 = arith.constant 2 : index
    %c12_384 = arith.constant 12 : index
    %791 = memref.load %arg3[%c2_383, %c12_384] : memref<3x16xf32, #tpu.memory_space<smem>>
    %792 = vector.broadcast %791 : f32 to vector<6x2x6xf32>
    %793 = arith.mulf %792, %208 : vector<6x2x6xf32>
    %794 = arith.addf %790, %793 : vector<6x2x6xf32>
    %c2_385 = arith.constant 2 : index
    %c13_386 = arith.constant 13 : index
    %795 = memref.load %arg3[%c2_385, %c13_386] : memref<3x16xf32, #tpu.memory_space<smem>>
    %796 = vector.broadcast %795 : f32 to vector<6x2x6xf32>
    %797 = arith.mulf %796, %213 : vector<6x2x6xf32>
    %798 = arith.addf %794, %797 : vector<6x2x6xf32>
    %c2_387 = arith.constant 2 : index
    %c14_388 = arith.constant 14 : index
    %799 = memref.load %arg3[%c2_387, %c14_388] : memref<3x16xf32, #tpu.memory_space<smem>>
    %800 = vector.broadcast %799 : f32 to vector<6x2x6xf32>
    %801 = arith.mulf %800, %218 : vector<6x2x6xf32>
    %802 = arith.addf %798, %801 : vector<6x2x6xf32>
    %c2_389 = arith.constant 2 : index
    %c15_390 = arith.constant 15 : index
    %803 = memref.load %arg3[%c2_389, %c15_390] : memref<3x16xf32, #tpu.memory_space<smem>>
    %804 = vector.broadcast %803 : f32 to vector<6x2x6xf32>
    %805 = arith.mulf %804, %283 : vector<6x2x6xf32>
    %806 = arith.addf %802, %805 : vector<6x2x6xf32>
    %807 = arith.maximumf %743, %806 : vector<6x2x6xf32>
    %c2_391 = arith.constant 2 : index
    %808 = memref.load %arg4[%c2_391] : memref<3xf32, #tpu.memory_space<smem>>
    %809 = vector.broadcast %808 : f32 to vector<6x2x6xf32>
    %810 = arith.addf %807, %809 : vector<6x2x6xf32>
    %cst_392 = arith.constant 0.000000e+00 : f32
    %811 = vector.broadcast %cst_392 : f32 to vector<6x2x6xf32>
    %812 = arith.maximumf %810, %811 : vector<6x2x6xf32>
    %813 = vector.extract_strided_slice %292 {offsets = [0, 0, 0], sizes = [5, 2, 5], strides = [1, 1, 1]} : vector<6x2x6xf32> to vector<5x2x5xf32>
    %814 = vector.extract_strided_slice %292 {offsets = [0, 0, 1], sizes = [5, 2, 5], strides = [1, 1, 1]} : vector<6x2x6xf32> to vector<5x2x5xf32>
    %815 = vector.extract_strided_slice %292 {offsets = [1, 0, 0], sizes = [5, 2, 5], strides = [1, 1, 1]} : vector<6x2x6xf32> to vector<5x2x5xf32>
    %816 = vector.extract_strided_slice %292 {offsets = [1, 0, 1], sizes = [5, 2, 5], strides = [1, 1, 1]} : vector<6x2x6xf32> to vector<5x2x5xf32>
    %817 = vector.extract_strided_slice %552 {offsets = [0, 0, 0], sizes = [5, 2, 5], strides = [1, 1, 1]} : vector<6x2x6xf32> to vector<5x2x5xf32>
    %818 = vector.extract_strided_slice %552 {offsets = [0, 0, 1], sizes = [5, 2, 5], strides = [1, 1, 1]} : vector<6x2x6xf32> to vector<5x2x5xf32>
    %819 = vector.extract_strided_slice %552 {offsets = [1, 0, 0], sizes = [5, 2, 5], strides = [1, 1, 1]} : vector<6x2x6xf32> to vector<5x2x5xf32>
    %820 = vector.extract_strided_slice %552 {offsets = [1, 0, 1], sizes = [5, 2, 5], strides = [1, 1, 1]} : vector<6x2x6xf32> to vector<5x2x5xf32>
    %821 = vector.extract_strided_slice %812 {offsets = [0, 0, 0], sizes = [5, 2, 5], strides = [1, 1, 1]} : vector<6x2x6xf32> to vector<5x2x5xf32>
    %822 = vector.extract_strided_slice %812 {offsets = [0, 0, 1], sizes = [5, 2, 5], strides = [1, 1, 1]} : vector<6x2x6xf32> to vector<5x2x5xf32>
    %823 = vector.extract_strided_slice %812 {offsets = [1, 0, 0], sizes = [5, 2, 5], strides = [1, 1, 1]} : vector<6x2x6xf32> to vector<5x2x5xf32>
    %824 = vector.extract_strided_slice %812 {offsets = [1, 0, 1], sizes = [5, 2, 5], strides = [1, 1, 1]} : vector<6x2x6xf32> to vector<5x2x5xf32>
    %c0_393 = arith.constant 0 : index
    %c0_394 = arith.constant 0 : index
    %825 = memref.load %arg5[%c0_393, %c0_394] : memref<3x12xf32, #tpu.memory_space<smem>>
    %826 = vector.broadcast %825 : f32 to vector<5x2x5xf32>
    %827 = arith.mulf %826, %813 : vector<5x2x5xf32>
    %c0_395 = arith.constant 0 : index
    %c1_396 = arith.constant 1 : index
    %828 = memref.load %arg5[%c0_395, %c1_396] : memref<3x12xf32, #tpu.memory_space<smem>>
    %829 = vector.broadcast %828 : f32 to vector<5x2x5xf32>
    %830 = arith.mulf %829, %814 : vector<5x2x5xf32>
    %831 = arith.addf %827, %830 : vector<5x2x5xf32>
    %c0_397 = arith.constant 0 : index
    %c2_398 = arith.constant 2 : index
    %832 = memref.load %arg5[%c0_397, %c2_398] : memref<3x12xf32, #tpu.memory_space<smem>>
    %833 = vector.broadcast %832 : f32 to vector<5x2x5xf32>
    %834 = arith.mulf %833, %815 : vector<5x2x5xf32>
    %835 = arith.addf %831, %834 : vector<5x2x5xf32>
    %c0_399 = arith.constant 0 : index
    %c3_400 = arith.constant 3 : index
    %836 = memref.load %arg5[%c0_399, %c3_400] : memref<3x12xf32, #tpu.memory_space<smem>>
    %837 = vector.broadcast %836 : f32 to vector<5x2x5xf32>
    %838 = arith.mulf %837, %816 : vector<5x2x5xf32>
    %839 = arith.addf %835, %838 : vector<5x2x5xf32>
    %c0_401 = arith.constant 0 : index
    %c4_402 = arith.constant 4 : index
    %840 = memref.load %arg5[%c0_401, %c4_402] : memref<3x12xf32, #tpu.memory_space<smem>>
    %841 = vector.broadcast %840 : f32 to vector<5x2x5xf32>
    %842 = arith.mulf %841, %817 : vector<5x2x5xf32>
    %843 = arith.addf %839, %842 : vector<5x2x5xf32>
    %c0_403 = arith.constant 0 : index
    %c5_404 = arith.constant 5 : index
    %844 = memref.load %arg5[%c0_403, %c5_404] : memref<3x12xf32, #tpu.memory_space<smem>>
    %845 = vector.broadcast %844 : f32 to vector<5x2x5xf32>
    %846 = arith.mulf %845, %818 : vector<5x2x5xf32>
    %847 = arith.addf %843, %846 : vector<5x2x5xf32>
    %c0_405 = arith.constant 0 : index
    %c6_406 = arith.constant 6 : index
    %848 = memref.load %arg5[%c0_405, %c6_406] : memref<3x12xf32, #tpu.memory_space<smem>>
    %849 = vector.broadcast %848 : f32 to vector<5x2x5xf32>
    %850 = arith.mulf %849, %819 : vector<5x2x5xf32>
    %851 = arith.addf %847, %850 : vector<5x2x5xf32>
    %c0_407 = arith.constant 0 : index
    %c7_408 = arith.constant 7 : index
    %852 = memref.load %arg5[%c0_407, %c7_408] : memref<3x12xf32, #tpu.memory_space<smem>>
    %853 = vector.broadcast %852 : f32 to vector<5x2x5xf32>
    %854 = arith.mulf %853, %820 : vector<5x2x5xf32>
    %855 = arith.addf %851, %854 : vector<5x2x5xf32>
    %c0_409 = arith.constant 0 : index
    %c8_410 = arith.constant 8 : index
    %856 = memref.load %arg5[%c0_409, %c8_410] : memref<3x12xf32, #tpu.memory_space<smem>>
    %857 = vector.broadcast %856 : f32 to vector<5x2x5xf32>
    %858 = arith.mulf %857, %821 : vector<5x2x5xf32>
    %859 = arith.addf %855, %858 : vector<5x2x5xf32>
    %c0_411 = arith.constant 0 : index
    %c9_412 = arith.constant 9 : index
    %860 = memref.load %arg5[%c0_411, %c9_412] : memref<3x12xf32, #tpu.memory_space<smem>>
    %861 = vector.broadcast %860 : f32 to vector<5x2x5xf32>
    %862 = arith.mulf %861, %822 : vector<5x2x5xf32>
    %863 = arith.addf %859, %862 : vector<5x2x5xf32>
    %c0_413 = arith.constant 0 : index
    %c10_414 = arith.constant 10 : index
    %864 = memref.load %arg5[%c0_413, %c10_414] : memref<3x12xf32, #tpu.memory_space<smem>>
    %865 = vector.broadcast %864 : f32 to vector<5x2x5xf32>
    %866 = arith.mulf %865, %823 : vector<5x2x5xf32>
    %867 = arith.addf %863, %866 : vector<5x2x5xf32>
    %c0_415 = arith.constant 0 : index
    %c11_416 = arith.constant 11 : index
    %868 = memref.load %arg5[%c0_415, %c11_416] : memref<3x12xf32, #tpu.memory_space<smem>>
    %869 = vector.broadcast %868 : f32 to vector<5x2x5xf32>
    %870 = arith.mulf %869, %824 : vector<5x2x5xf32>
    %871 = arith.addf %867, %870 : vector<5x2x5xf32>
    %c0_417 = arith.constant 0 : index
    %872 = memref.load %arg6[%c0_417] : memref<3xf32, #tpu.memory_space<smem>>
    %873 = vector.broadcast %872 : f32 to vector<5x2x5xf32>
    %874 = arith.addf %871, %873 : vector<5x2x5xf32>
    %cst_418 = arith.constant 0.000000e+00 : f32
    %875 = vector.broadcast %cst_418 : f32 to vector<5x2x5xf32>
    %876 = arith.maximumf %874, %875 : vector<5x2x5xf32>
    %877 = vector.extract_strided_slice %876 {offsets = [0, 0, 0], sizes = [4, 2, 4], strides = [1, 1, 1]} : vector<5x2x5xf32> to vector<4x2x4xf32>
    %878 = vector.extract_strided_slice %876 {offsets = [0, 0, 1], sizes = [4, 2, 4], strides = [1, 1, 1]} : vector<5x2x5xf32> to vector<4x2x4xf32>
    %879 = arith.maximumf %877, %878 : vector<4x2x4xf32>
    %880 = vector.extract_strided_slice %876 {offsets = [1, 0, 0], sizes = [4, 2, 4], strides = [1, 1, 1]} : vector<5x2x5xf32> to vector<4x2x4xf32>
    %881 = vector.extract_strided_slice %876 {offsets = [1, 0, 1], sizes = [4, 2, 4], strides = [1, 1, 1]} : vector<5x2x5xf32> to vector<4x2x4xf32>
    %882 = arith.maximumf %880, %881 : vector<4x2x4xf32>
    %883 = arith.maximumf %879, %882 : vector<4x2x4xf32>
    %884 = vector.extract_strided_slice %883 {offsets = [0, 0, 0], sizes = [1, 2, 4], strides = [1, 1, 1]} : vector<4x2x4xf32> to vector<1x2x4xf32>
    %885 = vector.shape_cast %884 : vector<1x2x4xf32> to vector<2x4xf32>
    %886 = arith.truncf %885 : vector<2x4xf32> to vector<2x4xbf16>
    %c0_419 = arith.constant 0 : index
    %c0_420 = arith.constant 0 : index
    %c0_421 = arith.constant 0 : index
    %887 = vector.load %arg7[%c0_419, %c0_420, %c0_421] : memref<12x4x64xbf16, #tpu.memory_space<vmem>>, vector<1x4x64xbf16>
    %888 = vector.shape_cast %887 : vector<1x4x64xbf16> to vector<4x64xbf16>
    %cst_422 = arith.constant dense<0.000000e+00> : vector<2x64xf32>
    %889 = tpu.matmul %886, %888, %cst_422 {dimension_numbers = #tpu.dot_dimension_numbers<[1], [0], [0], [1], [0, 0, 1, 1], [], []>} : vector<2x4xbf16>, vector<4x64xbf16>, vector<2x64xf32> -> vector<2x64xf32>
    %890 = vector.extract_strided_slice %883 {offsets = [1, 0, 0], sizes = [1, 2, 4], strides = [1, 1, 1]} : vector<4x2x4xf32> to vector<1x2x4xf32>
    %891 = vector.shape_cast %890 : vector<1x2x4xf32> to vector<2x4xf32>
    %892 = arith.truncf %891 : vector<2x4xf32> to vector<2x4xbf16>
    %c1_423 = arith.constant 1 : index
    %c0_424 = arith.constant 0 : index
    %c0_425 = arith.constant 0 : index
    %893 = vector.load %arg7[%c1_423, %c0_424, %c0_425] : memref<12x4x64xbf16, #tpu.memory_space<vmem>>, vector<1x4x64xbf16>
    %894 = vector.shape_cast %893 : vector<1x4x64xbf16> to vector<4x64xbf16>
    %cst_426 = arith.constant dense<0.000000e+00> : vector<2x64xf32>
    %895 = tpu.matmul %892, %894, %cst_426 {dimension_numbers = #tpu.dot_dimension_numbers<[1], [0], [0], [1], [0, 0, 1, 1], [], []>} : vector<2x4xbf16>, vector<4x64xbf16>, vector<2x64xf32> -> vector<2x64xf32>
    %896 = arith.addf %889, %895 : vector<2x64xf32>
    %897 = vector.extract_strided_slice %883 {offsets = [2, 0, 0], sizes = [1, 2, 4], strides = [1, 1, 1]} : vector<4x2x4xf32> to vector<1x2x4xf32>
    %898 = vector.shape_cast %897 : vector<1x2x4xf32> to vector<2x4xf32>
    %899 = arith.truncf %898 : vector<2x4xf32> to vector<2x4xbf16>
    %c2_427 = arith.constant 2 : index
    %c0_428 = arith.constant 0 : index
    %c0_429 = arith.constant 0 : index
    %900 = vector.load %arg7[%c2_427, %c0_428, %c0_429] : memref<12x4x64xbf16, #tpu.memory_space<vmem>>, vector<1x4x64xbf16>
    %901 = vector.shape_cast %900 : vector<1x4x64xbf16> to vector<4x64xbf16>
    %cst_430 = arith.constant dense<0.000000e+00> : vector<2x64xf32>
    %902 = tpu.matmul %899, %901, %cst_430 {dimension_numbers = #tpu.dot_dimension_numbers<[1], [0], [0], [1], [0, 0, 1, 1], [], []>} : vector<2x4xbf16>, vector<4x64xbf16>, vector<2x64xf32> -> vector<2x64xf32>
    %903 = arith.addf %896, %902 : vector<2x64xf32>
    %904 = vector.extract_strided_slice %883 {offsets = [3, 0, 0], sizes = [1, 2, 4], strides = [1, 1, 1]} : vector<4x2x4xf32> to vector<1x2x4xf32>
    %905 = vector.shape_cast %904 : vector<1x2x4xf32> to vector<2x4xf32>
    %906 = arith.truncf %905 : vector<2x4xf32> to vector<2x4xbf16>
    %c3_431 = arith.constant 3 : index
    %c0_432 = arith.constant 0 : index
    %c0_433 = arith.constant 0 : index
    %907 = vector.load %arg7[%c3_431, %c0_432, %c0_433] : memref<12x4x64xbf16, #tpu.memory_space<vmem>>, vector<1x4x64xbf16>
    %908 = vector.shape_cast %907 : vector<1x4x64xbf16> to vector<4x64xbf16>
    %cst_434 = arith.constant dense<0.000000e+00> : vector<2x64xf32>
    %909 = tpu.matmul %906, %908, %cst_434 {dimension_numbers = #tpu.dot_dimension_numbers<[1], [0], [0], [1], [0, 0, 1, 1], [], []>} : vector<2x4xbf16>, vector<4x64xbf16>, vector<2x64xf32> -> vector<2x64xf32>
    %910 = arith.addf %903, %909 : vector<2x64xf32>
    %c1_435 = arith.constant 1 : index
    %c0_436 = arith.constant 0 : index
    %911 = memref.load %arg5[%c1_435, %c0_436] : memref<3x12xf32, #tpu.memory_space<smem>>
    %912 = vector.broadcast %911 : f32 to vector<5x2x5xf32>
    %913 = arith.mulf %912, %813 : vector<5x2x5xf32>
    %c1_437 = arith.constant 1 : index
    %c1_438 = arith.constant 1 : index
    %914 = memref.load %arg5[%c1_437, %c1_438] : memref<3x12xf32, #tpu.memory_space<smem>>
    %915 = vector.broadcast %914 : f32 to vector<5x2x5xf32>
    %916 = arith.mulf %915, %814 : vector<5x2x5xf32>
    %917 = arith.addf %913, %916 : vector<5x2x5xf32>
    %c1_439 = arith.constant 1 : index
    %c2_440 = arith.constant 2 : index
    %918 = memref.load %arg5[%c1_439, %c2_440] : memref<3x12xf32, #tpu.memory_space<smem>>
    %919 = vector.broadcast %918 : f32 to vector<5x2x5xf32>
    %920 = arith.mulf %919, %815 : vector<5x2x5xf32>
    %921 = arith.addf %917, %920 : vector<5x2x5xf32>
    %c1_441 = arith.constant 1 : index
    %c3_442 = arith.constant 3 : index
    %922 = memref.load %arg5[%c1_441, %c3_442] : memref<3x12xf32, #tpu.memory_space<smem>>
    %923 = vector.broadcast %922 : f32 to vector<5x2x5xf32>
    %924 = arith.mulf %923, %816 : vector<5x2x5xf32>
    %925 = arith.addf %921, %924 : vector<5x2x5xf32>
    %c1_443 = arith.constant 1 : index
    %c4_444 = arith.constant 4 : index
    %926 = memref.load %arg5[%c1_443, %c4_444] : memref<3x12xf32, #tpu.memory_space<smem>>
    %927 = vector.broadcast %926 : f32 to vector<5x2x5xf32>
    %928 = arith.mulf %927, %817 : vector<5x2x5xf32>
    %929 = arith.addf %925, %928 : vector<5x2x5xf32>
    %c1_445 = arith.constant 1 : index
    %c5_446 = arith.constant 5 : index
    %930 = memref.load %arg5[%c1_445, %c5_446] : memref<3x12xf32, #tpu.memory_space<smem>>
    %931 = vector.broadcast %930 : f32 to vector<5x2x5xf32>
    %932 = arith.mulf %931, %818 : vector<5x2x5xf32>
    %933 = arith.addf %929, %932 : vector<5x2x5xf32>
    %c1_447 = arith.constant 1 : index
    %c6_448 = arith.constant 6 : index
    %934 = memref.load %arg5[%c1_447, %c6_448] : memref<3x12xf32, #tpu.memory_space<smem>>
    %935 = vector.broadcast %934 : f32 to vector<5x2x5xf32>
    %936 = arith.mulf %935, %819 : vector<5x2x5xf32>
    %937 = arith.addf %933, %936 : vector<5x2x5xf32>
    %c1_449 = arith.constant 1 : index
    %c7_450 = arith.constant 7 : index
    %938 = memref.load %arg5[%c1_449, %c7_450] : memref<3x12xf32, #tpu.memory_space<smem>>
    %939 = vector.broadcast %938 : f32 to vector<5x2x5xf32>
    %940 = arith.mulf %939, %820 : vector<5x2x5xf32>
    %941 = arith.addf %937, %940 : vector<5x2x5xf32>
    %c1_451 = arith.constant 1 : index
    %c8_452 = arith.constant 8 : index
    %942 = memref.load %arg5[%c1_451, %c8_452] : memref<3x12xf32, #tpu.memory_space<smem>>
    %943 = vector.broadcast %942 : f32 to vector<5x2x5xf32>
    %944 = arith.mulf %943, %821 : vector<5x2x5xf32>
    %945 = arith.addf %941, %944 : vector<5x2x5xf32>
    %c1_453 = arith.constant 1 : index
    %c9_454 = arith.constant 9 : index
    %946 = memref.load %arg5[%c1_453, %c9_454] : memref<3x12xf32, #tpu.memory_space<smem>>
    %947 = vector.broadcast %946 : f32 to vector<5x2x5xf32>
    %948 = arith.mulf %947, %822 : vector<5x2x5xf32>
    %949 = arith.addf %945, %948 : vector<5x2x5xf32>
    %c1_455 = arith.constant 1 : index
    %c10_456 = arith.constant 10 : index
    %950 = memref.load %arg5[%c1_455, %c10_456] : memref<3x12xf32, #tpu.memory_space<smem>>
    %951 = vector.broadcast %950 : f32 to vector<5x2x5xf32>
    %952 = arith.mulf %951, %823 : vector<5x2x5xf32>
    %953 = arith.addf %949, %952 : vector<5x2x5xf32>
    %c1_457 = arith.constant 1 : index
    %c11_458 = arith.constant 11 : index
    %954 = memref.load %arg5[%c1_457, %c11_458] : memref<3x12xf32, #tpu.memory_space<smem>>
    %955 = vector.broadcast %954 : f32 to vector<5x2x5xf32>
    %956 = arith.mulf %955, %824 : vector<5x2x5xf32>
    %957 = arith.addf %953, %956 : vector<5x2x5xf32>
    %c1_459 = arith.constant 1 : index
    %958 = memref.load %arg6[%c1_459] : memref<3xf32, #tpu.memory_space<smem>>
    %959 = vector.broadcast %958 : f32 to vector<5x2x5xf32>
    %960 = arith.addf %957, %959 : vector<5x2x5xf32>
    %cst_460 = arith.constant 0.000000e+00 : f32
    %961 = vector.broadcast %cst_460 : f32 to vector<5x2x5xf32>
    %962 = arith.maximumf %960, %961 : vector<5x2x5xf32>
    %963 = vector.extract_strided_slice %962 {offsets = [0, 0, 0], sizes = [4, 2, 4], strides = [1, 1, 1]} : vector<5x2x5xf32> to vector<4x2x4xf32>
    %964 = vector.extract_strided_slice %962 {offsets = [0, 0, 1], sizes = [4, 2, 4], strides = [1, 1, 1]} : vector<5x2x5xf32> to vector<4x2x4xf32>
    %965 = arith.maximumf %963, %964 : vector<4x2x4xf32>
    %966 = vector.extract_strided_slice %962 {offsets = [1, 0, 0], sizes = [4, 2, 4], strides = [1, 1, 1]} : vector<5x2x5xf32> to vector<4x2x4xf32>
    %967 = vector.extract_strided_slice %962 {offsets = [1, 0, 1], sizes = [4, 2, 4], strides = [1, 1, 1]} : vector<5x2x5xf32> to vector<4x2x4xf32>
    %968 = arith.maximumf %966, %967 : vector<4x2x4xf32>
    %969 = arith.maximumf %965, %968 : vector<4x2x4xf32>
    %970 = vector.extract_strided_slice %969 {offsets = [0, 0, 0], sizes = [1, 2, 4], strides = [1, 1, 1]} : vector<4x2x4xf32> to vector<1x2x4xf32>
    %971 = vector.shape_cast %970 : vector<1x2x4xf32> to vector<2x4xf32>
    %972 = arith.truncf %971 : vector<2x4xf32> to vector<2x4xbf16>
    %c4_461 = arith.constant 4 : index
    %c0_462 = arith.constant 0 : index
    %c0_463 = arith.constant 0 : index
    %973 = vector.load %arg7[%c4_461, %c0_462, %c0_463] : memref<12x4x64xbf16, #tpu.memory_space<vmem>>, vector<1x4x64xbf16>
    %974 = vector.shape_cast %973 : vector<1x4x64xbf16> to vector<4x64xbf16>
    %cst_464 = arith.constant dense<0.000000e+00> : vector<2x64xf32>
    %975 = tpu.matmul %972, %974, %cst_464 {dimension_numbers = #tpu.dot_dimension_numbers<[1], [0], [0], [1], [0, 0, 1, 1], [], []>} : vector<2x4xbf16>, vector<4x64xbf16>, vector<2x64xf32> -> vector<2x64xf32>
    %976 = arith.addf %910, %975 : vector<2x64xf32>
    %977 = vector.extract_strided_slice %969 {offsets = [1, 0, 0], sizes = [1, 2, 4], strides = [1, 1, 1]} : vector<4x2x4xf32> to vector<1x2x4xf32>
    %978 = vector.shape_cast %977 : vector<1x2x4xf32> to vector<2x4xf32>
    %979 = arith.truncf %978 : vector<2x4xf32> to vector<2x4xbf16>
    %c5_465 = arith.constant 5 : index
    %c0_466 = arith.constant 0 : index
    %c0_467 = arith.constant 0 : index
    %980 = vector.load %arg7[%c5_465, %c0_466, %c0_467] : memref<12x4x64xbf16, #tpu.memory_space<vmem>>, vector<1x4x64xbf16>
    %981 = vector.shape_cast %980 : vector<1x4x64xbf16> to vector<4x64xbf16>
    %cst_468 = arith.constant dense<0.000000e+00> : vector<2x64xf32>
    %982 = tpu.matmul %979, %981, %cst_468 {dimension_numbers = #tpu.dot_dimension_numbers<[1], [0], [0], [1], [0, 0, 1, 1], [], []>} : vector<2x4xbf16>, vector<4x64xbf16>, vector<2x64xf32> -> vector<2x64xf32>
    %983 = arith.addf %976, %982 : vector<2x64xf32>
    %984 = vector.extract_strided_slice %969 {offsets = [2, 0, 0], sizes = [1, 2, 4], strides = [1, 1, 1]} : vector<4x2x4xf32> to vector<1x2x4xf32>
    %985 = vector.shape_cast %984 : vector<1x2x4xf32> to vector<2x4xf32>
    %986 = arith.truncf %985 : vector<2x4xf32> to vector<2x4xbf16>
    %c6_469 = arith.constant 6 : index
    %c0_470 = arith.constant 0 : index
    %c0_471 = arith.constant 0 : index
    %987 = vector.load %arg7[%c6_469, %c0_470, %c0_471] : memref<12x4x64xbf16, #tpu.memory_space<vmem>>, vector<1x4x64xbf16>
    %988 = vector.shape_cast %987 : vector<1x4x64xbf16> to vector<4x64xbf16>
    %cst_472 = arith.constant dense<0.000000e+00> : vector<2x64xf32>
    %989 = tpu.matmul %986, %988, %cst_472 {dimension_numbers = #tpu.dot_dimension_numbers<[1], [0], [0], [1], [0, 0, 1, 1], [], []>} : vector<2x4xbf16>, vector<4x64xbf16>, vector<2x64xf32> -> vector<2x64xf32>
    %990 = arith.addf %983, %989 : vector<2x64xf32>
    %991 = vector.extract_strided_slice %969 {offsets = [3, 0, 0], sizes = [1, 2, 4], strides = [1, 1, 1]} : vector<4x2x4xf32> to vector<1x2x4xf32>
    %992 = vector.shape_cast %991 : vector<1x2x4xf32> to vector<2x4xf32>
    %993 = arith.truncf %992 : vector<2x4xf32> to vector<2x4xbf16>
    %c7_473 = arith.constant 7 : index
    %c0_474 = arith.constant 0 : index
    %c0_475 = arith.constant 0 : index
    %994 = vector.load %arg7[%c7_473, %c0_474, %c0_475] : memref<12x4x64xbf16, #tpu.memory_space<vmem>>, vector<1x4x64xbf16>
    %995 = vector.shape_cast %994 : vector<1x4x64xbf16> to vector<4x64xbf16>
    %cst_476 = arith.constant dense<0.000000e+00> : vector<2x64xf32>
    %996 = tpu.matmul %993, %995, %cst_476 {dimension_numbers = #tpu.dot_dimension_numbers<[1], [0], [0], [1], [0, 0, 1, 1], [], []>} : vector<2x4xbf16>, vector<4x64xbf16>, vector<2x64xf32> -> vector<2x64xf32>
    %997 = arith.addf %990, %996 : vector<2x64xf32>
    %c2_477 = arith.constant 2 : index
    %c0_478 = arith.constant 0 : index
    %998 = memref.load %arg5[%c2_477, %c0_478] : memref<3x12xf32, #tpu.memory_space<smem>>
    %999 = vector.broadcast %998 : f32 to vector<5x2x5xf32>
    %1000 = arith.mulf %999, %813 : vector<5x2x5xf32>
    %c2_479 = arith.constant 2 : index
    %c1_480 = arith.constant 1 : index
    %1001 = memref.load %arg5[%c2_479, %c1_480] : memref<3x12xf32, #tpu.memory_space<smem>>
    %1002 = vector.broadcast %1001 : f32 to vector<5x2x5xf32>
    %1003 = arith.mulf %1002, %814 : vector<5x2x5xf32>
    %1004 = arith.addf %1000, %1003 : vector<5x2x5xf32>
    %c2_481 = arith.constant 2 : index
    %c2_482 = arith.constant 2 : index
    %1005 = memref.load %arg5[%c2_481, %c2_482] : memref<3x12xf32, #tpu.memory_space<smem>>
    %1006 = vector.broadcast %1005 : f32 to vector<5x2x5xf32>
    %1007 = arith.mulf %1006, %815 : vector<5x2x5xf32>
    %1008 = arith.addf %1004, %1007 : vector<5x2x5xf32>
    %c2_483 = arith.constant 2 : index
    %c3_484 = arith.constant 3 : index
    %1009 = memref.load %arg5[%c2_483, %c3_484] : memref<3x12xf32, #tpu.memory_space<smem>>
    %1010 = vector.broadcast %1009 : f32 to vector<5x2x5xf32>
    %1011 = arith.mulf %1010, %816 : vector<5x2x5xf32>
    %1012 = arith.addf %1008, %1011 : vector<5x2x5xf32>
    %c2_485 = arith.constant 2 : index
    %c4_486 = arith.constant 4 : index
    %1013 = memref.load %arg5[%c2_485, %c4_486] : memref<3x12xf32, #tpu.memory_space<smem>>
    %1014 = vector.broadcast %1013 : f32 to vector<5x2x5xf32>
    %1015 = arith.mulf %1014, %817 : vector<5x2x5xf32>
    %1016 = arith.addf %1012, %1015 : vector<5x2x5xf32>
    %c2_487 = arith.constant 2 : index
    %c5_488 = arith.constant 5 : index
    %1017 = memref.load %arg5[%c2_487, %c5_488] : memref<3x12xf32, #tpu.memory_space<smem>>
    %1018 = vector.broadcast %1017 : f32 to vector<5x2x5xf32>
    %1019 = arith.mulf %1018, %818 : vector<5x2x5xf32>
    %1020 = arith.addf %1016, %1019 : vector<5x2x5xf32>
    %c2_489 = arith.constant 2 : index
    %c6_490 = arith.constant 6 : index
    %1021 = memref.load %arg5[%c2_489, %c6_490] : memref<3x12xf32, #tpu.memory_space<smem>>
    %1022 = vector.broadcast %1021 : f32 to vector<5x2x5xf32>
    %1023 = arith.mulf %1022, %819 : vector<5x2x5xf32>
    %1024 = arith.addf %1020, %1023 : vector<5x2x5xf32>
    %c2_491 = arith.constant 2 : index
    %c7_492 = arith.constant 7 : index
    %1025 = memref.load %arg5[%c2_491, %c7_492] : memref<3x12xf32, #tpu.memory_space<smem>>
    %1026 = vector.broadcast %1025 : f32 to vector<5x2x5xf32>
    %1027 = arith.mulf %1026, %820 : vector<5x2x5xf32>
    %1028 = arith.addf %1024, %1027 : vector<5x2x5xf32>
    %c2_493 = arith.constant 2 : index
    %c8_494 = arith.constant 8 : index
    %1029 = memref.load %arg5[%c2_493, %c8_494] : memref<3x12xf32, #tpu.memory_space<smem>>
    %1030 = vector.broadcast %1029 : f32 to vector<5x2x5xf32>
    %1031 = arith.mulf %1030, %821 : vector<5x2x5xf32>
    %1032 = arith.addf %1028, %1031 : vector<5x2x5xf32>
    %c2_495 = arith.constant 2 : index
    %c9_496 = arith.constant 9 : index
    %1033 = memref.load %arg5[%c2_495, %c9_496] : memref<3x12xf32, #tpu.memory_space<smem>>
    %1034 = vector.broadcast %1033 : f32 to vector<5x2x5xf32>
    %1035 = arith.mulf %1034, %822 : vector<5x2x5xf32>
    %1036 = arith.addf %1032, %1035 : vector<5x2x5xf32>
    %c2_497 = arith.constant 2 : index
    %c10_498 = arith.constant 10 : index
    %1037 = memref.load %arg5[%c2_497, %c10_498] : memref<3x12xf32, #tpu.memory_space<smem>>
    %1038 = vector.broadcast %1037 : f32 to vector<5x2x5xf32>
    %1039 = arith.mulf %1038, %823 : vector<5x2x5xf32>
    %1040 = arith.addf %1036, %1039 : vector<5x2x5xf32>
    %c2_499 = arith.constant 2 : index
    %c11_500 = arith.constant 11 : index
    %1041 = memref.load %arg5[%c2_499, %c11_500] : memref<3x12xf32, #tpu.memory_space<smem>>
    %1042 = vector.broadcast %1041 : f32 to vector<5x2x5xf32>
    %1043 = arith.mulf %1042, %824 : vector<5x2x5xf32>
    %1044 = arith.addf %1040, %1043 : vector<5x2x5xf32>
    %c2_501 = arith.constant 2 : index
    %1045 = memref.load %arg6[%c2_501] : memref<3xf32, #tpu.memory_space<smem>>
    %1046 = vector.broadcast %1045 : f32 to vector<5x2x5xf32>
    %1047 = arith.addf %1044, %1046 : vector<5x2x5xf32>
    %cst_502 = arith.constant 0.000000e+00 : f32
    %1048 = vector.broadcast %cst_502 : f32 to vector<5x2x5xf32>
    %1049 = arith.maximumf %1047, %1048 : vector<5x2x5xf32>
    %1050 = vector.extract_strided_slice %1049 {offsets = [0, 0, 0], sizes = [4, 2, 4], strides = [1, 1, 1]} : vector<5x2x5xf32> to vector<4x2x4xf32>
    %1051 = vector.extract_strided_slice %1049 {offsets = [0, 0, 1], sizes = [4, 2, 4], strides = [1, 1, 1]} : vector<5x2x5xf32> to vector<4x2x4xf32>
    %1052 = arith.maximumf %1050, %1051 : vector<4x2x4xf32>
    %1053 = vector.extract_strided_slice %1049 {offsets = [1, 0, 0], sizes = [4, 2, 4], strides = [1, 1, 1]} : vector<5x2x5xf32> to vector<4x2x4xf32>
    %1054 = vector.extract_strided_slice %1049 {offsets = [1, 0, 1], sizes = [4, 2, 4], strides = [1, 1, 1]} : vector<5x2x5xf32> to vector<4x2x4xf32>
    %1055 = arith.maximumf %1053, %1054 : vector<4x2x4xf32>
    %1056 = arith.maximumf %1052, %1055 : vector<4x2x4xf32>
    %1057 = vector.extract_strided_slice %1056 {offsets = [0, 0, 0], sizes = [1, 2, 4], strides = [1, 1, 1]} : vector<4x2x4xf32> to vector<1x2x4xf32>
    %1058 = vector.shape_cast %1057 : vector<1x2x4xf32> to vector<2x4xf32>
    %1059 = arith.truncf %1058 : vector<2x4xf32> to vector<2x4xbf16>
    %c8_503 = arith.constant 8 : index
    %c0_504 = arith.constant 0 : index
    %c0_505 = arith.constant 0 : index
    %1060 = vector.load %arg7[%c8_503, %c0_504, %c0_505] : memref<12x4x64xbf16, #tpu.memory_space<vmem>>, vector<1x4x64xbf16>
    %1061 = vector.shape_cast %1060 : vector<1x4x64xbf16> to vector<4x64xbf16>
    %cst_506 = arith.constant dense<0.000000e+00> : vector<2x64xf32>
    %1062 = tpu.matmul %1059, %1061, %cst_506 {dimension_numbers = #tpu.dot_dimension_numbers<[1], [0], [0], [1], [0, 0, 1, 1], [], []>} : vector<2x4xbf16>, vector<4x64xbf16>, vector<2x64xf32> -> vector<2x64xf32>
    %1063 = arith.addf %997, %1062 : vector<2x64xf32>
    %1064 = vector.extract_strided_slice %1056 {offsets = [1, 0, 0], sizes = [1, 2, 4], strides = [1, 1, 1]} : vector<4x2x4xf32> to vector<1x2x4xf32>
    %1065 = vector.shape_cast %1064 : vector<1x2x4xf32> to vector<2x4xf32>
    %1066 = arith.truncf %1065 : vector<2x4xf32> to vector<2x4xbf16>
    %c9_507 = arith.constant 9 : index
    %c0_508 = arith.constant 0 : index
    %c0_509 = arith.constant 0 : index
    %1067 = vector.load %arg7[%c9_507, %c0_508, %c0_509] : memref<12x4x64xbf16, #tpu.memory_space<vmem>>, vector<1x4x64xbf16>
    %1068 = vector.shape_cast %1067 : vector<1x4x64xbf16> to vector<4x64xbf16>
    %cst_510 = arith.constant dense<0.000000e+00> : vector<2x64xf32>
    %1069 = tpu.matmul %1066, %1068, %cst_510 {dimension_numbers = #tpu.dot_dimension_numbers<[1], [0], [0], [1], [0, 0, 1, 1], [], []>} : vector<2x4xbf16>, vector<4x64xbf16>, vector<2x64xf32> -> vector<2x64xf32>
    %1070 = arith.addf %1063, %1069 : vector<2x64xf32>
    %1071 = vector.extract_strided_slice %1056 {offsets = [2, 0, 0], sizes = [1, 2, 4], strides = [1, 1, 1]} : vector<4x2x4xf32> to vector<1x2x4xf32>
    %1072 = vector.shape_cast %1071 : vector<1x2x4xf32> to vector<2x4xf32>
    %1073 = arith.truncf %1072 : vector<2x4xf32> to vector<2x4xbf16>
    %c10_511 = arith.constant 10 : index
    %c0_512 = arith.constant 0 : index
    %c0_513 = arith.constant 0 : index
    %1074 = vector.load %arg7[%c10_511, %c0_512, %c0_513] : memref<12x4x64xbf16, #tpu.memory_space<vmem>>, vector<1x4x64xbf16>
    %1075 = vector.shape_cast %1074 : vector<1x4x64xbf16> to vector<4x64xbf16>
    %cst_514 = arith.constant dense<0.000000e+00> : vector<2x64xf32>
    %1076 = tpu.matmul %1073, %1075, %cst_514 {dimension_numbers = #tpu.dot_dimension_numbers<[1], [0], [0], [1], [0, 0, 1, 1], [], []>} : vector<2x4xbf16>, vector<4x64xbf16>, vector<2x64xf32> -> vector<2x64xf32>
    %1077 = arith.addf %1070, %1076 : vector<2x64xf32>
    %1078 = vector.extract_strided_slice %1056 {offsets = [3, 0, 0], sizes = [1, 2, 4], strides = [1, 1, 1]} : vector<4x2x4xf32> to vector<1x2x4xf32>
    %1079 = vector.shape_cast %1078 : vector<1x2x4xf32> to vector<2x4xf32>
    %1080 = arith.truncf %1079 : vector<2x4xf32> to vector<2x4xbf16>
    %c11_515 = arith.constant 11 : index
    %c0_516 = arith.constant 0 : index
    %c0_517 = arith.constant 0 : index
    %1081 = vector.load %arg7[%c11_515, %c0_516, %c0_517] : memref<12x4x64xbf16, #tpu.memory_space<vmem>>, vector<1x4x64xbf16>
    %1082 = vector.shape_cast %1081 : vector<1x4x64xbf16> to vector<4x64xbf16>
    %cst_518 = arith.constant dense<0.000000e+00> : vector<2x64xf32>
    %1083 = tpu.matmul %1080, %1082, %cst_518 {dimension_numbers = #tpu.dot_dimension_numbers<[1], [0], [0], [1], [0, 0, 1, 1], [], []>} : vector<2x4xbf16>, vector<4x64xbf16>, vector<2x64xf32> -> vector<2x64xf32>
    %1084 = arith.addf %1077, %1083 : vector<2x64xf32>
    %c0_519 = arith.constant 0 : index
    %c0_520 = arith.constant 0 : index
    %1085 = vector.load %arg8[%c0_519, %c0_520] : memref<1x64xf32, #tpu.memory_space<vmem>>, vector<1x64xf32>
    %1086 = vector.broadcast %1085 : vector<1x64xf32> to vector<2x64xf32>
    %1087 = arith.addf %1084, %1086 : vector<2x64xf32>
    %1088 = vector.extract_strided_slice %1087 {offsets = [0, 0], sizes = [2, 32], strides = [1, 1]} : vector<2x64xf32> to vector<2x32xf32>
    %1089 = vector.extract_strided_slice %1087 {offsets = [0, 32], sizes = [2, 32], strides = [1, 1]} : vector<2x64xf32> to vector<2x32xf32>
    %c0_521 = arith.constant 0 : index
    %c0_522 = arith.constant 0 : index
    %1090 = vector.load %arg2[%c0_521, %c0_522] : memref<2x32xf32, #tpu.memory_space<vmem>>, vector<2x32xf32>
    %cst_523 = arith.constant 5.000000e-01 : f32
    %1091 = vector.broadcast %cst_523 : f32 to vector<2x32xf32>
    %1092 = arith.mulf %1091, %1089 : vector<2x32xf32>
    %1093 = math.exp %1092 : vector<2x32xf32>
    %1094 = arith.mulf %1090, %1093 : vector<2x32xf32>
    %1095 = arith.addf %1088, %1094 : vector<2x32xf32>
    %1096 = arith.truncf %1095 : vector<2x32xf32> to vector<2x32xbf16>
    %c0_524 = arith.constant 0 : index
    %c0_525 = arith.constant 0 : index
    %1097 = vector.load %arg9[%c0_524, %c0_525] : memref<32x48xbf16, #tpu.memory_space<vmem>>, vector<32x48xbf16>
    %cst_526 = arith.constant dense<0.000000e+00> : vector<2x48xf32>
    %1098 = tpu.matmul %1096, %1097, %cst_526 {dimension_numbers = #tpu.dot_dimension_numbers<[1], [0], [0], [1], [0, 0, 1, 1], [], []>} : vector<2x32xbf16>, vector<32x48xbf16>, vector<2x48xf32> -> vector<2x48xf32>
    %c0_527 = arith.constant 0 : index
    %c0_528 = arith.constant 0 : index
    %1099 = vector.load %arg10[%c0_527, %c0_528] : memref<1x48xf32, #tpu.memory_space<vmem>>, vector<1x48xf32>
    %1100 = vector.broadcast %1099 : vector<1x48xf32> to vector<2x48xf32>
    %1101 = arith.addf %1098, %1100 : vector<2x48xf32>
    %cst_529 = arith.constant 0.000000e+00 : f32
    %1102 = vector.broadcast %cst_529 : f32 to vector<2x48xf32>
    %1103 = arith.maximumf %1101, %1102 : vector<2x48xf32>
    %1104 = arith.truncf %1103 : vector<2x48xf32> to vector<2x48xbf16>
    %c0_530 = arith.constant 0 : index
    %c0_531 = arith.constant 0 : index
    %1105 = vector.load %arg11[%c0_530, %c0_531] : memref<48x256xbf16, #tpu.memory_space<vmem>>, vector<48x256xbf16>
    %cst_532 = arith.constant dense<0.000000e+00> : vector<2x256xf32>
    %1106 = tpu.matmul %1104, %1105, %cst_532 {dimension_numbers = #tpu.dot_dimension_numbers<[1], [0], [0], [1], [0, 0, 1, 1], [], []>} : vector<2x48xbf16>, vector<48x256xbf16>, vector<2x256xf32> -> vector<2x256xf32>
    %c0_533 = arith.constant 0 : index
    %c0_534 = arith.constant 0 : index
    %1107 = vector.load %arg12[%c0_533, %c0_534] : memref<1x256xf32, #tpu.memory_space<vmem>>, vector<1x256xf32>
    %1108 = vector.broadcast %1107 : vector<1x256xf32> to vector<2x256xf32>
    %1109 = arith.addf %1106, %1108 : vector<2x256xf32>
    %cst_535 = arith.constant 0.000000e+00 : f32
    %1110 = vector.broadcast %cst_535 : f32 to vector<2x256xf32>
    %1111 = arith.subf %1110, %1109 : vector<2x256xf32>
    %1112 = math.exp %1111 : vector<2x256xf32>
    %cst_536 = arith.constant 1.000000e+00 : f32
    %1113 = vector.broadcast %cst_536 : f32 to vector<2x256xf32>
    %1114 = arith.addf %1113, %1112 : vector<2x256xf32>
    %cst_537 = arith.constant 1.000000e+00 : f32
    %1115 = vector.broadcast %cst_537 : f32 to vector<2x256xf32>
    %1116 = arith.divf %1115, %1114 : vector<2x256xf32>
    %c0_538 = arith.constant 0 : index
    %c0_539 = arith.constant 0 : index
    %1117 = vector.load %arg13[%c0_538, %c0_539] : memref<2x256xf32, #tpu.memory_space<vmem>>, vector<2x256xf32>
    tpu.vector_store %arg13[%c0_538, %c0_539], %1116 {strides = array<i32>} : memref<2x256xf32, #tpu.memory_space<vmem>>, vector<2x256xf32>,
    %c0_540 = arith.constant 0 : index
    %c0_541 = arith.constant 0 : index
    %1118 = vector.load %arg14[%c0_540, %c0_541] : memref<2x64xf32, #tpu.memory_space<vmem>>, vector<2x64xf32>
    tpu.vector_store %arg14[%c0_540, %c0_541], %1087 {strides = array<i32>} : memref<2x64xf32, #tpu.memory_space<vmem>>, vector<2x64xf32>,
    return
  }
  func.func @transform_0(%arg0: i32) -> (i32, i32, i32, i32, i32) {
    %c0_i32 = arith.constant 0 : i32
    %c0_i32_0 = arith.constant 0 : i32
    %c0_i32_1 = arith.constant 0 : i32
    %c0_i32_2 = arith.constant 0 : i32
    %c0_i32_3 = arith.constant 0 : i32
    return %c0_i32, %c0_i32_0, %c0_i32_1, %arg0, %c0_i32_2 : i32, i32, i32, i32, i32
  }
  func.func @transform_1(%arg0: i32) -> (i32, i32) {
    %c0_i32 = arith.constant 0 : i32
    %c0_i32_0 = arith.constant 0 : i32
    return %arg0, %c0_i32 : i32, i32
  }
  func.func @transform_2(%arg0: i32) -> (i32, i32) {
    %c0_i32 = arith.constant 0 : i32
    %c0_i32_0 = arith.constant 0 : i32
    %c0_i32_1 = arith.constant 0 : i32
    return %c0_i32, %c0_i32_0 : i32, i32
  }
  func.func @transform_3(%arg0: i32) -> i32 {
    %c0_i32 = arith.constant 0 : i32
    %c0_i32_0 = arith.constant 0 : i32
    return %c0_i32 : i32
  }
  func.func @transform_4(%arg0: i32) -> (i32, i32) {
    %c0_i32 = arith.constant 0 : i32
    %c0_i32_0 = arith.constant 0 : i32
    %c0_i32_1 = arith.constant 0 : i32
    return %c0_i32, %c0_i32_0 : i32, i32
  }
  func.func @transform_5(%arg0: i32) -> i32 {
    %c0_i32 = arith.constant 0 : i32
    %c0_i32_0 = arith.constant 0 : i32
    return %c0_i32 : i32
  }
  func.func @transform_6(%arg0: i32) -> (i32, i32, i32) {
    %c0_i32 = arith.constant 0 : i32
    %c0_i32_0 = arith.constant 0 : i32
    %c0_i32_1 = arith.constant 0 : i32
    %c0_i32_2 = arith.constant 0 : i32
    return %c0_i32, %c0_i32_0, %c0_i32_1 : i32, i32, i32
  }
  func.func @transform_7(%arg0: i32) -> (i32, i32) {
    %c0_i32 = arith.constant 0 : i32
    %c0_i32_0 = arith.constant 0 : i32
    %c0_i32_1 = arith.constant 0 : i32
    return %c0_i32, %c0_i32_0 : i32, i32
  }
  func.func @transform_8(%arg0: i32) -> (i32, i32) {
    %c0_i32 = arith.constant 0 : i32
    %c0_i32_0 = arith.constant 0 : i32
    %c0_i32_1 = arith.constant 0 : i32
    return %c0_i32, %c0_i32_0 : i32, i32
  }
  func.func @transform_9(%arg0: i32) -> (i32, i32) {
    %c0_i32 = arith.constant 0 : i32
    %c0_i32_0 = arith.constant 0 : i32
    %c0_i32_1 = arith.constant 0 : i32
    return %c0_i32, %c0_i32_0 : i32, i32
  }
  func.func @transform_10(%arg0: i32) -> (i32, i32) {
    %c0_i32 = arith.constant 0 : i32
    %c0_i32_0 = arith.constant 0 : i32
    %c0_i32_1 = arith.constant 0 : i32
    return %c0_i32, %c0_i32_0 : i32, i32
  }
  func.func @transform_11(%arg0: i32) -> (i32, i32) {
    %c0_i32 = arith.constant 0 : i32
    %c0_i32_0 = arith.constant 0 : i32
    %c0_i32_1 = arith.constant 0 : i32
    return %c0_i32, %c0_i32_0 : i32, i32
  }
  func.func @transform_12(%arg0: i32) -> (i32, i32) {
    %c0_i32 = arith.constant 0 : i32
    %c0_i32_0 = arith.constant 0 : i32
    return %arg0, %c0_i32 : i32, i32
  }
  func.func @transform_13(%arg0: i32) -> (i32, i32) {
    %c0_i32 = arith.constant 0 : i32
    %c0_i32_0 = arith.constant 0 : i32
    return %arg0, %c0_i32 : i32, i32
  }
}

</mosaic_0001>

<llo_original>
// kernel: vae_forward.1
$region0: #{vae_forward.1}
  #allocation0 [shape = 'u32[]', space=smem, size = 0x4, offset = 0x4, fixed_abs, tag = 'smem constant byte address 0x4 - core index']
  #allocation1 [shape = 'u32[72,128]{1,0:T(1,128)}', space=vmem, size = 0x9000, scoped, tag = 'internal scratch']
  %s0 = inlined_call_operand.vmem [shape: f32[2,2,8,2,8], index: 0, kind: input, shape index: {}]
  %s1 = inlined_call_operand.vmem [shape: f32[2,32], index: 1, kind: input, shape index: {}]
  %s2 = inlined_call_operand.vmem [shape: f32[3,16], index: 2, kind: input, shape index: {}]
  %s3 = inlined_call_operand.vmem [shape: f32[3], index: 3, kind: input, shape index: {}]
  %s4 = inlined_call_operand.vmem [shape: f32[3,12], index: 4, kind: input, shape index: {}]
  %s5 = inlined_call_operand.vmem [shape: f32[3], index: 5, kind: input, shape index: {}]
  %s6 = inlined_call_operand.vmem [shape: bf16[12,4,64], index: 6, kind: input, shape index: {}]
  %s7 = inlined_call_operand.vmem [shape: f32[1,64], index: 7, kind: input, shape index: {}]
  %s8 = inlined_call_operand.vmem [shape: bf16[32,48], index: 8, kind: input, shape index: {}]
  %s9 = inlined_call_operand.vmem [shape: f32[1,48], index: 9, kind: input, shape index: {}]
  %s10 = inlined_call_operand.vmem [shape: bf16[48,256], index: 10, kind: input, shape index: {}]
  %s11 = inlined_call_operand.vmem [shape: f32[1,256], index: 11, kind: input, shape index: {}]
  %s12 = inlined_call_operand.hbm [shape: f32[2,256], index: 12, kind: output, shape index: {0}]
  %s13 = inlined_call_operand.vmem [shape: f32[2,64], index: 13, kind: output, shape index: {1}]
  %14 = xla_tuple %s12, %s13
  %s15 = sld [smem:[#allocation0]]
  $region82: #{vae_forward.1} parent=0
    _
  %s17 = ssub.s32 1, %s15
  %s18 = scalar_select 0, %s17, %s15
  $region1: #{vae_forward.1} parent=0
    #allocation2 [shape = 'u8[2048]{0}', space=smem, size = 0x800, scoped, tag = 'input window, operand 2, single buffered']
    #allocation3 [shape = 's32[1]{0}', space=sflag, size = 0x4, scoped, tag = 'scoped memory for vae_forward.1']
    #allocation4 [shape = 's32[1]{0}', space=sflag, size = 0x4, scoped, tag = 'scoped memory for vae_forward.1']
    #allocation5 [shape = 'u8[512]{0}', space=smem, size = 0x200, scoped, tag = 'input window, operand 3, single buffered']
    #allocation6 [shape = 's32[1]{0}', space=sflag, size = 0x4, scoped, tag = 'scoped memory for vae_forward.1']
    #allocation7 [shape = 'u8[2048]{0}', space=smem, size = 0x800, scoped, tag = 'input window, operand 4, single buffered']
    #allocation8 [shape = 'u8[512]{0}', space=smem, size = 0x200, scoped, tag = 'input window, operand 5, single buffered']
    #allocation9 [shape = 's32[1]{0}', space=sflag, size = 0x4, scoped, tag = 'scoped memory for vae_forward.1']
    #allocation10 [shape = 'u8[2048]{0}', space=vmem, size = 0x800, scoped, tag = 'output window, operand 0, single buffered']
    %19 = vsyncpa [#allocation4], 0
    %20 = vsyncpa [#allocation6], 0
    %21 = vsyncpa [#allocation9], 0
    %22 = vsyncpa [#allocation3], 0
    // Predicated region
    $region2: #{vae_forward.1} parent=1 // pred_check
      _
    $region3: #{vae_forward.1} parent=1 // pred_check_branch
      %24 = sbr.rel (0) target = $region5
    $region4: #{vae_forward.1} parent=1 // pred_region
      _
    $region5: #{vae_forward.1} parent=1 // pred_fallthru
      _
    // Predicated region
    $region6: #{vae_forward.1} parent=1 // pred_check
      _
    $region7: #{vae_forward.1} parent=1 // pred_check_branch
      %26 = sbr.rel (0) target = $region9
    $region8: #{vae_forward.1} parent=1 // pred_region
      _
    $region9: #{vae_forward.1} parent=1 // pred_fallthru
      _
    // Predicated region
    $region10: #{vae_forward.1} parent=1 // pred_check
      _
    $region11: #{vae_forward.1} parent=1 // pred_check_branch
      %28 = sbr.rel (0) target = $region13
    $region12: #{vae_forward.1} parent=1 // pred_region
      %30 = vsyncadd [#allocation4], 0
      %s32 = sshll.u32 %s2, 4
      %s33 = int_to_ptr.vmem [resolvable:$true] %s32
      %35 = dma.vmem_to_smem %s33, 64, [#allocation2], [#allocation4]
    $region13: #{vae_forward.1} parent=1 // pred_fallthru
      _
    // Predicated region
    $region14: #{vae_forward.1} parent=1 // pred_check
      _
    $region15: #{vae_forward.1} parent=1 // pred_check_branch
      %37 = sbr.rel (0) target = $region17
    $region16: #{vae_forward.1} parent=1 // pred_region
      %39 = vsyncadd [#allocation6], 0
      %s41 = sshll.u32 %s3, 4
      %s42 = int_to_ptr.vmem [resolvable:$true] %s41
      %44 = dma.vmem_to_smem %s42, 16, [#allocation5], [#allocation6]
    $region17: #{vae_forward.1} parent=1 // pred_fallthru
      _
    // Predicated region
    $region18: #{vae_forward.1} parent=1 // pred_check
      _
    $region19: #{vae_forward.1} parent=1 // pred_check_branch
      %46 = sbr.rel (0) target = $region21
    $region20: #{vae_forward.1} parent=1 // pred_region
      %48 = vsyncadd [#allocation6], 0
      %s50 = sshll.u32 %s4, 4
      %s51 = int_to_ptr.vmem [resolvable:$true] %s50
      %53 = dma.vmem_to_smem %s51, 64, [#allocation7], [#allocation6]
    $region21: #{vae_forward.1} parent=1 // pred_fallthru
      _
    // Predicated region
    $region22: #{vae_forward.1} parent=1 // pred_check
      _
    $region23: #{vae_forward.1} parent=1 // pred_check_branch
      %55 = sbr.rel (0) target = $region25
    $region24: #{vae_forward.1} parent=1 // pred_region
      %57 = vsyncadd [#allocation9], 0
      %s59 = sshll.u32 %s5, 4
      %s60 = int_to_ptr.vmem [resolvable:$true] %s59
      %62 = dma.vmem_to_smem %s60, 16, [#allocation8], [#allocation9]
    $region25: #{vae_forward.1} parent=1 // pred_fallthru
      _
    // Predicated region
    $region26: #{vae_forward.1} parent=1 // pred_check
      _
    $region27: #{vae_forward.1} parent=1 // pred_check_branch
      %64 = sbr.rel (0) target = $region29
    $region28: #{vae_forward.1} parent=1 // pred_region
      _
    $region29: #{vae_forward.1} parent=1 // pred_fallthru
      _
    // Predicated region
    $region30: #{vae_forward.1} parent=1 // pred_check
      _
    $region31: #{vae_forward.1} parent=1 // pred_check_branch
      %66 = sbr.rel (0) target = $region33
    $region32: #{vae_forward.1} parent=1 // pred_region
      _
    $region33: #{vae_forward.1} parent=1 // pred_fallthru
      _
    // Predicated region
    $region34: #{vae_forward.1} parent=1 // pred_check
      _
    $region35: #{vae_forward.1} parent=1 // pred_check_branch
      %68 = sbr.rel (0) target = $region37
    $region36: #{vae_forward.1} parent=1 // pred_region
      _
    $region37: #{vae_forward.1} parent=1 // pred_fallthru
      _
    // Predicated region
    $region38: #{vae_forward.1} parent=1 // pred_check
      _
    $region39: #{vae_forward.1} parent=1 // pred_check_branch
      %70 = sbr.rel (0) target = $region41
    $region40: #{vae_forward.1} parent=1 // pred_region
      _
    $region41: #{vae_forward.1} parent=1 // pred_fallthru
      _
    // Predicated region
    $region42: #{vae_forward.1} parent=1 // pred_check
      _
    $region43: #{vae_forward.1} parent=1 // pred_check_branch
      %72 = sbr.rel (0) target = $region45
    $region44: #{vae_forward.1} parent=1 // pred_region
      _
    $region45: #{vae_forward.1} parent=1 // pred_fallthru
      _
    // Predicated region
    $region46: #{vae_forward.1} parent=1 // pred_check
      _
    $region47: #{vae_forward.1} parent=1 // pred_check_branch
      %74 = sbr.rel (0) target = $region49
    $region48: #{vae_forward.1} parent=1 // pred_region
      _
    $region49: #{vae_forward.1} parent=1 // pred_fallthru
      _
    // Predicated region
    $region50: #{vae_forward.1} parent=1 // pred_check
      _
    $region51: #{vae_forward.1} parent=1 // pred_check_branch
      %76 = sbr.rel (0) target = $region53
    $region52: #{vae_forward.1} parent=1 // pred_region
      %78 = dma.done [#allocation4], 64
    $region53: #{vae_forward.1} parent=1 // pred_fallthru
      _
    // Predicated region
    $region54: #{vae_forward.1} parent=1 // pred_check
      _
    $region55: #{vae_forward.1} parent=1 // pred_check_branch
      %80 = sbr.rel (0) target = $region57
    $region56: #{vae_forward.1} parent=1 // pred_region
      %82 = dma.done [#allocation6], 16
    $region57: #{vae_forward.1} parent=1 // pred_fallthru
      _
    // Predicated region
    $region58: #{vae_forward.1} parent=1 // pred_check
      _
    $region59: #{vae_forward.1} parent=1 // pred_check_branch
      %84 = sbr.rel (0) target = $region61
    $region60: #{vae_forward.1} parent=1 // pred_region
      %86 = dma.done [#allocation6], 64
    $region61: #{vae_forward.1} parent=1 // pred_fallthru
      _
    // Predicated region
    $region62: #{vae_forward.1} parent=1 // pred_check
      _
    $region63: #{vae_forward.1} parent=1 // pred_check_branch
      %88 = sbr.rel (0) target = $region65
    $region64: #{vae_forward.1} parent=1 // pred_region
      %90 = dma.done [#allocation9], 16
    $region65: #{vae_forward.1} parent=1 // pred_fallthru
      _
    %91 = sfence
    %v93 = vld [vmem:[%s0] sm:$0x3]
    %v94 = vld [vmem:[%s0 + $0x2] sm:$0x3]
    %v95 = vld [vmem:[%s0 + $0x4] sm:$0x3]
    %v96 = vld [vmem:[%s0 + $0x6] sm:$0x3]
    %v97 = vld [vmem:[%s0 + $0x8] sm:$0x3]
    %v98 = vld [vmem:[%s0 + $0xa] sm:$0x3]
    %v99 = vld [vmem:[%s0 + $0xc] sm:$0x3]
    %v100 = vld [vmem:[%s0 + $0xe] sm:$0x3]
    %s101 = scalar_lea.vmem %s0, 16
    %v102 = vld [vmem:[%s101] sm:$0x3]
    %v103 = vld [vmem:[%s101 + $0x2] sm:$0x3]
    %v104 = vld [vmem:[%s101 + $0x4] sm:$0x3]
    %v105 = vld [vmem:[%s101 + $0x6] sm:$0x3]
    %v106 = vld [vmem:[%s101 + $0x8] sm:$0x3]
    %v107 = vld [vmem:[%s101 + $0xa] sm:$0x3]
    %v108 = vld [vmem:[%s101 + $0xc] sm:$0x3]
    %v109 = vld [vmem:[%s101 + $0xe] sm:$0x3]
    %s110 = scalar_lea.vmem %s0, 32
    %v111 = vld [vmem:[%s110] sm:$0x3]
    %v112 = vld [vmem:[%s110 + $0x2] sm:$0x3]
    %v113 = vld [vmem:[%s110 + $0x4] sm:$0x3]
    %v114 = vld [vmem:[%s110 + $0x6] sm:$0x3]
    %v115 = vld [vmem:[%s110 + $0x8] sm:$0x3]
    %v116 = vld [vmem:[%s110 + $0xa] sm:$0x3]
    %v117 = vld [vmem:[%s110 + $0xc] sm:$0x3]
    %s118 = scalar_lea.vmem %s0, 48
    %v119 = vld [vmem:[%s118] sm:$0x3]
    %v120 = vld [vmem:[%s118 + $0x2] sm:$0x3]
    %v121 = vld [vmem:[%s118 + $0x4] sm:$0x3]
    %v122 = vld [vmem:[%s118 + $0x6] sm:$0x3]
    %v123 = vld [vmem:[%s118 + $0x8] sm:$0x3]
    %v124 = vld [vmem:[%s118 + $0xa] sm:$0x3]
    %v125 = vld [vmem:[%s118 + $0xc] sm:$0x3]
    %s126 = sld [smem:[#allocation2]]
    %v127 = vstv %s126
    %v128 = vmul.f32 %v127, %v93
    %v129 = vmul.f32 %v127, %v94
    %v130 = vmul.f32 %v127, %v95
    %v131 = vmul.f32 %v127, %v96
    %v132 = vmul.f32 %v127, %v97
    %v133 = vmul.f32 %v127, %v98
    %s134 = sld [smem:[#allocation2 + $0x1]]
    %v135 = vstv %s134
    %v136 = vmul.f32 %v135, %v102
    %v137 = vmul.f32 %v135, %v103
    %v138 = vmul.f32 %v135, %v104
    %v139 = vmul.f32 %v135, %v105
    %v140 = vmul.f32 %v135, %v106
    %v141 = vmul.f32 %v135, %v107
    %v142 = vadd.f32 %v128, %v136
    %v143 = vadd.f32 %v129, %v137
    %v144 = vadd.f32 %v130, %v138
    %v145 = vadd.f32 %v131, %v139
    %v146 = vadd.f32 %v132, %v140
    %v147 = vadd.f32 %v133, %v141
    %s148 = sld [smem:[#allocation2 + $0x2]]
    %v149 = vstv %s148
    %v150 = vmul.f32 %v149, %v93
    %v151 = vmul.f32 %v149, %v94
    %v152 = vmul.f32 %v149, %v95
    %v153 = vmul.f32 %v149, %v96
    %v154 = vmul.f32 %v149, %v97
    %v155 = vmul.f32 %v149, %v98
    %162 = vrot.lane.b32.xlu0 %v150, 127
    %v163 = vpop.permute.xlu0 %162
    %164 = vrot.lane.b32.xlu0 %v151, 127
    %v165 = vpop.permute.xlu0 %164
    %166 = vrot.lane.b32.xlu0 %v152, 127
    %v167 = vpop.permute.xlu0 %166
    %168 = vrot.lane.b32.xlu0 %v153, 127
    %v169 = vpop.permute.xlu0 %168
    %170 = vrot.lane.b32.xlu0 %v154, 127
    %v171 = vpop.permute.xlu0 %170
    %172 = vrot.lane.b32.xlu0 %v155, 127
    %v173 = vpop.permute.xlu0 %172
    %v180 = vadd.f32 %v142, %v163
    %v181 = vadd.f32 %v143, %v165
    %v182 = vadd.f32 %v144, %v167
    %v183 = vadd.f32 %v145, %v169
    %v184 = vadd.f32 %v146, %v171
    %v185 = vadd.f32 %v147, %v173
    %s186 = sld [smem:[#allocation2 + $0x3]]
    %v187 = vstv %s186
    %v188 = vmul.f32 %v187, %v102
    %v189 = vmul.f32 %v187, %v103
    %v190 = vmul.f32 %v187, %v104
    %v191 = vmul.f32 %v187, %v105
    %v192 = vmul.f32 %v187, %v106
    %v193 = vmul.f32 %v187, %v107
    %200 = vrot.lane.b32.xlu0 %v188, 127
    %v201 = vpop.permute.xlu0 %200
    %202 = vrot.lane.b32.xlu0 %v189, 127
    %v203 = vpop.permute.xlu0 %202
    %204 = vrot.lane.b32.xlu0 %v190, 127
    %v205 = vpop.permute.xlu0 %204
    %206 = vrot.lane.b32.xlu0 %v191, 127
    %v207 = vpop.permute.xlu0 %206
    %208 = vrot.lane.b32.xlu0 %v192, 127
    %v209 = vpop.permute.xlu0 %208
    %210 = vrot.lane.b32.xlu0 %v193, 127
    %v211 = vpop.permute.xlu0 %210
    %v218 = vadd.f32 %v180, %v201
    %v219 = vadd.f32 %v181, %v203
    %v220 = vadd.f32 %v182, %v205
    %v221 = vadd.f32 %v183, %v207
    %v222 = vadd.f32 %v184, %v209
    %v223 = vadd.f32 %v185, %v211
    %s224 = sld [smem:[#allocation2 + $0x4]]
    %v225 = vstv %s224
    %v226 = vmul.f32 %v225, %v111
    %v227 = vmul.f32 %v225, %v112
    %v228 = vmul.f32 %v225, %v113
    %v229 = vmul.f32 %v225, %v114
    %v230 = vmul.f32 %v225, %v115
    %v231 = vmul.f32 %v225, %v116
    %v232 = vadd.f32 %v218, %v226
    %v233 = vadd.f32 %v219, %v227
    %v234 = vadd.f32 %v220, %v228
    %v235 = vadd.f32 %v221, %v229
    %v236 = vadd.f32 %v222, %v230
    %v237 = vadd.f32 %v223, %v231
    %s238 = sld [smem:[#allocation2 + $0x5]]
    %v239 = vstv %s238
    %v240 = vmul.f32 %v239, %v119
    %v241 = vmul.f32 %v239, %v120
    %v242 = vmul.f32 %v239, %v121
    %v243 = vmul.f32 %v239, %v122
    %v244 = vmul.f32 %v239, %v123
    %v245 = vmul.f32 %v239, %v124
    %v246 = vadd.f32 %v232, %v240
    %v247 = vadd.f32 %v233, %v241
    %v248 = vadd.f32 %v234, %v242
    %v249 = vadd.f32 %v235, %v243
    %v250 = vadd.f32 %v236, %v244
    %v251 = vadd.f32 %v237, %v245
    %s252 = sld [smem:[#allocation2 + $0x6]]
    %v253 = vstv %s252
    %v254 = vmul.f32 %v253, %v111
    %v255 = vmul.f32 %v253, %v112
    %v256 = vmul.f32 %v253, %v113
    %v257 = vmul.f32 %v253, %v114
    %v258 = vmul.f32 %v253, %v115
    %v259 = vmul.f32 %v253, %v116
    %266 = vrot.lane.b32.xlu0 %v254, 127
    %v267 = vpop.permute.xlu0 %266
    %268 = vrot.lane.b32.xlu0 %v255, 127
    %v269 = vpop.permute.xlu0 %268
    %270 = vrot.lane.b32.xlu0 %v256, 127
    %v271 = vpop.permute.xlu0 %270
    %272 = vrot.lane.b32.xlu0 %v257, 127
    %v273 = vpop.permute.xlu0 %272
    %274 = vrot.lane.b32.xlu0 %v258, 127
    %v275 = vpop.permute.xlu0 %274
    %276 = vrot.lane.b32.xlu0 %v259, 127
    %v277 = vpop.permute.xlu0 %276
    %v284 = vadd.f32 %v246, %v267
    %v285 = vadd.f32 %v247, %v269
    %v286 = vadd.f32 %v248, %v271
    %v287 = vadd.f32 %v249, %v273
    %v288 = vadd.f32 %v250, %v275
    %v289 = vadd.f32 %v251, %v277
    %s290 = sld [smem:[#allocation2 + $0x7]]
    %v291 = vstv %s290
    %v292 = vmul.f32 %v291, %v119
    %v293 = vmul.f32 %v291, %v120
    %v294 = vmul.f32 %v291, %v121
    %v295 = vmul.f32 %v291, %v122
    %v296 = vmul.f32 %v291, %v123
    %v297 = vmul.f32 %v291, %v124
    %304 = vrot.lane.b32.xlu0 %v292, 127
    %v305 = vpop.permute.xlu0 %304
    %306 = vrot.lane.b32.xlu0 %v293, 127
    %v307 = vpop.permute.xlu0 %306
    %308 = vrot.lane.b32.xlu0 %v294, 127
    %v309 = vpop.permute.xlu0 %308
    %310 = vrot.lane.b32.xlu0 %v295, 127
    %v311 = vpop.permute.xlu0 %310
    %312 = vrot.lane.b32.xlu0 %v296, 127
    %v313 = vpop.permute.xlu0 %312
    %314 = vrot.lane.b32.xlu0 %v297, 127
    %v315 = vpop.permute.xlu0 %314
    %v322 = vadd.f32 %v284, %v305
    %v323 = vadd.f32 %v285, %v307
    %v324 = vadd.f32 %v286, %v309
    %v325 = vadd.f32 %v287, %v311
    %v326 = vadd.f32 %v288, %v313
    %v327 = vadd.f32 %v289, %v315
    %s328 = sld [smem:[#allocation2 + $0x8]]
    %v329 = vstv %s328
    %v330 = vmul.f32 %v329, %v94
    %v331 = vmul.f32 %v329, %v95
    %v332 = vmul.f32 %v329, %v96
    %v333 = vmul.f32 %v329, %v97
    %v334 = vmul.f32 %v329, %v98
    %v335 = vmul.f32 %v329, %v99
    %v336 = vadd.f32 %v322, %v330
    %v337 = vadd.f32 %v323, %v331
    %v338 = vadd.f32 %v324, %v332
    %v339 = vadd.f32 %v325, %v333
    %v340 = vadd.f32 %v326, %v334
    %v341 = vadd.f32 %v327, %v335
    %s342 = sld [smem:[#allocation2 + $0x9]]
    %v343 = vstv %s342
    %v344 = vmul.f32 %v343, %v103
    %v345 = vmul.f32 %v343, %v104
    %v346 = vmul.f32 %v343, %v105
    %v347 = vmul.f32 %v343, %v106
    %v348 = vmul.f32 %v343, %v107
    %v349 = vmul.f32 %v343, %v108
    %v350 = vadd.f32 %v336, %v344
    %v351 = vadd.f32 %v337, %v345
    %v352 = vadd.f32 %v338, %v346
    %v353 = vadd.f32 %v339, %v347
    %v354 = vadd.f32 %v340, %v348
    %v355 = vadd.f32 %v341, %v349
    %s356 = sld [smem:[#allocation2 + $0xa]]
    %v357 = vstv %s356
    %v358 = vmul.f32 %v357, %v94
    %v359 = vmul.f32 %v357, %v95
    %v360 = vmul.f32 %v357, %v96
    %v361 = vmul.f32 %v357, %v97
    %v362 = vmul.f32 %v357, %v98
    %v363 = vmul.f32 %v357, %v99
    %370 = vrot.lane.b32.xlu0 %v358, 127
    %v371 = vpop.permute.xlu0 %370
    %372 = vrot.lane.b32.xlu0 %v359, 127
    %v373 = vpop.permute.xlu0 %372
    %374 = vrot.lane.b32.xlu0 %v360, 127
    %v375 = vpop.permute.xlu0 %374
    %376 = vrot.lane.b32.xlu0 %v361, 127
    %v377 = vpop.permute.xlu0 %376
    %378 = vrot.lane.b32.xlu0 %v362, 127
    %v379 = vpop.permute.xlu0 %378
    %380 = vrot.lane.b32.xlu0 %v363, 127
    %v381 = vpop.permute.xlu0 %380
    %v388 = vadd.f32 %v350, %v371
    %v389 = vadd.f32 %v351, %v373
    %v390 = vadd.f32 %v352, %v375
    %v391 = vadd.f32 %v353, %v377
    %v392 = vadd.f32 %v354, %v379
    %v393 = vadd.f32 %v355, %v381
    %s394 = sld [smem:[#allocation2 + $0xb]]
    %v395 = vstv %s394
    %v396 = vmul.f32 %v395, %v103
    %v397 = vmul.f32 %v395, %v104
    %v398 = vmul.f32 %v395, %v105
    %v399 = vmul.f32 %v395, %v106
    %v400 = vmul.f32 %v395, %v107
    %v401 = vmul.f32 %v395, %v108
    %408 = vrot.lane.b32.xlu0 %v396, 127
    %v409 = vpop.permute.xlu0 %408
    %410 = vrot.lane.b32.xlu0 %v397, 127
    %v411 = vpop.permute.xlu0 %410
    %412 = vrot.lane.b32.xlu0 %v398, 127
    %v413 = vpop.permute.xlu0 %412
    %414 = vrot.lane.b32.xlu0 %v399, 127
    %v415 = vpop.permute.xlu0 %414
    %416 = vrot.lane.b32.xlu0 %v400, 127
    %v417 = vpop.permute.xlu0 %416
    %418 = vrot.lane.b32.xlu0 %v401, 127
    %v419 = vpop.permute.xlu0 %418
    %v426 = vadd.f32 %v388, %v409
    %v427 = vadd.f32 %v389, %v411
    %v428 = vadd.f32 %v390, %v413
    %v429 = vadd.f32 %v391, %v415
    %v430 = vadd.f32 %v392, %v417
    %v431 = vadd.f32 %v393, %v419
    %s432 = sld [smem:[#allocation2 + $0xc]]
    %v433 = vstv %s432
    %v434 = vmul.f32 %v433, %v112
    %v435 = vmul.f32 %v433, %v113
    %v436 = vmul.f32 %v433, %v114
    %v437 = vmul.f32 %v433, %v115
    %v438 = vmul.f32 %v433, %v116
    %v439 = vmul.f32 %v433, %v117
    %v440 = vadd.f32 %v426, %v434
    %v441 = vadd.f32 %v427, %v435
    %v442 = vadd.f32 %v428, %v436
    %v443 = vadd.f32 %v429, %v437
    %v444 = vadd.f32 %v430, %v438
    %v445 = vadd.f32 %v431, %v439
    %s446 = sld [smem:[#allocation2 + $0xd]]
    %v447 = vstv %s446
    %v448 = vmul.f32 %v447, %v120
    %v449 = vmul.f32 %v447, %v121
    %v450 = vmul.f32 %v447, %v122
    %v451 = vmul.f32 %v447, %v123
    %v452 = vmul.f32 %v447, %v124
    %v453 = vmul.f32 %v447, %v125
    %v454 = vadd.f32 %v440, %v448
    %v455 = vadd.f32 %v441, %v449
    %v456 = vadd.f32 %v442, %v450
    %v457 = vadd.f32 %v443, %v451
    %v458 = vadd.f32 %v444, %v452
    %v459 = vadd.f32 %v445, %v453
    %s460 = sld [smem:[#allocation2 + $0xe]]
    %v461 = vstv %s460
    %v462 = vmul.f32 %v461, %v112
    %v463 = vmul.f32 %v461, %v113
    %v464 = vmul.f32 %v461, %v114
    %v465 = vmul.f32 %v461, %v115
    %v466 = vmul.f32 %v461, %v116
    %v467 = vmul.f32 %v461, %v117
    %474 = vrot.lane.b32.xlu0 %v462, 127
    %v475 = vpop.permute.xlu0 %474
    %476 = vrot.lane.b32.xlu0 %v463, 127
    %v477 = vpop.permute.xlu0 %476
    %478 = vrot.lane.b32.xlu0 %v464, 127
    %v479 = vpop.permute.xlu0 %478
    %480 = vrot.lane.b32.xlu0 %v465, 127
    %v481 = vpop.permute.xlu0 %480
    %482 = vrot.lane.b32.xlu0 %v466, 127
    %v483 = vpop.permute.xlu0 %482
    %484 = vrot.lane.b32.xlu0 %v467, 127
    %v485 = vpop.permute.xlu0 %484
    %v492 = vadd.f32 %v454, %v475
    %v493 = vadd.f32 %v455, %v477
    %v494 = vadd.f32 %v456, %v479
    %v495 = vadd.f32 %v457, %v481
    %v496 = vadd.f32 %v458, %v483
    %v497 = vadd.f32 %v459, %v485
    %s498 = sld [smem:[#allocation2 + $0xf]]
    %v499 = vstv %s498
    %v500 = vmul.f32 %v499, %v120
    %v501 = vmul.f32 %v499, %v121
    %v502 = vmul.f32 %v499, %v122
    %v503 = vmul.f32 %v499, %v123
    %v504 = vmul.f32 %v499, %v124
    %v505 = vmul.f32 %v499, %v125
    %512 = vrot.lane.b32.xlu0 %v500, 127
    %v513 = vpop.permute.xlu0 %512
    %514 = vrot.lane.b32.xlu0 %v501, 127
    %v515 = vpop.permute.xlu0 %514
    %516 = vrot.lane.b32.xlu0 %v502, 127
    %v517 = vpop.permute.xlu0 %516
    %518 = vrot.lane.b32.xlu0 %v503, 127
    %v519 = vpop.permute.xlu0 %518
    %520 = vrot.lane.b32.xlu0 %v504, 127
    %v521 = vpop.permute.xlu0 %520
    %522 = vrot.lane.b32.xlu0 %v505, 127
    %v523 = vpop.permute.xlu0 %522
    %v530 = vadd.f32 %v492, %v513
    %v531 = vadd.f32 %v493, %v515
    %v532 = vadd.f32 %v494, %v517
    %v533 = vadd.f32 %v495, %v519
    %v534 = vadd.f32 %v496, %v521
    %v535 = vadd.f32 %v497, %v523
    %v536 = vmul.f32 %v127, %v102
    %v537 = vmul.f32 %v127, %v103
    %v538 = vmul.f32 %v127, %v104
    %v539 = vmul.f32 %v127, %v105
    %v540 = vmul.f32 %v127, %v106
    %v541 = vmul.f32 %v127, %v107
    %v542 = vmul.f32 %v135, %v93
    %v543 = vmul.f32 %v135, %v94
    %v544 = vmul.f32 %v135, %v95
    %v545 = vmul.f32 %v135, %v96
    %v546 = vmul.f32 %v135, %v97
    %v547 = vmul.f32 %v135, %v98
    %554 = vrot.lane.b32.xlu0 %v542, 127
    %v555 = vpop.permute.xlu0 %554
    %556 = vrot.lane.b32.xlu0 %v543, 127
    %v557 = vpop.permute.xlu0 %556
    %558 = vrot.lane.b32.xlu0 %v544, 127
    %v559 = vpop.permute.xlu0 %558
    %560 = vrot.lane.b32.xlu0 %v545, 127
    %v561 = vpop.permute.xlu0 %560
    %562 = vrot.lane.b32.xlu0 %v546, 127
    %v563 = vpop.permute.xlu0 %562
    %564 = vrot.lane.b32.xlu0 %v547, 127
    %v565 = vpop.permute.xlu0 %564
    %v572 = vadd.f32 %v536, %v555
    %v573 = vadd.f32 %v537, %v557
    %v574 = vadd.f32 %v538, %v559
    %v575 = vadd.f32 %v539, %v561
    %v576 = vadd.f32 %v540, %v563
    %v577 = vadd.f32 %v541, %v565
    %v578 = vmul.f32 %v149, %v102
    %v579 = vmul.f32 %v149, %v103
    %v580 = vmul.f32 %v149, %v104
    %v581 = vmul.f32 %v149, %v105
    %v582 = vmul.f32 %v149, %v106
    %v583 = vmul.f32 %v149, %v107
    %590 = vrot.lane.b32.xlu0 %v578, 127
    %v591 = vpop.permute.xlu0 %590
    %592 = vrot.lane.b32.xlu0 %v579, 127
    %v593 = vpop.permute.xlu0 %592
    %594 = vrot.lane.b32.xlu0 %v580, 127
    %v595 = vpop.permute.xlu0 %594
    %596 = vrot.lane.b32.xlu0 %v581, 127
    %v597 = vpop.permute.xlu0 %596
    %598 = vrot.lane.b32.xlu0 %v582, 127
    %v599 = vpop.permute.xlu0 %598
    %600 = vrot.lane.b32.xlu0 %v583, 127
    %v601 = vpop.permute.xlu0 %600
    %v608 = vadd.f32 %v572, %v591
    %v609 = vadd.f32 %v573, %v593
    %v610 = vadd.f32 %v574, %v595
    %v611 = vadd.f32 %v575, %v597
    %v612 = vadd.f32 %v576, %v599
    %v613 = vadd.f32 %v577, %v601
    %v614 = vmul.f32 %v187, %v93
    %v615 = vmul.f32 %v187, %v94
    %v616 = vmul.f32 %v187, %v95
    %v617 = vmul.f32 %v187, %v96
    %v618 = vmul.f32 %v187, %v97
    %v619 = vmul.f32 %v187, %v98
    %626 = vrot.lane.b32.xlu0 %v614, 126
    %v627 = vpop.permute.xlu0 %626
    %628 = vrot.lane.b32.xlu0 %v615, 126
    %v629 = vpop.permute.xlu0 %628
    %630 = vrot.lane.b32.xlu0 %v616, 126
    %v631 = vpop.permute.xlu0 %630
    %632 = vrot.lane.b32.xlu0 %v617, 126
    %v633 = vpop.permute.xlu0 %632
    %634 = vrot.lane.b32.xlu0 %v618, 126
    %v635 = vpop.permute.xlu0 %634
    %636 = vrot.lane.b32.xlu0 %v619, 126
    %v637 = vpop.permute.xlu0 %636
    %v644 = vadd.f32 %v608, %v627
    %v645 = vadd.f32 %v609, %v629
    %v646 = vadd.f32 %v610, %v631
    %v647 = vadd.f32 %v611, %v633
    %v648 = vadd.f32 %v612, %v635
    %v649 = vadd.f32 %v613, %v637
    %v650 = vmul.f32 %v225, %v119
    %v651 = vmul.f32 %v225, %v120
    %v652 = vmul.f32 %v225, %v121
    %v653 = vmul.f32 %v225, %v122
    %v654 = vmul.f32 %v225, %v123
    %v655 = vmul.f32 %v225, %v124
    %v656 = vadd.f32 %v644, %v650
    %v657 = vadd.f32 %v645, %v651
    %v658 = vadd.f32 %v646, %v652
    %v659 = vadd.f32 %v647, %v653
    %v660 = vadd.f32 %v648, %v654
    %v661 = vadd.f32 %v649, %v655
    %v662 = vmul.f32 %v239, %v111
    %v663 = vmul.f32 %v239, %v112
    %v664 = vmul.f32 %v239, %v113
    %v665 = vmul.f32 %v239, %v114
    %v666 = vmul.f32 %v239, %v115
    %v667 = vmul.f32 %v239, %v116
    %674 = vrot.lane.b32.xlu0 %v662, 127
    %v675 = vpop.permute.xlu0 %674
    %676 = vrot.lane.b32.xlu0 %v663, 127
    %v677 = vpop.permute.xlu0 %676
    %678 = vrot.lane.b32.xlu0 %v664, 127
    %v679 = vpop.permute.xlu0 %678
    %680 = vrot.lane.b32.xlu0 %v665, 127
    %v681 = vpop.permute.xlu0 %680
    %682 = vrot.lane.b32.xlu0 %v666, 127
    %v683 = vpop.permute.xlu0 %682
    %684 = vrot.lane.b32.xlu0 %v667, 127
    %v685 = vpop.permute.xlu0 %684
    %v692 = vadd.f32 %v656, %v675
    %v693 = vadd.f32 %v657, %v677
    %v694 = vadd.f32 %v658, %v679
    %v695 = vadd.f32 %v659, %v681
    %v696 = vadd.f32 %v660, %v683
    %v697 = vadd.f32 %v661, %v685
    %v698 = vmul.f32 %v253, %v119
    %v699 = vmul.f32 %v253, %v120
    %v700 = vmul.f32 %v253, %v121
    %v701 = vmul.f32 %v253, %v122
    %v702 = vmul.f32 %v253, %v123
    %v703 = vmul.f32 %v253, %v124
    %710 = vrot.lane.b32.xlu0 %v698, 127
    %v711 = vpop.permute.xlu0 %710
    %712 = vrot.lane.b32.xlu0 %v699, 127
    %v713 = vpop.permute.xlu0 %712
    %714 = vrot.lane.b32.xlu0 %v700, 127
    %v715 = vpop.permute.xlu0 %714
    %716 = vrot.lane.b32.xlu0 %v701, 127
    %v717 = vpop.permute.xlu0 %716
    %718 = vrot.lane.b32.xlu0 %v702, 127
    %v719 = vpop.permute.xlu0 %718
    %720 = vrot.lane.b32.xlu0 %v703, 127
    %v721 = vpop.permute.xlu0 %720
    %v728 = vadd.f32 %v692, %v711
    %v729 = vadd.f32 %v693, %v713
    %v730 = vadd.f32 %v694, %v715
    %v731 = vadd.f32 %v695, %v717
    %v732 = vadd.f32 %v696, %v719
    %v733 = vadd.f32 %v697, %v721
    %v734 = vmul.f32 %v291, %v111
    %v735 = vmul.f32 %v291, %v112
    %v736 = vmul.f32 %v291, %v113
    %v737 = vmul.f32 %v291, %v114
    %v738 = vmul.f32 %v291, %v115
    %v739 = vmul.f32 %v291, %v116
    %746 = vrot.lane.b32.xlu0 %v734, 126
    %v747 = vpop.permute.xlu0 %746
    %748 = vrot.lane.b32.xlu0 %v735, 126
    %v749 = vpop.permute.xlu0 %748
    %750 = vrot.lane.b32.xlu0 %v736, 126
    %v751 = vpop.permute.xlu0 %750
    %752 = vrot.lane.b32.xlu0 %v737, 126
    %v753 = vpop.permute.xlu0 %752
    %754 = vrot.lane.b32.xlu0 %v738, 126
    %v755 = vpop.permute.xlu0 %754
    %756 = vrot.lane.b32.xlu0 %v739, 126
    %v757 = vpop.permute.xlu0 %756
    %v764 = vadd.f32 %v728, %v747
    %v765 = vadd.f32 %v729, %v749
    %v766 = vadd.f32 %v730, %v751
    %v767 = vadd.f32 %v731, %v753
    %v768 = vadd.f32 %v732, %v755
    %v769 = vadd.f32 %v733, %v757
    %v770 = vmul.f32 %v329, %v103
    %v771 = vmul.f32 %v329, %v104
    %v772 = vmul.f32 %v329, %v105
    %v773 = vmul.f32 %v329, %v106
    %v774 = vmul.f32 %v329, %v107
    %v775 = vmul.f32 %v329, %v108
    %v776 = vadd.f32 %v764, %v770
    %v777 = vadd.f32 %v765, %v771
    %v778 = vadd.f32 %v766, %v772
    %v779 = vadd.f32 %v767, %v773
    %v780 = vadd.f32 %v768, %v774
    %v781 = vadd.f32 %v769, %v775
    %v782 = vmul.f32 %v343, %v94
    %v783 = vmul.f32 %v343, %v95
    %v784 = vmul.f32 %v343, %v96
    %v785 = vmul.f32 %v343, %v97
    %v786 = vmul.f32 %v343, %v98
    %v787 = vmul.f32 %v343, %v99
    %794 = vrot.lane.b32.xlu0 %v782, 127
    %v795 = vpop.permute.xlu0 %794
    %796 = vrot.lane.b32.xlu0 %v783, 127
    %v797 = vpop.permute.xlu0 %796
    %798 = vrot.lane.b32.xlu0 %v784, 127
    %v799 = vpop.permute.xlu0 %798
    %800 = vrot.lane.b32.xlu0 %v785, 127
    %v801 = vpop.permute.xlu0 %800
    %802 = vrot.lane.b32.xlu0 %v786, 127
    %v803 = vpop.permute.xlu0 %802
    %804 = vrot.lane.b32.xlu0 %v787, 127
    %v805 = vpop.permute.xlu0 %804
    %v812 = vadd.f32 %v776, %v795
    %v813 = vadd.f32 %v777, %v797
    %v814 = vadd.f32 %v778, %v799
    %v815 = vadd.f32 %v779, %v801
    %v816 = vadd.f32 %v780, %v803
    %v817 = vadd.f32 %v781, %v805
    %v818 = vmul.f32 %v357, %v103
    %v819 = vmul.f32 %v357, %v104
    %v820 = vmul.f32 %v357, %v105
    %v821 = vmul.f32 %v357, %v106
    %v822 = vmul.f32 %v357, %v107
    %v823 = vmul.f32 %v357, %v108
    %830 = vrot.lane.b32.xlu0 %v818, 127
    %v831 = vpop.permute.xlu0 %830
    %832 = vrot.lane.b32.xlu0 %v819, 127
    %v833 = vpop.permute.xlu0 %832
    %834 = vrot.lane.b32.xlu0 %v820, 127
    %v835 = vpop.permute.xlu0 %834
    %836 = vrot.lane.b32.xlu0 %v821, 127
    %v837 = vpop.permute.xlu0 %836
    %838 = vrot.lane.b32.xlu0 %v822, 127
    %v839 = vpop.permute.xlu0 %838
    %840 = vrot.lane.b32.xlu0 %v823, 127
    %v841 = vpop.permute.xlu0 %840
    %v848 = vadd.f32 %v812, %v831
    %v849 = vadd.f32 %v813, %v833
    %v850 = vadd.f32 %v814, %v835
    %v851 = vadd.f32 %v815, %v837
    %v852 = vadd.f32 %v816, %v839
    %v853 = vadd.f32 %v817, %v841
    %v854 = vmul.f32 %v395, %v94
    %v855 = vmul.f32 %v395, %v95
    %v856 = vmul.f32 %v395, %v96
    %v857 = vmul.f32 %v395, %v97
    %v858 = vmul.f32 %v395, %v98
    %v859 = vmul.f32 %v395, %v99
    %866 = vrot.lane.b32.xlu0 %v854, 126
    %v867 = vpop.permute.xlu0 %866
    %868 = vrot.lane.b32.xlu0 %v855, 126
    %v869 = vpop.permute.xlu0 %868
    %870 = vrot.lane.b32.xlu0 %v856, 126
    %v871 = vpop.permute.xlu0 %870
    %872 = vrot.lane.b32.xlu0 %v857, 126
    %v873 = vpop.permute.xlu0 %872
    %874 = vrot.lane.b32.xlu0 %v858, 126
    %v875 = vpop.permute.xlu0 %874
    %876 = vrot.lane.b32.xlu0 %v859, 126
    %v877 = vpop.permute.xlu0 %876
    %v884 = vadd.f32 %v848, %v867
    %v885 = vadd.f32 %v849, %v869
    %v886 = vadd.f32 %v850, %v871
    %v887 = vadd.f32 %v851, %v873
    %v888 = vadd.f32 %v852, %v875
    %v889 = vadd.f32 %v853, %v877
    %v890 = vmul.f32 %v433, %v120
    %v891 = vmul.f32 %v433, %v121
    %v892 = vmul.f32 %v433, %v122
    %v893 = vmul.f32 %v433, %v123
    %v894 = vmul.f32 %v433, %v124
    %v895 = vmul.f32 %v433, %v125
    %v896 = vadd.f32 %v884, %v890
    %v897 = vadd.f32 %v885, %v891
    %v898 = vadd.f32 %v886, %v892
    %v899 = vadd.f32 %v887, %v893
    %v900 = vadd.f32 %v888, %v894
    %v901 = vadd.f32 %v889, %v895
    %v902 = vmul.f32 %v447, %v112
    %v903 = vmul.f32 %v447, %v113
    %v904 = vmul.f32 %v447, %v114
    %v905 = vmul.f32 %v447, %v115
    %v906 = vmul.f32 %v447, %v116
    %v907 = vmul.f32 %v447, %v117
    %914 = vrot.lane.b32.xlu0 %v902, 127
    %v915 = vpop.permute.xlu0 %914
    %916 = vrot.lane.b32.xlu0 %v903, 127
    %v917 = vpop.permute.xlu0 %916
    %918 = vrot.lane.b32.xlu0 %v904, 127
    %v919 = vpop.permute.xlu0 %918
    %920 = vrot.lane.b32.xlu0 %v905, 127
    %v921 = vpop.permute.xlu0 %920
    %922 = vrot.lane.b32.xlu0 %v906, 127
    %v923 = vpop.permute.xlu0 %922
    %924 = vrot.lane.b32.xlu0 %v907, 127
    %v925 = vpop.permute.xlu0 %924
    %v932 = vadd.f32 %v896, %v915
    %v933 = vadd.f32 %v897, %v917
    %v934 = vadd.f32 %v898, %v919
    %v935 = vadd.f32 %v899, %v921
    %v936 = vadd.f32 %v900, %v923
    %v937 = vadd.f32 %v901, %v925
    %v938 = vmul.f32 %v461, %v120
    %v939 = vmul.f32 %v461, %v121
    %v940 = vmul.f32 %v461, %v122
    %v941 = vmul.f32 %v461, %v123
    %v942 = vmul.f32 %v461, %v124
    %v943 = vmul.f32 %v461, %v125
    %950 = vrot.lane.b32.xlu0 %v938, 127
    %v951 = vpop.permute.xlu0 %950
    %952 = vrot.lane.b32.xlu0 %v939, 127
    %v953 = vpop.permute.xlu0 %952
    %954 = vrot.lane.b32.xlu0 %v940, 127
    %v955 = vpop.permute.xlu0 %954
    %956 = vrot.lane.b32.xlu0 %v941, 127
    %v957 = vpop.permute.xlu0 %956
    %958 = vrot.lane.b32.xlu0 %v942, 127
    %v959 = vpop.permute.xlu0 %958
    %960 = vrot.lane.b32.xlu0 %v943, 127
    %v961 = vpop.permute.xlu0 %960
    %v968 = vadd.f32 %v932, %v951
    %v969 = vadd.f32 %v933, %v953
    %v970 = vadd.f32 %v934, %v955
    %v971 = vadd.f32 %v935, %v957
    %v972 = vadd.f32 %v936, %v959
    %v973 = vadd.f32 %v937, %v961
    %v974 = vmul.f32 %v499, %v112
    %v975 = vmul.f32 %v499, %v113
    %v976 = vmul.f32 %v499, %v114
    %v977 = vmul.f32 %v499, %v115
    %v978 = vmul.f32 %v499, %v116
    %v979 = vmul.f32 %v499, %v117
    %986 = vrot.lane.b32.xlu0 %v974, 126
    %v987 = vpop.permute.xlu0 %986
    %988 = vrot.lane.b32.xlu0 %v975, 126
    %v989 = vpop.permute.xlu0 %988
    %990 = vrot.lane.b32.xlu0 %v976, 126
    %v991 = vpop.permute.xlu0 %990
    %992 = vrot.lane.b32.xlu0 %v977, 126
    %v993 = vpop.permute.xlu0 %992
    %994 = vrot.lane.b32.xlu0 %v978, 126
    %v995 = vpop.permute.xlu0 %994
    %996 = vrot.lane.b32.xlu0 %v979, 126
    %v997 = vpop.permute.xlu0 %996
    %v1004 = vadd.f32 %v968, %v987
    %v1005 = vadd.f32 %v969, %v989
    %v1006 = vadd.f32 %v970, %v991
    %v1007 = vadd.f32 %v971, %v993
    %v1008 = vadd.f32 %v972, %v995
    %v1009 = vadd.f32 %v973, %v997
    %v1010 = vmax.f32 %v530, %v1004
    %v1011 = vmax.f32 %v531, %v1005
    %v1012 = vmax.f32 %v532, %v1006
    %v1013 = vmax.f32 %v533, %v1007
    %v1014 = vmax.f32 %v534, %v1008
    %v1015 = vmax.f32 %v535, %v1009
    %v1016 = vmul.f32 %v127, %v111
    %v1017 = vmul.f32 %v127, %v112
    %v1018 = vmul.f32 %v127, %v113
    %v1019 = vmul.f32 %v127, %v114
    %v1020 = vmul.f32 %v127, %v115
    %v1021 = vmul.f32 %v127, %v116
    %v1022 = vmul.f32 %v135, %v119
    %v1023 = vmul.f32 %v135, %v120
    %v1024 = vmul.f32 %v135, %v121
    %v1025 = vmul.f32 %v135, %v122
    %v1026 = vmul.f32 %v135, %v123
    %v1027 = vmul.f32 %v135, %v124
    %v1028 = vadd.f32 %v1016, %v1022
    %v1029 = vadd.f32 %v1017, %v1023
    %v1030 = vadd.f32 %v1018, %v1024
    %v1031 = vadd.f32 %v1019, %v1025
    %v1032 = vadd.f32 %v1020, %v1026
    %v1033 = vadd.f32 %v1021, %v1027
    %v1034 = vmul.f32 %v149, %v111
    %v1035 = vmul.f32 %v149, %v112
    %v1036 = vmul.f32 %v149, %v113
    %v1037 = vmul.f32 %v149, %v114
    %v1038 = vmul.f32 %v149, %v115
    %v1039 = vmul.f32 %v149, %v116
    %1046 = vrot.lane.b32.xlu0 %v1034, 127
    %v1047 = vpop.permute.xlu0 %1046
    %1048 = vrot.lane.b32.xlu0 %v1035, 127
    %v1049 = vpop.permute.xlu0 %1048
    %1050 = vrot.lane.b32.xlu0 %v1036, 127
    %v1051 = vpop.permute.xlu0 %1050
    %1052 = vrot.lane.b32.xlu0 %v1037, 127
    %v1053 = vpop.permute.xlu0 %1052
    %1054 = vrot.lane.b32.xlu0 %v1038, 127
    %v1055 = vpop.permute.xlu0 %1054
    %1056 = vrot.lane.b32.xlu0 %v1039, 127
    %v1057 = vpop.permute.xlu0 %1056
    %v1064 = vadd.f32 %v1028, %v1047
    %v1065 = vadd.f32 %v1029, %v1049
    %v1066 = vadd.f32 %v1030, %v1051
    %v1067 = vadd.f32 %v1031, %v1053
    %v1068 = vadd.f32 %v1032, %v1055
    %v1069 = vadd.f32 %v1033, %v1057
    %v1070 = vmul.f32 %v187, %v119
    %v1071 = vmul.f32 %v187, %v120
    %v1072 = vmul.f32 %v187, %v121
    %v1073 = vmul.f32 %v187, %v122
    %v1074 = vmul.f32 %v187, %v123
    %v1075 = vmul.f32 %v187, %v124
    %1082 = vrot.lane.b32.xlu0 %v1070, 127
    %v1083 = vpop.permute.xlu0 %1082
    %1084 = vrot.lane.b32.xlu0 %v1071, 127
    %v1085 = vpop.permute.xlu0 %1084
    %1086 = vrot.lane.b32.xlu0 %v1072, 127
    %v1087 = vpop.permute.xlu0 %1086
    %1088 = vrot.lane.b32.xlu0 %v1073, 127
    %v1089 = vpop.permute.xlu0 %1088
    %1090 = vrot.lane.b32.xlu0 %v1074, 127
    %v1091 = vpop.permute.xlu0 %1090
    %1092 = vrot.lane.b32.xlu0 %v1075, 127
    %v1093 = vpop.permute.xlu0 %1092
    %v1100 = vadd.f32 %v1064, %v1083
    %v1101 = vadd.f32 %v1065, %v1085
    %v1102 = vadd.f32 %v1066, %v1087
    %v1103 = vadd.f32 %v1067, %v1089
    %v1104 = vadd.f32 %v1068, %v1091
    %v1105 = vadd.f32 %v1069, %v1093
    %v1106 = vmul.f32 %v225, %v94
    %v1107 = vmul.f32 %v225, %v95
    %v1108 = vmul.f32 %v225, %v96
    %v1109 = vmul.f32 %v225, %v97
    %v1110 = vmul.f32 %v225, %v98
    %v1111 = vmul.f32 %v225, %v99
    %v1112 = vadd.f32 %v1100, %v1106
    %v1113 = vadd.f32 %v1101, %v1107
    %v1114 = vadd.f32 %v1102, %v1108
    %v1115 = vadd.f32 %v1103, %v1109
    %v1116 = vadd.f32 %v1104, %v1110
    %v1117 = vadd.f32 %v1105, %v1111
    %v1118 = vmul.f32 %v239, %v103
    %v1119 = vmul.f32 %v239, %v104
    %v1120 = vmul.f32 %v239, %v105
    %v1121 = vmul.f32 %v239, %v106
    %v1122 = vmul.f32 %v239, %v107
    %v1123 = vmul.f32 %v239, %v108
    %v1124 = vadd.f32 %v1112, %v1118
    %v1125 = vadd.f32 %v1113, %v1119
    %v1126 = vadd.f32 %v1114, %v1120
    %v1127 = vadd.f32 %v1115, %v1121
    %v1128 = vadd.f32 %v1116, %v1122
    %v1129 = vadd.f32 %v1117, %v1123
    %v1130 = vmul.f32 %v253, %v94
    %v1131 = vmul.f32 %v253, %v95
    %v1132 = vmul.f32 %v253, %v96
    %v1133 = vmul.f32 %v253, %v97
    %v1134 = vmul.f32 %v253, %v98
    %v1135 = vmul.f32 %v253, %v99
    %1142 = vrot.lane.b32.xlu0 %v1130, 127
    %v1143 = vpop.permute.xlu0 %1142
    %1144 = vrot.lane.b32.xlu0 %v1131, 127
    %v1145 = vpop.permute.xlu0 %1144
    %1146 = vrot.lane.b32.xlu0 %v1132, 127
    %v1147 = vpop.permute.xlu0 %1146
    %1148 = vrot.lane.b32.xlu0 %v1133, 127
    %v1149 = vpop.permute.xlu0 %1148
    %1150 = vrot.lane.b32.xlu0 %v1134, 127
    %v1151 = vpop.permute.xlu0 %1150
    %1152 = vrot.lane.b32.xlu0 %v1135, 127
    %v1153 = vpop.permute.xlu0 %1152
    %v1160 = vadd.f32 %v1124, %v1143
    %v1161 = vadd.f32 %v1125, %v1145
    %v1162 = vadd.f32 %v1126, %v1147
    %v1163 = vadd.f32 %v1127, %v1149
    %v1164 = vadd.f32 %v1128, %v1151
    %v1165 = vadd.f32 %v1129, %v1153
    %v1166 = vmul.f32 %v291, %v103
    %v1167 = vmul.f32 %v291, %v104
    %v1168 = vmul.f32 %v291, %v105
    %v1169 = vmul.f32 %v291, %v106
    %v1170 = vmul.f32 %v291, %v107
    %v1171 = vmul.f32 %v291, %v108
    %1178 = vrot.lane.b32.xlu0 %v1166, 127
    %v1179 = vpop.permute.xlu0 %1178
    %1180 = vrot.lane.b32.xlu0 %v1167, 127
    %v1181 = vpop.permute.xlu0 %1180
    %1182 = vrot.lane.b32.xlu0 %v1168, 127
    %v1183 = vpop.permute.xlu0 %1182
    %1184 = vrot.lane.b32.xlu0 %v1169, 127
    %v1185 = vpop.permute.xlu0 %1184
    %1186 = vrot.lane.b32.xlu0 %v1170, 127
    %v1187 = vpop.permute.xlu0 %1186
    %1188 = vrot.lane.b32.xlu0 %v1171, 127
    %v1189 = vpop.permute.xlu0 %1188
    %v1196 = vadd.f32 %v1160, %v1179
    %v1197 = vadd.f32 %v1161, %v1181
    %v1198 = vadd.f32 %v1162, %v1183
    %v1199 = vadd.f32 %v1163, %v1185
    %v1200 = vadd.f32 %v1164, %v1187
    %v1201 = vadd.f32 %v1165, %v1189
    %v1202 = vmul.f32 %v329, %v112
    %v1203 = vmul.f32 %v329, %v113
    %v1204 = vmul.f32 %v329, %v114
    %v1205 = vmul.f32 %v329, %v115
    %v1206 = vmul.f32 %v329, %v116
    %v1207 = vmul.f32 %v329, %v117
    %v1208 = vadd.f32 %v1196, %v1202
    %v1209 = vadd.f32 %v1197, %v1203
    %v1210 = vadd.f32 %v1198, %v1204
    %v1211 = vadd.f32 %v1199, %v1205
    %v1212 = vadd.f32 %v1200, %v1206
    %v1213 = vadd.f32 %v1201, %v1207
    %v1214 = vmul.f32 %v343, %v120
    %v1215 = vmul.f32 %v343, %v121
    %v1216 = vmul.f32 %v343, %v122
    %v1217 = vmul.f32 %v343, %v123
    %v1218 = vmul.f32 %v343, %v124
    %v1219 = vmul.f32 %v343, %v125
    %v1220 = vadd.f32 %v1208, %v1214
    %v1221 = vadd.f32 %v1209, %v1215
    %v1222 = vadd.f32 %v1210, %v1216
    %v1223 = vadd.f32 %v1211, %v1217
    %v1224 = vadd.f32 %v1212, %v1218
    %v1225 = vadd.f32 %v1213, %v1219
    %v1226 = vmul.f32 %v357, %v112
    %v1227 = vmul.f32 %v357, %v113
    %v1228 = vmul.f32 %v357, %v114
    %v1229 = vmul.f32 %v357, %v115
    %v1230 = vmul.f32 %v357, %v116
    %v1231 = vmul.f32 %v357, %v117
    %1238 = vrot.lane.b32.xlu0 %v1226, 127
    %v1239 = vpop.permute.xlu0 %1238
    %1240 = vrot.lane.b32.xlu0 %v1227, 127
    %v1241 = vpop.permute.xlu0 %1240
    %1242 = vrot.lane.b32.xlu0 %v1228, 127
    %v1243 = vpop.permute.xlu0 %1242
    %1244 = vrot.lane.b32.xlu0 %v1229, 127
    %v1245 = vpop.permute.xlu0 %1244
    %1246 = vrot.lane.b32.xlu0 %v1230, 127
    %v1247 = vpop.permute.xlu0 %1246
    %1248 = vrot.lane.b32.xlu0 %v1231, 127
    %v1249 = vpop.permute.xlu0 %1248
    %v1256 = vadd.f32 %v1220, %v1239
    %v1257 = vadd.f32 %v1221, %v1241
    %v1258 = vadd.f32 %v1222, %v1243
    %v1259 = vadd.f32 %v1223, %v1245
    %v1260 = vadd.f32 %v1224, %v1247
    %v1261 = vadd.f32 %v1225, %v1249
    %v1262 = vmul.f32 %v395, %v120
    %v1263 = vmul.f32 %v395, %v121
    %v1264 = vmul.f32 %v395, %v122
    %v1265 = vmul.f32 %v395, %v123
    %v1266 = vmul.f32 %v395, %v124
    %v1267 = vmul.f32 %v395, %v125
    %1274 = vrot.lane.b32.xlu0 %v1262, 127
    %v1275 = vpop.permute.xlu0 %1274
    %1276 = vrot.lane.b32.xlu0 %v1263, 127
    %v1277 = vpop.permute.xlu0 %1276
    %1278 = vrot.lane.b32.xlu0 %v1264, 127
    %v1279 = vpop.permute.xlu0 %1278
    %1280 = vrot.lane.b32.xlu0 %v1265, 127
    %v1281 = vpop.permute.xlu0 %1280
    %1282 = vrot.lane.b32.xlu0 %v1266, 127
    %v1283 = vpop.permute.xlu0 %1282
    %1284 = vrot.lane.b32.xlu0 %v1267, 127
    %v1285 = vpop.permute.xlu0 %1284
    %v1292 = vadd.f32 %v1256, %v1275
    %v1293 = vadd.f32 %v1257, %v1277
    %v1294 = vadd.f32 %v1258, %v1279
    %v1295 = vadd.f32 %v1259, %v1281
    %v1296 = vadd.f32 %v1260, %v1283
    %v1297 = vadd.f32 %v1261, %v1285
    %v1298 = vmul.f32 %v433, %v95
    %v1299 = vmul.f32 %v433, %v96
    %v1300 = vmul.f32 %v433, %v97
    %v1301 = vmul.f32 %v433, %v98
    %v1302 = vmul.f32 %v433, %v99
    %v1303 = vmul.f32 %v433, %v100
    %v1304 = vadd.f32 %v1292, %v1298
    %v1305 = vadd.f32 %v1293, %v1299
    %v1306 = vadd.f32 %v1294, %v1300
    %v1307 = vadd.f32 %v1295, %v1301
    %v1308 = vadd.f32 %v1296, %v1302
    %v1309 = vadd.f32 %v1297, %v1303
    %v1310 = vmul.f32 %v447, %v104
    %v1311 = vmul.f32 %v447, %v105
    %v1312 = vmul.f32 %v447, %v106
    %v1313 = vmul.f32 %v447, %v107
    %v1314 = vmul.f32 %v447, %v108
    %v1315 = vmul.f32 %v447, %v109
    %v1316 = vadd.f32 %v1304, %v1310
    %v1317 = vadd.f32 %v1305, %v1311
    %v1318 = vadd.f32 %v1306, %v1312
    %v1319 = vadd.f32 %v1307, %v1313
    %v1320 = vadd.f32 %v1308, %v1314
    %v1321 = vadd.f32 %v1309, %v1315
    %v1322 = vmul.f32 %v461, %v95
    %v1323 = vmul.f32 %v461, %v96
    %v1324 = vmul.f32 %v461, %v97
    %v1325 = vmul.f32 %v461, %v98
    %v1326 = vmul.f32 %v461, %v99
    %v1327 = vmul.f32 %v461, %v100
    %1334 = vrot.lane.b32.xlu0 %v1322, 127
    %v1335 = vpop.permute.xlu0 %1334
    %1336 = vrot.lane.b32.xlu0 %v1323, 127
    %v1337 = vpop.permute.xlu0 %1336
    %1338 = vrot.lane.b32.xlu0 %v1324, 127
    %v1339 = vpop.permute.xlu0 %1338
    %1340 = vrot.lane.b32.xlu0 %v1325, 127
    %v1341 = vpop.permute.xlu0 %1340
    %1342 = vrot.lane.b32.xlu0 %v1326, 127
    %v1343 = vpop.permute.xlu0 %1342
    %1344 = vrot.lane.b32.xlu0 %v1327, 127
    %v1345 = vpop.permute.xlu0 %1344
    %v1352 = vadd.f32 %v1316, %v1335
    %v1353 = vadd.f32 %v1317, %v1337
    %v1354 = vadd.f32 %v1318, %v1339
    %v1355 = vadd.f32 %v1319, %v1341
    %v1356 = vadd.f32 %v1320, %v1343
    %v1357 = vadd.f32 %v1321, %v1345
    %v1358 = vmul.f32 %v499, %v104
    %v1359 = vmul.f32 %v499, %v105
    %v1360 = vmul.f32 %v499, %v106
    %v1361 = vmul.f32 %v499, %v107
    %v1362 = vmul.f32 %v499, %v108
    %v1363 = vmul.f32 %v499, %v109
    %1370 = vrot.lane.b32.xlu0 %v1358, 127
    %v1371 = vpop.permute.xlu0 %1370
    %1372 = vrot.lane.b32.xlu0 %v1359, 127
    %v1373 = vpop.permute.xlu0 %1372
    %1374 = vrot.lane.b32.xlu0 %v1360, 127
    %v1375 = vpop.permute.xlu0 %1374
    %1376 = vrot.lane.b32.xlu0 %v1361, 127
    %v1377 = vpop.permute.xlu0 %1376
    %1378 = vrot.lane.b32.xlu0 %v1362, 127
    %v1379 = vpop.permute.xlu0 %1378
    %1380 = vrot.lane.b32.xlu0 %v1363, 127
    %v1381 = vpop.permute.xlu0 %1380
    %v1388 = vadd.f32 %v1352, %v1371
    %v1389 = vadd.f32 %v1353, %v1373
    %v1390 = vadd.f32 %v1354, %v1375
    %v1391 = vadd.f32 %v1355, %v1377
    %v1392 = vadd.f32 %v1356, %v1379
    %v1393 = vadd.f32 %v1357, %v1381
    %v1394 = vmax.f32 %v1010, %v1388
    %v1395 = vmax.f32 %v1011, %v1389
    %v1396 = vmax.f32 %v1012, %v1390
    %v1397 = vmax.f32 %v1013, %v1391
    %v1398 = vmax.f32 %v1014, %v1392
    %v1399 = vmax.f32 %v1015, %v1393
    %v1400 = vmul.f32 %v127, %v119
    %v1401 = vmul.f32 %v127, %v120
    %v1402 = vmul.f32 %v127, %v121
    %v1403 = vmul.f32 %v127, %v122
    %v1404 = vmul.f32 %v127, %v123
    %v1405 = vmul.f32 %v127, %v124
    %v1406 = vmul.f32 %v135, %v111
    %v1407 = vmul.f32 %v135, %v112
    %v1408 = vmul.f32 %v135, %v113
    %v1409 = vmul.f32 %v135, %v114
    %v1410 = vmul.f32 %v135, %v115
    %v1411 = vmul.f32 %v135, %v116
    %1418 = vrot.lane.b32.xlu0 %v1406, 127
    %v1419 = vpop.permute.xlu0 %1418
    %1420 = vrot.lane.b32.xlu0 %v1407, 127
    %v1421 = vpop.permute.xlu0 %1420
    %1422 = vrot.lane.b32.xlu0 %v1408, 127
    %v1423 = vpop.permute.xlu0 %1422
    %1424 = vrot.lane.b32.xlu0 %v1409, 127
    %v1425 = vpop.permute.xlu0 %1424
    %1426 = vrot.lane.b32.xlu0 %v1410, 127
    %v1427 = vpop.permute.xlu0 %1426
    %1428 = vrot.lane.b32.xlu0 %v1411, 127
    %v1429 = vpop.permute.xlu0 %1428
    %v1436 = vadd.f32 %v1400, %v1419
    %v1437 = vadd.f32 %v1401, %v1421
    %v1438 = vadd.f32 %v1402, %v1423
    %v1439 = vadd.f32 %v1403, %v1425
    %v1440 = vadd.f32 %v1404, %v1427
    %v1441 = vadd.f32 %v1405, %v1429
    %v1442 = vmul.f32 %v149, %v119
    %v1443 = vmul.f32 %v149, %v120
    %v1444 = vmul.f32 %v149, %v121
    %v1445 = vmul.f32 %v149, %v122
    %v1446 = vmul.f32 %v149, %v123
    %v1447 = vmul.f32 %v149, %v124
    %1454 = vrot.lane.b32.xlu0 %v1442, 127
    %v1455 = vpop.permute.xlu0 %1454
    %1456 = vrot.lane.b32.xlu0 %v1443, 127
    %v1457 = vpop.permute.xlu0 %1456
    %1458 = vrot.lane.b32.xlu0 %v1444, 127
    %v1459 = vpop.permute.xlu0 %1458
    %1460 = vrot.lane.b32.xlu0 %v1445, 127
    %v1461 = vpop.permute.xlu0 %1460
    %1462 = vrot.lane.b32.xlu0 %v1446, 127
    %v1463 = vpop.permute.xlu0 %1462
    %1464 = vrot.lane.b32.xlu0 %v1447, 127
    %v1465 = vpop.permute.xlu0 %1464
    %v1472 = vadd.f32 %v1436, %v1455
    %v1473 = vadd.f32 %v1437, %v1457
    %v1474 = vadd.f32 %v1438, %v1459
    %v1475 = vadd.f32 %v1439, %v1461
    %v1476 = vadd.f32 %v1440, %v1463
    %v1477 = vadd.f32 %v1441, %v1465
    %v1478 = vmul.f32 %v187, %v111
    %v1479 = vmul.f32 %v187, %v112
    %v1480 = vmul.f32 %v187, %v113
    %v1481 = vmul.f32 %v187, %v114
    %v1482 = vmul.f32 %v187, %v115
    %v1483 = vmul.f32 %v187, %v116
    %1490 = vrot.lane.b32.xlu0 %v1478, 126
    %v1491 = vpop.permute.xlu0 %1490
    %1492 = vrot.lane.b32.xlu0 %v1479, 126
    %v1493 = vpop.permute.xlu0 %1492
    %1494 = vrot.lane.b32.xlu0 %v1480, 126
    %v1495 = vpop.permute.xlu0 %1494
    %1496 = vrot.lane.b32.xlu0 %v1481, 126
    %v1497 = vpop.permute.xlu0 %1496
    %1498 = vrot.lane.b32.xlu0 %v1482, 126
    %v1499 = vpop.permute.xlu0 %1498
    %1500 = vrot.lane.b32.xlu0 %v1483, 126
    %v1501 = vpop.permute.xlu0 %1500
    %v1508 = vadd.f32 %v1472, %v1491
    %v1509 = vadd.f32 %v1473, %v1493
    %v1510 = vadd.f32 %v1474, %v1495
    %v1511 = vadd.f32 %v1475, %v1497
    %v1512 = vadd.f32 %v1476, %v1499
    %v1513 = vadd.f32 %v1477, %v1501
    %v1514 = vmul.f32 %v225, %v103
    %v1515 = vmul.f32 %v225, %v104
    %v1516 = vmul.f32 %v225, %v105
    %v1517 = vmul.f32 %v225, %v106
    %v1518 = vmul.f32 %v225, %v107
    %v1519 = vmul.f32 %v225, %v108
    %v1520 = vadd.f32 %v1508, %v1514
    %v1521 = vadd.f32 %v1509, %v1515
    %v1522 = vadd.f32 %v1510, %v1516
    %v1523 = vadd.f32 %v1511, %v1517
    %v1524 = vadd.f32 %v1512, %v1518
    %v1525 = vadd.f32 %v1513, %v1519
    %v1526 = vmul.f32 %v239, %v94
    %v1527 = vmul.f32 %v239, %v95
    %v1528 = vmul.f32 %v239, %v96
    %v1529 = vmul.f32 %v239, %v97
    %v1530 = vmul.f32 %v239, %v98
    %v1531 = vmul.f32 %v239, %v99
    %1538 = vrot.lane.b32.xlu0 %v1526, 127
    %v1539 = vpop.permute.xlu0 %1538
    %1540 = vrot.lane.b32.xlu0 %v1527, 127
    %v1541 = vpop.permute.xlu0 %1540
    %1542 = vrot.lane.b32.xlu0 %v1528, 127
    %v1543 = vpop.permute.xlu0 %1542
    %1544 = vrot.lane.b32.xlu0 %v1529, 127
    %v1545 = vpop.permute.xlu0 %1544
    %1546 = vrot.lane.b32.xlu0 %v1530, 127
    %v1547 = vpop.permute.xlu0 %1546
    %1548 = vrot.lane.b32.xlu0 %v1531, 127
    %v1549 = vpop.permute.xlu0 %1548
    %v1556 = vadd.f32 %v1520, %v1539
    %v1557 = vadd.f32 %v1521, %v1541
    %v1558 = vadd.f32 %v1522, %v1543
    %v1559 = vadd.f32 %v1523, %v1545
    %v1560 = vadd.f32 %v1524, %v1547
    %v1561 = vadd.f32 %v1525, %v1549
    %v1562 = vmul.f32 %v253, %v103
    %v1563 = vmul.f32 %v253, %v104
    %v1564 = vmul.f32 %v253, %v105
    %v1565 = vmul.f32 %v253, %v106
    %v1566 = vmul.f32 %v253, %v107
    %v1567 = vmul.f32 %v253, %v108
    %1574 = vrot.lane.b32.xlu0 %v1562, 127
    %v1575 = vpop.permute.xlu0 %1574
    %1576 = vrot.lane.b32.xlu0 %v1563, 127
    %v1577 = vpop.permute.xlu0 %1576
    %1578 = vrot.lane.b32.xlu0 %v1564, 127
    %v1579 = vpop.permute.xlu0 %1578
    %1580 = vrot.lane.b32.xlu0 %v1565, 127
    %v1581 = vpop.permute.xlu0 %1580
    %1582 = vrot.lane.b32.xlu0 %v1566, 127
    %v1583 = vpop.permute.xlu0 %1582
    %1584 = vrot.lane.b32.xlu0 %v1567, 127
    %v1585 = vpop.permute.xlu0 %1584
    %v1592 = vadd.f32 %v1556, %v1575
    %v1593 = vadd.f32 %v1557, %v1577
    %v1594 = vadd.f32 %v1558, %v1579
    %v1595 = vadd.f32 %v1559, %v1581
    %v1596 = vadd.f32 %v1560, %v1583
    %v1597 = vadd.f32 %v1561, %v1585
    %v1598 = vmul.f32 %v291, %v94
    %v1599 = vmul.f32 %v291, %v95
    %v1600 = vmul.f32 %v291, %v96
    %v1601 = vmul.f32 %v291, %v97
    %v1602 = vmul.f32 %v291, %v98
    %v1603 = vmul.f32 %v291, %v99
    %1610 = vrot.lane.b32.xlu0 %v1598, 126
    %v1611 = vpop.permute.xlu0 %1610
    %1612 = vrot.lane.b32.xlu0 %v1599, 126
    %v1613 = vpop.permute.xlu0 %1612
    %1614 = vrot.lane.b32.xlu0 %v1600, 126
    %v1615 = vpop.permute.xlu0 %1614
    %1616 = vrot.lane.b32.xlu0 %v1601, 126
    %v1617 = vpop.permute.xlu0 %1616
    %1618 = vrot.lane.b32.xlu0 %v1602, 126
    %v1619 = vpop.permute.xlu0 %1618
    %1620 = vrot.lane.b32.xlu0 %v1603, 126
    %v1621 = vpop.permute.xlu0 %1620
    %v1628 = vadd.f32 %v1592, %v1611
    %v1629 = vadd.f32 %v1593, %v1613
    %v1630 = vadd.f32 %v1594, %v1615
    %v1631 = vadd.f32 %v1595, %v1617
    %v1632 = vadd.f32 %v1596, %v1619
    %v1633 = vadd.f32 %v1597, %v1621
    %v1634 = vmul.f32 %v329, %v120
    %v1635 = vmul.f32 %v329, %v121
    %v1636 = vmul.f32 %v329, %v122
    %v1637 = vmul.f32 %v329, %v123
    %v1638 = vmul.f32 %v329, %v124
    %v1639 = vmul.f32 %v329, %v125
    %v1640 = vadd.f32 %v1628, %v1634
    %v1641 = vadd.f32 %v1629, %v1635
    %v1642 = vadd.f32 %v1630, %v1636
    %v1643 = vadd.f32 %v1631, %v1637
    %v1644 = vadd.f32 %v1632, %v1638
    %v1645 = vadd.f32 %v1633, %v1639
    %v1646 = vmul.f32 %v343, %v112
    %v1647 = vmul.f32 %v343, %v113
    %v1648 = vmul.f32 %v343, %v114
    %v1649 = vmul.f32 %v343, %v115
    %v1650 = vmul.f32 %v343, %v116
    %v1651 = vmul.f32 %v343, %v117
    %1658 = vrot.lane.b32.xlu0 %v1646, 127
    %v1659 = vpop.permute.xlu0 %1658
    %1660 = vrot.lane.b32.xlu0 %v1647, 127
    %v1661 = vpop.permute.xlu0 %1660
    %1662 = vrot.lane.b32.xlu0 %v1648, 127
    %v1663 = vpop.permute.xlu0 %1662
    %1664 = vrot.lane.b32.xlu0 %v1649, 127
    %v1665 = vpop.permute.xlu0 %1664
    %1666 = vrot.lane.b32.xlu0 %v1650, 127
    %v1667 = vpop.permute.xlu0 %1666
    %1668 = vrot.lane.b32.xlu0 %v1651, 127
    %v1669 = vpop.permute.xlu0 %1668
    %v1676 = vadd.f32 %v1640, %v1659
    %v1677 = vadd.f32 %v1641, %v1661
    %v1678 = vadd.f32 %v1642, %v1663
    %v1679 = vadd.f32 %v1643, %v1665
    %v1680 = vadd.f32 %v1644, %v1667
    %v1681 = vadd.f32 %v1645, %v1669
    %v1682 = vmul.f32 %v357, %v120
    %v1683 = vmul.f32 %v357, %v121
    %v1684 = vmul.f32 %v357, %v122
    %v1685 = vmul.f32 %v357, %v123
    %v1686 = vmul.f32 %v357, %v124
    %v1687 = vmul.f32 %v357, %v125
    %1694 = vrot.lane.b32.xlu0 %v1682, 127
    %v1695 = vpop.permute.xlu0 %1694
    %1696 = vrot.lane.b32.xlu0 %v1683, 127
    %v1697 = vpop.permute.xlu0 %1696
    %1698 = vrot.lane.b32.xlu0 %v1684, 127
    %v1699 = vpop.permute.xlu0 %1698
    %1700 = vrot.lane.b32.xlu0 %v1685, 127
    %v1701 = vpop.permute.xlu0 %1700
    %1702 = vrot.lane.b32.xlu0 %v1686, 127
    %v1703 = vpop.permute.xlu0 %1702
    %1704 = vrot.lane.b32.xlu0 %v1687, 127
    %v1705 = vpop.permute.xlu0 %1704
    %v1712 = vadd.f32 %v1676, %v1695
    %v1713 = vadd.f32 %v1677, %v1697
    %v1714 = vadd.f32 %v1678, %v1699
    %v1715 = vadd.f32 %v1679, %v1701
    %v1716 = vadd.f32 %v1680, %v1703
    %v1717 = vadd.f32 %v1681, %v1705
    %v1718 = vmul.f32 %v395, %v112
    %v1719 = vmul.f32 %v395, %v113
    %v1720 = vmul.f32 %v395, %v114
    %v1721 = vmul.f32 %v395, %v115
    %v1722 = vmul.f32 %v395, %v116
    %v1723 = vmul.f32 %v395, %v117
    %1730 = vrot.lane.b32.xlu0 %v1718, 126
    %v1731 = vpop.permute.xlu0 %1730
    %1732 = vrot.lane.b32.xlu0 %v1719, 126
    %v1733 = vpop.permute.xlu0 %1732
    %1734 = vrot.lane.b32.xlu0 %v1720, 126
    %v1735 = vpop.permute.xlu0 %1734
    %1736 = vrot.lane.b32.xlu0 %v1721, 126
    %v1737 = vpop.permute.xlu0 %1736
    %1738 = vrot.lane.b32.xlu0 %v1722, 126
    %v1739 = vpop.permute.xlu0 %1738
    %1740 = vrot.lane.b32.xlu0 %v1723, 126
    %v1741 = vpop.permute.xlu0 %1740
    %v1748 = vadd.f32 %v1712, %v1731
    %v1749 = vadd.f32 %v1713, %v1733
    %v1750 = vadd.f32 %v1714, %v1735
    %v1751 = vadd.f32 %v1715, %v1737
    %v1752 = vadd.f32 %v1716, %v1739
    %v1753 = vadd.f32 %v1717, %v1741
    %v1754 = vmul.f32 %v433, %v104
    %v1755 = vmul.f32 %v433, %v105
    %v1756 = vmul.f32 %v433, %v106
    %v1757 = vmul.f32 %v433, %v107
    %v1758 = vmul.f32 %v433, %v108
    %v1759 = vmul.f32 %v433, %v109
    %v1760 = vadd.f32 %v1748, %v1754
    %v1761 = vadd.f32 %v1749, %v1755
    %v1762 = vadd.f32 %v1750, %v1756
    %v1763 = vadd.f32 %v1751, %v1757
    %v1764 = vadd.f32 %v1752, %v1758
    %v1765 = vadd.f32 %v1753, %v1759
    %v1766 = vmul.f32 %v447, %v95
    %v1767 = vmul.f32 %v447, %v96
    %v1768 = vmul.f32 %v447, %v97
    %v1769 = vmul.f32 %v447, %v98
    %v1770 = vmul.f32 %v447, %v99
    %v1771 = vmul.f32 %v447, %v100
    %1778 = vrot.lane.b32.xlu0 %v1766, 127
    %v1779 = vpop.permute.xlu0 %1778
    %1780 = vrot.lane.b32.xlu0 %v1767, 127
    %v1781 = vpop.permute.xlu0 %1780
    %1782 = vrot.lane.b32.xlu0 %v1768, 127
    %v1783 = vpop.permute.xlu0 %1782
    %1784 = vrot.lane.b32.xlu0 %v1769, 127
    %v1785 = vpop.permute.xlu0 %1784
    %1786 = vrot.lane.b32.xlu0 %v1770, 127
    %v1787 = vpop.permute.xlu0 %1786
    %1788 = vrot.lane.b32.xlu0 %v1771, 127
    %v1789 = vpop.permute.xlu0 %1788
    %v1796 = vadd.f32 %v1760, %v1779
    %v1797 = vadd.f32 %v1761, %v1781
    %v1798 = vadd.f32 %v1762, %v1783
    %v1799 = vadd.f32 %v1763, %v1785
    %v1800 = vadd.f32 %v1764, %v1787
    %v1801 = vadd.f32 %v1765, %v1789
    %v1802 = vmul.f32 %v461, %v104
    %v1803 = vmul.f32 %v461, %v105
    %v1804 = vmul.f32 %v461, %v106
    %v1805 = vmul.f32 %v461, %v107
    %v1806 = vmul.f32 %v461, %v108
    %v1807 = vmul.f32 %v461, %v109
    %1814 = vrot.lane.b32.xlu0 %v1802, 127
    %v1815 = vpop.permute.xlu0 %1814
    %1816 = vrot.lane.b32.xlu0 %v1803, 127
    %v1817 = vpop.permute.xlu0 %1816
    %1818 = vrot.lane.b32.xlu0 %v1804, 127
    %v1819 = vpop.permute.xlu0 %1818
    %1820 = vrot.lane.b32.xlu0 %v1805, 127
    %v1821 = vpop.permute.xlu0 %1820
    %1822 = vrot.lane.b32.xlu0 %v1806, 127
    %v1823 = vpop.permute.xlu0 %1822
    %1824 = vrot.lane.b32.xlu0 %v1807, 127
    %v1825 = vpop.permute.xlu0 %1824
    %v1832 = vadd.f32 %v1796, %v1815
    %v1833 = vadd.f32 %v1797, %v1817
    %v1834 = vadd.f32 %v1798, %v1819
    %v1835 = vadd.f32 %v1799, %v1821
    %v1836 = vadd.f32 %v1800, %v1823
    %v1837 = vadd.f32 %v1801, %v1825
    %v1838 = vmul.f32 %v499, %v95
    %v1839 = vmul.f32 %v499, %v96
    %v1840 = vmul.f32 %v499, %v97
    %v1841 = vmul.f32 %v499, %v98
    %v1842 = vmul.f32 %v499, %v99
    %v1843 = vmul.f32 %v499, %v100
    %1850 = vrot.lane.b32.xlu0 %v1838, 126
    %v1851 = vpop.permute.xlu0 %1850
    %1852 = vrot.lane.b32.xlu0 %v1839, 126
    %v1853 = vpop.permute.xlu0 %1852
    %1854 = vrot.lane.b32.xlu0 %v1840, 126
    %v1855 = vpop.permute.xlu0 %1854
    %1856 = vrot.lane.b32.xlu0 %v1841, 126
    %v1857 = vpop.permute.xlu0 %1856
    %1858 = vrot.lane.b32.xlu0 %v1842, 126
    %v1859 = vpop.permute.xlu0 %1858
    %1860 = vrot.lane.b32.xlu0 %v1843, 126
    %v1861 = vpop.permute.xlu0 %1860
    %v1868 = vadd.f32 %v1832, %v1851
    %v1869 = vadd.f32 %v1833, %v1853
    %v1870 = vadd.f32 %v1834, %v1855
    %v1871 = vadd.f32 %v1835, %v1857
    %v1872 = vadd.f32 %v1836, %v1859
    %v1873 = vadd.f32 %v1837, %v1861
    %v1874 = vmax.f32 %v1394, %v1868
    %v1875 = vmax.f32 %v1395, %v1869
    %v1876 = vmax.f32 %v1396, %v1870
    %v1877 = vmax.f32 %v1397, %v1871
    %v1878 = vmax.f32 %v1398, %v1872
    %v1879 = vmax.f32 %v1399, %v1873
    %s1880 = sld [smem:[#allocation5]]
    %v1881 = vstv %s1880
    %v1882 = vadd.f32 %v1874, %v1881
    %v1883 = vadd.f32 %v1875, %v1881
    %v1884 = vadd.f32 %v1876, %v1881
    %v1885 = vadd.f32 %v1877, %v1881
    %v1886 = vadd.f32 %v1878, %v1881
    %v1887 = vadd.f32 %v1879, %v1881
    %v1888 = vmax.f32 %v1882, 0.0
    %v1889 = vmax.f32 %v1883, 0.0
    %v1890 = vmax.f32 %v1884, 0.0
    %v1891 = vmax.f32 %v1885, 0.0
    %v1892 = vmax.f32 %v1886, 0.0
    %v1893 = vmax.f32 %v1887, 0.0
    %s1894 = sld [smem:[#allocation2 + $0x80]]
    %v1895 = vstv %s1894
    %v1896 = vmul.f32 %v1895, %v93
    %v1897 = vmul.f32 %v1895, %v94
    %v1898 = vmul.f32 %v1895, %v95
    %v1899 = vmul.f32 %v1895, %v96
    %v1900 = vmul.f32 %v1895, %v97
    %v1901 = vmul.f32 %v1895, %v98
    %s1902 = sld [smem:[#allocation2 + $0x81]]
    %v1903 = vstv %s1902
    %v1904 = vmul.f32 %v1903, %v102
    %v1905 = vmul.f32 %v1903, %v103
    %v1906 = vmul.f32 %v1903, %v104
    %v1907 = vmul.f32 %v1903, %v105
    %v1908 = vmul.f32 %v1903, %v106
    %v1909 = vmul.f32 %v1903, %v107
    %v1910 = vadd.f32 %v1896, %v1904
    %v1911 = vadd.f32 %v1897, %v1905
    %v1912 = vadd.f32 %v1898, %v1906
    %v1913 = vadd.f32 %v1899, %v1907
    %v1914 = vadd.f32 %v1900, %v1908
    %v1915 = vadd.f32 %v1901, %v1909
    %s1916 = sld [smem:[#allocation2 + $0x82]]
    %v1917 = vstv %s1916
    %v1918 = vmul.f32 %v1917, %v93
    %v1919 = vmul.f32 %v1917, %v94
    %v1920 = vmul.f32 %v1917, %v95
    %v1921 = vmul.f32 %v1917, %v96
    %v1922 = vmul.f32 %v1917, %v97
    %v1923 = vmul.f32 %v1917, %v98
    %1930 = vrot.lane.b32.xlu0 %v1918, 127
    %v1931 = vpop.permute.xlu0 %1930
    %1932 = vrot.lane.b32.xlu0 %v1919, 127
    %v1933 = vpop.permute.xlu0 %1932
    %1934 = vrot.lane.b32.xlu0 %v1920, 127
    %v1935 = vpop.permute.xlu0 %1934
    %1936 = vrot.lane.b32.xlu0 %v1921, 127
    %v1937 = vpop.permute.xlu0 %1936
    %1938 = vrot.lane.b32.xlu0 %v1922, 127
    %v1939 = vpop.permute.xlu0 %1938
    %1940 = vrot.lane.b32.xlu0 %v1923, 127
    %v1941 = vpop.permute.xlu0 %1940
    %v1948 = vadd.f32 %v1910, %v1931
    %v1949 = vadd.f32 %v1911, %v1933
    %v1950 = vadd.f32 %v1912, %v1935
    %v1951 = vadd.f32 %v1913, %v1937
    %v1952 = vadd.f32 %v1914, %v1939
    %v1953 = vadd.f32 %v1915, %v1941
    %s1954 = sld [smem:[#allocation2 + $0x83]]
    %v1955 = vstv %s1954
    %v1956 = vmul.f32 %v1955, %v102
    %v1957 = vmul.f32 %v1955, %v103
    %v1958 = vmul.f32 %v1955, %v104
    %v1959 = vmul.f32 %v1955, %v105
    %v1960 = vmul.f32 %v1955, %v106
    %v1961 = vmul.f32 %v1955, %v107
    %1968 = vrot.lane.b32.xlu0 %v1956, 127
    %v1969 = vpop.permute.xlu0 %1968
    %1970 = vrot.lane.b32.xlu0 %v1957, 127
    %v1971 = vpop.permute.xlu0 %1970
    %1972 = vrot.lane.b32.xlu0 %v1958, 127
    %v1973 = vpop.permute.xlu0 %1972
    %1974 = vrot.lane.b32.xlu0 %v1959, 127
    %v1975 = vpop.permute.xlu0 %1974
    %1976 = vrot.lane.b32.xlu0 %v1960, 127
    %v1977 = vpop.permute.xlu0 %1976
    %1978 = vrot.lane.b32.xlu0 %v1961, 127
    %v1979 = vpop.permute.xlu0 %1978
    %v1986 = vadd.f32 %v1948, %v1969
    %v1987 = vadd.f32 %v1949, %v1971
    %v1988 = vadd.f32 %v1950, %v1973
    %v1989 = vadd.f32 %v1951, %v1975
    %v1990 = vadd.f32 %v1952, %v1977
    %v1991 = vadd.f32 %v1953, %v1979
    %s1992 = sld [smem:[#allocation2 + $0x84]]
    %v1993 = vstv %s1992
    %v1994 = vmul.f32 %v1993, %v111
    %v1995 = vmul.f32 %v1993, %v112
    %v1996 = vmul.f32 %v1993, %v113
    %v1997 = vmul.f32 %v1993, %v114
    %v1998 = vmul.f32 %v1993, %v115
    %v1999 = vmul.f32 %v1993, %v116
    %v2000 = vadd.f32 %v1986, %v1994
    %v2001 = vadd.f32 %v1987, %v1995
    %v2002 = vadd.f32 %v1988, %v1996
    %v2003 = vadd.f32 %v1989, %v1997
    %v2004 = vadd.f32 %v1990, %v1998
    %v2005 = vadd.f32 %v1991, %v1999
    %s2006 = sld [smem:[#allocation2 + $0x85]]
    %v2007 = vstv %s2006
    %v2008 = vmul.f32 %v2007, %v119
    %v2009 = vmul.f32 %v2007, %v120
    %v2010 = vmul.f32 %v2007, %v121
    %v2011 = vmul.f32 %v2007, %v122
    %v2012 = vmul.f32 %v2007, %v123
    %v2013 = vmul.f32 %v2007, %v124
    %v2014 = vadd.f32 %v2000, %v2008
    %v2015 = vadd.f32 %v2001, %v2009
    %v2016 = vadd.f32 %v2002, %v2010
    %v2017 = vadd.f32 %v2003, %v2011
    %v2018 = vadd.f32 %v2004, %v2012
    %v2019 = vadd.f32 %v2005, %v2013
    %s2020 = sld [smem:[#allocation2 + $0x86]]
    %v2021 = vstv %s2020
    %v2022 = vmul.f32 %v2021, %v111
    %v2023 = vmul.f32 %v2021, %v112
    %v2024 = vmul.f32 %v2021, %v113
    %v2025 = vmul.f32 %v2021, %v114
    %v2026 = vmul.f32 %v2021, %v115
    %v2027 = vmul.f32 %v2021, %v116
    %2034 = vrot.lane.b32.xlu0 %v2022, 127
    %v2035 = vpop.permute.xlu0 %2034
    %2036 = vrot.lane.b32.xlu0 %v2023, 127
    %v2037 = vpop.permute.xlu0 %2036
    %2038 = vrot.lane.b32.xlu0 %v2024, 127
    %v2039 = vpop.permute.xlu0 %2038
    %2040 = vrot.lane.b32.xlu0 %v2025, 127
    %v2041 = vpop.permute.xlu0 %2040
    %2042 = vrot.lane.b32.xlu0 %v2026, 127
    %v2043 = vpop.permute.xlu0 %2042
    %2044 = vrot.lane.b32.xlu0 %v2027, 127
    %v2045 = vpop.permute.xlu0 %2044
    %v2052 = vadd.f32 %v2014, %v2035
    %v2053 = vadd.f32 %v2015, %v2037
    %v2054 = vadd.f32 %v2016, %v2039
    %v2055 = vadd.f32 %v2017, %v2041
    %v2056 = vadd.f32 %v2018, %v2043
    %v2057 = vadd.f32 %v2019, %v2045
    %s2058 = sld [smem:[#allocation2 + $0x87]]
    %v2059 = vstv %s2058
    %v2060 = vmul.f32 %v2059, %v119
    %v2061 = vmul.f32 %v2059, %v120
    %v2062 = vmul.f32 %v2059, %v121
    %v2063 = vmul.f32 %v2059, %v122
    %v2064 = vmul.f32 %v2059, %v123
    %v2065 = vmul.f32 %v2059, %v124
    %2072 = vrot.lane.b32.xlu0 %v2060, 127
    %v2073 = vpop.permute.xlu0 %2072
    %2074 = vrot.lane.b32.xlu0 %v2061, 127
    %v2075 = vpop.permute.xlu0 %2074
    %2076 = vrot.lane.b32.xlu0 %v2062, 127
    %v2077 = vpop.permute.xlu0 %2076
    %2078 = vrot.lane.b32.xlu0 %v2063, 127
    %v2079 = vpop.permute.xlu0 %2078
    %2080 = vrot.lane.b32.xlu0 %v2064, 127
    %v2081 = vpop.permute.xlu0 %2080
    %2082 = vrot.lane.b32.xlu0 %v2065, 127
    %v2083 = vpop.permute.xlu0 %2082
    %v2090 = vadd.f32 %v2052, %v2073
    %v2091 = vadd.f32 %v2053, %v2075
    %v2092 = vadd.f32 %v2054, %v2077
    %v2093 = vadd.f32 %v2055, %v2079
    %v2094 = vadd.f32 %v2056, %v2081
    %v2095 = vadd.f32 %v2057, %v2083
    %s2096 = sld [smem:[#allocation2 + $0x88]]
    %v2097 = vstv %s2096
    %v2098 = vmul.f32 %v2097, %v94
    %v2099 = vmul.f32 %v2097, %v95
    %v2100 = vmul.f32 %v2097, %v96
    %v2101 = vmul.f32 %v2097, %v97
    %v2102 = vmul.f32 %v2097, %v98
    %v2103 = vmul.f32 %v2097, %v99
    %v2104 = vadd.f32 %v2090, %v2098
    %v2105 = vadd.f32 %v2091, %v2099
    %v2106 = vadd.f32 %v2092, %v2100
    %v2107 = vadd.f32 %v2093, %v2101
    %v2108 = vadd.f32 %v2094, %v2102
    %v2109 = vadd.f32 %v2095, %v2103
    %s2110 = sld [smem:[#allocation2 + $0x89]]
    %v2111 = vstv %s2110
    %v2112 = vmul.f32 %v2111, %v103
    %v2113 = vmul.f32 %v2111, %v104
    %v2114 = vmul.f32 %v2111, %v105
    %v2115 = vmul.f32 %v2111, %v106
    %v2116 = vmul.f32 %v2111, %v107
    %v2117 = vmul.f32 %v2111, %v108
    %v2118 = vadd.f32 %v2104, %v2112
    %v2119 = vadd.f32 %v2105, %v2113
    %v2120 = vadd.f32 %v2106, %v2114
    %v2121 = vadd.f32 %v2107, %v2115
    %v2122 = vadd.f32 %v2108, %v2116
    %v2123 = vadd.f32 %v2109, %v2117
    %s2124 = sld [smem:[#allocation2 + $0x8a]]
    %v2125 = vstv %s2124
    %v2126 = vmul.f32 %v2125, %v94
    %v2127 = vmul.f32 %v2125, %v95
    %v2128 = vmul.f32 %v2125, %v96
    %v2129 = vmul.f32 %v2125, %v97
    %v2130 = vmul.f32 %v2125, %v98
    %v2131 = vmul.f32 %v2125, %v99
    %2138 = vrot.lane.b32.xlu0 %v2126, 127
    %v2139 = vpop.permute.xlu0 %2138
    %2140 = vrot.lane.b32.xlu0 %v2127, 127
    %v2141 = vpop.permute.xlu0 %2140
    %2142 = vrot.lane.b32.xlu0 %v2128, 127
    %v2143 = vpop.permute.xlu0 %2142
    %2144 = vrot.lane.b32.xlu0 %v2129, 127
    %v2145 = vpop.permute.xlu0 %2144
    %2146 = vrot.lane.b32.xlu0 %v2130, 127
    %v2147 = vpop.permute.xlu0 %2146
    %2148 = vrot.lane.b32.xlu0 %v2131, 127
    %v2149 = vpop.permute.xlu0 %2148
    %v2156 = vadd.f32 %v2118, %v2139
    %v2157 = vadd.f32 %v2119, %v2141
    %v2158 = vadd.f32 %v2120, %v2143
    %v2159 = vadd.f32 %v2121, %v2145
    %v2160 = vadd.f32 %v2122, %v2147
    %v2161 = vadd.f32 %v2123, %v2149
    %s2162 = sld [smem:[#allocation2 + $0x8b]]
    %v2163 = vstv %s2162
    %v2164 = vmul.f32 %v2163, %v103
    %v2165 = vmul.f32 %v2163, %v104
    %v2166 = vmul.f32 %v2163, %v105
    %v2167 = vmul.f32 %v2163, %v106
    %v2168 = vmul.f32 %v2163, %v107
    %v2169 = vmul.f32 %v2163, %v108
    %2176 = vrot.lane.b32.xlu0 %v2164, 127
    %v2177 = vpop.permute.xlu0 %2176
    %2178 = vrot.lane.b32.xlu0 %v2165, 127
    %v2179 = vpop.permute.xlu0 %2178
    %2180 = vrot.lane.b32.xlu0 %v2166, 127
    %v2181 = vpop.permute.xlu0 %2180
    %2182 = vrot.lane.b32.xlu0 %v2167, 127
    %v2183 = vpop.permute.xlu0 %2182
    %2184 = vrot.lane.b32.xlu0 %v2168, 127
    %v2185 = vpop.permute.xlu0 %2184
    %2186 = vrot.lane.b32.xlu0 %v2169, 127
    %v2187 = vpop.permute.xlu0 %2186
    %v2194 = vadd.f32 %v2156, %v2177
    %v2195 = vadd.f32 %v2157, %v2179
    %v2196 = vadd.f32 %v2158, %v2181
    %v2197 = vadd.f32 %v2159, %v2183
    %v2198 = vadd.f32 %v2160, %v2185
    %v2199 = vadd.f32 %v2161, %v2187
    %s2200 = sld [smem:[#allocation2 + $0x8c]]
    %v2201 = vstv %s2200
    %v2202 = vmul.f32 %v2201, %v112
    %v2203 = vmul.f32 %v2201, %v113
    %v2204 = vmul.f32 %v2201, %v114
    %v2205 = vmul.f32 %v2201, %v115
    %v2206 = vmul.f32 %v2201, %v116
    %v2207 = vmul.f32 %v2201, %v117
    %v2208 = vadd.f32 %v2194, %v2202
    %v2209 = vadd.f32 %v2195, %v2203
    %v2210 = vadd.f32 %v2196, %v2204
    %v2211 = vadd.f32 %v2197, %v2205
    %v2212 = vadd.f32 %v2198, %v2206
    %v2213 = vadd.f32 %v2199, %v2207
    %s2214 = sld [smem:[#allocation2 + $0x8d]]
    %v2215 = vstv %s2214
    %v2216 = vmul.f32 %v2215, %v120
    %v2217 = vmul.f32 %v2215, %v121
    %v2218 = vmul.f32 %v2215, %v122
    %v2219 = vmul.f32 %v2215, %v123
    %v2220 = vmul.f32 %v2215, %v124
    %v2221 = vmul.f32 %v2215, %v125
    %v2222 = vadd.f32 %v2208, %v2216
    %v2223 = vadd.f32 %v2209, %v2217
    %v2224 = vadd.f32 %v2210, %v2218
    %v2225 = vadd.f32 %v2211, %v2219
    %v2226 = vadd.f32 %v2212, %v2220
    %v2227 = vadd.f32 %v2213, %v2221
    %s2228 = sld [smem:[#allocation2 + $0x8e]]
    %v2229 = vstv %s2228
    %v2230 = vmul.f32 %v2229, %v112
    %v2231 = vmul.f32 %v2229, %v113
    %v2232 = vmul.f32 %v2229, %v114
    %v2233 = vmul.f32 %v2229, %v115
    %v2234 = vmul.f32 %v2229, %v116
    %v2235 = vmul.f32 %v2229, %v117
    %2242 = vrot.lane.b32.xlu0 %v2230, 127
    %v2243 = vpop.permute.xlu0 %2242
    %2244 = vrot.lane.b32.xlu0 %v2231, 127
    %v2245 = vpop.permute.xlu0 %2244
    %2246 = vrot.lane.b32.xlu0 %v2232, 127
    %v2247 = vpop.permute.xlu0 %2246
    %2248 = vrot.lane.b32.xlu0 %v2233, 127
    %v2249 = vpop.permute.xlu0 %2248
    %2250 = vrot.lane.b32.xlu0 %v2234, 127
    %v2251 = vpop.permute.xlu0 %2250
    %2252 = vrot.lane.b32.xlu0 %v2235, 127
    %v2253 = vpop.permute.xlu0 %2252
    %v2260 = vadd.f32 %v2222, %v2243
    %v2261 = vadd.f32 %v2223, %v2245
    %v2262 = vadd.f32 %v2224, %v2247
    %v2263 = vadd.f32 %v2225, %v2249
    %v2264 = vadd.f32 %v2226, %v2251
    %v2265 = vadd.f32 %v2227, %v2253
    %s2266 = sld [smem:[#allocation2 + $0x8f]]
    %v2267 = vstv %s2266
    %v2268 = vmul.f32 %v2267, %v120
    %v2269 = vmul.f32 %v2267, %v121
    %v2270 = vmul.f32 %v2267, %v122
    %v2271 = vmul.f32 %v2267, %v123
    %v2272 = vmul.f32 %v2267, %v124
    %v2273 = vmul.f32 %v2267, %v125
    %2280 = vrot.lane.b32.xlu0 %v2268, 127
    %v2281 = vpop.permute.xlu0 %2280
    %2282 = vrot.lane.b32.xlu0 %v2269, 127
    %v2283 = vpop.permute.xlu0 %2282
    %2284 = vrot.lane.b32.xlu0 %v2270, 127
    %v2285 = vpop.permute.xlu0 %2284
    %2286 = vrot.lane.b32.xlu0 %v2271, 127
    %v2287 = vpop.permute.xlu0 %2286
    %2288 = vrot.lane.b32.xlu0 %v2272, 127
    %v2289 = vpop.permute.xlu0 %2288
    %2290 = vrot.lane.b32.xlu0 %v2273, 127
    %v2291 = vpop.permute.xlu0 %2290
    %v2298 = vadd.f32 %v2260, %v2281
    %v2299 = vadd.f32 %v2261, %v2283
    %v2300 = vadd.f32 %v2262, %v2285
    %v2301 = vadd.f32 %v2263, %v2287
    %v2302 = vadd.f32 %v2264, %v2289
    %v2303 = vadd.f32 %v2265, %v2291
    %v2304 = vmul.f32 %v1895, %v102
    %v2305 = vmul.f32 %v1895, %v103
    %v2306 = vmul.f32 %v1895, %v104
    %v2307 = vmul.f32 %v1895, %v105
    %v2308 = vmul.f32 %v1895, %v106
    %v2309 = vmul.f32 %v1895, %v107
    %v2310 = vmul.f32 %v1903, %v93
    %v2311 = vmul.f32 %v1903, %v94
    %v2312 = vmul.f32 %v1903, %v95
    %v2313 = vmul.f32 %v1903, %v96
    %v2314 = vmul.f32 %v1903, %v97
    %v2315 = vmul.f32 %v1903, %v98
    %2322 = vrot.lane.b32.xlu0 %v2310, 127
    %v2323 = vpop.permute.xlu0 %2322
    %2324 = vrot.lane.b32.xlu0 %v2311, 127
    %v2325 = vpop.permute.xlu0 %2324
    %2326 = vrot.lane.b32.xlu0 %v2312, 127
    %v2327 = vpop.permute.xlu0 %2326
    %2328 = vrot.lane.b32.xlu0 %v2313, 127
    %v2329 = vpop.permute.xlu0 %2328
    %2330 = vrot.lane.b32.xlu0 %v2314, 127
    %v2331 = vpop.permute.xlu0 %2330
    %2332 = vrot.lane.b32.xlu0 %v2315, 127
    %v2333 = vpop.permute.xlu0 %2332
    %v2340 = vadd.f32 %v2304, %v2323
    %v2341 = vadd.f32 %v2305, %v2325
    %v2342 = vadd.f32 %v2306, %v2327
    %v2343 = vadd.f32 %v2307, %v2329
    %v2344 = vadd.f32 %v2308, %v2331
    %v2345 = vadd.f32 %v2309, %v2333
    %v2346 = vmul.f32 %v1917, %v102
    %v2347 = vmul.f32 %v1917, %v103
    %v2348 = vmul.f32 %v1917, %v104
    %v2349 = vmul.f32 %v1917, %v105
    %v2350 = vmul.f32 %v1917, %v106
    %v2351 = vmul.f32 %v1917, %v107
    %2358 = vrot.lane.b32.xlu0 %v2346, 127
    %v2359 = vpop.permute.xlu0 %2358
    %2360 = vrot.lane.b32.xlu0 %v2347, 127
    %v2361 = vpop.permute.xlu0 %2360
    %2362 = vrot.lane.b32.xlu0 %v2348, 127
    %v2363 = vpop.permute.xlu0 %2362
    %2364 = vrot.lane.b32.xlu0 %v2349, 127
    %v2365 = vpop.permute.xlu0 %2364
    %2366 = vrot.lane.b32.xlu0 %v2350, 127
    %v2367 = vpop.permute.xlu0 %2366
    %2368 = vrot.lane.b32.xlu0 %v2351, 127
    %v2369 = vpop.permute.xlu0 %2368
    %v2376 = vadd.f32 %v2340, %v2359
    %v2377 = vadd.f32 %v2341, %v2361
    %v2378 = vadd.f32 %v2342, %v2363
    %v2379 = vadd.f32 %v2343, %v2365
    %v2380 = vadd.f32 %v2344, %v2367
    %v2381 = vadd.f32 %v2345, %v2369
    %v2382 = vmul.f32 %v1955, %v93
    %v2383 = vmul.f32 %v1955, %v94
    %v2384 = vmul.f32 %v1955, %v95
    %v2385 = vmul.f32 %v1955, %v96
    %v2386 = vmul.f32 %v1955, %v97
    %v2387 = vmul.f32 %v1955, %v98
    %2394 = vrot.lane.b32.xlu0 %v2382, 126
    %v2395 = vpop.permute.xlu0 %2394
    %2396 = vrot.lane.b32.xlu0 %v2383, 126
    %v2397 = vpop.permute.xlu0 %2396
    %2398 = vrot.lane.b32.xlu0 %v2384, 126
    %v2399 = vpop.permute.xlu0 %2398
    %2400 = vrot.lane.b32.xlu0 %v2385, 126
    %v2401 = vpop.permute.xlu0 %2400
    %2402 = vrot.lane.b32.xlu0 %v2386, 126
    %v2403 = vpop.permute.xlu0 %2402
    %2404 = vrot.lane.b32.xlu0 %v2387, 126
    %v2405 = vpop.permute.xlu0 %2404
    %v2412 = vadd.f32 %v2376, %v2395
    %v2413 = vadd.f32 %v2377, %v2397
    %v2414 = vadd.f32 %v2378, %v2399
    %v2415 = vadd.f32 %v2379, %v2401
    %v2416 = vadd.f32 %v2380, %v2403
    %v2417 = vadd.f32 %v2381, %v2405
    %v2418 = vmul.f32 %v1993, %v119
    %v2419 = vmul.f32 %v1993, %v120
    %v2420 = vmul.f32 %v1993, %v121
    %v2421 = vmul.f32 %v1993, %v122
    %v2422 = vmul.f32 %v1993, %v123
    %v2423 = vmul.f32 %v1993, %v124
    %v2424 = vadd.f32 %v2412, %v2418
    %v2425 = vadd.f32 %v2413, %v2419
    %v2426 = vadd.f32 %v2414, %v2420
    %v2427 = vadd.f32 %v2415, %v2421
    %v2428 = vadd.f32 %v2416, %v2422
    %v2429 = vadd.f32 %v2417, %v2423
    %v2430 = vmul.f32 %v2007, %v111
    %v2431 = vmul.f32 %v2007, %v112
    %v2432 = vmul.f32 %v2007, %v113
    %v2433 = vmul.f32 %v2007, %v114
    %v2434 = vmul.f32 %v2007, %v115
    %v2435 = vmul.f32 %v2007, %v116
    %2442 = vrot.lane.b32.xlu0 %v2430, 127
    %v2443 = vpop.permute.xlu0 %2442
    %2444 = vrot.lane.b32.xlu0 %v2431, 127
    %v2445 = vpop.permute.xlu0 %2444
    %2446 = vrot.lane.b32.xlu0 %v2432, 127
    %v2447 = vpop.permute.xlu0 %2446
    %2448 = vrot.lane.b32.xlu0 %v2433, 127
    %v2449 = vpop.permute.xlu0 %2448
    %2450 = vrot.lane.b32.xlu0 %v2434, 127
    %v2451 = vpop.permute.xlu0 %2450
    %2452 = vrot.lane.b32.xlu0 %v2435, 127
    %v2453 = vpop.permute.xlu0 %2452
    %v2460 = vadd.f32 %v2424, %v2443
    %v2461 = vadd.f32 %v2425, %v2445
    %v2462 = vadd.f32 %v2426, %v2447
    %v2463 = vadd.f32 %v2427, %v2449
    %v2464 = vadd.f32 %v2428, %v2451
    %v2465 = vadd.f32 %v2429, %v2453
    %v2466 = vmul.f32 %v2021, %v119
    %v2467 = vmul.f32 %v2021, %v120
    %v2468 = vmul.f32 %v2021, %v121
    %v2469 = vmul.f32 %v2021, %v122
    %v2470 = vmul.f32 %v2021, %v123
    %v2471 = vmul.f32 %v2021, %v124
    %2478 = vrot.lane.b32.xlu0 %v2466, 127
    %v2479 = vpop.permute.xlu0 %2478
    %2480 = vrot.lane.b32.xlu0 %v2467, 127
    %v2481 = vpop.permute.xlu0 %2480
    %2482 = vrot.lane.b32.xlu0 %v2468, 127
    %v2483 = vpop.permute.xlu0 %2482
    %2484 = vrot.lane.b32.xlu0 %v2469, 127
    %v2485 = vpop.permute.xlu0 %2484
    %2486 = vrot.lane.b32.xlu0 %v2470, 127
    %v2487 = vpop.permute.xlu0 %2486
    %2488 = vrot.lane.b32.xlu0 %v2471, 127
    %v2489 = vpop.permute.xlu0 %2488
    %v2496 = vadd.f32 %v2460, %v2479
    %v2497 = vadd.f32 %v2461, %v2481
    %v2498 = vadd.f32 %v2462, %v2483
    %v2499 = vadd.f32 %v2463, %v2485
    %v2500 = vadd.f32 %v2464, %v2487
    %v2501 = vadd.f32 %v2465, %v2489
    %v2502 = vmul.f32 %v2059, %v111
    %v2503 = vmul.f32 %v2059, %v112
    %v2504 = vmul.f32 %v2059, %v113
    %v2505 = vmul.f32 %v2059, %v114
    %v2506 = vmul.f32 %v2059, %v115
    %v2507 = vmul.f32 %v2059, %v116
    %2514 = vrot.lane.b32.xlu0 %v2502, 126
    %v2515 = vpop.permute.xlu0 %2514
    %2516 = vrot.lane.b32.xlu0 %v2503, 126
    %v2517 = vpop.permute.xlu0 %2516
    %2518 = vrot.lane.b32.xlu0 %v2504, 126
    %v2519 = vpop.permute.xlu0 %2518
    %2520 = vrot.lane.b32.xlu0 %v2505, 126
    %v2521 = vpop.permute.xlu0 %2520
    %2522 = vrot.lane.b32.xlu0 %v2506, 126
    %v2523 = vpop.permute.xlu0 %2522
    %2524 = vrot.lane.b32.xlu0 %v2507, 126
    %v2525 = vpop.permute.xlu0 %2524
    %v2532 = vadd.f32 %v2496, %v2515
    %v2533 = vadd.f32 %v2497, %v2517
    %v2534 = vadd.f32 %v2498, %v2519
    %v2535 = vadd.f32 %v2499, %v2521
    %v2536 = vadd.f32 %v2500, %v2523
    %v2537 = vadd.f32 %v2501, %v2525
    %v2538 = vmul.f32 %v2097, %v103
    %v2539 = vmul.f32 %v2097, %v104
    %v2540 = vmul.f32 %v2097, %v105
    %v2541 = vmul.f32 %v2097, %v106
    %v2542 = vmul.f32 %v2097, %v107
    %v2543 = vmul.f32 %v2097, %v108
    %v2544 = vadd.f32 %v2532, %v2538
    %v2545 = vadd.f32 %v2533, %v2539
    %v2546 = vadd.f32 %v2534, %v2540
    %v2547 = vadd.f32 %v2535, %v2541
    %v2548 = vadd.f32 %v2536, %v2542
    %v2549 = vadd.f32 %v2537, %v2543
    %v2550 = vmul.f32 %v2111, %v94
    %v2551 = vmul.f32 %v2111, %v95
    %v2552 = vmul.f32 %v2111, %v96
    %v2553 = vmul.f32 %v2111, %v97
    %v2554 = vmul.f32 %v2111, %v98
    %v2555 = vmul.f32 %v2111, %v99
    %2562 = vrot.lane.b32.xlu0 %v2550, 127
    %v2563 = vpop.permute.xlu0 %2562
    %2564 = vrot.lane.b32.xlu0 %v2551, 127
    %v2565 = vpop.permute.xlu0 %2564
    %2566 = vrot.lane.b32.xlu0 %v2552, 127
    %v2567 = vpop.permute.xlu0 %2566
    %2568 = vrot.lane.b32.xlu0 %v2553, 127
    %v2569 = vpop.permute.xlu0 %2568
    %2570 = vrot.lane.b32.xlu0 %v2554, 127
    %v2571 = vpop.permute.xlu0 %2570
    %2572 = vrot.lane.b32.xlu0 %v2555, 127
    %v2573 = vpop.permute.xlu0 %2572
    %v2580 = vadd.f32 %v2544, %v2563
    %v2581 = vadd.f32 %v2545, %v2565
    %v2582 = vadd.f32 %v2546, %v2567
    %v2583 = vadd.f32 %v2547, %v2569
    %v2584 = vadd.f32 %v2548, %v2571
    %v2585 = vadd.f32 %v2549, %v2573
    %v2586 = vmul.f32 %v2125, %v103
    %v2587 = vmul.f32 %v2125, %v104
    %v2588 = vmul.f32 %v2125, %v105
    %v2589 = vmul.f32 %v2125, %v106
    %v2590 = vmul.f32 %v2125, %v107
    %v2591 = vmul.f32 %v2125, %v108
    %2598 = vrot.lane.b32.xlu0 %v2586, 127
    %v2599 = vpop.permute.xlu0 %2598
    %2600 = vrot.lane.b32.xlu0 %v2587, 127
    %v2601 = vpop.permute.xlu0 %2600
    %2602 = vrot.lane.b32.xlu0 %v2588, 127
    %v2603 = vpop.permute.xlu0 %2602
    %2604 = vrot.lane.b32.xlu0 %v2589, 127
    %v2605 = vpop.permute.xlu0 %2604
    %2606 = vrot.lane.b32.xlu0 %v2590, 127
    %v2607 = vpop.permute.xlu0 %2606
    %2608 = vrot.lane.b32.xlu0 %v2591, 127
    %v2609 = vpop.permute.xlu0 %2608
    %v2616 = vadd.f32 %v2580, %v2599
    %v2617 = vadd.f32 %v2581, %v2601
    %v2618 = vadd.f32 %v2582, %v2603
    %v2619 = vadd.f32 %v2583, %v2605
    %v2620 = vadd.f32 %v2584, %v2607
    %v2621 = vadd.f32 %v2585, %v2609
    %v2622 = vmul.f32 %v2163, %v94
    %v2623 = vmul.f32 %v2163, %v95
    %v2624 = vmul.f32 %v2163, %v96
    %v2625 = vmul.f32 %v2163, %v97
    %v2626 = vmul.f32 %v2163, %v98
    %v2627 = vmul.f32 %v2163, %v99
    %2634 = vrot.lane.b32.xlu0 %v2622, 126
    %v2635 = vpop.permute.xlu0 %2634
    %2636 = vrot.lane.b32.xlu0 %v2623, 126
    %v2637 = vpop.permute.xlu0 %2636
    %2638 = vrot.lane.b32.xlu0 %v2624, 126
    %v2639 = vpop.permute.xlu0 %2638
    %2640 = vrot.lane.b32.xlu0 %v2625, 126
    %v2641 = vpop.permute.xlu0 %2640
    %2642 = vrot.lane.b32.xlu0 %v2626, 126
    %v2643 = vpop.permute.xlu0 %2642
    %2644 = vrot.lane.b32.xlu0 %v2627, 126
    %v2645 = vpop.permute.xlu0 %2644
    %v2652 = vadd.f32 %v2616, %v2635
    %v2653 = vadd.f32 %v2617, %v2637
    %v2654 = vadd.f32 %v2618, %v2639
    %v2655 = vadd.f32 %v2619, %v2641
    %v2656 = vadd.f32 %v2620, %v2643
    %v2657 = vadd.f32 %v2621, %v2645
    %v2658 = vmul.f32 %v2201, %v120
    %v2659 = vmul.f32 %v2201, %v121
    %v2660 = vmul.f32 %v2201, %v122
    %v2661 = vmul.f32 %v2201, %v123
    %v2662 = vmul.f32 %v2201, %v124
    %v2663 = vmul.f32 %v2201, %v125
    %v2664 = vadd.f32 %v2652, %v2658
    %v2665 = vadd.f32 %v2653, %v2659
    %v2666 = vadd.f32 %v2654, %v2660
    %v2667 = vadd.f32 %v2655, %v2661
    %v2668 = vadd.f32 %v2656, %v2662
    %v2669 = vadd.f32 %v2657, %v2663
    %v2670 = vmul.f32 %v2215, %v112
    %v2671 = vmul.f32 %v2215, %v113
    %v2672 = vmul.f32 %v2215, %v114
    %v2673 = vmul.f32 %v2215, %v115
    %v2674 = vmul.f32 %v2215, %v116
    %v2675 = vmul.f32 %v2215, %v117
    %2682 = vrot.lane.b32.xlu0 %v2670, 127
    %v2683 = vpop.permute.xlu0 %2682
    %2684 = vrot.lane.b32.xlu0 %v2671, 127
    %v2685 = vpop.permute.xlu0 %2684
    %2686 = vrot.lane.b32.xlu0 %v2672, 127
    %v2687 = vpop.permute.xlu0 %2686
    %2688 = vrot.lane.b32.xlu0 %v2673, 127
    %v2689 = vpop.permute.xlu0 %2688
    %2690 = vrot.lane.b32.xlu0 %v2674, 127
    %v2691 = vpop.permute.xlu0 %2690
    %2692 = vrot.lane.b32.xlu0 %v2675, 127
    %v2693 = vpop.permute.xlu0 %2692
    %v2700 = vadd.f32 %v2664, %v2683
    %v2701 = vadd.f32 %v2665, %v2685
    %v2702 = vadd.f32 %v2666, %v2687
    %v2703 = vadd.f32 %v2667, %v2689
    %v2704 = vadd.f32 %v2668, %v2691
    %v2705 = vadd.f32 %v2669, %v2693
    %v2706 = vmul.f32 %v2229, %v120
    %v2707 = vmul.f32 %v2229, %v121
    %v2708 = vmul.f32 %v2229, %v122
    %v2709 = vmul.f32 %v2229, %v123
    %v2710 = vmul.f32 %v2229, %v124
    %v2711 = vmul.f32 %v2229, %v125
    %2718 = vrot.lane.b32.xlu0 %v2706, 127
    %v2719 = vpop.permute.xlu0 %2718
    %2720 = vrot.lane.b32.xlu0 %v2707, 127
    %v2721 = vpop.permute.xlu0 %2720
    %2722 = vrot.lane.b32.xlu0 %v2708, 127
    %v2723 = vpop.permute.xlu0 %2722
    %2724 = vrot.lane.b32.xlu0 %v2709, 127
    %v2725 = vpop.permute.xlu0 %2724
    %2726 = vrot.lane.b32.xlu0 %v2710, 127
    %v2727 = vpop.permute.xlu0 %2726
    %2728 = vrot.lane.b32.xlu0 %v2711, 127
    %v2729 = vpop.permute.xlu0 %2728
    %v2736 = vadd.f32 %v2700, %v2719
    %v2737 = vadd.f32 %v2701, %v2721
    %v2738 = vadd.f32 %v2702, %v2723
    %v2739 = vadd.f32 %v2703, %v2725
    %v2740 = vadd.f32 %v2704, %v2727
    %v2741 = vadd.f32 %v2705, %v2729
    %v2742 = vmul.f32 %v2267, %v112
    %v2743 = vmul.f32 %v2267, %v113
    %v2744 = vmul.f32 %v2267, %v114
    %v2745 = vmul.f32 %v2267, %v115
    %v2746 = vmul.f32 %v2267, %v116
    %v2747 = vmul.f32 %v2267, %v117
    %2754 = vrot.lane.b32.xlu0 %v2742, 126
    %v2755 = vpop.permute.xlu0 %2754
    %2756 = vrot.lane.b32.xlu0 %v2743, 126
    %v2757 = vpop.permute.xlu0 %2756
    %2758 = vrot.lane.b32.xlu0 %v2744, 126
    %v2759 = vpop.permute.xlu0 %2758
    %2760 = vrot.lane.b32.xlu0 %v2745, 126
    %v2761 = vpop.permute.xlu0 %2760
    %2762 = vrot.lane.b32.xlu0 %v2746, 126
    %v2763 = vpop.permute.xlu0 %2762
    %2764 = vrot.lane.b32.xlu0 %v2747, 126
    %v2765 = vpop.permute.xlu0 %2764
    %v2772 = vadd.f32 %v2736, %v2755
    %v2773 = vadd.f32 %v2737, %v2757
    %v2774 = vadd.f32 %v2738, %v2759
    %v2775 = vadd.f32 %v2739, %v2761
    %v2776 = vadd.f32 %v2740, %v2763
    %v2777 = vadd.f32 %v2741, %v2765
    %v2778 = vmax.f32 %v2298, %v2772
    %v2779 = vmax.f32 %v2299, %v2773
    %v2780 = vmax.f32 %v2300, %v2774
    %v2781 = vmax.f32 %v2301, %v2775
    %v2782 = vmax.f32 %v2302, %v2776
    %v2783 = vmax.f32 %v2303, %v2777
    %v2784 = vmul.f32 %v1895, %v111
    %v2785 = vmul.f32 %v1895, %v112
    %v2786 = vmul.f32 %v1895, %v113
    %v2787 = vmul.f32 %v1895, %v114
    %v2788 = vmul.f32 %v1895, %v115
    %v2789 = vmul.f32 %v1895, %v116
    %v2790 = vmul.f32 %v1903, %v119
    %v2791 = vmul.f32 %v1903, %v120
    %v2792 = vmul.f32 %v1903, %v121
    %v2793 = vmul.f32 %v1903, %v122
    %v2794 = vmul.f32 %v1903, %v123
    %v2795 = vmul.f32 %v1903, %v124
    %v2796 = vadd.f32 %v2784, %v2790
    %v2797 = vadd.f32 %v2785, %v2791
    %v2798 = vadd.f32 %v2786, %v2792
    %v2799 = vadd.f32 %v2787, %v2793
    %v2800 = vadd.f32 %v2788, %v2794
    %v2801 = vadd.f32 %v2789, %v2795
    %v2802 = vmul.f32 %v1917, %v111
    %v2803 = vmul.f32 %v1917, %v112
    %v2804 = vmul.f32 %v1917, %v113
    %v2805 = vmul.f32 %v1917, %v114
    %v2806 = vmul.f32 %v1917, %v115
    %v2807 = vmul.f32 %v1917, %v116
    %2814 = vrot.lane.b32.xlu0 %v2802, 127
    %v2815 = vpop.permute.xlu0 %2814
    %2816 = vrot.lane.b32.xlu0 %v2803, 127
    %v2817 = vpop.permute.xlu0 %2816
    %2818 = vrot.lane.b32.xlu0 %v2804, 127
    %v2819 = vpop.permute.xlu0 %2818
    %2820 = vrot.lane.b32.xlu0 %v2805, 127
    %v2821 = vpop.permute.xlu0 %2820
    %2822 = vrot.lane.b32.xlu0 %v2806, 127
    %v2823 = vpop.permute.xlu0 %2822
    %2824 = vrot.lane.b32.xlu0 %v2807, 127
    %v2825 = vpop.permute.xlu0 %2824
    %v2832 = vadd.f32 %v2796, %v2815
    %v2833 = vadd.f32 %v2797, %v2817
    %v2834 = vadd.f32 %v2798, %v2819
    %v2835 = vadd.f32 %v2799, %v2821
    %v2836 = vadd.f32 %v2800, %v2823
    %v2837 = vadd.f32 %v2801, %v2825
    %v2838 = vmul.f32 %v1955, %v119
    %v2839 = vmul.f32 %v1955, %v120
    %v2840 = vmul.f32 %v1955, %v121
    %v2841 = vmul.f32 %v1955, %v122
    %v2842 = vmul.f32 %v1955, %v123
    %v2843 = vmul.f32 %v1955, %v124
    %2850 = vrot.lane.b32.xlu0 %v2838, 127
    %v2851 = vpop.permute.xlu0 %2850
    %2852 = vrot.lane.b32.xlu0 %v2839, 127
    %v2853 = vpop.permute.xlu0 %2852
    %2854 = vrot.lane.b32.xlu0 %v2840, 127
    %v2855 = vpop.permute.xlu0 %2854
    %2856 = vrot.lane.b32.xlu0 %v2841, 127
    %v2857 = vpop.permute.xlu0 %2856
    %2858 = vrot.lane.b32.xlu0 %v2842, 127
    %v2859 = vpop.permute.xlu0 %2858
    %2860 = vrot.lane.b32.xlu0 %v2843, 127
    %v2861 = vpop.permute.xlu0 %2860
    %v2868 = vadd.f32 %v2832, %v2851
    %v2869 = vadd.f32 %v2833, %v2853
    %v2870 = vadd.f32 %v2834, %v2855
    %v2871 = vadd.f32 %v2835, %v2857
    %v2872 = vadd.f32 %v2836, %v2859
    %v2873 = vadd.f32 %v2837, %v2861
    %v2874 = vmul.f32 %v1993, %v94
    %v2875 = vmul.f32 %v1993, %v95
    %v2876 = vmul.f32 %v1993, %v96
    %v2877 = vmul.f32 %v1993, %v97
    %v2878 = vmul.f32 %v1993, %v98
    %v2879 = vmul.f32 %v1993, %v99
    %v2880 = vadd.f32 %v2868, %v2874
    %v2881 = vadd.f32 %v2869, %v2875
    %v2882 = vadd.f32 %v2870, %v2876
    %v2883 = vadd.f32 %v2871, %v2877
    %v2884 = vadd.f32 %v2872, %v2878
    %v2885 = vadd.f32 %v2873, %v2879
    %v2886 = vmul.f32 %v2007, %v103
    %v2887 = vmul.f32 %v2007, %v104
    %v2888 = vmul.f32 %v2007, %v105
    %v2889 = vmul.f32 %v2007, %v106
    %v2890 = vmul.f32 %v2007, %v107
    %v2891 = vmul.f32 %v2007, %v108
    %v2892 = vadd.f32 %v2880, %v2886
    %v2893 = vadd.f32 %v2881, %v2887
    %v2894 = vadd.f32 %v2882, %v2888
    %v2895 = vadd.f32 %v2883, %v2889
    %v2896 = vadd.f32 %v2884, %v2890
    %v2897 = vadd.f32 %v2885, %v2891
    %v2898 = vmul.f32 %v2021, %v94
    %v2899 = vmul.f32 %v2021, %v95
    %v2900 = vmul.f32 %v2021, %v96
    %v2901 = vmul.f32 %v2021, %v97
    %v2902 = vmul.f32 %v2021, %v98
    %v2903 = vmul.f32 %v2021, %v99
    %2910 = vrot.lane.b32.xlu0 %v2898, 127
    %v2911 = vpop.permute.xlu0 %2910
    %2912 = vrot.lane.b32.xlu0 %v2899, 127
    %v2913 = vpop.permute.xlu0 %2912
    %2914 = vrot.lane.b32.xlu0 %v2900, 127
    %v2915 = vpop.permute.xlu0 %2914
    %2916 = vrot.lane.b32.xlu0 %v2901, 127
    %v2917 = vpop.permute.xlu0 %2916
    %2918 = vrot.lane.b32.xlu0 %v2902, 127
    %v2919 = vpop.permute.xlu0 %2918
    %2920 = vrot.lane.b32.xlu0 %v2903, 127
    %v2921 = vpop.permute.xlu0 %2920
    %v2928 = vadd.f32 %v2892, %v2911
    %v2929 = vadd.f32 %v2893, %v2913
    %v2930 = vadd.f32 %v2894, %v2915
    %v2931 = vadd.f32 %v2895, %v2917
    %v2932 = vadd.f32 %v2896, %v2919
    %v2933 = vadd.f32 %v2897, %v2921
    %v2934 = vmul.f32 %v2059, %v103
    %v2935 = vmul.f32 %v2059, %v104
    %v2936 = vmul.f32 %v2059, %v105
    %v2937 = vmul.f32 %v2059, %v106
    %v2938 = vmul.f32 %v2059, %v107
    %v2939 = vmul.f32 %v2059, %v108
    %2946 = vrot.lane.b32.xlu0 %v2934, 127
    %v2947 = vpop.permute.xlu0 %2946
    %2948 = vrot.lane.b32.xlu0 %v2935, 127
    %v2949 = vpop.permute.xlu0 %2948
    %2950 = vrot.lane.b32.xlu0 %v2936, 127
    %v2951 = vpop.permute.xlu0 %2950
    %2952 = vrot.lane.b32.xlu0 %v2937, 127
    %v2953 = vpop.permute.xlu0 %2952
    %2954 = vrot.lane.b32.xlu0 %v2938, 127
    %v2955 = vpop.permute.xlu0 %2954
    %2956 = vrot.lane.b32.xlu0 %v2939, 127
    %v2957 = vpop.permute.xlu0 %2956
    %v2964 = vadd.f32 %v2928, %v2947
    %v2965 = vadd.f32 %v2929, %v2949
    %v2966 = vadd.f32 %v2930, %v2951
    %v2967 = vadd.f32 %v2931, %v2953
    %v2968 = vadd.f32 %v2932, %v2955
    %v2969 = vadd.f32 %v2933, %v2957
    %v2970 = vmul.f32 %v2097, %v112
    %v2971 = vmul.f32 %v2097, %v113
    %v2972 = vmul.f32 %v2097, %v114
    %v2973 = vmul.f32 %v2097, %v115
    %v2974 = vmul.f32 %v2097, %v116
    %v2975 = vmul.f32 %v2097, %v117
    %v2976 = vadd.f32 %v2964, %v2970
    %v2977 = vadd.f32 %v2965, %v2971
    %v2978 = vadd.f32 %v2966, %v2972
    %v2979 = vadd.f32 %v2967, %v2973
    %v2980 = vadd.f32 %v2968, %v2974
    %v2981 = vadd.f32 %v2969, %v2975
    %v2982 = vmul.f32 %v2111, %v120
    %v2983 = vmul.f32 %v2111, %v121
    %v2984 = vmul.f32 %v2111, %v122
    %v2985 = vmul.f32 %v2111, %v123
    %v2986 = vmul.f32 %v2111, %v124
    %v2987 = vmul.f32 %v2111, %v125
    %v2988 = vadd.f32 %v2976, %v2982
    %v2989 = vadd.f32 %v2977, %v2983
    %v2990 = vadd.f32 %v2978, %v2984
    %v2991 = vadd.f32 %v2979, %v2985
    %v2992 = vadd.f32 %v2980, %v2986
    %v2993 = vadd.f32 %v2981, %v2987
    %v2994 = vmul.f32 %v2125, %v112
    %v2995 = vmul.f32 %v2125, %v113
    %v2996 = vmul.f32 %v2125, %v114
    %v2997 = vmul.f32 %v2125, %v115
    %v2998 = vmul.f32 %v2125, %v116
    %v2999 = vmul.f32 %v2125, %v117
    %3006 = vrot.lane.b32.xlu0 %v2994, 127
    %v3007 = vpop.permute.xlu0 %3006
    %3008 = vrot.lane.b32.xlu0 %v2995, 127
    %v3009 = vpop.permute.xlu0 %3008
    %3010 = vrot.lane.b32.xlu0 %v2996, 127
    %v3011 = vpop.permute.xlu0 %3010
    %3012 = vrot.lane.b32.xlu0 %v2997, 127
    %v3013 = vpop.permute.xlu0 %3012
    %3014 = vrot.lane.b32.xlu0 %v2998, 127
    %v3015 = vpop.permute.xlu0 %3014
    %3016 = vrot.lane.b32.xlu0 %v2999, 127
    %v3017 = vpop.permute.xlu0 %3016
    %v3024 = vadd.f32 %v2988, %v3007
    %v3025 = vadd.f32 %v2989, %v3009
    %v3026 = vadd.f32 %v2990, %v3011
    %v3027 = vadd.f32 %v2991, %v3013
    %v3028 = vadd.f32 %v2992, %v3015
    %v3029 = vadd.f32 %v2993, %v3017
    %v3030 = vmul.f32 %v2163, %v120
    %v3031 = vmul.f32 %v2163, %v121
    %v3032 = vmul.f32 %v2163, %v122
    %v3033 = vmul.f32 %v2163, %v123
    %v3034 = vmul.f32 %v2163, %v124
    %v3035 = vmul.f32 %v2163, %v125
    %3042 = vrot.lane.b32.xlu0 %v3030, 127
    %v3043 = vpop.permute.xlu0 %3042
    %3044 = vrot.lane.b32.xlu0 %v3031, 127
    %v3045 = vpop.permute.xlu0 %3044
    %3046 = vrot.lane.b32.xlu0 %v3032, 127
    %v3047 = vpop.permute.xlu0 %3046
    %3048 = vrot.lane.b32.xlu0 %v3033, 127
    %v3049 = vpop.permute.xlu0 %3048
    %3050 = vrot.lane.b32.xlu0 %v3034, 127
    %v3051 = vpop.permute.xlu0 %3050
    %3052 = vrot.lane.b32.xlu0 %v3035, 127
    %v3053 = vpop.permute.xlu0 %3052
    %v3060 = vadd.f32 %v3024, %v3043
    %v3061 = vadd.f32 %v3025, %v3045
    %v3062 = vadd.f32 %v3026, %v3047
    %v3063 = vadd.f32 %v3027, %v3049
    %v3064 = vadd.f32 %v3028, %v3051
    %v3065 = vadd.f32 %v3029, %v3053
    %v3066 = vmul.f32 %v2201, %v95
    %v3067 = vmul.f32 %v2201, %v96
    %v3068 = vmul.f32 %v2201, %v97
    %v3069 = vmul.f32 %v2201, %v98
    %v3070 = vmul.f32 %v2201, %v99
    %v3071 = vmul.f32 %v2201, %v100
    %v3072 = vadd.f32 %v3060, %v3066
    %v3073 = vadd.f32 %v3061, %v3067
    %v3074 = vadd.f32 %v3062, %v3068
    %v3075 = vadd.f32 %v3063, %v3069
    %v3076 = vadd.f32 %v3064, %v3070
    %v3077 = vadd.f32 %v3065, %v3071
    %v3078 = vmul.f32 %v2215, %v104
    %v3079 = vmul.f32 %v2215, %v105
    %v3080 = vmul.f32 %v2215, %v106
    %v3081 = vmul.f32 %v2215, %v107
    %v3082 = vmul.f32 %v2215, %v108
    %v3083 = vmul.f32 %v2215, %v109
    %v3084 = vadd.f32 %v3072, %v3078
    %v3085 = vadd.f32 %v3073, %v3079
    %v3086 = vadd.f32 %v3074, %v3080
    %v3087 = vadd.f32 %v3075, %v3081
    %v3088 = vadd.f32 %v3076, %v3082
    %v3089 = vadd.f32 %v3077, %v3083
    %v3090 = vmul.f32 %v2229, %v95
    %v3091 = vmul.f32 %v2229, %v96
    %v3092 = vmul.f32 %v2229, %v97
    %v3093 = vmul.f32 %v2229, %v98
    %v3094 = vmul.f32 %v2229, %v99
    %v3095 = vmul.f32 %v2229, %v100
    %3102 = vrot.lane.b32.xlu0 %v3090, 127
    %v3103 = vpop.permute.xlu0 %3102
    %3104 = vrot.lane.b32.xlu0 %v3091, 127
    %v3105 = vpop.permute.xlu0 %3104
    %3106 = vrot.lane.b32.xlu0 %v3092, 127
    %v3107 = vpop.permute.xlu0 %3106
    %3108 = vrot.lane.b32.xlu0 %v3093, 127
    %v3109 = vpop.permute.xlu0 %3108
    %3110 = vrot.lane.b32.xlu0 %v3094, 127
    %v3111 = vpop.permute.xlu0 %3110
    %3112 = vrot.lane.b32.xlu0 %v3095, 127
    %v3113 = vpop.permute.xlu0 %3112
    %v3120 = vadd.f32 %v3084, %v3103
    %v3121 = vadd.f32 %v3085, %v3105
    %v3122 = vadd.f32 %v3086, %v3107
    %v3123 = vadd.f32 %v3087, %v3109
    %v3124 = vadd.f32 %v3088, %v3111
    %v3125 = vadd.f32 %v3089, %v3113
    %v3126 = vmul.f32 %v2267, %v104
    %v3127 = vmul.f32 %v2267, %v105
    %v3128 = vmul.f32 %v2267, %v106
    %v3129 = vmul.f32 %v2267, %v107
    %v3130 = vmul.f32 %v2267, %v108
    %v3131 = vmul.f32 %v2267, %v109
    %3138 = vrot.lane.b32.xlu0 %v3126, 127
    %v3139 = vpop.permute.xlu0 %3138
    %3140 = vrot.lane.b32.xlu0 %v3127, 127
    %v3141 = vpop.permute.xlu0 %3140
    %3142 = vrot.lane.b32.xlu0 %v3128, 127
    %v3143 = vpop.permute.xlu0 %3142
    %3144 = vrot.lane.b32.xlu0 %v3129, 127
    %v3145 = vpop.permute.xlu0 %3144
    %3146 = vrot.lane.b32.xlu0 %v3130, 127
    %v3147 = vpop.permute.xlu0 %3146
    %3148 = vrot.lane.b32.xlu0 %v3131, 127
    %v3149 = vpop.permute.xlu0 %3148
    %v3156 = vadd.f32 %v3120, %v3139
    %v3157 = vadd.f32 %v3121, %v3141
    %v3158 = vadd.f32 %v3122, %v3143
    %v3159 = vadd.f32 %v3123, %v3145
    %v3160 = vadd.f32 %v3124, %v3147
    %v3161 = vadd.f32 %v3125, %v3149
    %v3162 = vmax.f32 %v2778, %v3156
    %v3163 = vmax.f32 %v2779, %v3157
    %v3164 = vmax.f32 %v2780, %v3158
    %v3165 = vmax.f32 %v2781, %v3159
    %v3166 = vmax.f32 %v2782, %v3160
    %v3167 = vmax.f32 %v2783, %v3161
    %v3168 = vmul.f32 %v1895, %v119
    %v3169 = vmul.f32 %v1895, %v120
    %v3170 = vmul.f32 %v1895, %v121
    %v3171 = vmul.f32 %v1895, %v122
    %v3172 = vmul.f32 %v1895, %v123
    %v3173 = vmul.f32 %v1895, %v124
    %v3174 = vmul.f32 %v1903, %v111
    %v3175 = vmul.f32 %v1903, %v112
    %v3176 = vmul.f32 %v1903, %v113
    %v3177 = vmul.f32 %v1903, %v114
    %v3178 = vmul.f32 %v1903, %v115
    %v3179 = vmul.f32 %v1903, %v116
    %3186 = vrot.lane.b32.xlu0 %v3174, 127
    %v3187 = vpop.permute.xlu0 %3186
    %3188 = vrot.lane.b32.xlu0 %v3175, 127
    %v3189 = vpop.permute.xlu0 %3188
    %3190 = vrot.lane.b32.xlu0 %v3176, 127
    %v3191 = vpop.permute.xlu0 %3190
    %3192 = vrot.lane.b32.xlu0 %v3177, 127
    %v3193 = vpop.permute.xlu0 %3192
    %3194 = vrot.lane.b32.xlu0 %v3178, 127
    %v3195 = vpop.permute.xlu0 %3194
    %3196 = vrot.lane.b32.xlu0 %v3179, 127
    %v3197 = vpop.permute.xlu0 %3196
    %v3204 = vadd.f32 %v3168, %v3187
    %v3205 = vadd.f32 %v3169, %v3189
    %v3206 = vadd.f32 %v3170, %v3191
    %v3207 = vadd.f32 %v3171, %v3193
    %v3208 = vadd.f32 %v3172, %v3195
    %v3209 = vadd.f32 %v3173, %v3197
    %v3210 = vmul.f32 %v1917, %v119
    %v3211 = vmul.f32 %v1917, %v120
    %v3212 = vmul.f32 %v1917, %v121
    %v3213 = vmul.f32 %v1917, %v122
    %v3214 = vmul.f32 %v1917, %v123
    %v3215 = vmul.f32 %v1917, %v124
    %3222 = vrot.lane.b32.xlu0 %v3210, 127
    %v3223 = vpop.permute.xlu0 %3222
    %3224 = vrot.lane.b32.xlu0 %v3211, 127
    %v3225 = vpop.permute.xlu0 %3224
    %3226 = vrot.lane.b32.xlu0 %v3212, 127
    %v3227 = vpop.permute.xlu0 %3226
    %3228 = vrot.lane.b32.xlu0 %v3213, 127
    %v3229 = vpop.permute.xlu0 %3228
    %3230 = vrot.lane.b32.xlu0 %v3214, 127
    %v3231 = vpop.permute.xlu0 %3230
    %3232 = vrot.lane.b32.xlu0 %v3215, 127
    %v3233 = vpop.permute.xlu0 %3232
    %v3240 = vadd.f32 %v3204, %v3223
    %v3241 = vadd.f32 %v3205, %v3225
    %v3242 = vadd.f32 %v3206, %v3227
    %v3243 = vadd.f32 %v3207, %v3229
    %v3244 = vadd.f32 %v3208, %v3231
    %v3245 = vadd.f32 %v3209, %v3233
    %v3246 = vmul.f32 %v1955, %v111
    %v3247 = vmul.f32 %v1955, %v112
    %v3248 = vmul.f32 %v1955, %v113
    %v3249 = vmul.f32 %v1955, %v114
    %v3250 = vmul.f32 %v1955, %v115
    %v3251 = vmul.f32 %v1955, %v116
    %3258 = vrot.lane.b32.xlu0 %v3246, 126
    %v3259 = vpop.permute.xlu0 %3258
    %3260 = vrot.lane.b32.xlu0 %v3247, 126
    %v3261 = vpop.permute.xlu0 %3260
    %3262 = vrot.lane.b32.xlu0 %v3248, 126
    %v3263 = vpop.permute.xlu0 %3262
    %3264 = vrot.lane.b32.xlu0 %v3249, 126
    %v3265 = vpop.permute.xlu0 %3264
    %3266 = vrot.lane.b32.xlu0 %v3250, 126
    %v3267 = vpop.permute.xlu0 %3266
    %3268 = vrot.lane.b32.xlu0 %v3251, 126
    %v3269 = vpop.permute.xlu0 %3268
    %v3276 = vadd.f32 %v3240, %v3259
    %v3277 = vadd.f32 %v3241, %v3261
    %v3278 = vadd.f32 %v3242, %v3263
    %v3279 = vadd.f32 %v3243, %v3265
    %v3280 = vadd.f32 %v3244, %v3267
    %v3281 = vadd.f32 %v3245, %v3269
    %v3282 = vmul.f32 %v1993, %v103
    %v3283 = vmul.f32 %v1993, %v104
    %v3284 = vmul.f32 %v1993, %v105
    %v3285 = vmul.f32 %v1993, %v106
    %v3286 = vmul.f32 %v1993, %v107
    %v3287 = vmul.f32 %v1993, %v108
    %v3288 = vadd.f32 %v3276, %v3282
    %v3289 = vadd.f32 %v3277, %v3283
    %v3290 = vadd.f32 %v3278, %v3284
    %v3291 = vadd.f32 %v3279, %v3285
    %v3292 = vadd.f32 %v3280, %v3286
    %v3293 = vadd.f32 %v3281, %v3287
    %v3294 = vmul.f32 %v2007, %v94
    %v3295 = vmul.f32 %v2007, %v95
    %v3296 = vmul.f32 %v2007, %v96
    %v3297 = vmul.f32 %v2007, %v97
    %v3298 = vmul.f32 %v2007, %v98
    %v3299 = vmul.f32 %v2007, %v99
    %3306 = vrot.lane.b32.xlu0 %v3294, 127
    %v3307 = vpop.permute.xlu0 %3306
    %3308 = vrot.lane.b32.xlu0 %v3295, 127
    %v3309 = vpop.permute.xlu0 %3308
    %3310 = vrot.lane.b32.xlu0 %v3296, 127
    %v3311 = vpop.permute.xlu0 %3310
    %3312 = vrot.lane.b32.xlu0 %v3297, 127
    %v3313 = vpop.permute.xlu0 %3312
    %3314 = vrot.lane.b32.xlu0 %v3298, 127
    %v3315 = vpop.permute.xlu0 %3314
    %3316 = vrot.lane.b32.xlu0 %v3299, 127
    %v3317 = vpop.permute.xlu0 %3316
    %v3324 = vadd.f32 %v3288, %v3307
    %v3325 = vadd.f32 %v3289, %v3309
    %v3326 = vadd.f32 %v3290, %v3311
    %v3327 = vadd.f32 %v3291, %v3313
    %v3328 = vadd.f32 %v3292, %v3315
    %v3329 = vadd.f32 %v3293, %v3317
    %v3330 = vmul.f32 %v2021, %v103
    %v3331 = vmul.f32 %v2021, %v104
    %v3332 = vmul.f32 %v2021, %v105
    %v3333 = vmul.f32 %v2021, %v106
    %v3334 = vmul.f32 %v2021, %v107
    %v3335 = vmul.f32 %v2021, %v108
    %3342 = vrot.lane.b32.xlu0 %v3330, 127
    %v3343 = vpop.permute.xlu0 %3342
    %3344 = vrot.lane.b32.xlu0 %v3331, 127
    %v3345 = vpop.permute.xlu0 %3344
    %3346 = vrot.lane.b32.xlu0 %v3332, 127
    %v3347 = vpop.permute.xlu0 %3346
    %3348 = vrot.lane.b32.xlu0 %v3333, 127
    %v3349 = vpop.permute.xlu0 %3348
    %3350 = vrot.lane.b32.xlu0 %v3334, 127
    %v3351 = vpop.permute.xlu0 %3350
    %3352 = vrot.lane.b32.xlu0 %v3335, 127
    %v3353 = vpop.permute.xlu0 %3352
    %v3360 = vadd.f32 %v3324, %v3343
    %v3361 = vadd.f32 %v3325, %v3345
    %v3362 = vadd.f32 %v3326, %v3347
    %v3363 = vadd.f32 %v3327, %v3349
    %v3364 = vadd.f32 %v3328, %v3351
    %v3365 = vadd.f32 %v3329, %v3353
    %v3366 = vmul.f32 %v2059, %v94
    %v3367 = vmul.f32 %v2059, %v95
    %v3368 = vmul.f32 %v2059, %v96
    %v3369 = vmul.f32 %v2059, %v97
    %v3370 = vmul.f32 %v2059, %v98
    %v3371 = vmul.f32 %v2059, %v99
    %3378 = vrot.lane.b32.xlu0 %v3366, 126
    %v3379 = vpop.permute.xlu0 %3378
    %3380 = vrot.lane.b32.xlu0 %v3367, 126
    %v3381 = vpop.permute.xlu0 %3380
    %3382 = vrot.lane.b32.xlu0 %v3368, 126
    %v3383 = vpop.permute.xlu0 %3382
    %3384 = vrot.lane.b32.xlu0 %v3369, 126
    %v3385 = vpop.permute.xlu0 %3384
    %3386 = vrot.lane.b32.xlu0 %v3370, 126
    %v3387 = vpop.permute.xlu0 %3386
    %3388 = vrot.lane.b32.xlu0 %v3371, 126
    %v3389 = vpop.permute.xlu0 %3388
    %v3396 = vadd.f32 %v3360, %v3379
    %v3397 = vadd.f32 %v3361, %v3381
    %v3398 = vadd.f32 %v3362, %v3383
    %v3399 = vadd.f32 %v3363, %v3385
    %v3400 = vadd.f32 %v3364, %v3387
    %v3401 = vadd.f32 %v3365, %v3389
    %v3402 = vmul.f32 %v2097, %v120
    %v3403 = vmul.f32 %v2097, %v121
    %v3404 = vmul.f32 %v2097, %v122
    %v3405 = vmul.f32 %v2097, %v123
    %v3406 = vmul.f32 %v2097, %v124
    %v3407 = vmul.f32 %v2097, %v125
    %v3408 = vadd.f32 %v3396, %v3402
    %v3409 = vadd.f32 %v3397, %v3403
    %v3410 = vadd.f32 %v3398, %v3404
    %v3411 = vadd.f32 %v3399, %v3405
    %v3412 = vadd.f32 %v3400, %v3406
    %v3413 = vadd.f32 %v3401, %v3407
    %v3414 = vmul.f32 %v2111, %v112
    %v3415 = vmul.f32 %v2111, %v113
    %v3416 = vmul.f32 %v2111, %v114
    %v3417 = vmul.f32 %v2111, %v115
    %v3418 = vmul.f32 %v2111, %v116
    %v3419 = vmul.f32 %v2111, %v117
    %3426 = vrot.lane.b32.xlu0 %v3414, 127
    %v3427 = vpop.permute.xlu0 %3426
    %3428 = vrot.lane.b32.xlu0 %v3415, 127
    %v3429 = vpop.permute.xlu0 %3428
    %3430 = vrot.lane.b32.xlu0 %v3416, 127
    %v3431 = vpop.permute.xlu0 %3430
    %3432 = vrot.lane.b32.xlu0 %v3417, 127
    %v3433 = vpop.permute.xlu0 %3432
    %3434 = vrot.lane.b32.xlu0 %v3418, 127
    %v3435 = vpop.permute.xlu0 %3434
    %3436 = vrot.lane.b32.xlu0 %v3419, 127
    %v3437 = vpop.permute.xlu0 %3436
    %v3444 = vadd.f32 %v3408, %v3427
    %v3445 = vadd.f32 %v3409, %v3429
    %v3446 = vadd.f32 %v3410, %v3431
    %v3447 = vadd.f32 %v3411, %v3433
    %v3448 = vadd.f32 %v3412, %v3435
    %v3449 = vadd.f32 %v3413, %v3437
    %v3450 = vmul.f32 %v2125, %v120
    %v3451 = vmul.f32 %v2125, %v121
    %v3452 = vmul.f32 %v2125, %v122
    %v3453 = vmul.f32 %v2125, %v123
    %v3454 = vmul.f32 %v2125, %v124
    %v3455 = vmul.f32 %v2125, %v125
    %3462 = vrot.lane.b32.xlu0 %v3450, 127
    %v3463 = vpop.permute.xlu0 %3462
    %3464 = vrot.lane.b32.xlu0 %v3451, 127
    %v3465 = vpop.permute.xlu0 %3464
    %3466 = vrot.lane.b32.xlu0 %v3452, 127
    %v3467 = vpop.permute.xlu0 %3466
    %3468 = vrot.lane.b32.xlu0 %v3453, 127
    %v3469 = vpop.permute.xlu0 %3468
    %3470 = vrot.lane.b32.xlu0 %v3454, 127
    %v3471 = vpop.permute.xlu0 %3470
    %3472 = vrot.lane.b32.xlu0 %v3455, 127
    %v3473 = vpop.permute.xlu0 %3472
    %v3480 = vadd.f32 %v3444, %v3463
    %v3481 = vadd.f32 %v3445, %v3465
    %v3482 = vadd.f32 %v3446, %v3467
    %v3483 = vadd.f32 %v3447, %v3469
    %v3484 = vadd.f32 %v3448, %v3471
    %v3485 = vadd.f32 %v3449, %v3473
    %v3486 = vmul.f32 %v2163, %v112
    %v3487 = vmul.f32 %v2163, %v113
    %v3488 = vmul.f32 %v2163, %v114
    %v3489 = vmul.f32 %v2163, %v115
    %v3490 = vmul.f32 %v2163, %v116
    %v3491 = vmul.f32 %v2163, %v117
    %3498 = vrot.lane.b32.xlu0 %v3486, 126
    %v3499 = vpop.permute.xlu0 %3498
    %3500 = vrot.lane.b32.xlu0 %v3487, 126
    %v3501 = vpop.permute.xlu0 %3500
    %3502 = vrot.lane.b32.xlu0 %v3488, 126
    %v3503 = vpop.permute.xlu0 %3502
    %3504 = vrot.lane.b32.xlu0 %v3489, 126
    %v3505 = vpop.permute.xlu0 %3504
    %3506 = vrot.lane.b32.xlu0 %v3490, 126
    %v3507 = vpop.permute.xlu0 %3506
    %3508 = vrot.lane.b32.xlu0 %v3491, 126
    %v3509 = vpop.permute.xlu0 %3508
    %v3516 = vadd.f32 %v3480, %v3499
    %v3517 = vadd.f32 %v3481, %v3501
    %v3518 = vadd.f32 %v3482, %v3503
    %v3519 = vadd.f32 %v3483, %v3505
    %v3520 = vadd.f32 %v3484, %v3507
    %v3521 = vadd.f32 %v3485, %v3509
    %v3522 = vmul.f32 %v2201, %v104
    %v3523 = vmul.f32 %v2201, %v105
    %v3524 = vmul.f32 %v2201, %v106
    %v3525 = vmul.f32 %v2201, %v107
    %v3526 = vmul.f32 %v2201, %v108
    %v3527 = vmul.f32 %v2201, %v109
    %v3528 = vadd.f32 %v3516, %v3522
    %v3529 = vadd.f32 %v3517, %v3523
    %v3530 = vadd.f32 %v3518, %v3524
    %v3531 = vadd.f32 %v3519, %v3525
    %v3532 = vadd.f32 %v3520, %v3526
    %v3533 = vadd.f32 %v3521, %v3527
    %v3534 = vmul.f32 %v2215, %v95
    %v3535 = vmul.f32 %v2215, %v96
    %v3536 = vmul.f32 %v2215, %v97
    %v3537 = vmul.f32 %v2215, %v98
    %v3538 = vmul.f32 %v2215, %v99
    %v3539 = vmul.f32 %v2215, %v100
    %3546 = vrot.lane.b32.xlu0 %v3534, 127
    %v3547 = vpop.permute.xlu0 %3546
    %3548 = vrot.lane.b32.xlu0 %v3535, 127
    %v3549 = vpop.permute.xlu0 %3548
    %3550 = vrot.lane.b32.xlu0 %v3536, 127
    %v3551 = vpop.permute.xlu0 %3550
    %3552 = vrot.lane.b32.xlu0 %v3537, 127
    %v3553 = vpop.permute.xlu0 %3552
    %3554 = vrot.lane.b32.xlu0 %v3538, 127
    %v3555 = vpop.permute.xlu0 %3554
    %3556 = vrot.lane.b32.xlu0 %v3539, 127
    %v3557 = vpop.permute.xlu0 %3556
    %v3564 = vadd.f32 %v3528, %v3547
    %v3565 = vadd.f32 %v3529, %v3549
    %v3566 = vadd.f32 %v3530, %v3551
    %v3567 = vadd.f32 %v3531, %v3553
    %v3568 = vadd.f32 %v3532, %v3555
    %v3569 = vadd.f32 %v3533, %v3557
    %v3570 = vmul.f32 %v2229, %v104
    %v3571 = vmul.f32 %v2229, %v105
    %v3572 = vmul.f32 %v2229, %v106
    %v3573 = vmul.f32 %v2229, %v107
    %v3574 = vmul.f32 %v2229, %v108
    %v3575 = vmul.f32 %v2229, %v109
    %3582 = vrot.lane.b32.xlu0 %v3570, 127
    %v3583 = vpop.permute.xlu0 %3582
    %3584 = vrot.lane.b32.xlu0 %v3571, 127
    %v3585 = vpop.permute.xlu0 %3584
    %3586 = vrot.lane.b32.xlu0 %v3572, 127
    %v3587 = vpop.permute.xlu0 %3586
    %3588 = vrot.lane.b32.xlu0 %v3573, 127
    %v3589 = vpop.permute.xlu0 %3588
    %3590 = vrot.lane.b32.xlu0 %v3574, 127
    %v3591 = vpop.permute.xlu0 %3590
    %3592 = vrot.lane.b32.xlu0 %v3575, 127
    %v3593 = vpop.permute.xlu0 %3592
    %v3600 = vadd.f32 %v3564, %v3583
    %v3601 = vadd.f32 %v3565, %v3585
    %v3602 = vadd.f32 %v3566, %v3587
    %v3603 = vadd.f32 %v3567, %v3589
    %v3604 = vadd.f32 %v3568, %v3591
    %v3605 = vadd.f32 %v3569, %v3593
    %v3606 = vmul.f32 %v2267, %v95
    %v3607 = vmul.f32 %v2267, %v96
    %v3608 = vmul.f32 %v2267, %v97
    %v3609 = vmul.f32 %v2267, %v98
    %v3610 = vmul.f32 %v2267, %v99
    %v3611 = vmul.f32 %v2267, %v100
    %3618 = vrot.lane.b32.xlu0 %v3606, 126
    %v3619 = vpop.permute.xlu0 %3618
    %3620 = vrot.lane.b32.xlu0 %v3607, 126
    %v3621 = vpop.permute.xlu0 %3620
    %3622 = vrot.lane.b32.xlu0 %v3608, 126
    %v3623 = vpop.permute.xlu0 %3622
    %3624 = vrot.lane.b32.xlu0 %v3609, 126
    %v3625 = vpop.permute.xlu0 %3624
    %3626 = vrot.lane.b32.xlu0 %v3610, 126
    %v3627 = vpop.permute.xlu0 %3626
    %3628 = vrot.lane.b32.xlu0 %v3611, 126
    %v3629 = vpop.permute.xlu0 %3628
    %v3636 = vadd.f32 %v3600, %v3619
    %v3637 = vadd.f32 %v3601, %v3621
    %v3638 = vadd.f32 %v3602, %v3623
    %v3639 = vadd.f32 %v3603, %v3625
    %v3640 = vadd.f32 %v3604, %v3627
    %v3641 = vadd.f32 %v3605, %v3629
    %v3642 = vmax.f32 %v3162, %v3636
    %v3643 = vmax.f32 %v3163, %v3637
    %v3644 = vmax.f32 %v3164, %v3638
    %v3645 = vmax.f32 %v3165, %v3639
    %v3646 = vmax.f32 %v3166, %v3640
    %v3647 = vmax.f32 %v3167, %v3641
    %s3648 = sld [smem:[#allocation5 + $0x1]]
    %v3649 = vstv %s3648
    %v3650 = vadd.f32 %v3642, %v3649
    %v3651 = vadd.f32 %v3643, %v3649
    %v3652 = vadd.f32 %v3644, %v3649
    %v3653 = vadd.f32 %v3645, %v3649
    %v3654 = vadd.f32 %v3646, %v3649
    %v3655 = vadd.f32 %v3647, %v3649
    %v3656 = vmax.f32 %v3650, 0.0
    %v3657 = vmax.f32 %v3651, 0.0
    %v3658 = vmax.f32 %v3652, 0.0
    %v3659 = vmax.f32 %v3653, 0.0
    %v3660 = vmax.f32 %v3654, 0.0
    %v3661 = vmax.f32 %v3655, 0.0
    %s3662 = sld [smem:[#allocation2 + $0x100]]
    %v3663 = vstv %s3662
    %v3664 = vmul.f32 %v3663, %v93
    %v3665 = vmul.f32 %v3663, %v94
    %v3666 = vmul.f32 %v3663, %v95
    %v3667 = vmul.f32 %v3663, %v96
    %v3668 = vmul.f32 %v3663, %v97
    %v3669 = vmul.f32 %v3663, %v98
    %s3670 = sld [smem:[#allocation2 + $0x101]]
    %v3671 = vstv %s3670
    %v3672 = vmul.f32 %v3671, %v102
    %v3673 = vmul.f32 %v3671, %v103
    %v3674 = vmul.f32 %v3671, %v104
    %v3675 = vmul.f32 %v3671, %v105
    %v3676 = vmul.f32 %v3671, %v106
    %v3677 = vmul.f32 %v3671, %v107
    %v3678 = vadd.f32 %v3664, %v3672
    %v3679 = vadd.f32 %v3665, %v3673
    %v3680 = vadd.f32 %v3666, %v3674
    %v3681 = vadd.f32 %v3667, %v3675
    %v3682 = vadd.f32 %v3668, %v3676
    %v3683 = vadd.f32 %v3669, %v3677
    %s3684 = sld [smem:[#allocation2 + $0x102]]
    %v3685 = vstv %s3684
    %v3686 = vmul.f32 %v3685, %v93
    %v3687 = vmul.f32 %v3685, %v94
    %v3688 = vmul.f32 %v3685, %v95
    %v3689 = vmul.f32 %v3685, %v96
    %v3690 = vmul.f32 %v3685, %v97
    %v3691 = vmul.f32 %v3685, %v98
    %3698 = vrot.lane.b32.xlu0 %v3686, 127
    %v3699 = vpop.permute.xlu0 %3698
    %3700 = vrot.lane.b32.xlu0 %v3687, 127
    %v3701 = vpop.permute.xlu0 %3700
    %3702 = vrot.lane.b32.xlu0 %v3688, 127
    %v3703 = vpop.permute.xlu0 %3702
    %3704 = vrot.lane.b32.xlu0 %v3689, 127
    %v3705 = vpop.permute.xlu0 %3704
    %3706 = vrot.lane.b32.xlu0 %v3690, 127
    %v3707 = vpop.permute.xlu0 %3706
    %3708 = vrot.lane.b32.xlu0 %v3691, 127
    %v3709 = vpop.permute.xlu0 %3708
    %v3716 = vadd.f32 %v3678, %v3699
    %v3717 = vadd.f32 %v3679, %v3701
    %v3718 = vadd.f32 %v3680, %v3703
    %v3719 = vadd.f32 %v3681, %v3705
    %v3720 = vadd.f32 %v3682, %v3707
    %v3721 = vadd.f32 %v3683, %v3709
    %s3722 = sld [smem:[#allocation2 + $0x103]]
    %v3723 = vstv %s3722
    %v3724 = vmul.f32 %v3723, %v102
    %v3725 = vmul.f32 %v3723, %v103
    %v3726 = vmul.f32 %v3723, %v104
    %v3727 = vmul.f32 %v3723, %v105
    %v3728 = vmul.f32 %v3723, %v106
    %v3729 = vmul.f32 %v3723, %v107
    %3736 = vrot.lane.b32.xlu0 %v3724, 127
    %v3737 = vpop.permute.xlu0 %3736
    %3738 = vrot.lane.b32.xlu0 %v3725, 127
    %v3739 = vpop.permute.xlu0 %3738
    %3740 = vrot.lane.b32.xlu0 %v3726, 127
    %v3741 = vpop.permute.xlu0 %3740
    %3742 = vrot.lane.b32.xlu0 %v3727, 127
    %v3743 = vpop.permute.xlu0 %3742
    %3744 = vrot.lane.b32.xlu0 %v3728, 127
    %v3745 = vpop.permute.xlu0 %3744
    %3746 = vrot.lane.b32.xlu0 %v3729, 127
    %v3747 = vpop.permute.xlu0 %3746
    %v3754 = vadd.f32 %v3716, %v3737
    %v3755 = vadd.f32 %v3717, %v3739
    %v3756 = vadd.f32 %v3718, %v3741
    %v3757 = vadd.f32 %v3719, %v3743
    %v3758 = vadd.f32 %v3720, %v3745
    %v3759 = vadd.f32 %v3721, %v3747
    %s3760 = sld [smem:[#allocation2 + $0x104]]
    %v3761 = vstv %s3760
    %v3762 = vmul.f32 %v3761, %v111
    %v3763 = vmul.f32 %v3761, %v112
    %v3764 = vmul.f32 %v3761, %v113
    %v3765 = vmul.f32 %v3761, %v114
    %v3766 = vmul.f32 %v3761, %v115
    %v3767 = vmul.f32 %v3761, %v116
    %v3768 = vadd.f32 %v3754, %v3762
    %v3769 = vadd.f32 %v3755, %v3763
    %v3770 = vadd.f32 %v3756, %v3764
    %v3771 = vadd.f32 %v3757, %v3765
    %v3772 = vadd.f32 %v3758, %v3766
    %v3773 = vadd.f32 %v3759, %v3767
    %s3774 = sld [smem:[#allocation2 + $0x105]]
    %v3775 = vstv %s3774
    %v3776 = vmul.f32 %v3775, %v119
    %v3777 = vmul.f32 %v3775, %v120
    %v3778 = vmul.f32 %v3775, %v121
    %v3779 = vmul.f32 %v3775, %v122
    %v3780 = vmul.f32 %v3775, %v123
    %v3781 = vmul.f32 %v3775, %v124
    %v3782 = vadd.f32 %v3768, %v3776
    %v3783 = vadd.f32 %v3769, %v3777
    %v3784 = vadd.f32 %v3770, %v3778
    %v3785 = vadd.f32 %v3771, %v3779
    %v3786 = vadd.f32 %v3772, %v3780
    %v3787 = vadd.f32 %v3773, %v3781
    %s3788 = sld [smem:[#allocation2 + $0x106]]
    %v3789 = vstv %s3788
    %v3790 = vmul.f32 %v3789, %v111
    %v3791 = vmul.f32 %v3789, %v112
    %v3792 = vmul.f32 %v3789, %v113
    %v3793 = vmul.f32 %v3789, %v114
    %v3794 = vmul.f32 %v3789, %v115
    %v3795 = vmul.f32 %v3789, %v116
    %3802 = vrot.lane.b32.xlu0 %v3790, 127
    %v3803 = vpop.permute.xlu0 %3802
    %3804 = vrot.lane.b32.xlu0 %v3791, 127
    %v3805 = vpop.permute.xlu0 %3804
    %3806 = vrot.lane.b32.xlu0 %v3792, 127
    %v3807 = vpop.permute.xlu0 %3806
    %3808 = vrot.lane.b32.xlu0 %v3793, 127
    %v3809 = vpop.permute.xlu0 %3808
    %3810 = vrot.lane.b32.xlu0 %v3794, 127
    %v3811 = vpop.permute.xlu0 %3810
    %3812 = vrot.lane.b32.xlu0 %v3795, 127
    %v3813 = vpop.permute.xlu0 %3812
    %v3820 = vadd.f32 %v3782, %v3803
    %v3821 = vadd.f32 %v3783, %v3805
    %v3822 = vadd.f32 %v3784, %v3807
    %v3823 = vadd.f32 %v3785, %v3809
    %v3824 = vadd.f32 %v3786, %v3811
    %v3825 = vadd.f32 %v3787, %v3813
    %s3826 = sld [smem:[#allocation2 + $0x107]]
    %v3827 = vstv %s3826
    %v3828 = vmul.f32 %v3827, %v119
    %v3829 = vmul.f32 %v3827, %v120
    %v3830 = vmul.f32 %v3827, %v121
    %v3831 = vmul.f32 %v3827, %v122
    %v3832 = vmul.f32 %v3827, %v123
    %v3833 = vmul.f32 %v3827, %v124
    %3840 = vrot.lane.b32.xlu0 %v3828, 127
    %v3841 = vpop.permute.xlu0 %3840
    %3842 = vrot.lane.b32.xlu0 %v3829, 127
    %v3843 = vpop.permute.xlu0 %3842
    %3844 = vrot.lane.b32.xlu0 %v3830, 127
    %v3845 = vpop.permute.xlu0 %3844
    %3846 = vrot.lane.b32.xlu0 %v3831, 127
    %v3847 = vpop.permute.xlu0 %3846
    %3848 = vrot.lane.b32.xlu0 %v3832, 127
    %v3849 = vpop.permute.xlu0 %3848
    %3850 = vrot.lane.b32.xlu0 %v3833, 127
    %v3851 = vpop.permute.xlu0 %3850
    %v3858 = vadd.f32 %v3820, %v3841
    %v3859 = vadd.f32 %v3821, %v3843
    %v3860 = vadd.f32 %v3822, %v3845
    %v3861 = vadd.f32 %v3823, %v3847
    %v3862 = vadd.f32 %v3824, %v3849
    %v3863 = vadd.f32 %v3825, %v3851
    %s3864 = sld [smem:[#allocation2 + $0x108]]
    %v3865 = vstv %s3864
    %v3866 = vmul.f32 %v3865, %v94
    %v3867 = vmul.f32 %v3865, %v95
    %v3868 = vmul.f32 %v3865, %v96
    %v3869 = vmul.f32 %v3865, %v97
    %v3870 = vmul.f32 %v3865, %v98
    %v3871 = vmul.f32 %v3865, %v99
    %v3872 = vadd.f32 %v3858, %v3866
    %v3873 = vadd.f32 %v3859, %v3867
    %v3874 = vadd.f32 %v3860, %v3868
    %v3875 = vadd.f32 %v3861, %v3869
    %v3876 = vadd.f32 %v3862, %v3870
    %v3877 = vadd.f32 %v3863, %v3871
    %s3878 = sld [smem:[#allocation2 + $0x109]]
    %v3879 = vstv %s3878
    %v3880 = vmul.f32 %v3879, %v103
    %v3881 = vmul.f32 %v3879, %v104
    %v3882 = vmul.f32 %v3879, %v105
    %v3883 = vmul.f32 %v3879, %v106
    %v3884 = vmul.f32 %v3879, %v107
    %v3885 = vmul.f32 %v3879, %v108
    %v3886 = vadd.f32 %v3872, %v3880
    %v3887 = vadd.f32 %v3873, %v3881
    %v3888 = vadd.f32 %v3874, %v3882
    %v3889 = vadd.f32 %v3875, %v3883
    %v3890 = vadd.f32 %v3876, %v3884
    %v3891 = vadd.f32 %v3877, %v3885
    %s3892 = sld [smem:[#allocation2 + $0x10a]]
    %v3893 = vstv %s3892
    %v3894 = vmul.f32 %v3893, %v94
    %v3895 = vmul.f32 %v3893, %v95
    %v3896 = vmul.f32 %v3893, %v96
    %v3897 = vmul.f32 %v3893, %v97
    %v3898 = vmul.f32 %v3893, %v98
    %v3899 = vmul.f32 %v3893, %v99
    %3906 = vrot.lane.b32.xlu0 %v3894, 127
    %v3907 = vpop.permute.xlu0 %3906
    %3908 = vrot.lane.b32.xlu0 %v3895, 127
    %v3909 = vpop.permute.xlu0 %3908
    %3910 = vrot.lane.b32.xlu0 %v3896, 127
    %v3911 = vpop.permute.xlu0 %3910
    %3912 = vrot.lane.b32.xlu0 %v3897, 127
    %v3913 = vpop.permute.xlu0 %3912
    %3914 = vrot.lane.b32.xlu0 %v3898, 127
    %v3915 = vpop.permute.xlu0 %3914
    %3916 = vrot.lane.b32.xlu0 %v3899, 127
    %v3917 = vpop.permute.xlu0 %3916
    %v3924 = vadd.f32 %v3886, %v3907
    %v3925 = vadd.f32 %v3887, %v3909
    %v3926 = vadd.f32 %v3888, %v3911
    %v3927 = vadd.f32 %v3889, %v3913
    %v3928 = vadd.f32 %v3890, %v3915
    %v3929 = vadd.f32 %v3891, %v3917
    %s3930 = sld [smem:[#allocation2 + $0x10b]]
    %v3931 = vstv %s3930
    %v3932 = vmul.f32 %v3931, %v103
    %v3933 = vmul.f32 %v3931, %v104
    %v3934 = vmul.f32 %v3931, %v105
    %v3935 = vmul.f32 %v3931, %v106
    %v3936 = vmul.f32 %v3931, %v107
    %v3937 = vmul.f32 %v3931, %v108
    %3944 = vrot.lane.b32.xlu0 %v3932, 127
    %v3945 = vpop.permute.xlu0 %3944
    %3946 = vrot.lane.b32.xlu0 %v3933, 127
    %v3947 = vpop.permute.xlu0 %3946
    %3948 = vrot.lane.b32.xlu0 %v3934, 127
    %v3949 = vpop.permute.xlu0 %3948
    %3950 = vrot.lane.b32.xlu0 %v3935, 127
    %v3951 = vpop.permute.xlu0 %3950
    %3952 = vrot.lane.b32.xlu0 %v3936, 127
    %v3953 = vpop.permute.xlu0 %3952
    %3954 = vrot.lane.b32.xlu0 %v3937, 127
    %v3955 = vpop.permute.xlu0 %3954
    %v3962 = vadd.f32 %v3924, %v3945
    %v3963 = vadd.f32 %v3925, %v3947
    %v3964 = vadd.f32 %v3926, %v3949
    %v3965 = vadd.f32 %v3927, %v3951
    %v3966 = vadd.f32 %v3928, %v3953
    %v3967 = vadd.f32 %v3929, %v3955
    %s3968 = sld [smem:[#allocation2 + $0x10c]]
    %v3969 = vstv %s3968
    %v3970 = vmul.f32 %v3969, %v112
    %v3971 = vmul.f32 %v3969, %v113
    %v3972 = vmul.f32 %v3969, %v114
    %v3973 = vmul.f32 %v3969, %v115
    %v3974 = vmul.f32 %v3969, %v116
    %v3975 = vmul.f32 %v3969, %v117
    %v3976 = vadd.f32 %v3962, %v3970
    %v3977 = vadd.f32 %v3963, %v3971
    %v3978 = vadd.f32 %v3964, %v3972
    %v3979 = vadd.f32 %v3965, %v3973
    %v3980 = vadd.f32 %v3966, %v3974
    %v3981 = vadd.f32 %v3967, %v3975
    %s3982 = sld [smem:[#allocation2 + $0x10d]]
    %v3983 = vstv %s3982
    %v3984 = vmul.f32 %v3983, %v120
    %v3985 = vmul.f32 %v3983, %v121
    %v3986 = vmul.f32 %v3983, %v122
    %v3987 = vmul.f32 %v3983, %v123
    %v3988 = vmul.f32 %v3983, %v124
    %v3989 = vmul.f32 %v3983, %v125
    %v3990 = vadd.f32 %v3976, %v3984
    %v3991 = vadd.f32 %v3977, %v3985
    %v3992 = vadd.f32 %v3978, %v3986
    %v3993 = vadd.f32 %v3979, %v3987
    %v3994 = vadd.f32 %v3980, %v3988
    %v3995 = vadd.f32 %v3981, %v3989
    %s3996 = sld [smem:[#allocation2 + $0x10e]]
    %v3997 = vstv %s3996
    %v3998 = vmul.f32 %v3997, %v112
    %v3999 = vmul.f32 %v3997, %v113
    %v4000 = vmul.f32 %v3997, %v114
    %v4001 = vmul.f32 %v3997, %v115
    %v4002 = vmul.f32 %v3997, %v116
    %v4003 = vmul.f32 %v3997, %v117
    %4010 = vrot.lane.b32.xlu0 %v3998, 127
    %v4011 = vpop.permute.xlu0 %4010
    %4012 = vrot.lane.b32.xlu0 %v3999, 127
    %v4013 = vpop.permute.xlu0 %4012
    %4014 = vrot.lane.b32.xlu0 %v4000, 127
    %v4015 = vpop.permute.xlu0 %4014
    %4016 = vrot.lane.b32.xlu0 %v4001, 127
    %v4017 = vpop.permute.xlu0 %4016
    %4018 = vrot.lane.b32.xlu0 %v4002, 127
    %v4019 = vpop.permute.xlu0 %4018
    %4020 = vrot.lane.b32.xlu0 %v4003, 127
    %v4021 = vpop.permute.xlu0 %4020
    %v4028 = vadd.f32 %v3990, %v4011
    %v4029 = vadd.f32 %v3991, %v4013
    %v4030 = vadd.f32 %v3992, %v4015
    %v4031 = vadd.f32 %v3993, %v4017
    %v4032 = vadd.f32 %v3994, %v4019
    %v4033 = vadd.f32 %v3995, %v4021
    %s4034 = sld [smem:[#allocation2 + $0x10f]]
    %v4035 = vstv %s4034
    %v4036 = vmul.f32 %v4035, %v120
    %v4037 = vmul.f32 %v4035, %v121
    %v4038 = vmul.f32 %v4035, %v122
    %v4039 = vmul.f32 %v4035, %v123
    %v4040 = vmul.f32 %v4035, %v124
    %v4041 = vmul.f32 %v4035, %v125
    %4048 = vrot.lane.b32.xlu0 %v4036, 127
    %v4049 = vpop.permute.xlu0 %4048
    %4050 = vrot.lane.b32.xlu0 %v4037, 127
    %v4051 = vpop.permute.xlu0 %4050
    %4052 = vrot.lane.b32.xlu0 %v4038, 127
    %v4053 = vpop.permute.xlu0 %4052
    %4054 = vrot.lane.b32.xlu0 %v4039, 127
    %v4055 = vpop.permute.xlu0 %4054
    %4056 = vrot.lane.b32.xlu0 %v4040, 127
    %v4057 = vpop.permute.xlu0 %4056
    %4058 = vrot.lane.b32.xlu0 %v4041, 127
    %v4059 = vpop.permute.xlu0 %4058
    %v4066 = vadd.f32 %v4028, %v4049
    %v4067 = vadd.f32 %v4029, %v4051
    %v4068 = vadd.f32 %v4030, %v4053
    %v4069 = vadd.f32 %v4031, %v4055
    %v4070 = vadd.f32 %v4032, %v4057
    %v4071 = vadd.f32 %v4033, %v4059
    %v4072 = vmul.f32 %v3663, %v102
    %v4073 = vmul.f32 %v3663, %v103
    %v4074 = vmul.f32 %v3663, %v104
    %v4075 = vmul.f32 %v3663, %v105
    %v4076 = vmul.f32 %v3663, %v106
    %v4077 = vmul.f32 %v3663, %v107
    %v4078 = vmul.f32 %v3671, %v93
    %v4079 = vmul.f32 %v3671, %v94
    %v4080 = vmul.f32 %v3671, %v95
    %v4081 = vmul.f32 %v3671, %v96
    %v4082 = vmul.f32 %v3671, %v97
    %v4083 = vmul.f32 %v3671, %v98
    %4090 = vrot.lane.b32.xlu0 %v4078, 127
    %v4091 = vpop.permute.xlu0 %4090
    %4092 = vrot.lane.b32.xlu0 %v4079, 127
    %v4093 = vpop.permute.xlu0 %4092
    %4094 = vrot.lane.b32.xlu0 %v4080, 127
    %v4095 = vpop.permute.xlu0 %4094
    %4096 = vrot.lane.b32.xlu0 %v4081, 127
    %v4097 = vpop.permute.xlu0 %4096
    %4098 = vrot.lane.b32.xlu0 %v4082, 127
    %v4099 = vpop.permute.xlu0 %4098
    %4100 = vrot.lane.b32.xlu0 %v4083, 127
    %v4101 = vpop.permute.xlu0 %4100
    %v4108 = vadd.f32 %v4072, %v4091
    %v4109 = vadd.f32 %v4073, %v4093
    %v4110 = vadd.f32 %v4074, %v4095
    %v4111 = vadd.f32 %v4075, %v4097
    %v4112 = vadd.f32 %v4076, %v4099
    %v4113 = vadd.f32 %v4077, %v4101
    %v4114 = vmul.f32 %v3685, %v102
    %v4115 = vmul.f32 %v3685, %v103
    %v4116 = vmul.f32 %v3685, %v104
    %v4117 = vmul.f32 %v3685, %v105
    %v4118 = vmul.f32 %v3685, %v106
    %v4119 = vmul.f32 %v3685, %v107
    %4126 = vrot.lane.b32.xlu0 %v4114, 127
    %v4127 = vpop.permute.xlu0 %4126
    %4128 = vrot.lane.b32.xlu0 %v4115, 127
    %v4129 = vpop.permute.xlu0 %4128
    %4130 = vrot.lane.b32.xlu0 %v4116, 127
    %v4131 = vpop.permute.xlu0 %4130
    %4132 = vrot.lane.b32.xlu0 %v4117, 127
    %v4133 = vpop.permute.xlu0 %4132
    %4134 = vrot.lane.b32.xlu0 %v4118, 127
    %v4135 = vpop.permute.xlu0 %4134
    %4136 = vrot.lane.b32.xlu0 %v4119, 127
    %v4137 = vpop.permute.xlu0 %4136
    %v4144 = vadd.f32 %v4108, %v4127
    %v4145 = vadd.f32 %v4109, %v4129
    %v4146 = vadd.f32 %v4110, %v4131
    %v4147 = vadd.f32 %v4111, %v4133
    %v4148 = vadd.f32 %v4112, %v4135
    %v4149 = vadd.f32 %v4113, %v4137
    %v4150 = vmul.f32 %v3723, %v93
    %v4151 = vmul.f32 %v3723, %v94
    %v4152 = vmul.f32 %v3723, %v95
    %v4153 = vmul.f32 %v3723, %v96
    %v4154 = vmul.f32 %v3723, %v97
    %v4155 = vmul.f32 %v3723, %v98
    %4162 = vrot.lane.b32.xlu0 %v4150, 126
    %v4163 = vpop.permute.xlu0 %4162
    %4164 = vrot.lane.b32.xlu0 %v4151, 126
    %v4165 = vpop.permute.xlu0 %4164
    %4166 = vrot.lane.b32.xlu0 %v4152, 126
    %v4167 = vpop.permute.xlu0 %4166
    %4168 = vrot.lane.b32.xlu0 %v4153, 126
    %v4169 = vpop.permute.xlu0 %4168
    %4170 = vrot.lane.b32.xlu0 %v4154, 126
    %v4171 = vpop.permute.xlu0 %4170
    %4172 = vrot.lane.b32.xlu0 %v4155, 126
    %v4173 = vpop.permute.xlu0 %4172
    %v4180 = vadd.f32 %v4144, %v4163
    %v4181 = vadd.f32 %v4145, %v4165
    %v4182 = vadd.f32 %v4146, %v4167
    %v4183 = vadd.f32 %v4147, %v4169
    %v4184 = vadd.f32 %v4148, %v4171
    %v4185 = vadd.f32 %v4149, %v4173
    %v4186 = vmul.f32 %v3761, %v119
    %v4187 = vmul.f32 %v3761, %v120
    %v4188 = vmul.f32 %v3761, %v121
    %v4189 = vmul.f32 %v3761, %v122
    %v4190 = vmul.f32 %v3761, %v123
    %v4191 = vmul.f32 %v3761, %v124
    %v4192 = vadd.f32 %v4180, %v4186
    %v4193 = vadd.f32 %v4181, %v4187
    %v4194 = vadd.f32 %v4182, %v4188
    %v4195 = vadd.f32 %v4183, %v4189
    %v4196 = vadd.f32 %v4184, %v4190
    %v4197 = vadd.f32 %v4185, %v4191
    %v4198 = vmul.f32 %v3775, %v111
    %v4199 = vmul.f32 %v3775, %v112
    %v4200 = vmul.f32 %v3775, %v113
    %v4201 = vmul.f32 %v3775, %v114
    %v4202 = vmul.f32 %v3775, %v115
    %v4203 = vmul.f32 %v3775, %v116
    %4210 = vrot.lane.b32.xlu0 %v4198, 127
    %v4211 = vpop.permute.xlu0 %4210
    %4212 = vrot.lane.b32.xlu0 %v4199, 127
    %v4213 = vpop.permute.xlu0 %4212
    %4214 = vrot.lane.b32.xlu0 %v4200, 127
    %v4215 = vpop.permute.xlu0 %4214
    %4216 = vrot.lane.b32.xlu0 %v4201, 127
    %v4217 = vpop.permute.xlu0 %4216
    %4218 = vrot.lane.b32.xlu0 %v4202, 127
    %v4219 = vpop.permute.xlu0 %4218
    %4220 = vrot.lane.b32.xlu0 %v4203, 127
    %v4221 = vpop.permute.xlu0 %4220
    %v4228 = vadd.f32 %v4192, %v4211
    %v4229 = vadd.f32 %v4193, %v4213
    %v4230 = vadd.f32 %v4194, %v4215
    %v4231 = vadd.f32 %v4195, %v4217
    %v4232 = vadd.f32 %v4196, %v4219
    %v4233 = vadd.f32 %v4197, %v4221
    %v4234 = vmul.f32 %v3789, %v119
    %v4235 = vmul.f32 %v3789, %v120
    %v4236 = vmul.f32 %v3789, %v121
    %v4237 = vmul.f32 %v3789, %v122
    %v4238 = vmul.f32 %v3789, %v123
    %v4239 = vmul.f32 %v3789, %v124
    %4246 = vrot.lane.b32.xlu0 %v4234, 127
    %v4247 = vpop.permute.xlu0 %4246
    %4248 = vrot.lane.b32.xlu0 %v4235, 127
    %v4249 = vpop.permute.xlu0 %4248
    %4250 = vrot.lane.b32.xlu0 %v4236, 127
    %v4251 = vpop.permute.xlu0 %4250
    %4252 = vrot.lane.b32.xlu0 %v4237, 127
    %v4253 = vpop.permute.xlu0 %4252
    %4254 = vrot.lane.b32.xlu0 %v4238, 127
    %v4255 = vpop.permute.xlu0 %4254
    %4256 = vrot.lane.b32.xlu0 %v4239, 127
    %v4257 = vpop.permute.xlu0 %4256
    %v4264 = vadd.f32 %v4228, %v4247
    %v4265 = vadd.f32 %v4229, %v4249
    %v4266 = vadd.f32 %v4230, %v4251
    %v4267 = vadd.f32 %v4231, %v4253
    %v4268 = vadd.f32 %v4232, %v4255
    %v4269 = vadd.f32 %v4233, %v4257
    %v4270 = vmul.f32 %v3827, %v111
    %v4271 = vmul.f32 %v3827, %v112
    %v4272 = vmul.f32 %v3827, %v113
    %v4273 = vmul.f32 %v3827, %v114
    %v4274 = vmul.f32 %v3827, %v115
    %v4275 = vmul.f32 %v3827, %v116
    %4282 = vrot.lane.b32.xlu0 %v4270, 126
    %v4283 = vpop.permute.xlu0 %4282
    %4284 = vrot.lane.b32.xlu0 %v4271, 126
    %v4285 = vpop.permute.xlu0 %4284
    %4286 = vrot.lane.b32.xlu0 %v4272, 126
    %v4287 = vpop.permute.xlu0 %4286
    %4288 = vrot.lane.b32.xlu0 %v4273, 126
    %v4289 = vpop.permute.xlu0 %4288
    %4290 = vrot.lane.b32.xlu0 %v4274, 126
    %v4291 = vpop.permute.xlu0 %4290
    %4292 = vrot.lane.b32.xlu0 %v4275, 126
    %v4293 = vpop.permute.xlu0 %4292
    %v4300 = vadd.f32 %v4264, %v4283
    %v4301 = vadd.f32 %v4265, %v4285
    %v4302 = vadd.f32 %v4266, %v4287
    %v4303 = vadd.f32 %v4267, %v4289
    %v4304 = vadd.f32 %v4268, %v4291
    %v4305 = vadd.f32 %v4269, %v4293
    %v4306 = vmul.f32 %v3865, %v103
    %v4307 = vmul.f32 %v3865, %v104
    %v4308 = vmul.f32 %v3865, %v105
    %v4309 = vmul.f32 %v3865, %v106
    %v4310 = vmul.f32 %v3865, %v107
    %v4311 = vmul.f32 %v3865, %v108
    %v4312 = vadd.f32 %v4300, %v4306
    %v4313 = vadd.f32 %v4301, %v4307
    %v4314 = vadd.f32 %v4302, %v4308
    %v4315 = vadd.f32 %v4303, %v4309
    %v4316 = vadd.f32 %v4304, %v4310
    %v4317 = vadd.f32 %v4305, %v4311
    %v4318 = vmul.f32 %v3879, %v94
    %v4319 = vmul.f32 %v3879, %v95
    %v4320 = vmul.f32 %v3879, %v96
    %v4321 = vmul.f32 %v3879, %v97
    %v4322 = vmul.f32 %v3879, %v98
    %v4323 = vmul.f32 %v3879, %v99
    %4330 = vrot.lane.b32.xlu0 %v4318, 127
    %v4331 = vpop.permute.xlu0 %4330
    %4332 = vrot.lane.b32.xlu0 %v4319, 127
    %v4333 = vpop.permute.xlu0 %4332
    %4334 = vrot.lane.b32.xlu0 %v4320, 127
    %v4335 = vpop.permute.xlu0 %4334
    %4336 = vrot.lane.b32.xlu0 %v4321, 127
    %v4337 = vpop.permute.xlu0 %4336
    %4338 = vrot.lane.b32.xlu0 %v4322, 127
    %v4339 = vpop.permute.xlu0 %4338
    %4340 = vrot.lane.b32.xlu0 %v4323, 127
    %v4341 = vpop.permute.xlu0 %4340
    %v4348 = vadd.f32 %v4312, %v4331
    %v4349 = vadd.f32 %v4313, %v4333
    %v4350 = vadd.f32 %v4314, %v4335
    %v4351 = vadd.f32 %v4315, %v4337
    %v4352 = vadd.f32 %v4316, %v4339
    %v4353 = vadd.f32 %v4317, %v4341
    %v4354 = vmul.f32 %v3893, %v103
    %v4355 = vmul.f32 %v3893, %v104
    %v4356 = vmul.f32 %v3893, %v105
    %v4357 = vmul.f32 %v3893, %v106
    %v4358 = vmul.f32 %v3893, %v107
    %v4359 = vmul.f32 %v3893, %v108
    %4366 = vrot.lane.b32.xlu0 %v4354, 127
    %v4367 = vpop.permute.xlu0 %4366
    %4368 = vrot.lane.b32.xlu0 %v4355, 127
    %v4369 = vpop.permute.xlu0 %4368
    %4370 = vrot.lane.b32.xlu0 %v4356, 127
    %v4371 = vpop.permute.xlu0 %4370
    %4372 = vrot.lane.b32.xlu0 %v4357, 127
    %v4373 = vpop.permute.xlu0 %4372
    %4374 = vrot.lane.b32.xlu0 %v4358, 127
    %v4375 = vpop.permute.xlu0 %4374
    %4376 = vrot.lane.b32.xlu0 %v4359, 127
    %v4377 = vpop.permute.xlu0 %4376
    %v4384 = vadd.f32 %v4348, %v4367
    %v4385 = vadd.f32 %v4349, %v4369
    %v4386 = vadd.f32 %v4350, %v4371
    %v4387 = vadd.f32 %v4351, %v4373
    %v4388 = vadd.f32 %v4352, %v4375
    %v4389 = vadd.f32 %v4353, %v4377
    %v4390 = vmul.f32 %v3931, %v94
    %v4391 = vmul.f32 %v3931, %v95
    %v4392 = vmul.f32 %v3931, %v96
    %v4393 = vmul.f32 %v3931, %v97
    %v4394 = vmul.f32 %v3931, %v98
    %v4395 = vmul.f32 %v3931, %v99
    %4402 = vrot.lane.b32.xlu0 %v4390, 126
    %v4403 = vpop.permute.xlu0 %4402
    %4404 = vrot.lane.b32.xlu0 %v4391, 126
    %v4405 = vpop.permute.xlu0 %4404
    %4406 = vrot.lane.b32.xlu0 %v4392, 126
    %v4407 = vpop.permute.xlu0 %4406
    %4408 = vrot.lane.b32.xlu0 %v4393, 126
    %v4409 = vpop.permute.xlu0 %4408
    %4410 = vrot.lane.b32.xlu0 %v4394, 126
    %v4411 = vpop.permute.xlu0 %4410
    %4412 = vrot.lane.b32.xlu0 %v4395, 126
    %v4413 = vpop.permute.xlu0 %4412
    %v4420 = vadd.f32 %v4384, %v4403
    %v4421 = vadd.f32 %v4385, %v4405
    %v4422 = vadd.f32 %v4386, %v4407
    %v4423 = vadd.f32 %v4387, %v4409
    %v4424 = vadd.f32 %v4388, %v4411
    %v4425 = vadd.f32 %v4389, %v4413
    %v4426 = vmul.f32 %v3969, %v120
    %v4427 = vmul.f32 %v3969, %v121
    %v4428 = vmul.f32 %v3969, %v122
    %v4429 = vmul.f32 %v3969, %v123
    %v4430 = vmul.f32 %v3969, %v124
    %v4431 = vmul.f32 %v3969, %v125
    %v4432 = vadd.f32 %v4420, %v4426
    %v4433 = vadd.f32 %v4421, %v4427
    %v4434 = vadd.f32 %v4422, %v4428
    %v4435 = vadd.f32 %v4423, %v4429
    %v4436 = vadd.f32 %v4424, %v4430
    %v4437 = vadd.f32 %v4425, %v4431
    %v4438 = vmul.f32 %v3983, %v112
    %v4439 = vmul.f32 %v3983, %v113
    %v4440 = vmul.f32 %v3983, %v114
    %v4441 = vmul.f32 %v3983, %v115
    %v4442 = vmul.f32 %v3983, %v116
    %v4443 = vmul.f32 %v3983, %v117
    %4450 = vrot.lane.b32.xlu0 %v4438, 127
    %v4451 = vpop.permute.xlu0 %4450
    %4452 = vrot.lane.b32.xlu0 %v4439, 127
    %v4453 = vpop.permute.xlu0 %4452
    %4454 = vrot.lane.b32.xlu0 %v4440, 127
    %v4455 = vpop.permute.xlu0 %4454
    %4456 = vrot.lane.b32.xlu0 %v4441, 127
    %v4457 = vpop.permute.xlu0 %4456
    %4458 = vrot.lane.b32.xlu0 %v4442, 127
    %v4459 = vpop.permute.xlu0 %4458
    %4460 = vrot.lane.b32.xlu0 %v4443, 127
    %v4461 = vpop.permute.xlu0 %4460
    %v4468 = vadd.f32 %v4432, %v4451
    %v4469 = vadd.f32 %v4433, %v4453
    %v4470 = vadd.f32 %v4434, %v4455
    %v4471 = vadd.f32 %v4435, %v4457
    %v4472 = vadd.f32 %v4436, %v4459
    %v4473 = vadd.f32 %v4437, %v4461
    %v4474 = vmul.f32 %v3997, %v120
    %v4475 = vmul.f32 %v3997, %v121
    %v4476 = vmul.f32 %v3997, %v122
    %v4477 = vmul.f32 %v3997, %v123
    %v4478 = vmul.f32 %v3997, %v124
    %v4479 = vmul.f32 %v3997, %v125
    %4486 = vrot.lane.b32.xlu0 %v4474, 127
    %v4487 = vpop.permute.xlu0 %4486
    %4488 = vrot.lane.b32.xlu0 %v4475, 127
    %v4489 = vpop.permute.xlu0 %4488
    %4490 = vrot.lane.b32.xlu0 %v4476, 127
    %v4491 = vpop.permute.xlu0 %4490
    %4492 = vrot.lane.b32.xlu0 %v4477, 127
    %v4493 = vpop.permute.xlu0 %4492
    %4494 = vrot.lane.b32.xlu0 %v4478, 127
    %v4495 = vpop.permute.xlu0 %4494
    %4496 = vrot.lane.b32.xlu0 %v4479, 127
    %v4497 = vpop.permute.xlu0 %4496
    %v4504 = vadd.f32 %v4468, %v4487
    %v4505 = vadd.f32 %v4469, %v4489
    %v4506 = vadd.f32 %v4470, %v4491
    %v4507 = vadd.f32 %v4471, %v4493
    %v4508 = vadd.f32 %v4472, %v4495
    %v4509 = vadd.f32 %v4473, %v4497
    %v4510 = vmul.f32 %v4035, %v112
    %v4511 = vmul.f32 %v4035, %v113
    %v4512 = vmul.f32 %v4035, %v114
    %v4513 = vmul.f32 %v4035, %v115
    %v4514 = vmul.f32 %v4035, %v116
    %v4515 = vmul.f32 %v4035, %v117
    %4522 = vrot.lane.b32.xlu0 %v4510, 126
    %v4523 = vpop.permute.xlu0 %4522
    %4524 = vrot.lane.b32.xlu0 %v4511, 126
    %v4525 = vpop.permute.xlu0 %4524
    %4526 = vrot.lane.b32.xlu0 %v4512, 126
    %v4527 = vpop.permute.xlu0 %4526
    %4528 = vrot.lane.b32.xlu0 %v4513, 126
    %v4529 = vpop.permute.xlu0 %4528
    %4530 = vrot.lane.b32.xlu0 %v4514, 126
    %v4531 = vpop.permute.xlu0 %4530
    %4532 = vrot.lane.b32.xlu0 %v4515, 126
    %v4533 = vpop.permute.xlu0 %4532
    %v4540 = vadd.f32 %v4504, %v4523
    %v4541 = vadd.f32 %v4505, %v4525
    %v4542 = vadd.f32 %v4506, %v4527
    %v4543 = vadd.f32 %v4507, %v4529
    %v4544 = vadd.f32 %v4508, %v4531
    %v4545 = vadd.f32 %v4509, %v4533
    %v4546 = vmax.f32 %v4066, %v4540
    %v4547 = vmax.f32 %v4067, %v4541
    %v4548 = vmax.f32 %v4068, %v4542
    %v4549 = vmax.f32 %v4069, %v4543
    %v4550 = vmax.f32 %v4070, %v4544
    %v4551 = vmax.f32 %v4071, %v4545
    %v4552 = vmul.f32 %v3663, %v111
    %v4553 = vmul.f32 %v3663, %v112
    %v4554 = vmul.f32 %v3663, %v113
    %v4555 = vmul.f32 %v3663, %v114
    %v4556 = vmul.f32 %v3663, %v115
    %v4557 = vmul.f32 %v3663, %v116
    %v4558 = vmul.f32 %v3671, %v119
    %v4559 = vmul.f32 %v3671, %v120
    %v4560 = vmul.f32 %v3671, %v121
    %v4561 = vmul.f32 %v3671, %v122
    %v4562 = vmul.f32 %v3671, %v123
    %v4563 = vmul.f32 %v3671, %v124
    %v4564 = vadd.f32 %v4552, %v4558
    %v4565 = vadd.f32 %v4553, %v4559
    %v4566 = vadd.f32 %v4554, %v4560
    %v4567 = vadd.f32 %v4555, %v4561
    %v4568 = vadd.f32 %v4556, %v4562
    %v4569 = vadd.f32 %v4557, %v4563
    %v4570 = vmul.f32 %v3685, %v111
    %v4571 = vmul.f32 %v3685, %v112
    %v4572 = vmul.f32 %v3685, %v113
    %v4573 = vmul.f32 %v3685, %v114
    %v4574 = vmul.f32 %v3685, %v115
    %v4575 = vmul.f32 %v3685, %v116
    %4582 = vrot.lane.b32.xlu0 %v4570, 127
    %v4583 = vpop.permute.xlu0 %4582
    %4584 = vrot.lane.b32.xlu0 %v4571, 127
    %v4585 = vpop.permute.xlu0 %4584
    %4586 = vrot.lane.b32.xlu0 %v4572, 127
    %v4587 = vpop.permute.xlu0 %4586
    %4588 = vrot.lane.b32.xlu0 %v4573, 127
    %v4589 = vpop.permute.xlu0 %4588
    %4590 = vrot.lane.b32.xlu0 %v4574, 127
    %v4591 = vpop.permute.xlu0 %4590
    %4592 = vrot.lane.b32.xlu0 %v4575, 127
    %v4593 = vpop.permute.xlu0 %4592
    %v4600 = vadd.f32 %v4564, %v4583
    %v4601 = vadd.f32 %v4565, %v4585
    %v4602 = vadd.f32 %v4566, %v4587
    %v4603 = vadd.f32 %v4567, %v4589
    %v4604 = vadd.f32 %v4568, %v4591
    %v4605 = vadd.f32 %v4569, %v4593
    %v4606 = vmul.f32 %v3723, %v119
    %v4607 = vmul.f32 %v3723, %v120
    %v4608 = vmul.f32 %v3723, %v121
    %v4609 = vmul.f32 %v3723, %v122
    %v4610 = vmul.f32 %v3723, %v123
    %v4611 = vmul.f32 %v3723, %v124
    %4618 = vrot.lane.b32.xlu0 %v4606, 127
    %v4619 = vpop.permute.xlu0 %4618
    %4620 = vrot.lane.b32.xlu0 %v4607, 127
    %v4621 = vpop.permute.xlu0 %4620
    %4622 = vrot.lane.b32.xlu0 %v4608, 127
    %v4623 = vpop.permute.xlu0 %4622
    %4624 = vrot.lane.b32.xlu0 %v4609, 127
    %v4625 = vpop.permute.xlu0 %4624
    %4626 = vrot.lane.b32.xlu0 %v4610, 127
    %v4627 = vpop.permute.xlu0 %4626
    %4628 = vrot.lane.b32.xlu0 %v4611, 127
    %v4629 = vpop.permute.xlu0 %4628
    %v4636 = vadd.f32 %v4600, %v4619
    %v4637 = vadd.f32 %v4601, %v4621
    %v4638 = vadd.f32 %v4602, %v4623
    %v4639 = vadd.f32 %v4603, %v4625
    %v4640 = vadd.f32 %v4604, %v4627
    %v4641 = vadd.f32 %v4605, %v4629
    %v4642 = vmul.f32 %v3761, %v94
    %v4643 = vmul.f32 %v3761, %v95
    %v4644 = vmul.f32 %v3761, %v96
    %v4645 = vmul.f32 %v3761, %v97
    %v4646 = vmul.f32 %v3761, %v98
    %v4647 = vmul.f32 %v3761, %v99
    %v4648 = vadd.f32 %v4636, %v4642
    %v4649 = vadd.f32 %v4637, %v4643
    %v4650 = vadd.f32 %v4638, %v4644
    %v4651 = vadd.f32 %v4639, %v4645
    %v4652 = vadd.f32 %v4640, %v4646
    %v4653 = vadd.f32 %v4641, %v4647
    %v4654 = vmul.f32 %v3775, %v103
    %v4655 = vmul.f32 %v3775, %v104
    %v4656 = vmul.f32 %v3775, %v105
    %v4657 = vmul.f32 %v3775, %v106
    %v4658 = vmul.f32 %v3775, %v107
    %v4659 = vmul.f32 %v3775, %v108
    %v4660 = vadd.f32 %v4648, %v4654
    %v4661 = vadd.f32 %v4649, %v4655
    %v4662 = vadd.f32 %v4650, %v4656
    %v4663 = vadd.f32 %v4651, %v4657
    %v4664 = vadd.f32 %v4652, %v4658
    %v4665 = vadd.f32 %v4653, %v4659
    %v4666 = vmul.f32 %v3789, %v94
    %v4667 = vmul.f32 %v3789, %v95
    %v4668 = vmul.f32 %v3789, %v96
    %v4669 = vmul.f32 %v3789, %v97
    %v4670 = vmul.f32 %v3789, %v98
    %v4671 = vmul.f32 %v3789, %v99
    %4678 = vrot.lane.b32.xlu0 %v4666, 127
    %v4679 = vpop.permute.xlu0 %4678
    %4680 = vrot.lane.b32.xlu0 %v4667, 127
    %v4681 = vpop.permute.xlu0 %4680
    %4682 = vrot.lane.b32.xlu0 %v4668, 127
    %v4683 = vpop.permute.xlu0 %4682
    %4684 = vrot.lane.b32.xlu0 %v4669, 127
    %v4685 = vpop.permute.xlu0 %4684
    %4686 = vrot.lane.b32.xlu0 %v4670, 127
    %v4687 = vpop.permute.xlu0 %4686
    %4688 = vrot.lane.b32.xlu0 %v4671, 127
    %v4689 = vpop.permute.xlu0 %4688
    %v4696 = vadd.f32 %v4660, %v4679
    %v4697 = vadd.f32 %v4661, %v4681
    %v4698 = vadd.f32 %v4662, %v4683
    %v4699 = vadd.f32 %v4663, %v4685
    %v4700 = vadd.f32 %v4664, %v4687
    %v4701 = vadd.f32 %v4665, %v4689
    %v4702 = vmul.f32 %v3827, %v103
    %v4703 = vmul.f32 %v3827, %v104
    %v4704 = vmul.f32 %v3827, %v105
    %v4705 = vmul.f32 %v3827, %v106
    %v4706 = vmul.f32 %v3827, %v107
    %v4707 = vmul.f32 %v3827, %v108
    %4714 = vrot.lane.b32.xlu0 %v4702, 127
    %v4715 = vpop.permute.xlu0 %4714
    %4716 = vrot.lane.b32.xlu0 %v4703, 127
    %v4717 = vpop.permute.xlu0 %4716
    %4718 = vrot.lane.b32.xlu0 %v4704, 127
    %v4719 = vpop.permute.xlu0 %4718
    %4720 = vrot.lane.b32.xlu0 %v4705, 127
    %v4721 = vpop.permute.xlu0 %4720
    %4722 = vrot.lane.b32.xlu0 %v4706, 127
    %v4723 = vpop.permute.xlu0 %4722
    %4724 = vrot.lane.b32.xlu0 %v4707, 127
    %v4725 = vpop.permute.xlu0 %4724
    %v4732 = vadd.f32 %v4696, %v4715
    %v4733 = vadd.f32 %v4697, %v4717
    %v4734 = vadd.f32 %v4698, %v4719
    %v4735 = vadd.f32 %v4699, %v4721
    %v4736 = vadd.f32 %v4700, %v4723
    %v4737 = vadd.f32 %v4701, %v4725
    %v4738 = vmul.f32 %v3865, %v112
    %v4739 = vmul.f32 %v3865, %v113
    %v4740 = vmul.f32 %v3865, %v114
    %v4741 = vmul.f32 %v3865, %v115
    %v4742 = vmul.f32 %v3865, %v116
    %v4743 = vmul.f32 %v3865, %v117
    %v4744 = vadd.f32 %v4732, %v4738
    %v4745 = vadd.f32 %v4733, %v4739
    %v4746 = vadd.f32 %v4734, %v4740
    %v4747 = vadd.f32 %v4735, %v4741
    %v4748 = vadd.f32 %v4736, %v4742
    %v4749 = vadd.f32 %v4737, %v4743
    %v4750 = vmul.f32 %v3879, %v120
    %v4751 = vmul.f32 %v3879, %v121
    %v4752 = vmul.f32 %v3879, %v122
    %v4753 = vmul.f32 %v3879, %v123
    %v4754 = vmul.f32 %v3879, %v124
    %v4755 = vmul.f32 %v3879, %v125
    %v4756 = vadd.f32 %v4744, %v4750
    %v4757 = vadd.f32 %v4745, %v4751
    %v4758 = vadd.f32 %v4746, %v4752
    %v4759 = vadd.f32 %v4747, %v4753
    %v4760 = vadd.f32 %v4748, %v4754
    %v4761 = vadd.f32 %v4749, %v4755
    %v4762 = vmul.f32 %v3893, %v112
    %v4763 = vmul.f32 %v3893, %v113
    %v4764 = vmul.f32 %v3893, %v114
    %v4765 = vmul.f32 %v3893, %v115
    %v4766 = vmul.f32 %v3893, %v116
    %v4767 = vmul.f32 %v3893, %v117
    %4774 = vrot.lane.b32.xlu0 %v4762, 127
    %v4775 = vpop.permute.xlu0 %4774
    %4776 = vrot.lane.b32.xlu0 %v4763, 127
    %v4777 = vpop.permute.xlu0 %4776
    %4778 = vrot.lane.b32.xlu0 %v4764, 127
    %v4779 = vpop.permute.xlu0 %4778
    %4780 = vrot.lane.b32.xlu0 %v4765, 127
    %v4781 = vpop.permute.xlu0 %4780
    %4782 = vrot.lane.b32.xlu0 %v4766, 127
    %v4783 = vpop.permute.xlu0 %4782
    %4784 = vrot.lane.b32.xlu0 %v4767, 127
    %v4785 = vpop.permute.xlu0 %4784
    %v4792 = vadd.f32 %v4756, %v4775
    %v4793 = vadd.f32 %v4757, %v4777
    %v4794 = vadd.f32 %v4758, %v4779
    %v4795 = vadd.f32 %v4759, %v4781
    %v4796 = vadd.f32 %v4760, %v4783
    %v4797 = vadd.f32 %v4761, %v4785
    %v4798 = vmul.f32 %v3931, %v120
    %v4799 = vmul.f32 %v3931, %v121
    %v4800 = vmul.f32 %v3931, %v122
    %v4801 = vmul.f32 %v3931, %v123
    %v4802 = vmul.f32 %v3931, %v124
    %v4803 = vmul.f32 %v3931, %v125
    %4810 = vrot.lane.b32.xlu0 %v4798, 127
    %v4811 = vpop.permute.xlu0 %4810
    %4812 = vrot.lane.b32.xlu0 %v4799, 127
    %v4813 = vpop.permute.xlu0 %4812
    %4814 = vrot.lane.b32.xlu0 %v4800, 127
    %v4815 = vpop.permute.xlu0 %4814
    %4816 = vrot.lane.b32.xlu0 %v4801, 127
    %v4817 = vpop.permute.xlu0 %4816
    %4818 = vrot.lane.b32.xlu0 %v4802, 127
    %v4819 = vpop.permute.xlu0 %4818
    %4820 = vrot.lane.b32.xlu0 %v4803, 127
    %v4821 = vpop.permute.xlu0 %4820
    %v4828 = vadd.f32 %v4792, %v4811
    %v4829 = vadd.f32 %v4793, %v4813
    %v4830 = vadd.f32 %v4794, %v4815
    %v4831 = vadd.f32 %v4795, %v4817
    %v4832 = vadd.f32 %v4796, %v4819
    %v4833 = vadd.f32 %v4797, %v4821
    %v4834 = vmul.f32 %v3969, %v95
    %v4835 = vmul.f32 %v3969, %v96
    %v4836 = vmul.f32 %v3969, %v97
    %v4837 = vmul.f32 %v3969, %v98
    %v4838 = vmul.f32 %v3969, %v99
    %v4839 = vmul.f32 %v3969, %v100
    %v4840 = vadd.f32 %v4828, %v4834
    %v4841 = vadd.f32 %v4829, %v4835
    %v4842 = vadd.f32 %v4830, %v4836
    %v4843 = vadd.f32 %v4831, %v4837
    %v4844 = vadd.f32 %v4832, %v4838
    %v4845 = vadd.f32 %v4833, %v4839
    %v4846 = vmul.f32 %v3983, %v104
    %v4847 = vmul.f32 %v3983, %v105
    %v4848 = vmul.f32 %v3983, %v106
    %v4849 = vmul.f32 %v3983, %v107
    %v4850 = vmul.f32 %v3983, %v108
    %v4851 = vmul.f32 %v3983, %v109
    %v4852 = vadd.f32 %v4840, %v4846
    %v4853 = vadd.f32 %v4841, %v4847
    %v4854 = vadd.f32 %v4842, %v4848
    %v4855 = vadd.f32 %v4843, %v4849
    %v4856 = vadd.f32 %v4844, %v4850
    %v4857 = vadd.f32 %v4845, %v4851
    %v4858 = vmul.f32 %v3997, %v95
    %v4859 = vmul.f32 %v3997, %v96
    %v4860 = vmul.f32 %v3997, %v97
    %v4861 = vmul.f32 %v3997, %v98
    %v4862 = vmul.f32 %v3997, %v99
    %v4863 = vmul.f32 %v3997, %v100
    %4870 = vrot.lane.b32.xlu0 %v4858, 127
    %v4871 = vpop.permute.xlu0 %4870
    %4872 = vrot.lane.b32.xlu0 %v4859, 127
    %v4873 = vpop.permute.xlu0 %4872
    %4874 = vrot.lane.b32.xlu0 %v4860, 127
    %v4875 = vpop.permute.xlu0 %4874
    %4876 = vrot.lane.b32.xlu0 %v4861, 127
    %v4877 = vpop.permute.xlu0 %4876
    %4878 = vrot.lane.b32.xlu0 %v4862, 127
    %v4879 = vpop.permute.xlu0 %4878
    %4880 = vrot.lane.b32.xlu0 %v4863, 127
    %v4881 = vpop.permute.xlu0 %4880
    %v4888 = vadd.f32 %v4852, %v4871
    %v4889 = vadd.f32 %v4853, %v4873
    %v4890 = vadd.f32 %v4854, %v4875
    %v4891 = vadd.f32 %v4855, %v4877
    %v4892 = vadd.f32 %v4856, %v4879
    %v4893 = vadd.f32 %v4857, %v4881
    %v4894 = vmul.f32 %v4035, %v104
    %v4895 = vmul.f32 %v4035, %v105
    %v4896 = vmul.f32 %v4035, %v106
    %v4897 = vmul.f32 %v4035, %v107
    %v4898 = vmul.f32 %v4035, %v108
    %v4899 = vmul.f32 %v4035, %v109
    %4906 = vrot.lane.b32.xlu0 %v4894, 127
    %v4907 = vpop.permute.xlu0 %4906
    %4908 = vrot.lane.b32.xlu0 %v4895, 127
    %v4909 = vpop.permute.xlu0 %4908
    %4910 = vrot.lane.b32.xlu0 %v4896, 127
    %v4911 = vpop.permute.xlu0 %4910
    %4912 = vrot.lane.b32.xlu0 %v4897, 127
    %v4913 = vpop.permute.xlu0 %4912
    %4914 = vrot.lane.b32.xlu0 %v4898, 127
    %v4915 = vpop.permute.xlu0 %4914
    %4916 = vrot.lane.b32.xlu0 %v4899, 127
    %v4917 = vpop.permute.xlu0 %4916
    %v4924 = vadd.f32 %v4888, %v4907
    %v4925 = vadd.f32 %v4889, %v4909
    %v4926 = vadd.f32 %v4890, %v4911
    %v4927 = vadd.f32 %v4891, %v4913
    %v4928 = vadd.f32 %v4892, %v4915
    %v4929 = vadd.f32 %v4893, %v4917
    %v4930 = vmax.f32 %v4546, %v4924
    %v4931 = vmax.f32 %v4547, %v4925
    %v4932 = vmax.f32 %v4548, %v4926
    %v4933 = vmax.f32 %v4549, %v4927
    %v4934 = vmax.f32 %v4550, %v4928
    %v4935 = vmax.f32 %v4551, %v4929
    %v4936 = vmul.f32 %v3663, %v119
    %v4937 = vmul.f32 %v3663, %v120
    %v4938 = vmul.f32 %v3663, %v121
    %v4939 = vmul.f32 %v3663, %v122
    %v4940 = vmul.f32 %v3663, %v123
    %v4941 = vmul.f32 %v3663, %v124
    %v4942 = vmul.f32 %v3671, %v111
    %v4943 = vmul.f32 %v3671, %v112
    %v4944 = vmul.f32 %v3671, %v113
    %v4945 = vmul.f32 %v3671, %v114
    %v4946 = vmul.f32 %v3671, %v115
    %v4947 = vmul.f32 %v3671, %v116
    %4954 = vrot.lane.b32.xlu0 %v4942, 127
    %v4955 = vpop.permute.xlu0 %4954
    %4956 = vrot.lane.b32.xlu0 %v4943, 127
    %v4957 = vpop.permute.xlu0 %4956
    %4958 = vrot.lane.b32.xlu0 %v4944, 127
    %v4959 = vpop.permute.xlu0 %4958
    %4960 = vrot.lane.b32.xlu0 %v4945, 127
    %v4961 = vpop.permute.xlu0 %4960
    %4962 = vrot.lane.b32.xlu0 %v4946, 127
    %v4963 = vpop.permute.xlu0 %4962
    %4964 = vrot.lane.b32.xlu0 %v4947, 127
    %v4965 = vpop.permute.xlu0 %4964
    %v4972 = vadd.f32 %v4936, %v4955
    %v4973 = vadd.f32 %v4937, %v4957
    %v4974 = vadd.f32 %v4938, %v4959
    %v4975 = vadd.f32 %v4939, %v4961
    %v4976 = vadd.f32 %v4940, %v4963
    %v4977 = vadd.f32 %v4941, %v4965
    %v4978 = vmul.f32 %v3685, %v119
    %v4979 = vmul.f32 %v3685, %v120
    %v4980 = vmul.f32 %v3685, %v121
    %v4981 = vmul.f32 %v3685, %v122
    %v4982 = vmul.f32 %v3685, %v123
    %v4983 = vmul.f32 %v3685, %v124
    %4990 = vrot.lane.b32.xlu0 %v4978, 127
    %v4991 = vpop.permute.xlu0 %4990
    %4992 = vrot.lane.b32.xlu0 %v4979, 127
    %v4993 = vpop.permute.xlu0 %4992
    %4994 = vrot.lane.b32.xlu0 %v4980, 127
    %v4995 = vpop.permute.xlu0 %4994
    %4996 = vrot.lane.b32.xlu0 %v4981, 127
    %v4997 = vpop.permute.xlu0 %4996
    %4998 = vrot.lane.b32.xlu0 %v4982, 127
    %v4999 = vpop.permute.xlu0 %4998
    %5000 = vrot.lane.b32.xlu0 %v4983, 127
    %v5001 = vpop.permute.xlu0 %5000
    %v5008 = vadd.f32 %v4972, %v4991
    %v5009 = vadd.f32 %v4973, %v4993
    %v5010 = vadd.f32 %v4974, %v4995
    %v5011 = vadd.f32 %v4975, %v4997
    %v5012 = vadd.f32 %v4976, %v4999
    %v5013 = vadd.f32 %v4977, %v5001
    %v5014 = vmul.f32 %v3723, %v111
    %v5015 = vmul.f32 %v3723, %v112
    %v5016 = vmul.f32 %v3723, %v113
    %v5017 = vmul.f32 %v3723, %v114
    %v5018 = vmul.f32 %v3723, %v115
    %v5019 = vmul.f32 %v3723, %v116
    %5026 = vrot.lane.b32.xlu0 %v5014, 126
    %v5027 = vpop.permute.xlu0 %5026
    %5028 = vrot.lane.b32.xlu0 %v5015, 126
    %v5029 = vpop.permute.xlu0 %5028
    %5030 = vrot.lane.b32.xlu0 %v5016, 126
    %v5031 = vpop.permute.xlu0 %5030
    %5032 = vrot.lane.b32.xlu0 %v5017, 126
    %v5033 = vpop.permute.xlu0 %5032
    %5034 = vrot.lane.b32.xlu0 %v5018, 126
    %v5035 = vpop.permute.xlu0 %5034
    %5036 = vrot.lane.b32.xlu0 %v5019, 126
    %v5037 = vpop.permute.xlu0 %5036
    %v5044 = vadd.f32 %v5008, %v5027
    %v5045 = vadd.f32 %v5009, %v5029
    %v5046 = vadd.f32 %v5010, %v5031
    %v5047 = vadd.f32 %v5011, %v5033
    %v5048 = vadd.f32 %v5012, %v5035
    %v5049 = vadd.f32 %v5013, %v5037
    %v5050 = vmul.f32 %v3761, %v103
    %v5051 = vmul.f32 %v3761, %v104
    %v5052 = vmul.f32 %v3761, %v105
    %v5053 = vmul.f32 %v3761, %v106
    %v5054 = vmul.f32 %v3761, %v107
    %v5055 = vmul.f32 %v3761, %v108
    %v5056 = vadd.f32 %v5044, %v5050
    %v5057 = vadd.f32 %v5045, %v5051
    %v5058 = vadd.f32 %v5046, %v5052
    %v5059 = vadd.f32 %v5047, %v5053
    %v5060 = vadd.f32 %v5048, %v5054
    %v5061 = vadd.f32 %v5049, %v5055
    %v5062 = vmul.f32 %v3775, %v94
    %v5063 = vmul.f32 %v3775, %v95
    %v5064 = vmul.f32 %v3775, %v96
    %v5065 = vmul.f32 %v3775, %v97
    %v5066 = vmul.f32 %v3775, %v98
    %v5067 = vmul.f32 %v3775, %v99
    %5074 = vrot.lane.b32.xlu0 %v5062, 127
    %v5075 = vpop.permute.xlu0 %5074
    %5076 = vrot.lane.b32.xlu0 %v5063, 127
    %v5077 = vpop.permute.xlu0 %5076
    %5078 = vrot.lane.b32.xlu0 %v5064, 127
    %v5079 = vpop.permute.xlu0 %5078
    %5080 = vrot.lane.b32.xlu0 %v5065, 127
    %v5081 = vpop.permute.xlu0 %5080
    %5082 = vrot.lane.b32.xlu0 %v5066, 127
    %v5083 = vpop.permute.xlu0 %5082
    %5084 = vrot.lane.b32.xlu0 %v5067, 127
    %v5085 = vpop.permute.xlu0 %5084
    %v5092 = vadd.f32 %v5056, %v5075
    %v5093 = vadd.f32 %v5057, %v5077
    %v5094 = vadd.f32 %v5058, %v5079
    %v5095 = vadd.f32 %v5059, %v5081
    %v5096 = vadd.f32 %v5060, %v5083
    %v5097 = vadd.f32 %v5061, %v5085
    %v5098 = vmul.f32 %v3789, %v103
    %v5099 = vmul.f32 %v3789, %v104
    %v5100 = vmul.f32 %v3789, %v105
    %v5101 = vmul.f32 %v3789, %v106
    %v5102 = vmul.f32 %v3789, %v107
    %v5103 = vmul.f32 %v3789, %v108
    %5110 = vrot.lane.b32.xlu0 %v5098, 127
    %v5111 = vpop.permute.xlu0 %5110
    %5112 = vrot.lane.b32.xlu0 %v5099, 127
    %v5113 = vpop.permute.xlu0 %5112
    %5114 = vrot.lane.b32.xlu0 %v5100, 127
    %v5115 = vpop.permute.xlu0 %5114
    %5116 = vrot.lane.b32.xlu0 %v5101, 127
    %v5117 = vpop.permute.xlu0 %5116
    %5118 = vrot.lane.b32.xlu0 %v5102, 127
    %v5119 = vpop.permute.xlu0 %5118
    %5120 = vrot.lane.b32.xlu0 %v5103, 127
    %v5121 = vpop.permute.xlu0 %5120
    %v5128 = vadd.f32 %v5092, %v5111
    %v5129 = vadd.f32 %v5093, %v5113
    %v5130 = vadd.f32 %v5094, %v5115
    %v5131 = vadd.f32 %v5095, %v5117
    %v5132 = vadd.f32 %v5096, %v5119
    %v5133 = vadd.f32 %v5097, %v5121
    %v5134 = vmul.f32 %v3827, %v94
    %v5135 = vmul.f32 %v3827, %v95
    %v5136 = vmul.f32 %v3827, %v96
    %v5137 = vmul.f32 %v3827, %v97
    %v5138 = vmul.f32 %v3827, %v98
    %v5139 = vmul.f32 %v3827, %v99
    %5146 = vrot.lane.b32.xlu0 %v5134, 126
    %v5147 = vpop.permute.xlu0 %5146
    %5148 = vrot.lane.b32.xlu0 %v5135, 126
    %v5149 = vpop.permute.xlu0 %5148
    %5150 = vrot.lane.b32.xlu0 %v5136, 126
    %v5151 = vpop.permute.xlu0 %5150
    %5152 = vrot.lane.b32.xlu0 %v5137, 126
    %v5153 = vpop.permute.xlu0 %5152
    %5154 = vrot.lane.b32.xlu0 %v5138, 126
    %v5155 = vpop.permute.xlu0 %5154
    %5156 = vrot.lane.b32.xlu0 %v5139, 126
    %v5157 = vpop.permute.xlu0 %5156
    %v5164 = vadd.f32 %v5128, %v5147
    %v5165 = vadd.f32 %v5129, %v5149
    %v5166 = vadd.f32 %v5130, %v5151
    %v5167 = vadd.f32 %v5131, %v5153
    %v5168 = vadd.f32 %v5132, %v5155
    %v5169 = vadd.f32 %v5133, %v5157
    %v5170 = vmul.f32 %v3865, %v120
    %v5171 = vmul.f32 %v3865, %v121
    %v5172 = vmul.f32 %v3865, %v122
    %v5173 = vmul.f32 %v3865, %v123
    %v5174 = vmul.f32 %v3865, %v124
    %v5175 = vmul.f32 %v3865, %v125
    %v5176 = vadd.f32 %v5164, %v5170
    %v5177 = vadd.f32 %v5165, %v5171
    %v5178 = vadd.f32 %v5166, %v5172
    %v5179 = vadd.f32 %v5167, %v5173
    %v5180 = vadd.f32 %v5168, %v5174
    %v5181 = vadd.f32 %v5169, %v5175
    %v5182 = vmul.f32 %v3879, %v112
    %v5183 = vmul.f32 %v3879, %v113
    %v5184 = vmul.f32 %v3879, %v114
    %v5185 = vmul.f32 %v3879, %v115
    %v5186 = vmul.f32 %v3879, %v116
    %v5187 = vmul.f32 %v3879, %v117
    %5194 = vrot.lane.b32.xlu0 %v5182, 127
    %v5195 = vpop.permute.xlu0 %5194
    %5196 = vrot.lane.b32.xlu0 %v5183, 127
    %v5197 = vpop.permute.xlu0 %5196
    %5198 = vrot.lane.b32.xlu0 %v5184, 127
    %v5199 = vpop.permute.xlu0 %5198
    %5200 = vrot.lane.b32.xlu0 %v5185, 127
    %v5201 = vpop.permute.xlu0 %5200
    %5202 = vrot.lane.b32.xlu0 %v5186, 127
    %v5203 = vpop.permute.xlu0 %5202
    %5204 = vrot.lane.b32.xlu0 %v5187, 127
    %v5205 = vpop.permute.xlu0 %5204
    %v5212 = vadd.f32 %v5176, %v5195
    %v5213 = vadd.f32 %v5177, %v5197
    %v5214 = vadd.f32 %v5178, %v5199
    %v5215 = vadd.f32 %v5179, %v5201
    %v5216 = vadd.f32 %v5180, %v5203
    %v5217 = vadd.f32 %v5181, %v5205
    %v5218 = vmul.f32 %v3893, %v120
    %v5219 = vmul.f32 %v3893, %v121
    %v5220 = vmul.f32 %v3893, %v122
    %v5221 = vmul.f32 %v3893, %v123
    %v5222 = vmul.f32 %v3893, %v124
    %v5223 = vmul.f32 %v3893, %v125
    %5230 = vrot.lane.b32.xlu0 %v5218, 127
    %v5231 = vpop.permute.xlu0 %5230
    %5232 = vrot.lane.b32.xlu0 %v5219, 127
    %v5233 = vpop.permute.xlu0 %5232
    %5234 = vrot.lane.b32.xlu0 %v5220, 127
    %v5235 = vpop.permute.xlu0 %5234
    %5236 = vrot.lane.b32.xlu0 %v5221, 127
    %v5237 = vpop.permute.xlu0 %5236
    %5238 = vrot.lane.b32.xlu0 %v5222, 127
    %v5239 = vpop.permute.xlu0 %5238
    %5240 = vrot.lane.b32.xlu0 %v5223, 127
    %v5241 = vpop.permute.xlu0 %5240
    %v5248 = vadd.f32 %v5212, %v5231
    %v5249 = vadd.f32 %v5213, %v5233
    %v5250 = vadd.f32 %v5214, %v5235
    %v5251 = vadd.f32 %v5215, %v5237
    %v5252 = vadd.f32 %v5216, %v5239
    %v5253 = vadd.f32 %v5217, %v5241
    %v5254 = vmul.f32 %v3931, %v112
    %v5255 = vmul.f32 %v3931, %v113
    %v5256 = vmul.f32 %v3931, %v114
    %v5257 = vmul.f32 %v3931, %v115
    %v5258 = vmul.f32 %v3931, %v116
    %v5259 = vmul.f32 %v3931, %v117
    %5266 = vrot.lane.b32.xlu0 %v5254, 126
    %v5267 = vpop.permute.xlu0 %5266
    %5268 = vrot.lane.b32.xlu0 %v5255, 126
    %v5269 = vpop.permute.xlu0 %5268
    %5270 = vrot.lane.b32.xlu0 %v5256, 126
    %v5271 = vpop.permute.xlu0 %5270
    %5272 = vrot.lane.b32.xlu0 %v5257, 126
    %v5273 = vpop.permute.xlu0 %5272
    %5274 = vrot.lane.b32.xlu0 %v5258, 126
    %v5275 = vpop.permute.xlu0 %5274
    %5276 = vrot.lane.b32.xlu0 %v5259, 126
    %v5277 = vpop.permute.xlu0 %5276
    %v5284 = vadd.f32 %v5248, %v5267
    %v5285 = vadd.f32 %v5249, %v5269
    %v5286 = vadd.f32 %v5250, %v5271
    %v5287 = vadd.f32 %v5251, %v5273
    %v5288 = vadd.f32 %v5252, %v5275
    %v5289 = vadd.f32 %v5253, %v5277
    %v5290 = vmul.f32 %v3969, %v104
    %v5291 = vmul.f32 %v3969, %v105
    %v5292 = vmul.f32 %v3969, %v106
    %v5293 = vmul.f32 %v3969, %v107
    %v5294 = vmul.f32 %v3969, %v108
    %v5295 = vmul.f32 %v3969, %v109
    %v5296 = vadd.f32 %v5284, %v5290
    %v5297 = vadd.f32 %v5285, %v5291
    %v5298 = vadd.f32 %v5286, %v5292
    %v5299 = vadd.f32 %v5287, %v5293
    %v5300 = vadd.f32 %v5288, %v5294
    %v5301 = vadd.f32 %v5289, %v5295
    %v5302 = vmul.f32 %v3983, %v95
    %v5303 = vmul.f32 %v3983, %v96
    %v5304 = vmul.f32 %v3983, %v97
    %v5305 = vmul.f32 %v3983, %v98
    %v5306 = vmul.f32 %v3983, %v99
    %v5307 = vmul.f32 %v3983, %v100
    %5314 = vrot.lane.b32.xlu0 %v5302, 127
    %v5315 = vpop.permute.xlu0 %5314
    %5316 = vrot.lane.b32.xlu0 %v5303, 127
    %v5317 = vpop.permute.xlu0 %5316
    %5318 = vrot.lane.b32.xlu0 %v5304, 127
    %v5319 = vpop.permute.xlu0 %5318
    %5320 = vrot.lane.b32.xlu0 %v5305, 127
    %v5321 = vpop.permute.xlu0 %5320
    %5322 = vrot.lane.b32.xlu0 %v5306, 127
    %v5323 = vpop.permute.xlu0 %5322
    %5324 = vrot.lane.b32.xlu0 %v5307, 127
    %v5325 = vpop.permute.xlu0 %5324
    %v5332 = vadd.f32 %v5296, %v5315
    %v5333 = vadd.f32 %v5297, %v5317
    %v5334 = vadd.f32 %v5298, %v5319
    %v5335 = vadd.f32 %v5299, %v5321
    %v5336 = vadd.f32 %v5300, %v5323
    %v5337 = vadd.f32 %v5301, %v5325
    %v5338 = vmul.f32 %v3997, %v104
    %v5339 = vmul.f32 %v3997, %v105
    %v5340 = vmul.f32 %v3997, %v106
    %v5341 = vmul.f32 %v3997, %v107
    %v5342 = vmul.f32 %v3997, %v108
    %v5343 = vmul.f32 %v3997, %v109
    %5350 = vrot.lane.b32.xlu0 %v5338, 127
    %v5351 = vpop.permute.xlu0 %5350
    %5352 = vrot.lane.b32.xlu0 %v5339, 127
    %v5353 = vpop.permute.xlu0 %5352
    %5354 = vrot.lane.b32.xlu0 %v5340, 127
    %v5355 = vpop.permute.xlu0 %5354
    %5356 = vrot.lane.b32.xlu0 %v5341, 127
    %v5357 = vpop.permute.xlu0 %5356
    %5358 = vrot.lane.b32.xlu0 %v5342, 127
    %v5359 = vpop.permute.xlu0 %5358
    %5360 = vrot.lane.b32.xlu0 %v5343, 127
    %v5361 = vpop.permute.xlu0 %5360
    %v5368 = vadd.f32 %v5332, %v5351
    %v5369 = vadd.f32 %v5333, %v5353
    %v5370 = vadd.f32 %v5334, %v5355
    %v5371 = vadd.f32 %v5335, %v5357
    %v5372 = vadd.f32 %v5336, %v5359
    %v5373 = vadd.f32 %v5337, %v5361
    %v5374 = vmul.f32 %v4035, %v95
    %v5375 = vmul.f32 %v4035, %v96
    %v5376 = vmul.f32 %v4035, %v97
    %v5377 = vmul.f32 %v4035, %v98
    %v5378 = vmul.f32 %v4035, %v99
    %v5379 = vmul.f32 %v4035, %v100
    %5386 = vrot.lane.b32.xlu0 %v5374, 126
    %v5387 = vpop.permute.xlu0 %5386
    %5388 = vrot.lane.b32.xlu0 %v5375, 126
    %v5389 = vpop.permute.xlu0 %5388
    %5390 = vrot.lane.b32.xlu0 %v5376, 126
    %v5391 = vpop.permute.xlu0 %5390
    %5392 = vrot.lane.b32.xlu0 %v5377, 126
    %v5393 = vpop.permute.xlu0 %5392
    %5394 = vrot.lane.b32.xlu0 %v5378, 126
    %v5395 = vpop.permute.xlu0 %5394
    %5396 = vrot.lane.b32.xlu0 %v5379, 126
    %v5397 = vpop.permute.xlu0 %5396
    %v5404 = vadd.f32 %v5368, %v5387
    %v5405 = vadd.f32 %v5369, %v5389
    %v5406 = vadd.f32 %v5370, %v5391
    %v5407 = vadd.f32 %v5371, %v5393
    %v5408 = vadd.f32 %v5372, %v5395
    %v5409 = vadd.f32 %v5373, %v5397
    %v5410 = vmax.f32 %v4930, %v5404
    %v5411 = vmax.f32 %v4931, %v5405
    %v5412 = vmax.f32 %v4932, %v5406
    %v5413 = vmax.f32 %v4933, %v5407
    %v5414 = vmax.f32 %v4934, %v5408
    %v5415 = vmax.f32 %v4935, %v5409
    %s5416 = sld [smem:[#allocation5 + $0x2]]
    %v5417 = vstv %s5416
    %v5418 = vadd.f32 %v5410, %v5417
    %v5419 = vadd.f32 %v5411, %v5417
    %v5420 = vadd.f32 %v5412, %v5417
    %v5421 = vadd.f32 %v5413, %v5417
    %v5422 = vadd.f32 %v5414, %v5417
    %v5423 = vadd.f32 %v5415, %v5417
    %v5424 = vmax.f32 %v5418, 0.0
    %v5425 = vmax.f32 %v5419, 0.0
    %v5426 = vmax.f32 %v5420, 0.0
    %v5427 = vmax.f32 %v5421, 0.0
    %v5428 = vmax.f32 %v5422, 0.0
    %v5429 = vmax.f32 %v5423, 0.0
    %s5430 = sld [smem:[#allocation7]]
    %v5431 = vstv %s5430
    %v5432 = vmul.f32 %v5431, %v1888
    %v5433 = vmul.f32 %v5431, %v1889
    %v5434 = vmul.f32 %v5431, %v1890
    %v5435 = vmul.f32 %v5431, %v1891
    %v5436 = vmul.f32 %v5431, %v1892
    %s5437 = sld [smem:[#allocation7 + $0x1]]
    %v5438 = vstv %s5437
    %v5439 = vmul.f32 %v5438, %v1888
    %v5440 = vmul.f32 %v5438, %v1889
    %v5441 = vmul.f32 %v5438, %v1890
    %v5442 = vmul.f32 %v5438, %v1891
    %v5443 = vmul.f32 %v5438, %v1892
    %5449 = vrot.lane.b32.xlu0 %v5439, 127
    %v5450 = vpop.permute.xlu0 %5449
    %5451 = vrot.lane.b32.xlu0 %v5440, 127
    %v5452 = vpop.permute.xlu0 %5451
    %5453 = vrot.lane.b32.xlu0 %v5441, 127
    %v5454 = vpop.permute.xlu0 %5453
    %5455 = vrot.lane.b32.xlu0 %v5442, 127
    %v5456 = vpop.permute.xlu0 %5455
    %5457 = vrot.lane.b32.xlu0 %v5443, 127
    %v5458 = vpop.permute.xlu0 %5457
    %v5464 = vadd.f32 %v5432, %v5450
    %v5465 = vadd.f32 %v5433, %v5452
    %v5466 = vadd.f32 %v5434, %v5454
    %v5467 = vadd.f32 %v5435, %v5456
    %v5468 = vadd.f32 %v5436, %v5458
    %s5469 = sld [smem:[#allocation7 + $0x2]]
    %v5470 = vstv %s5469
    %v5471 = vmul.f32 %v5470, %v1889
    %v5472 = vmul.f32 %v5470, %v1890
    %v5473 = vmul.f32 %v5470, %v1891
    %v5474 = vmul.f32 %v5470, %v1892
    %v5475 = vmul.f32 %v5470, %v1893
    %v5476 = vadd.f32 %v5464, %v5471
    %v5477 = vadd.f32 %v5465, %v5472
    %v5478 = vadd.f32 %v5466, %v5473
    %v5479 = vadd.f32 %v5467, %v5474
    %v5480 = vadd.f32 %v5468, %v5475
    %s5481 = sld [smem:[#allocation7 + $0x3]]
    %v5482 = vstv %s5481
    %v5483 = vmul.f32 %v5482, %v1889
    %v5484 = vmul.f32 %v5482, %v1890
    %v5485 = vmul.f32 %v5482, %v1891
    %v5486 = vmul.f32 %v5482, %v1892
    %v5487 = vmul.f32 %v5482, %v1893
    %5493 = vrot.lane.b32.xlu0 %v5483, 127
    %v5494 = vpop.permute.xlu0 %5493
    %5495 = vrot.lane.b32.xlu0 %v5484, 127
    %v5496 = vpop.permute.xlu0 %5495
    %5497 = vrot.lane.b32.xlu0 %v5485, 127
    %v5498 = vpop.permute.xlu0 %5497
    %5499 = vrot.lane.b32.xlu0 %v5486, 127
    %v5500 = vpop.permute.xlu0 %5499
    %5501 = vrot.lane.b32.xlu0 %v5487, 127
    %v5502 = vpop.permute.xlu0 %5501
    %v5508 = vadd.f32 %v5476, %v5494
    %v5509 = vadd.f32 %v5477, %v5496
    %v5510 = vadd.f32 %v5478, %v5498
    %v5511 = vadd.f32 %v5479, %v5500
    %v5512 = vadd.f32 %v5480, %v5502
    %s5513 = sld [smem:[#allocation7 + $0x4]]
    %v5514 = vstv %s5513
    %v5515 = vmul.f32 %v5514, %v3656
    %v5516 = vmul.f32 %v5514, %v3657
    %v5517 = vmul.f32 %v5514, %v3658
    %v5518 = vmul.f32 %v5514, %v3659
    %v5519 = vmul.f32 %v5514, %v3660
    %v5520 = vadd.f32 %v5508, %v5515
    %v5521 = vadd.f32 %v5509, %v5516
    %v5522 = vadd.f32 %v5510, %v5517
    %v5523 = vadd.f32 %v5511, %v5518
    %v5524 = vadd.f32 %v5512, %v5519
    %s5525 = sld [smem:[#allocation7 + $0x5]]
    %v5526 = vstv %s5525
    %v5527 = vmul.f32 %v5526, %v3656
    %v5528 = vmul.f32 %v5526, %v3657
    %v5529 = vmul.f32 %v5526, %v3658
    %v5530 = vmul.f32 %v5526, %v3659
    %v5531 = vmul.f32 %v5526, %v3660
    %5537 = vrot.lane.b32.xlu0 %v5527, 127
    %v5538 = vpop.permute.xlu0 %5537
    %5539 = vrot.lane.b32.xlu0 %v5528, 127
    %v5540 = vpop.permute.xlu0 %5539
    %5541 = vrot.lane.b32.xlu0 %v5529, 127
    %v5542 = vpop.permute.xlu0 %5541
    %5543 = vrot.lane.b32.xlu0 %v5530, 127
    %v5544 = vpop.permute.xlu0 %5543
    %5545 = vrot.lane.b32.xlu0 %v5531, 127
    %v5546 = vpop.permute.xlu0 %5545
    %v5552 = vadd.f32 %v5520, %v5538
    %v5553 = vadd.f32 %v5521, %v5540
    %v5554 = vadd.f32 %v5522, %v5542
    %v5555 = vadd.f32 %v5523, %v5544
    %v5556 = vadd.f32 %v5524, %v5546
    %s5557 = sld [smem:[#allocation7 + $0x6]]
    %v5558 = vstv %s5557
    %v5559 = vmul.f32 %v5558, %v3657
    %v5560 = vmul.f32 %v5558, %v3658
    %v5561 = vmul.f32 %v5558, %v3659
    %v5562 = vmul.f32 %v5558, %v3660
    %v5563 = vmul.f32 %v5558, %v3661
    %v5564 = vadd.f32 %v5552, %v5559
    %v5565 = vadd.f32 %v5553, %v5560
    %v5566 = vadd.f32 %v5554, %v5561
    %v5567 = vadd.f32 %v5555, %v5562
    %v5568 = vadd.f32 %v5556, %v5563
    %s5569 = sld [smem:[#allocation7 + $0x7]]
    %v5570 = vstv %s5569
    %v5571 = vmul.f32 %v5570, %v3657
    %v5572 = vmul.f32 %v5570, %v3658
    %v5573 = vmul.f32 %v5570, %v3659
    %v5574 = vmul.f32 %v5570, %v3660
    %v5575 = vmul.f32 %v5570, %v3661
    %5581 = vrot.lane.b32.xlu0 %v5571, 127
    %v5582 = vpop.permute.xlu0 %5581
    %5583 = vrot.lane.b32.xlu0 %v5572, 127
    %v5584 = vpop.permute.xlu0 %5583
    %5585 = vrot.lane.b32.xlu0 %v5573, 127
    %v5586 = vpop.permute.xlu0 %5585
    %5587 = vrot.lane.b32.xlu0 %v5574, 127
    %v5588 = vpop.permute.xlu0 %5587
    %5589 = vrot.lane.b32.xlu0 %v5575, 127
    %v5590 = vpop.permute.xlu0 %5589
    %v5596 = vadd.f32 %v5564, %v5582
    %v5597 = vadd.f32 %v5565, %v5584
    %v5598 = vadd.f32 %v5566, %v5586
    %v5599 = vadd.f32 %v5567, %v5588
    %v5600 = vadd.f32 %v5568, %v5590
    %s5601 = sld [smem:[#allocation7 + $0x8]]
    %v5602 = vstv %s5601
    %v5603 = vmul.f32 %v5602, %v5424
    %v5604 = vmul.f32 %v5602, %v5425
    %v5605 = vmul.f32 %v5602, %v5426
    %v5606 = vmul.f32 %v5602, %v5427
    %v5607 = vmul.f32 %v5602, %v5428
    %v5608 = vadd.f32 %v5596, %v5603
    %v5609 = vadd.f32 %v5597, %v5604
    %v5610 = vadd.f32 %v5598, %v5605
    %v5611 = vadd.f32 %v5599, %v5606
    %v5612 = vadd.f32 %v5600, %v5607
    %s5613 = sld [smem:[#allocation7 + $0x9]]
    %v5614 = vstv %s5613
    %v5615 = vmul.f32 %v5614, %v5424
    %v5616 = vmul.f32 %v5614, %v5425
    %v5617 = vmul.f32 %v5614, %v5426
    %v5618 = vmul.f32 %v5614, %v5427
    %v5619 = vmul.f32 %v5614, %v5428
    %5625 = vrot.lane.b32.xlu0 %v5615, 127
    %v5626 = vpop.permute.xlu0 %5625
    %5627 = vrot.lane.b32.xlu0 %v5616, 127
    %v5628 = vpop.permute.xlu0 %5627
    %5629 = vrot.lane.b32.xlu0 %v5617, 127
    %v5630 = vpop.permute.xlu0 %5629
    %5631 = vrot.lane.b32.xlu0 %v5618, 127
    %v5632 = vpop.permute.xlu0 %5631
    %5633 = vrot.lane.b32.xlu0 %v5619, 127
    %v5634 = vpop.permute.xlu0 %5633
    %v5640 = vadd.f32 %v5608, %v5626
    %v5641 = vadd.f32 %v5609, %v5628
    %v5642 = vadd.f32 %v5610, %v5630
    %v5643 = vadd.f32 %v5611, %v5632
    %v5644 = vadd.f32 %v5612, %v5634
    %s5645 = sld [smem:[#allocation7 + $0xa]]
    %v5646 = vstv %s5645
    %v5647 = vmul.f32 %v5646, %v5425
    %v5648 = vmul.f32 %v5646, %v5426
    %v5649 = vmul.f32 %v5646, %v5427
    %v5650 = vmul.f32 %v5646, %v5428
    %v5651 = vmul.f32 %v5646, %v5429
    %v5652 = vadd.f32 %v5640, %v5647
    %v5653 = vadd.f32 %v5641, %v5648
    %v5654 = vadd.f32 %v5642, %v5649
    %v5655 = vadd.f32 %v5643, %v5650
    %v5656 = vadd.f32 %v5644, %v5651
    %s5657 = sld [smem:[#allocation7 + $0xb]]
    %v5658 = vstv %s5657
    %v5659 = vmul.f32 %v5658, %v5425
    %v5660 = vmul.f32 %v5658, %v5426
    %v5661 = vmul.f32 %v5658, %v5427
    %v5662 = vmul.f32 %v5658, %v5428
    %v5663 = vmul.f32 %v5658, %v5429
    %5669 = vrot.lane.b32.xlu0 %v5659, 127
    %v5670 = vpop.permute.xlu0 %5669
    %5671 = vrot.lane.b32.xlu0 %v5660, 127
    %v5672 = vpop.permute.xlu0 %5671
    %5673 = vrot.lane.b32.xlu0 %v5661, 127
    %v5674 = vpop.permute.xlu0 %5673
    %5675 = vrot.lane.b32.xlu0 %v5662, 127
    %v5676 = vpop.permute.xlu0 %5675
    %5677 = vrot.lane.b32.xlu0 %v5663, 127
    %v5678 = vpop.permute.xlu0 %5677
    %v5684 = vadd.f32 %v5652, %v5670
    %v5685 = vadd.f32 %v5653, %v5672
    %v5686 = vadd.f32 %v5654, %v5674
    %v5687 = vadd.f32 %v5655, %v5676
    %v5688 = vadd.f32 %v5656, %v5678
    %s5689 = sld [smem:[#allocation8]]
    %v5690 = vstv %s5689
    %v5691 = vadd.f32 %v5684, %v5690
    %v5692 = vadd.f32 %v5685, %v5690
    %v5693 = vadd.f32 %v5686, %v5690
    %v5694 = vadd.f32 %v5687, %v5690
    %v5695 = vadd.f32 %v5688, %v5690
    %v5696 = vmax.f32 %v5691, 0.0
    %v5697 = vmax.f32 %v5692, 0.0
    %v5698 = vmax.f32 %v5693, 0.0
    %v5699 = vmax.f32 %v5694, 0.0
    %v5700 = vmax.f32 %v5695, 0.0
    %5705 = vrot.lane.b32.xlu0 %v5696, 127
    %v5706 = vpop.permute.xlu0 %5705
    %5707 = vrot.lane.b32.xlu0 %v5697, 127
    %v5708 = vpop.permute.xlu0 %5707
    %5709 = vrot.lane.b32.xlu0 %v5698, 127
    %v5710 = vpop.permute.xlu0 %5709
    %5711 = vrot.lane.b32.xlu0 %v5699, 127
    %v5712 = vpop.permute.xlu0 %5711
    %v5717 = vmax.f32 %v5696, %v5706
    %v5718 = vmax.f32 %v5697, %v5708
    %v5719 = vmax.f32 %v5698, %v5710
    %v5720 = vmax.f32 %v5699, %v5712
    %5722 = vrot.lane.b32.xlu0 %v5700, 127
    %v5723 = vpop.permute.xlu0 %5722
    %v5725 = vmax.f32 %v5700, %v5723
    %v5726 = vmax.f32 %v5717, %v5718
    %v5727 = vmax.f32 %v5718, %v5719
    %v5728 = vmax.f32 %v5719, %v5720
    %v5729 = vmax.f32 %v5720, %v5725
    %v5730 = vpack.c.bf16 %v5726, %v5726
    %v5731 = vld [vmem:[%s6] sm:$0x3]
    %v5732 = vpack.c.bf16 %v5727, %v5727
    %s5733 = scalar_lea.vmem %s6, 2
    %v5734 = vld [vmem:[%s5733] sm:$0x3]
    %vm5735 = vcmask 31744
    %v5737 = vsel %vm5735, %v5732, 0
    %vm5739 = vcmask 1041408
    %v5741 = vsel %vm5739, %v5734, 0
    %5743 = vmatpush.bf16.msra.mxu0 0
    %5744 = vmatpush.bf16.msra.mxu0 0
    %5745 = vmatpush.bf16.msra.mxu0 0
    %5746 = vmatpush.bf16.msra.mxu0 0
    %5747 = vmatpush.bf16.msra.mxu0 0
    %5748 = vmatpush.bf16.msra.mxu0 0
    %5749 = vmatpush.bf16.msra.mxu0 0
    %5750 = vmatpush.bf16.msra.mxu0 %v5741
    %5751 = vmatmul.bf16.gmra.mxu0 %v5737
    %v5752 = vpop.f32.mrf.mxu0
    %v5753 = vadd.f32 0.0, %v5752
    %v5754 = vpop.f32.mrf.mxu0
    %5755 = vdwg.mxu0
    %v5757 = vsel %vm5735, %v5730, 0
    %v5760 = vsel %vm5739, %v5731, 0
    %5762 = vmatpush.bf16.msra.mxu0 0
    %5763 = vmatpush.bf16.msra.mxu0 0
    %5764 = vmatpush.bf16.msra.mxu0 0
    %5765 = vmatpush.bf16.msra.mxu0 0
    %5766 = vmatpush.bf16.msra.mxu0 0
    %5767 = vmatpush.bf16.msra.mxu0 0
    %5768 = vmatpush.bf16.msra.mxu0 0
    %5769 = vmatpush.bf16.msra.mxu0 %v5760
    %5770 = vmatmul.bf16.gmra.mxu0 %v5757
    %v5771 = vpop.f32.mrf.mxu0
    %v5772 = vadd.f32 %v5753, %v5771
    %v5773 = vpop.f32.mrf.mxu0
    %5774 = vdwg.mxu0
    %v5775 = vpack.c.bf16 %v5728, %v5728
    %s5776 = scalar_lea.vmem %s6, 4
    %v5777 = vld [vmem:[%s5776] sm:$0x3]
    %v5779 = vsel %vm5735, %v5775, 0
    %v5782 = vsel %vm5739, %v5777, 0
    %5784 = vmatpush.bf16.msra.mxu0 0
    %5785 = vmatpush.bf16.msra.mxu0 0
    %5786 = vmatpush.bf16.msra.mxu0 0
    %5787 = vmatpush.bf16.msra.mxu0 0
    %5788 = vmatpush.bf16.msra.mxu0 0
    %5789 = vmatpush.bf16.msra.mxu0 0
    %5790 = vmatpush.bf16.msra.mxu0 0
    %5791 = vmatpush.bf16.msra.mxu0 %v5782
    %5792 = vmatmul.bf16.gmra.mxu0 %v5779
    %v5793 = vpop.f32.mrf.mxu0
    %v5794 = vadd.f32 0.0, %v5793
    %v5795 = vpop.f32.mrf.mxu0
    %5796 = vdwg.mxu0
    %v5797 = vadd.f32 %v5772, %v5794
    %v5798 = vpack.c.bf16 %v5729, %v5729
    %s5799 = scalar_lea.vmem %s6, 6
    %v5800 = vld [vmem:[%s5799] sm:$0x3]
    %v5802 = vsel %vm5735, %v5798, 0
    %v5805 = vsel %vm5739, %v5800, 0
    %5807 = vmatpush.bf16.msra.mxu0 0
    %5808 = vmatpush.bf16.msra.mxu0 0
    %5809 = vmatpush.bf16.msra.mxu0 0
    %5810 = vmatpush.bf16.msra.mxu0 0
    %5811 = vmatpush.bf16.msra.mxu0 0
    %5812 = vmatpush.bf16.msra.mxu0 0
    %5813 = vmatpush.bf16.msra.mxu0 0
    %5814 = vmatpush.bf16.msra.mxu0 %v5805
    %5815 = vmatmul.bf16.gmra.mxu0 %v5802
    %v5816 = vpop.f32.mrf.mxu0
    %v5817 = vadd.f32 0.0, %v5816
    %v5818 = vpop.f32.mrf.mxu0
    %5819 = vdwg.mxu0
    %v5820 = vadd.f32 %v5797, %v5817
    %s5821 = sld [smem:[#allocation7 + $0x80]]
    %v5822 = vstv %s5821
    %v5823 = vmul.f32 %v5822, %v1888
    %v5824 = vmul.f32 %v5822, %v1889
    %v5825 = vmul.f32 %v5822, %v1890
    %v5826 = vmul.f32 %v5822, %v1891
    %v5827 = vmul.f32 %v5822, %v1892
    %s5828 = sld [smem:[#allocation7 + $0x81]]
    %v5829 = vstv %s5828
    %v5830 = vmul.f32 %v5829, %v1888
    %v5831 = vmul.f32 %v5829, %v1889
    %v5832 = vmul.f32 %v5829, %v1890
    %v5833 = vmul.f32 %v5829, %v1891
    %v5834 = vmul.f32 %v5829, %v1892
    %5840 = vrot.lane.b32.xlu0 %v5830, 127
    %v5841 = vpop.permute.xlu0 %5840
    %5842 = vrot.lane.b32.xlu0 %v5831, 127
    %v5843 = vpop.permute.xlu0 %5842
    %5844 = vrot.lane.b32.xlu0 %v5832, 127
    %v5845 = vpop.permute.xlu0 %5844
    %5846 = vrot.lane.b32.xlu0 %v5833, 127
    %v5847 = vpop.permute.xlu0 %5846
    %5848 = vrot.lane.b32.xlu0 %v5834, 127
    %v5849 = vpop.permute.xlu0 %5848
    %v5855 = vadd.f32 %v5823, %v5841
    %v5856 = vadd.f32 %v5824, %v5843
    %v5857 = vadd.f32 %v5825, %v5845
    %v5858 = vadd.f32 %v5826, %v5847
    %v5859 = vadd.f32 %v5827, %v5849
    %s5860 = sld [smem:[#allocation7 + $0x82]]
    %v5861 = vstv %s5860
    %v5862 = vmul.f32 %v5861, %v1889
    %v5863 = vmul.f32 %v5861, %v1890
    %v5864 = vmul.f32 %v5861, %v1891
    %v5865 = vmul.f32 %v5861, %v1892
    %v5866 = vmul.f32 %v5861, %v1893
    %v5867 = vadd.f32 %v5855, %v5862
    %v5868 = vadd.f32 %v5856, %v5863
    %v5869 = vadd.f32 %v5857, %v5864
    %v5870 = vadd.f32 %v5858, %v5865
    %v5871 = vadd.f32 %v5859, %v5866
    %s5872 = sld [smem:[#allocation7 + $0x83]]
    %v5873 = vstv %s5872
    %v5874 = vmul.f32 %v5873, %v1889
    %v5875 = vmul.f32 %v5873, %v1890
    %v5876 = vmul.f32 %v5873, %v1891
    %v5877 = vmul.f32 %v5873, %v1892
    %v5878 = vmul.f32 %v5873, %v1893
    %5884 = vrot.lane.b32.xlu0 %v5874, 127
    %v5885 = vpop.permute.xlu0 %5884
    %5886 = vrot.lane.b32.xlu0 %v5875, 127
    %v5887 = vpop.permute.xlu0 %5886
    %5888 = vrot.lane.b32.xlu0 %v5876, 127
    %v5889 = vpop.permute.xlu0 %5888
    %5890 = vrot.lane.b32.xlu0 %v5877, 127
    %v5891 = vpop.permute.xlu0 %5890
    %5892 = vrot.lane.b32.xlu0 %v5878, 127
    %v5893 = vpop.permute.xlu0 %5892
    %v5899 = vadd.f32 %v5867, %v5885
    %v5900 = vadd.f32 %v5868, %v5887
    %v5901 = vadd.f32 %v5869, %v5889
    %v5902 = vadd.f32 %v5870, %v5891
    %v5903 = vadd.f32 %v5871, %v5893
    %s5904 = sld [smem:[#allocation7 + $0x84]]
    %v5905 = vstv %s5904
    %v5906 = vmul.f32 %v5905, %v3656
    %v5907 = vmul.f32 %v5905, %v3657
    %v5908 = vmul.f32 %v5905, %v3658
    %v5909 = vmul.f32 %v5905, %v3659
    %v5910 = vmul.f32 %v5905, %v3660
    %v5911 = vadd.f32 %v5899, %v5906
    %v5912 = vadd.f32 %v5900, %v5907
    %v5913 = vadd.f32 %v5901, %v5908
    %v5914 = vadd.f32 %v5902, %v5909
    %v5915 = vadd.f32 %v5903, %v5910
    %s5916 = sld [smem:[#allocation7 + $0x85]]
    %v5917 = vstv %s5916
    %v5918 = vmul.f32 %v5917, %v3656
    %v5919 = vmul.f32 %v5917, %v3657
    %v5920 = vmul.f32 %v5917, %v3658
    %v5921 = vmul.f32 %v5917, %v3659
    %v5922 = vmul.f32 %v5917, %v3660
    %5928 = vrot.lane.b32.xlu0 %v5918, 127
    %v5929 = vpop.permute.xlu0 %5928
    %5930 = vrot.lane.b32.xlu0 %v5919, 127
    %v5931 = vpop.permute.xlu0 %5930
    %5932 = vrot.lane.b32.xlu0 %v5920, 127
    %v5933 = vpop.permute.xlu0 %5932
    %5934 = vrot.lane.b32.xlu0 %v5921, 127
    %v5935 = vpop.permute.xlu0 %5934
    %5936 = vrot.lane.b32.xlu0 %v5922, 127
    %v5937 = vpop.permute.xlu0 %5936
    %v5943 = vadd.f32 %v5911, %v5929
    %v5944 = vadd.f32 %v5912, %v5931
    %v5945 = vadd.f32 %v5913, %v5933
    %v5946 = vadd.f32 %v5914, %v5935
    %v5947 = vadd.f32 %v5915, %v5937
    %s5948 = sld [smem:[#allocation7 + $0x86]]
    %v5949 = vstv %s5948
    %v5950 = vmul.f32 %v5949, %v3657
    %v5951 = vmul.f32 %v5949, %v3658
    %v5952 = vmul.f32 %v5949, %v3659
    %v5953 = vmul.f32 %v5949, %v3660
    %v5954 = vmul.f32 %v5949, %v3661
    %v5955 = vadd.f32 %v5943, %v5950
    %v5956 = vadd.f32 %v5944, %v5951
    %v5957 = vadd.f32 %v5945, %v5952
    %v5958 = vadd.f32 %v5946, %v5953
    %v5959 = vadd.f32 %v5947, %v5954
    %s5960 = sld [smem:[#allocation7 + $0x87]]
    %v5961 = vstv %s5960
    %v5962 = vmul.f32 %v5961, %v3657
    %v5963 = vmul.f32 %v5961, %v3658
    %v5964 = vmul.f32 %v5961, %v3659
    %v5965 = vmul.f32 %v5961, %v3660
    %v5966 = vmul.f32 %v5961, %v3661
    %5972 = vrot.lane.b32.xlu0 %v5962, 127
    %v5973 = vpop.permute.xlu0 %5972
    %5974 = vrot.lane.b32.xlu0 %v5963, 127
    %v5975 = vpop.permute.xlu0 %5974
    %5976 = vrot.lane.b32.xlu0 %v5964, 127
    %v5977 = vpop.permute.xlu0 %5976
    %5978 = vrot.lane.b32.xlu0 %v5965, 127
    %v5979 = vpop.permute.xlu0 %5978
    %5980 = vrot.lane.b32.xlu0 %v5966, 127
    %v5981 = vpop.permute.xlu0 %5980
    %v5987 = vadd.f32 %v5955, %v5973
    %v5988 = vadd.f32 %v5956, %v5975
    %v5989 = vadd.f32 %v5957, %v5977
    %v5990 = vadd.f32 %v5958, %v5979
    %v5991 = vadd.f32 %v5959, %v5981
    %s5992 = sld [smem:[#allocation7 + $0x88]]
    %v5993 = vstv %s5992
    %v5994 = vmul.f32 %v5993, %v5424
    %v5995 = vmul.f32 %v5993, %v5425
    %v5996 = vmul.f32 %v5993, %v5426
    %v5997 = vmul.f32 %v5993, %v5427
    %v5998 = vmul.f32 %v5993, %v5428
    %v5999 = vadd.f32 %v5987, %v5994
    %v6000 = vadd.f32 %v5988, %v5995
    %v6001 = vadd.f32 %v5989, %v5996
    %v6002 = vadd.f32 %v5990, %v5997
    %v6003 = vadd.f32 %v5991, %v5998
    %s6004 = sld [smem:[#allocation7 + $0x89]]
    %v6005 = vstv %s6004
    %v6006 = vmul.f32 %v6005, %v5424
    %v6007 = vmul.f32 %v6005, %v5425
    %v6008 = vmul.f32 %v6005, %v5426
    %v6009 = vmul.f32 %v6005, %v5427
    %v6010 = vmul.f32 %v6005, %v5428
    %6016 = vrot.lane.b32.xlu0 %v6006, 127
    %v6017 = vpop.permute.xlu0 %6016
    %6018 = vrot.lane.b32.xlu0 %v6007, 127
    %v6019 = vpop.permute.xlu0 %6018
    %6020 = vrot.lane.b32.xlu0 %v6008, 127
    %v6021 = vpop.permute.xlu0 %6020
    %6022 = vrot.lane.b32.xlu0 %v6009, 127
    %v6023 = vpop.permute.xlu0 %6022
    %6024 = vrot.lane.b32.xlu0 %v6010, 127
    %v6025 = vpop.permute.xlu0 %6024
    %v6031 = vadd.f32 %v5999, %v6017
    %v6032 = vadd.f32 %v6000, %v6019
    %v6033 = vadd.f32 %v6001, %v6021
    %v6034 = vadd.f32 %v6002, %v6023
    %v6035 = vadd.f32 %v6003, %v6025
    %s6036 = sld [smem:[#allocation7 + $0x8a]]
    %v6037 = vstv %s6036
    %v6038 = vmul.f32 %v6037, %v5425
    %v6039 = vmul.f32 %v6037, %v5426
    %v6040 = vmul.f32 %v6037, %v5427
    %v6041 = vmul.f32 %v6037, %v5428
    %v6042 = vmul.f32 %v6037, %v5429
    %v6043 = vadd.f32 %v6031, %v6038
    %v6044 = vadd.f32 %v6032, %v6039
    %v6045 = vadd.f32 %v6033, %v6040
    %v6046 = vadd.f32 %v6034, %v6041
    %v6047 = vadd.f32 %v6035, %v6042
    %s6048 = sld [smem:[#allocation7 + $0x8b]]
    %v6049 = vstv %s6048
    %v6050 = vmul.f32 %v6049, %v5425
    %v6051 = vmul.f32 %v6049, %v5426
    %v6052 = vmul.f32 %v6049, %v5427
    %v6053 = vmul.f32 %v6049, %v5428
    %v6054 = vmul.f32 %v6049, %v5429
    %6060 = vrot.lane.b32.xlu0 %v6050, 127
    %v6061 = vpop.permute.xlu0 %6060
    %6062 = vrot.lane.b32.xlu0 %v6051, 127
    %v6063 = vpop.permute.xlu0 %6062
    %6064 = vrot.lane.b32.xlu0 %v6052, 127
    %v6065 = vpop.permute.xlu0 %6064
    %6066 = vrot.lane.b32.xlu0 %v6053, 127
    %v6067 = vpop.permute.xlu0 %6066
    %6068 = vrot.lane.b32.xlu0 %v6054, 127
    %v6069 = vpop.permute.xlu0 %6068
    %v6075 = vadd.f32 %v6043, %v6061
    %v6076 = vadd.f32 %v6044, %v6063
    %v6077 = vadd.f32 %v6045, %v6065
    %v6078 = vadd.f32 %v6046, %v6067
    %v6079 = vadd.f32 %v6047, %v6069
    %s6080 = sld [smem:[#allocation8 + $0x1]]
    %v6081 = vstv %s6080
    %v6082 = vadd.f32 %v6075, %v6081
    %v6083 = vadd.f32 %v6076, %v6081
    %v6084 = vadd.f32 %v6077, %v6081
    %v6085 = vadd.f32 %v6078, %v6081
    %v6086 = vadd.f32 %v6079, %v6081
    %v6087 = vmax.f32 %v6082, 0.0
    %v6088 = vmax.f32 %v6083, 0.0
    %v6089 = vmax.f32 %v6084, 0.0
    %v6090 = vmax.f32 %v6085, 0.0
    %v6091 = vmax.f32 %v6086, 0.0
    %6096 = vrot.lane.b32.xlu0 %v6087, 127
    %v6097 = vpop.permute.xlu0 %6096
    %6098 = vrot.lane.b32.xlu0 %v6088, 127
    %v6099 = vpop.permute.xlu0 %6098
    %6100 = vrot.lane.b32.xlu0 %v6089, 127
    %v6101 = vpop.permute.xlu0 %6100
    %6102 = vrot.lane.b32.xlu0 %v6090, 127
    %v6103 = vpop.permute.xlu0 %6102
    %v6108 = vmax.f32 %v6087, %v6097
    %v6109 = vmax.f32 %v6088, %v6099
    %v6110 = vmax.f32 %v6089, %v6101
    %v6111 = vmax.f32 %v6090, %v6103
    %6113 = vrot.lane.b32.xlu0 %v6091, 127
    %v6114 = vpop.permute.xlu0 %6113
    %v6116 = vmax.f32 %v6091, %v6114
    %v6117 = vmax.f32 %v6108, %v6109
    %v6118 = vmax.f32 %v6109, %v6110
    %v6119 = vmax.f32 %v6110, %v6111
    %v6120 = vmax.f32 %v6111, %v6116
    %v6121 = vpack.c.bf16 %v6117, %v6117
    %s6122 = scalar_lea.vmem %s6, 8
    %v6123 = vld [vmem:[%s6122] sm:$0x3]
    %v6125 = vsel %vm5735, %v6121, 0
    %v6128 = vsel %vm5739, %v6123, 0
    %6130 = vmatpush.bf16.msra.mxu0 0
    %6131 = vmatpush.bf16.msra.mxu0 0
    %6132 = vmatpush.bf16.msra.mxu0 0
    %6133 = vmatpush.bf16.msra.mxu0 0
    %6134 = vmatpush.bf16.msra.mxu0 0
    %6135 = vmatpush.bf16.msra.mxu0 0
    %6136 = vmatpush.bf16.msra.mxu0 0
    %6137 = vmatpush.bf16.msra.mxu0 %v6128
    %6138 = vmatmul.bf16.gmra.mxu0 %v6125
    %v6139 = vpop.f32.mrf.mxu0
    %v6140 = vadd.f32 0.0, %v6139
    %v6141 = vpop.f32.mrf.mxu0
    %6142 = vdwg.mxu0
    %v6143 = vadd.f32 %v5820, %v6140
    %v6144 = vpack.c.bf16 %v6118, %v6118
    %s6145 = scalar_lea.vmem %s6, 10
    %v6146 = vld [vmem:[%s6145] sm:$0x3]
    %v6148 = vsel %vm5735, %v6144, 0
    %v6151 = vsel %vm5739, %v6146, 0
    %6153 = vmatpush.bf16.msra.mxu0 0
    %6154 = vmatpush.bf16.msra.mxu0 0
    %6155 = vmatpush.bf16.msra.mxu0 0
    %6156 = vmatpush.bf16.msra.mxu0 0
    %6157 = vmatpush.bf16.msra.mxu0 0
    %6158 = vmatpush.bf16.msra.mxu0 0
    %6159 = vmatpush.bf16.msra.mxu0 0
    %6160 = vmatpush.bf16.msra.mxu0 %v6151
    %6161 = vmatmul.bf16.gmra.mxu0 %v6148
    %v6162 = vpop.f32.mrf.mxu0
    %v6163 = vadd.f32 0.0, %v6162
    %v6164 = vpop.f32.mrf.mxu0
    %6165 = vdwg.mxu0
    %v6166 = vadd.f32 %v6143, %v6163
    %v6167 = vpack.c.bf16 %v6119, %v6119
    %s6168 = scalar_lea.vmem %s6, 12
    %v6169 = vld [vmem:[%s6168] sm:$0x3]
    %v6171 = vsel %vm5735, %v6167, 0
    %v6174 = vsel %vm5739, %v6169, 0
    %6176 = vmatpush.bf16.msra.mxu0 0
    %6177 = vmatpush.bf16.msra.mxu0 0
    %6178 = vmatpush.bf16.msra.mxu0 0
    %6179 = vmatpush.bf16.msra.mxu0 0
    %6180 = vmatpush.bf16.msra.mxu0 0
    %6181 = vmatpush.bf16.msra.mxu0 0
    %6182 = vmatpush.bf16.msra.mxu0 0
    %6183 = vmatpush.bf16.msra.mxu0 %v6174
    %6184 = vmatmul.bf16.gmra.mxu0 %v6171
    %v6185 = vpop.f32.mrf.mxu0
    %v6186 = vadd.f32 0.0, %v6185
    %v6187 = vpop.f32.mrf.mxu0
    %6188 = vdwg.mxu0
    %v6189 = vadd.f32 %v6166, %v6186
    %v6190 = vpack.c.bf16 %v6120, %v6120
    %s6191 = scalar_lea.vmem %s6, 14
    %v6192 = vld [vmem:[%s6191] sm:$0x3]
    %v6194 = vsel %vm5735, %v6190, 0
    %v6197 = vsel %vm5739, %v6192, 0
    %6199 = vmatpush.bf16.msra.mxu0 0
    %6200 = vmatpush.bf16.msra.mxu0 0
    %6201 = vmatpush.bf16.msra.mxu0 0
    %6202 = vmatpush.bf16.msra.mxu0 0
    %6203 = vmatpush.bf16.msra.mxu0 0
    %6204 = vmatpush.bf16.msra.mxu0 0
    %6205 = vmatpush.bf16.msra.mxu0 0
    %6206 = vmatpush.bf16.msra.mxu0 %v6197
    %6207 = vmatmul.bf16.gmra.mxu0 %v6194
    %v6208 = vpop.f32.mrf.mxu0
    %v6209 = vadd.f32 0.0, %v6208
    %v6210 = vpop.f32.mrf.mxu0
    %6211 = vdwg.mxu0
    %v6212 = vadd.f32 %v6189, %v6209
    %s6213 = sld [smem:[#allocation7 + $0x100]]
    %v6214 = vstv %s6213
    %v6215 = vmul.f32 %v6214, %v1888
    %v6216 = vmul.f32 %v6214, %v1889
    %v6217 = vmul.f32 %v6214, %v1890
    %v6218 = vmul.f32 %v6214, %v1891
    %v6219 = vmul.f32 %v6214, %v1892
    %s6220 = sld [smem:[#allocation7 + $0x101]]
    %v6221 = vstv %s6220
    %v6222 = vmul.f32 %v6221, %v1888
    %v6223 = vmul.f32 %v6221, %v1889
    %v6224 = vmul.f32 %v6221, %v1890
    %v6225 = vmul.f32 %v6221, %v1891
    %v6226 = vmul.f32 %v6221, %v1892
    %6232 = vrot.lane.b32.xlu0 %v6222, 127
    %v6233 = vpop.permute.xlu0 %6232
    %6234 = vrot.lane.b32.xlu0 %v6223, 127
    %v6235 = vpop.permute.xlu0 %6234
    %6236 = vrot.lane.b32.xlu0 %v6224, 127
    %v6237 = vpop.permute.xlu0 %6236
    %6238 = vrot.lane.b32.xlu0 %v6225, 127
    %v6239 = vpop.permute.xlu0 %6238
    %6240 = vrot.lane.b32.xlu0 %v6226, 127
    %v6241 = vpop.permute.xlu0 %6240
    %v6247 = vadd.f32 %v6215, %v6233
    %v6248 = vadd.f32 %v6216, %v6235
    %v6249 = vadd.f32 %v6217, %v6237
    %v6250 = vadd.f32 %v6218, %v6239
    %v6251 = vadd.f32 %v6219, %v6241
    %s6252 = sld [smem:[#allocation7 + $0x102]]
    %v6253 = vstv %s6252
    %v6254 = vmul.f32 %v6253, %v1889
    %v6255 = vmul.f32 %v6253, %v1890
    %v6256 = vmul.f32 %v6253, %v1891
    %v6257 = vmul.f32 %v6253, %v1892
    %v6258 = vmul.f32 %v6253, %v1893
    %v6259 = vadd.f32 %v6247, %v6254
    %v6260 = vadd.f32 %v6248, %v6255
    %v6261 = vadd.f32 %v6249, %v6256
    %v6262 = vadd.f32 %v6250, %v6257
    %v6263 = vadd.f32 %v6251, %v6258
    %s6264 = sld [smem:[#allocation7 + $0x103]]
    %v6265 = vstv %s6264
    %v6266 = vmul.f32 %v6265, %v1889
    %v6267 = vmul.f32 %v6265, %v1890
    %v6268 = vmul.f32 %v6265, %v1891
    %v6269 = vmul.f32 %v6265, %v1892
    %v6270 = vmul.f32 %v6265, %v1893
    %6276 = vrot.lane.b32.xlu0 %v6266, 127
    %v6277 = vpop.permute.xlu0 %6276
    %6278 = vrot.lane.b32.xlu0 %v6267, 127
    %v6279 = vpop.permute.xlu0 %6278
    %6280 = vrot.lane.b32.xlu0 %v6268, 127
    %v6281 = vpop.permute.xlu0 %6280
    %6282 = vrot.lane.b32.xlu0 %v6269, 127
    %v6283 = vpop.permute.xlu0 %6282
    %6284 = vrot.lane.b32.xlu0 %v6270, 127
    %v6285 = vpop.permute.xlu0 %6284
    %v6291 = vadd.f32 %v6259, %v6277
    %v6292 = vadd.f32 %v6260, %v6279
    %v6293 = vadd.f32 %v6261, %v6281
    %v6294 = vadd.f32 %v6262, %v6283
    %v6295 = vadd.f32 %v6263, %v6285
    %s6296 = sld [smem:[#allocation7 + $0x104]]
    %v6297 = vstv %s6296
    %v6298 = vmul.f32 %v6297, %v3656
    %v6299 = vmul.f32 %v6297, %v3657
    %v6300 = vmul.f32 %v6297, %v3658
    %v6301 = vmul.f32 %v6297, %v3659
    %v6302 = vmul.f32 %v6297, %v3660
    %v6303 = vadd.f32 %v6291, %v6298
    %v6304 = vadd.f32 %v6292, %v6299
    %v6305 = vadd.f32 %v6293, %v6300
    %v6306 = vadd.f32 %v6294, %v6301
    %v6307 = vadd.f32 %v6295, %v6302
    %s6308 = sld [smem:[#allocation7 + $0x105]]
    %v6309 = vstv %s6308
    %v6310 = vmul.f32 %v6309, %v3656
    %v6311 = vmul.f32 %v6309, %v3657
    %v6312 = vmul.f32 %v6309, %v3658
    %v6313 = vmul.f32 %v6309, %v3659
    %v6314 = vmul.f32 %v6309, %v3660
    %6320 = vrot.lane.b32.xlu0 %v6310, 127
    %v6321 = vpop.permute.xlu0 %6320
    %6322 = vrot.lane.b32.xlu0 %v6311, 127
    %v6323 = vpop.permute.xlu0 %6322
    %6324 = vrot.lane.b32.xlu0 %v6312, 127
    %v6325 = vpop.permute.xlu0 %6324
    %6326 = vrot.lane.b32.xlu0 %v6313, 127
    %v6327 = vpop.permute.xlu0 %6326
    %6328 = vrot.lane.b32.xlu0 %v6314, 127
    %v6329 = vpop.permute.xlu0 %6328
    %v6335 = vadd.f32 %v6303, %v6321
    %v6336 = vadd.f32 %v6304, %v6323
    %v6337 = vadd.f32 %v6305, %v6325
    %v6338 = vadd.f32 %v6306, %v6327
    %v6339 = vadd.f32 %v6307, %v6329
    %s6340 = sld [smem:[#allocation7 + $0x106]]
    %v6341 = vstv %s6340
    %v6342 = vmul.f32 %v6341, %v3657
    %v6343 = vmul.f32 %v6341, %v3658
    %v6344 = vmul.f32 %v6341, %v3659
    %v6345 = vmul.f32 %v6341, %v3660
    %v6346 = vmul.f32 %v6341, %v3661
    %v6347 = vadd.f32 %v6335, %v6342
    %v6348 = vadd.f32 %v6336, %v6343
    %v6349 = vadd.f32 %v6337, %v6344
    %v6350 = vadd.f32 %v6338, %v6345
    %v6351 = vadd.f32 %v6339, %v6346
    %s6352 = sld [smem:[#allocation7 + $0x107]]
    %v6353 = vstv %s6352
    %v6354 = vmul.f32 %v6353, %v3657
    %v6355 = vmul.f32 %v6353, %v3658
    %v6356 = vmul.f32 %v6353, %v3659
    %v6357 = vmul.f32 %v6353, %v3660
    %v6358 = vmul.f32 %v6353, %v3661
    %6364 = vrot.lane.b32.xlu0 %v6354, 127
    %v6365 = vpop.permute.xlu0 %6364
    %6366 = vrot.lane.b32.xlu0 %v6355, 127
    %v6367 = vpop.permute.xlu0 %6366
    %6368 = vrot.lane.b32.xlu0 %v6356, 127
    %v6369 = vpop.permute.xlu0 %6368
    %6370 = vrot.lane.b32.xlu0 %v6357, 127
    %v6371 = vpop.permute.xlu0 %6370
    %6372 = vrot.lane.b32.xlu0 %v6358, 127
    %v6373 = vpop.permute.xlu0 %6372
    %v6379 = vadd.f32 %v6347, %v6365
    %v6380 = vadd.f32 %v6348, %v6367
    %v6381 = vadd.f32 %v6349, %v6369
    %v6382 = vadd.f32 %v6350, %v6371
    %v6383 = vadd.f32 %v6351, %v6373
    %s6384 = sld [smem:[#allocation7 + $0x108]]
    %v6385 = vstv %s6384
    %v6386 = vmul.f32 %v6385, %v5424
    %v6387 = vmul.f32 %v6385, %v5425
    %v6388 = vmul.f32 %v6385, %v5426
    %v6389 = vmul.f32 %v6385, %v5427
    %v6390 = vmul.f32 %v6385, %v5428
    %v6391 = vadd.f32 %v6379, %v6386
    %v6392 = vadd.f32 %v6380, %v6387
    %v6393 = vadd.f32 %v6381, %v6388
    %v6394 = vadd.f32 %v6382, %v6389
    %v6395 = vadd.f32 %v6383, %v6390
    %s6396 = sld [smem:[#allocation7 + $0x109]]
    %v6397 = vstv %s6396
    %v6398 = vmul.f32 %v6397, %v5424
    %v6399 = vmul.f32 %v6397, %v5425
    %v6400 = vmul.f32 %v6397, %v5426
    %v6401 = vmul.f32 %v6397, %v5427
    %v6402 = vmul.f32 %v6397, %v5428
    %6408 = vrot.lane.b32.xlu0 %v6398, 127
    %v6409 = vpop.permute.xlu0 %6408
    %6410 = vrot.lane.b32.xlu0 %v6399, 127
    %v6411 = vpop.permute.xlu0 %6410
    %6412 = vrot.lane.b32.xlu0 %v6400, 127
    %v6413 = vpop.permute.xlu0 %6412
    %6414 = vrot.lane.b32.xlu0 %v6401, 127
    %v6415 = vpop.permute.xlu0 %6414
    %6416 = vrot.lane.b32.xlu0 %v6402, 127
    %v6417 = vpop.permute.xlu0 %6416
    %v6423 = vadd.f32 %v6391, %v6409
    %v6424 = vadd.f32 %v6392, %v6411
    %v6425 = vadd.f32 %v6393, %v6413
    %v6426 = vadd.f32 %v6394, %v6415
    %v6427 = vadd.f32 %v6395, %v6417
    %s6428 = sld [smem:[#allocation7 + $0x10a]]
    %v6429 = vstv %s6428
    %v6430 = vmul.f32 %v6429, %v5425
    %v6431 = vmul.f32 %v6429, %v5426
    %v6432 = vmul.f32 %v6429, %v5427
    %v6433 = vmul.f32 %v6429, %v5428
    %v6434 = vmul.f32 %v6429, %v5429
    %v6435 = vadd.f32 %v6423, %v6430
    %v6436 = vadd.f32 %v6424, %v6431
    %v6437 = vadd.f32 %v6425, %v6432
    %v6438 = vadd.f32 %v6426, %v6433
    %v6439 = vadd.f32 %v6427, %v6434
    %s6440 = sld [smem:[#allocation7 + $0x10b]]
    %v6441 = vstv %s6440
    %v6442 = vmul.f32 %v6441, %v5425
    %v6443 = vmul.f32 %v6441, %v5426
    %v6444 = vmul.f32 %v6441, %v5427
    %v6445 = vmul.f32 %v6441, %v5428
    %v6446 = vmul.f32 %v6441, %v5429
    %6452 = vrot.lane.b32.xlu0 %v6442, 127
    %v6453 = vpop.permute.xlu0 %6452
    %6454 = vrot.lane.b32.xlu0 %v6443, 127
    %v6455 = vpop.permute.xlu0 %6454
    %6456 = vrot.lane.b32.xlu0 %v6444, 127
    %v6457 = vpop.permute.xlu0 %6456
    %6458 = vrot.lane.b32.xlu0 %v6445, 127
    %v6459 = vpop.permute.xlu0 %6458
    %6460 = vrot.lane.b32.xlu0 %v6446, 127
    %v6461 = vpop.permute.xlu0 %6460
    %v6467 = vadd.f32 %v6435, %v6453
    %v6468 = vadd.f32 %v6436, %v6455
    %v6469 = vadd.f32 %v6437, %v6457
    %v6470 = vadd.f32 %v6438, %v6459
    %v6471 = vadd.f32 %v6439, %v6461
    %s6472 = sld [smem:[#allocation8 + $0x2]]
    %v6473 = vstv %s6472
    %v6474 = vadd.f32 %v6467, %v6473
    %v6475 = vadd.f32 %v6468, %v6473
    %v6476 = vadd.f32 %v6469, %v6473
    %v6477 = vadd.f32 %v6470, %v6473
    %v6478 = vadd.f32 %v6471, %v6473
    %v6479 = vmax.f32 %v6474, 0.0
    %v6480 = vmax.f32 %v6475, 0.0
    %v6481 = vmax.f32 %v6476, 0.0
    %v6482 = vmax.f32 %v6477, 0.0
    %v6483 = vmax.f32 %v6478, 0.0
    %6488 = vrot.lane.b32.xlu0 %v6479, 127
    %v6489 = vpop.permute.xlu0 %6488
    %6490 = vrot.lane.b32.xlu0 %v6480, 127
    %v6491 = vpop.permute.xlu0 %6490
    %6492 = vrot.lane.b32.xlu0 %v6481, 127
    %v6493 = vpop.permute.xlu0 %6492
    %6494 = vrot.lane.b32.xlu0 %v6482, 127
    %v6495 = vpop.permute.xlu0 %6494
    %v6500 = vmax.f32 %v6479, %v6489
    %v6501 = vmax.f32 %v6480, %v6491
    %v6502 = vmax.f32 %v6481, %v6493
    %v6503 = vmax.f32 %v6482, %v6495
    %6505 = vrot.lane.b32.xlu0 %v6483, 127
    %v6506 = vpop.permute.xlu0 %6505
    %v6508 = vmax.f32 %v6483, %v6506
    %v6509 = vmax.f32 %v6500, %v6501
    %v6510 = vmax.f32 %v6501, %v6502
    %v6511 = vmax.f32 %v6502, %v6503
    %v6512 = vmax.f32 %v6503, %v6508
    %v6513 = vpack.c.bf16 %v6509, %v6509
    %s6514 = scalar_lea.vmem %s6, 16
    %v6515 = vld [vmem:[%s6514] sm:$0x3]
    %v6517 = vsel %vm5735, %v6513, 0
    %v6520 = vsel %vm5739, %v6515, 0
    %6522 = vmatpush.bf16.msra.mxu0 0
    %6523 = vmatpush.bf16.msra.mxu0 0
    %6524 = vmatpush.bf16.msra.mxu0 0
    %6525 = vmatpush.bf16.msra.mxu0 0
    %6526 = vmatpush.bf16.msra.mxu0 0
    %6527 = vmatpush.bf16.msra.mxu0 0
    %6528 = vmatpush.bf16.msra.mxu0 0
    %6529 = vmatpush.bf16.msra.mxu0 %v6520
    %6530 = vmatmul.bf16.gmra.mxu0 %v6517
    %v6531 = vpop.f32.mrf.mxu0
    %v6532 = vadd.f32 0.0, %v6531
    %v6533 = vpop.f32.mrf.mxu0
    %6534 = vdwg.mxu0
    %v6535 = vadd.f32 %v6212, %v6532
    %v6536 = vpack.c.bf16 %v6510, %v6510
    %s6537 = scalar_lea.vmem %s6, 18
    %v6538 = vld [vmem:[%s6537] sm:$0x3]
    %v6540 = vsel %vm5735, %v6536, 0
    %v6543 = vsel %vm5739, %v6538, 0
    %6545 = vmatpush.bf16.msra.mxu0 0
    %6546 = vmatpush.bf16.msra.mxu0 0
    %6547 = vmatpush.bf16.msra.mxu0 0
    %6548 = vmatpush.bf16.msra.mxu0 0
    %6549 = vmatpush.bf16.msra.mxu0 0
    %6550 = vmatpush.bf16.msra.mxu0 0
    %6551 = vmatpush.bf16.msra.mxu0 0
    %6552 = vmatpush.bf16.msra.mxu0 %v6543
    %6553 = vmatmul.bf16.gmra.mxu0 %v6540
    %v6554 = vpop.f32.mrf.mxu0
    %v6555 = vadd.f32 0.0, %v6554
    %v6556 = vpop.f32.mrf.mxu0
    %6557 = vdwg.mxu0
    %v6558 = vadd.f32 %v6535, %v6555
    %v6559 = vpack.c.bf16 %v6511, %v6511
    %s6560 = scalar_lea.vmem %s6, 20
    %v6561 = vld [vmem:[%s6560] sm:$0x3]
    %v6563 = vsel %vm5735, %v6559, 0
    %v6566 = vsel %vm5739, %v6561, 0
    %6568 = vmatpush.bf16.msra.mxu0 0
    %6569 = vmatpush.bf16.msra.mxu0 0
    %6570 = vmatpush.bf16.msra.mxu0 0
    %6571 = vmatpush.bf16.msra.mxu0 0
    %6572 = vmatpush.bf16.msra.mxu0 0
    %6573 = vmatpush.bf16.msra.mxu0 0
    %6574 = vmatpush.bf16.msra.mxu0 0
    %6575 = vmatpush.bf16.msra.mxu0 %v6566
    %6576 = vmatmul.bf16.gmra.mxu0 %v6563
    %v6577 = vpop.f32.mrf.mxu0
    %v6578 = vadd.f32 0.0, %v6577
    %v6579 = vpop.f32.mrf.mxu0
    %6580 = vdwg.mxu0
    %v6581 = vadd.f32 %v6558, %v6578
    %v6582 = vpack.c.bf16 %v6512, %v6512
    %s6583 = scalar_lea.vmem %s6, 22
    %v6584 = vld [vmem:[%s6583] sm:$0x3]
    %v6586 = vsel %vm5735, %v6582, 0
    %v6589 = vsel %vm5739, %v6584, 0
    %6591 = vmatpush.bf16.msra.mxu0 0
    %6592 = vmatpush.bf16.msra.mxu0 0
    %6593 = vmatpush.bf16.msra.mxu0 0
    %6594 = vmatpush.bf16.msra.mxu0 0
    %6595 = vmatpush.bf16.msra.mxu0 0
    %6596 = vmatpush.bf16.msra.mxu0 0
    %6597 = vmatpush.bf16.msra.mxu0 0
    %6598 = vmatpush.bf16.msra.mxu0 %v6589
    %6599 = vmatmul.bf16.gmra.mxu0 %v6586
    %v6600 = vpop.f32.mrf.mxu0
    %v6601 = vadd.f32 0.0, %v6600
    %v6602 = vpop.f32.mrf.mxu0
    %6603 = vdwg.mxu0
    %v6604 = vadd.f32 %v6581, %v6601
    %v6605 = vld [vmem:[%s7] sm:$0x1]
    %v6607 = vperm.slane %v6605, 0
    %v6609 = vadd.f32 %v6604, %v6607
    %v6610 = vld [vmem:[%s1] sm:$0x3]
    %v6611 = vmul.f32 %v6609, 0.5
    %v6612 = vmul.f32 %v6611, 1.442695
    %v6613 = vpow.pop %v6612
    %6615 = vrot.lane.b32.xlu0 %v6613, 96
    %v6616 = vpop.permute.xlu0 %6615
    %v6618 = vmul.f32 %v6610, %v6616
    %v6619 = vadd.f32 %v6609, %v6618
    %v6620 = vpack.c.bf16 %v6619, %v6619
    %v6621 = vld [vmem:[%s8] sm:$0xf]
    %v6622 = vld [vmem:[%s8 + $0x4] sm:$0xf]
    %v6623 = vld [vmem:[%s8 + $0x8] sm:$0xf]
    %v6624 = vld [vmem:[%s8 + $0xc] sm:$0xf]
    %v6625 = vld [vmem:[%s9] sm:$0x1]
    %v6627 = vperm.slane %v6625, 0
    %v6633 = vunpack.c.l.b16 %v6621
    %v6634 = vunpack.c.l.b16 %v6622
    %v6635 = vunpack.c.l.b16 %v6623
    %v6636 = vunpack.c.l.b16 %v6624
    %v6637 = vpack.c.b16 %v6634, %v6633
    %v6638 = vpack.c.b16 %v6636, %v6635
    %vm6641 = vcmask 261120
    %v6643 = vsel %vm6641, %v6620, 0
    %6645 = vmatpush.bf16.msra.mxu0 0
    %6646 = vmatpush.bf16.msra.mxu0 0
    %6647 = vmatpush.bf16.msra.mxu0 0
    %6648 = vmatpush.bf16.msra.mxu0 0
    %6649 = vmatpush.bf16.msra.mxu0 0
    %6650 = vmatpush.bf16.msra.mxu0 0
    %6651 = vmatpush.bf16.msra.mxu0 %v6638
    %6652 = vmatpush.bf16.msra.mxu0 %v6637
    %6653 = vmatmul.bf16.gmra.mxu0 %v6643
    %v6654 = vpop.f32.mrf.mxu0
    %v6655 = vadd.f32 %v6627, %v6654
    %v6656 = vpop.f32.mrf.mxu0
    %6657 = vdwg.mxu0
    %v6658 = vmax.f32 %v6655, 0.0
    %v6659 = vpack.c.bf16 %v6658, %v6658
    %v6660 = vld [vmem:[%s10] sm:$0xff]
    %v6661 = vld [vmem:[%s10 + $0x8] sm:$0xff]
    %v6662 = vld [vmem:[%s10 + $0x10] sm:$0xff]
    %v6663 = vld [vmem:[%s10 + $0x18] sm:$0xff]
    %v6664 = vld [vmem:[%s10 + $0x20] sm:$0xff]
    %v6665 = vld [vmem:[%s10 + $0x28] sm:$0xff]
    %v6666 = vld [vmem:[%s11] sm:$0x3]
    %v6668 = vperm.slane %v6666, 0
    %v6669 = vperm.slane %v6666, 1
    %v6678 = vunpack.c.l.b16 %v6660
    %v6679 = vunpack.c.h.b16 %v6660
    %v6680 = vunpack.c.l.b16 %v6661
    %v6681 = vunpack.c.h.b16 %v6661
    %v6682 = vunpack.c.l.b16 %v6662
    %v6683 = vunpack.c.h.b16 %v6662
    %v6684 = vunpack.c.l.b16 %v6663
    %v6685 = vunpack.c.h.b16 %v6663
    %v6686 = vunpack.c.l.b16 %v6664
    %v6687 = vunpack.c.h.b16 %v6664
    %v6688 = vunpack.c.l.b16 %v6665
    %v6689 = vunpack.c.h.b16 %v6665
    %v6690 = vpack.c.b16 %v6680, %v6678
    %v6691 = vpack.c.b16 %v6681, %v6679
    %v6692 = vpack.c.b16 %v6684, %v6682
    %v6693 = vpack.c.b16 %v6685, %v6683
    %v6694 = vpack.c.b16 %v6688, %v6686
    %v6695 = vpack.c.b16 %v6689, %v6687
    %vm6702 = vcmask 392192
    %v6704 = vsel %vm6702, %v6659, 0
    %6706 = vmatpush.bf16.msra.mxu0 0
    %6707 = vmatpush.bf16.msra.mxu0 0
    %6708 = vmatpush.bf16.msra.mxu0 0
    %6709 = vmatpush.bf16.msra.mxu0 0
    %6710 = vmatpush.bf16.msra.mxu0 0
    %6711 = vmatpush.bf16.msra.mxu0 %v6694
    %6712 = vmatpush.bf16.msra.mxu0 %v6692
    %6713 = vmatpush.bf16.msra.mxu0 %v6690
    %6714 = vmatmul.bf16.gmra.mxu0 %v6704
    %v6715 = vpop.f32.mrf.mxu0
    %v6716 = vadd.f32 %v6668, %v6715
    %v6717 = vpop.f32.mrf.mxu0
    %6718 = vdwg.mxu0
    %6719 = vmatpush.bf16.msra.mxu0 0
    %6720 = vmatpush.bf16.msra.mxu0 0
    %6721 = vmatpush.bf16.msra.mxu0 0
    %6722 = vmatpush.bf16.msra.mxu0 0
    %6723 = vmatpush.bf16.msra.mxu0 0
    %6724 = vmatpush.bf16.msra.mxu0 %v6695
    %6725 = vmatpush.bf16.msra.mxu0 %v6693
    %6726 = vmatpush.bf16.msra.mxu0 %v6691
    %6727 = vmatmul.bf16.gmra.mxu0 %v6704
    %v6728 = vpop.f32.mrf.mxu0
    %v6729 = vadd.f32 %v6669, %v6728
    %v6730 = vpop.f32.mrf.mxu0
    %6731 = vdwg.mxu0
    %v6732 = vsub.f32 0.0, %v6716
    %v6733 = vsub.f32 0.0, %v6729
    %v6734 = vmul.f32 %v6732, 1.442695
    %v6735 = vpow.pop %v6734
    %v6736 = vmul.f32 %v6733, 1.442695
    %v6737 = vpow.pop %v6736
    %v6738 = vadd.f32 %v6735, 1.0
    %v6739 = vadd.f32 %v6737, 1.0
    %v6740 = vrcp.pop %v6738
    %v6741 = vmul.f32 %v6738, %v6740
    %v6742 = vsub.f32 1.0, %v6741
    %v6743 = vmul.f32 %v6740, %v6742
    %v6744 = vadd.f32 %v6740, %v6743
    %vm6745 = vweird.f32 %v6738
    %vm6746 = vweird.f32 %v6740
    %vm6747 = vmor %vm6745, %vm6746
    %v6748 = vsel %vm6747, %v6740, %v6744
    %v6749 = vand.u32 2147483647, %v6738
    %vm6750 = vcmp.eq.f32.partialorder %v6749, 8.507059e+37
    %v6751 = vand.u32 %v6738, 2147483648
    %v6752 = vor.u32 1.1754944e-38, %v6751
    %v6753 = vsel %vm6750, %v6752, %v6748
    %v6754 = vmul.f32 1.0, %v6753
    %v6755 = vrcp.pop %v6739
    %v6756 = vmul.f32 %v6739, %v6755
    %v6757 = vsub.f32 1.0, %v6756
    %v6758 = vmul.f32 %v6755, %v6757
    %v6759 = vadd.f32 %v6755, %v6758
    %vm6760 = vweird.f32 %v6739
    %vm6761 = vweird.f32 %v6755
    %vm6762 = vmor %vm6760, %vm6761
    %v6763 = vsel %vm6762, %v6755, %v6759
    %v6764 = vand.u32 2147483647, %v6739
    %vm6765 = vcmp.eq.f32.partialorder %v6764, 8.507059e+37
    %v6766 = vand.u32 %v6739, 2147483648
    %v6767 = vor.u32 1.1754944e-38, %v6766
    %v6768 = vsel %vm6765, %v6767, %v6763
    %v6769 = vmul.f32 1.0, %v6768
    %v6772 = vrot.slane %v6769, 6
    %v6773 = vsel %vm5739, %v6754, %v6772
    %6775 = vst [vmem:[#allocation10] sm:$0xf] %v6773
    %vm6776 = vcmask 517120
    %6777 = vst.msk [vmem:[%s13] sm:$0x3] %vm6776, %v6609
    // Predicated region
    $region66: #{vae_forward.1} parent=1 // pred_check
      _
    $region67: #{vae_forward.1} parent=1 // pred_check_branch
      %6779 = sbr.rel (0) target = $region69
    $region68: #{vae_forward.1} parent=1 // pred_region
      %6781 = vsyncadd [#allocation3], 0
      %s6783 = sshll.u32 [#allocation10], 4
      %s6784 = int_to_ptr.vmem [resolvable:$true] %s6783
      %s6785 = sshll.u32 %s12, 4
      %s6786 = int_to_ptr.hbm [resolvable:$true] %s6785
      %6788 = dma.vmem_to_hbm [thread:$0]  %s6784, 64, %s6786, [#allocation3]
    $region69: #{vae_forward.1} parent=1 // pred_fallthru
      _
    // Predicated region
    $region70: #{vae_forward.1} parent=1 // pred_check
      _
    $region71: #{vae_forward.1} parent=1 // pred_check_branch
      %6790 = sbr.rel (0) target = $region73
    $region72: #{vae_forward.1} parent=1 // pred_region
      _
    $region73: #{vae_forward.1} parent=1 // pred_fallthru
      _
    // Predicated region
    $region74: #{vae_forward.1} parent=1 // pred_check
      _
    $region75: #{vae_forward.1} parent=1 // pred_check_branch
      %6792 = sbr.rel (0) target = $region77
    $region76: #{vae_forward.1} parent=1 // pred_region
      %6794 = dma.done [#allocation3], 64
    $region77: #{vae_forward.1} parent=1 // pred_fallthru
      _
    // Predicated region
    $region78: #{vae_forward.1} parent=1 // pred_check
      _
    $region79: #{vae_forward.1} parent=1 // pred_check_branch
      %6796 = sbr.rel (0) target = $region81
    $region80: #{vae_forward.1} parent=1 // pred_region
      _
    $region81: #{vae_forward.1} parent=1 // pred_fallthru
      _
    %6797 = vsyncpa [#allocation3], 1
    %6798 = vsyncpa [#allocation4], 1
    %6799 = vsyncpa [#allocation6], 1
    %6800 = vsyncpa [#allocation9], 1

</llo_original>
